<compile_context>
chip_gen: v5e
topology: v5e:2x2
jax: 0.10.0
libtpu: 0.0.40
codegen_flags: <defaults>
</compile_context>

<pallas_src>
import functools
import math

import jax
import jax.numpy as jnp
from jax.experimental import pallas as pl
from jax.experimental.pallas import tpu as pltpu

EPS = 1e-5
LANES = 128                 # lane-dense channel padding for conv outputs
MXU_DTYPE = jnp.bfloat16    # MXU operand / inter-stage HBM dtype (f32 accum)
NB_CAP = 8                  # max images per grid step


def _bytes(shape, dtype):
    return math.prod(shape) * jnp.dtype(dtype).itemsize


def _pick_nb(n, cap=NB_CAP, min_grid=4):
    """Largest divisor of n that is <= cap, preferring grid length >= min_grid
    (so both v7x TensorCores get >= 2 pipelined steps when n is large)."""
    divs = [d for d in range(1, min(cap, n) + 1) if n % d == 0]
    good = [d for d in divs if n // d >= min_grid]
    return max(good) if good else max(divs)


def _cparams(block_bytes, scratch_bytes):
    """Per-call compiler params: VMEM budget re-derived from actual block and
    scratch sizes (double-buffered blocks + headroom), clamped for v7x."""
    vmem = 2 * block_bytes + scratch_bytes + (2 << 20)
    vmem = int(max(16 << 20, min(vmem, 48 << 20)))
    return pltpu.CompilerParams(dimension_semantics=("parallel",),
                                vmem_limit_bytes=vmem)


# --------------------------- in-kernel helpers ---------------------------
def _zero_halo(scr, NB, H, W, C):
    """Zero only the 1-wide halo of the (NB, H+2, W+2, C) padded scratch.
    Re-zeroed every grid step (see header note on v7x megacore safety)."""
    scr[:, 0:1, :, :] = jnp.zeros((NB, 1, W + 2, C), MXU_DTYPE)
    scr[:, H + 1:H + 2, :, :] = jnp.zeros((NB, 1, W + 2, C), MXU_DTYPE)
    scr[:, :, 0:1, :] = jnp.zeros((NB, H + 2, 1, C), MXU_DTYPE)
    scr[:, :, W + 1:W + 2, :] = jnp.zeros((NB, H + 2, 1, C), MXU_DTYPE)


def _build_patch(scr, patch, NB, H, W, C):
    """(NB,H+2,W+2,C) padded scratch -> (NB*H*W, 9*C) im2col matrix.

    When C is lane-aligned (conv2: C=128) each tap is written straight into
    its lane-aligned K-slice of the preallocated patch scratch, killing the
    jnp.concatenate relayout copy.  Small unaligned C falls back to concat.
    """
    M = NB * H * W
    if C % LANES == 0:
        for kh in range(3):
            for kw in range(3):
                t = kh * 3 + kw
                patch[:, t * C:(t + 1) * C] = (
                    scr[:, kh:kh + H, kw:kw + W, :].reshape(M, C))
    else:
        patch[...] = jnp.concatenate(
            [scr[:, kh:kh + H, kw:kw + W, :].reshape(M, C)
             for kh in range(3) for kw in range(3)], axis=-1)
    return patch[...]


def _sum_sumsq(x):
    """Per-channel (sum, sum of squares) partials in f32 -> (2, C)."""
    return jnp.concatenate(
        [jnp.sum(x, axis=0, keepdims=True),
         jnp.sum(x * x, axis=0, keepdims=True)], axis=0)


# ------------------------------- kernels --------------------------------
def _stage_a_kernel(*refs, NB, H, W, Cin, Cp, downsample):
    """conv1 (+ fused 1x1 downsample) as ONE wide MXU matmul + BN partials."""
    if downsample:
        x_ref, w_ref, h1_ref, idn_ref, s_ref, scr, patch = refs
    else:
        x_ref, w_ref, h1_ref, s_ref, scr, patch = refs

    _zero_halo(scr, NB, H, W, Cin)
    scr[:, 1:H + 1, 1:W + 1, :] = x_ref[...]          # fused spatial zero-pad
    p = _build_patch(scr, patch, NB, H, W, Cin)       # (NB*H*W, 9*Cin) bf16
    out = jnp.dot(p, w_ref[...], preferred_element_type=jnp.float32)
    s_ref[0] = _sum_sumsq(out)                        # f32 stats -> exact BN
    h1_ref[...] = out[:, :Cp].astype(h1_ref.dtype)
    if downsample:
        idn_ref[...] = out[:, Cp:].astype(idn_ref.dtype)
    # Conv biases are omitted on purpose: a per-channel bias added before
    # training-mode BatchNorm is exactly cancelled by the mean subtraction.


def _stage_b_kernel(h1_ref, sc1_ref, sh1_ref, w2_ref, h2_ref, s2_ref, scr,
                    patch, *, NB, H, W, Cp):
    """BN1 (folded FMA, f32) + ReLU + conv2 + BN2 partial statistics."""
    _zero_halo(scr, NB, H, W, Cp)
    a1 = jnp.maximum(h1_ref[...] * sc1_ref[...] + sh1_ref[...], 0.0)   # f32
    scr[:, 1:H + 1, 1:W + 1, :] = a1.reshape(NB, H, W, Cp).astype(MXU_DTYPE)
    p = _build_patch(scr, patch, NB, H, W, Cp)        # (NB*H*W, 9*Cp) bf16
    h2 = jnp.dot(p, w2_ref[...], preferred_element_type=jnp.float32)
    s2_ref[0] = _sum_sumsq(h2)
    h2_ref[...] = h2.astype(h2_ref.dtype)


def _stage_c_kernel(*refs, downsample):
    """BN2 + residual add (+ downsample BN) + ReLU, lane-dense output slab."""
    if downsample:
        h2_ref, sc2_ref, sh2_ref, idn_ref, scd_ref, shd_ref, o_ref = refs
        idn = idn_ref[...] * scd_ref[...] + shd_ref[...]
    else:
        h2_ref, sc2_ref, sh2_ref, xpad_ref, o_ref = refs
        idn = xpad_ref[...]                           # pre-padded in wrapper
    o_ref[...] = jnp.maximum(
        h2_ref[...] * sc2_ref[...] + sh2_ref[...] + idn, 0.0)


# ------------------------------- wrapper ---------------------------------
def _prep_w_a(w1, wd, Cin, Cp, downsample):
    """torch (Cout,Cin,3,3) [+ (Cout,Cin,1,1)] -> (9*Cin, Cp or 2*Cp) bf16.

    The 1x1 downsample conv is fused as extra output columns whose weights
    live only in the center-tap (kh=1,kw=1) K rows, so a single MXU pass
    yields both conv1 and the identity projection (256-wide on v6e/v7x)."""
    cout = w1.shape[0]
    wt = jnp.transpose(w1, (2, 3, 1, 0)).astype(jnp.float32)      # (3,3,Cin,Cout)
    wt = jnp.pad(wt, ((0, 0), (0, 0), (0, 0), (0, Cp - cout)))
    w = wt.reshape(9 * Cin, Cp)
    if downsample:
        wdm = jnp.transpose(wd[:, :, 0, 0], (1, 0)).astype(jnp.float32)  # (Cin,Cout)
        wdm = jnp.pad(wdm, ((0, 0), (0, Cp - cout)))
        wd_cols = jnp.zeros((9 * Cin, Cp), jnp.float32)
        wd_cols = wd_cols.at[4 * Cin:5 * Cin, :].set(wdm)   # center tap rows
        w = jnp.concatenate([w, wd_cols], axis=-1)           # (9*Cin, 2*Cp)
    return w.astype(MXU_DTYPE)


def _prep_w2(w2, Cp):
    cout, cin = w2.shape[0], w2.shape[1]
    wt = jnp.transpose(w2, (2, 3, 1, 0)).astype(jnp.float32)     # (3,3,cin,cout)
    wt = jnp.pad(wt, ((0, 0), (0, 0), (0, Cp - cin), (0, Cp - cout)))
    return wt.reshape(9 * Cp, Cp).astype(MXU_DTYPE)


def _pad_vec(v, cp):
    return jnp.pad(v.astype(jnp.float32), (0, cp - v.shape[0]))


def _bn_fold(partial_stats, count, gamma, beta, cp):
    """Global training-mode BN -> per-channel (scale, shift) FMA, all f32."""
    s = jnp.sum(partial_stats, axis=0)                 # (2, cp)
    mean = s[0] / count
    var = jnp.maximum(s[1] / count - mean * mean, 0.0)
    scale = _pad_vec(gamma, cp) * jax.lax.rsqrt(var + EPS)
    shift = _pad_vec(beta, cp) - mean * scale
    return scale.reshape(1, cp), shift.reshape(1, cp)


def residual_block_forward(x_nchw, params):
    """Pallas ResidualBlock forward (training-mode BN). x: (N,Cin,H,W) f32."""
    N, Cin, H, W = x_nchw.shape
    Cout = params["w1"].shape[0]
    assert Cin <= LANES and Cout <= LANES
    Cp = LANES
    downsample = Cin != Cout
    cnt = float(N * H * W)

    NB = _pick_nb(N)
    G = N // NB
    M = NB * H * W
    WA = 2 * Cp if downsample else Cp            # stage-A fused output width

    x_nhwc = jnp.transpose(x_nchw, (0, 2, 3, 1)).astype(jnp.float32)
    x_bf = x_nhwc.astype(MXU_DTYPE)              # bf16 input for stage A

    wa = _prep_w_a(params["w1"], params.get("wd"), Cin, Cp, downsample)
    w2 = _prep_w2(params["w2"], Cp)

    # ---- stage A: conv1 (+ fused 1x1 downsample) raw + BN partial stats ----
    a_in_specs = [pl.BlockSpec((NB, H, W, Cin), lambda i: (i, 0, 0, 0)),
                  pl.BlockSpec((9 * Cin, WA), lambda i: (0, 0))]
    a_out_shape = [jax.ShapeDtypeStruct((N * H * W, Cp), MXU_DTYPE)]
    a_out_specs = [pl.BlockSpec((M, Cp), lambda i: (i, 0))]
    if downsample:
        a_out_shape.append(jax.ShapeDtypeStruct((N * H * W, Cp), MXU_DTYPE))
        a_out_specs.append(pl.BlockSpec((M, Cp), lambda i: (i, 0)))
    a_out_shape.append(jax.ShapeDtypeStruct((G, 2, WA), jnp.float32))
    a_out_specs.append(pl.BlockSpec((1, 2, WA), lambda i: (i, 0, 0)))
    a_scratch = [pltpu.VMEM((NB, H + 2, W + 2, Cin), MXU_DTYPE),
                 pltpu.VMEM((M, 9 * Cin), MXU_DTYPE)]
    a_blk = (_bytes((NB, H, W, Cin), MXU_DTYPE) + _bytes((9 * Cin, WA), MXU_DTYPE)
             + (2 if downsample else 1) * _bytes((M, Cp), MXU_DTYPE)
             + _bytes((1, 2, WA), jnp.float32))
    a_scr = (_bytes((NB, H + 2, W + 2, Cin), MXU_DTYPE)
             + _bytes((M, 9 * Cin), MXU_DTYPE))
    flops_a = 2 * N * H * W * (9 * Cin) * WA

    a_out = pl.pallas_call(
        functools.partial(_stage_a_kernel, NB=NB, H=H, W=W, Cin=Cin, Cp=Cp,
                          downsample=downsample),
        out_shape=tuple(a_out_shape),
        grid_spec=pltpu.PrefetchScalarGridSpec(
            num_scalar_prefetch=0, grid=(G,),
            in_specs=a_in_specs, out_specs=a_out_specs,
            scratch_shapes=a_scratch),
        compiler_params=_cparams(a_blk, a_scr),
        cost_estimate=pl.CostEstimate(flops=flops_a, transcendentals=0,
                                      bytes_accessed=G * a_blk),
    )(x_bf, wa)
    if downsample:
        h1_raw, idn_raw, s_all = a_out
        s1, sd = s_all[:, :, :Cp], s_all[:, :, Cp:]
    else:
        h1_raw, s_all = a_out
        s1 = s_all

    sc1, sh1 = _bn_fold(s1, cnt, params["g1"], params["be1"], Cp)

    # ---- stage B: BN1 + ReLU + conv2 raw + BN2 partial stats ----
    b_in_specs = [pl.BlockSpec((M, Cp), lambda i: (i, 0)),
                  pl.BlockSpec((1, Cp), lambda i: (0, 0)),
                  pl.BlockSpec((1, Cp), lambda i: (0, 0)),
                  pl.BlockSpec((9 * Cp, Cp), lambda i: (0, 0))]
    b_out_shape = (jax.ShapeDtypeStruct((N * H * W, Cp), MXU_DTYPE),
                   jax.ShapeDtypeStruct((G, 2, Cp), jnp.float32))
    b_out_specs = [pl.BlockSpec((M, Cp), lambda i: (i, 0)),
                   pl.BlockSpec((1, 2, Cp), lambda i: (i, 0, 0))]
    b_scratch = [pltpu.VMEM((NB, H + 2, W + 2, Cp), MXU_DTYPE),
                 pltpu.VMEM((M, 9 * Cp), MXU_DTYPE)]
    b_blk = (2 * _bytes((M, Cp), MXU_DTYPE) + 2 * _bytes((1, Cp), jnp.float32)
             + _bytes((9 * Cp, Cp), MXU_DTYPE) + _bytes((1, 2, Cp), jnp.float32))
    b_scr = (_bytes((NB, H + 2, W + 2, Cp), MXU_DTYPE)
             + _bytes((M, 9 * Cp), MXU_DTYPE))
    flops_b = 2 * N * H * W * (9 * Cp) * Cp + 4 * N * H * W * Cp

    h2_raw, s2 = pl.pallas_call(
        functools.partial(_stage_b_kernel, NB=NB, H=H, W=W, Cp=Cp),
        out_shape=b_out_shape,
        grid_spec=pltpu.PrefetchScalarGridSpec(
            num_scalar_prefetch=0, grid=(G,),
            in_specs=b_in_specs, out_specs=b_out_specs,
            scratch_shapes=b_scratch),
        compiler_params=_cparams(b_blk, b_scr),
        cost_estimate=pl.CostEstimate(flops=flops_b, transcendentals=0,
                                      bytes_accessed=G * b_blk),
    )(h1_raw, sc1, sh1, w2)

    sc2, sh2 = _bn_fold(s2, cnt, params["g2"], params["be2"], Cp)

    # ---- stage C: BN2 + residual (+ downsample BN) + ReLU ----
    if downsample:
        scd, shd = _bn_fold(sd, cnt, params["gd"], params["bed"], Cp)
        c_in = [h2_raw, sc2, sh2, idn_raw, scd, shd]
        c_in_specs = [pl.BlockSpec((M, Cp), lambda i: (i, 0)),
                      pl.BlockSpec((1, Cp), lambda i: (0, 0)),
                      pl.BlockSpec((1, Cp), lambda i: (0, 0)),
                      pl.BlockSpec((M, Cp), lambda i: (i, 0)),
                      pl.BlockSpec((1, Cp), lambda i: (0, 0)),
                      pl.BlockSpec((1, Cp), lambda i: (0, 0))]
        c_blk = (2 * _bytes((M, Cp), MXU_DTYPE) + _bytes((M, Cp), jnp.float32)
                 + 4 * _bytes((1, Cp), jnp.float32))
    else:
        # identity path: pre-pad x to 128 lanes ONCE (no per-step zeros+concat)
        x_pad = jnp.pad(x_nhwc.reshape(N * H * W, Cin), ((0, 0), (0, Cp - Cin)))
        c_in = [h2_raw, sc2, sh2, x_pad]
        c_in_specs = [pl.BlockSpec((M, Cp), lambda i: (i, 0)),
                      pl.BlockSpec((1, Cp), lambda i: (0, 0)),
                      pl.BlockSpec((1, Cp), lambda i: (0, 0)),
                      pl.BlockSpec((M, Cp), lambda i: (i, 0))]
        c_blk = (_bytes((M, Cp), MXU_DTYPE) + 2 * _bytes((M, Cp), jnp.float32)
                 + 2 * _bytes((1, Cp), jnp.float32))
    flops_c = 8 * N * H * W * Cp

    out_p = pl.pallas_call(
        functools.partial(_stage_c_kernel, downsample=downsample),
        out_shape=jax.ShapeDtypeStruct((N * H * W, Cp), jnp.float32),
        grid_spec=pltpu.PrefetchScalarGridSpec(
            num_scalar_prefetch=0, grid=(G,),
            in_specs=c_in_specs,
            out_specs=pl.BlockSpec((M, Cp), lambda i: (i, 0))),
        compiler_params=_cparams(c_blk, 0),
        cost_estimate=pl.CostEstimate(flops=flops_c, transcendentals=0,
                                      bytes_accessed=G * c_blk),
    )(*c_in)

    out = out_p.reshape(N, H, W, Cp)[..., :Cout]      # drop lane padding
    return jnp.transpose(out, (0, 3, 1, 2))           # back to NCHW
    # TODO(synk): BatchNorm running_mean/running_var in-place updates (training
    # side effect) are not modeled; they do not affect the forward output.


# --------------------------- pure-JAX reference ---------------------------
def residual_block_ref(x, params):
    def conv(x, w, b=None, pad=1):
        y = jax.lax.conv_general_dilated(
            x, w, (1, 1), [(pad, pad), (pad, pad)],
            dimension_numbers=("NCHW", "OIHW", "NCHW"))
        if b is not None:
            y = y + b.reshape(1, -1, 1, 1)
        return y

    def bn(x, g, be):
        mean = jnp.mean(x, axis=(0, 2, 3), keepdims=True)
        var = jnp.mean((x - mean) ** 2, axis=(0, 2, 3), keepdims=True)
        return (x - mean) * jax.lax.rsqrt(var + EPS) * g.reshape(1, -1, 1, 1) \
               + be.reshape(1, -1, 1, 1)

    out = jax.nn.relu(bn(conv(x, params["w1"], params["b1"]), params["g1"], params["be1"]))
    out = bn(conv(out, params["w2"], params["b2"]), params["g2"], params["be2"])
    if params["w1"].shape[0] != params["w1"].shape[1]:
        idn = bn(conv(x, params["wd"], None, pad=0), params["gd"], params["bed"])
    else:
        idn = x
    return jax.nn.relu(out + idn)


if __name__ == "__main__":
    key = jax.random.PRNGKey(0)

    def make_params(cin, cout, k):
        ks = jax.random.split(k, 10)
        p = dict(
            w1=jax.random.normal(ks[0], (cout, cin, 3, 3), jnp.float32) * 0.1,
            b1=jax.random.normal(ks[1], (cout,), jnp.float32) * 0.1,  # cancelled by BN
            g1=1.0 + 0.1 * jax.random.normal(ks[2], (cout,), jnp.float32),
            be1=0.1 * jax.random.normal(ks[3], (cout,), jnp.float32),
            w2=jax.random.normal(ks[4], (cout, cout, 3, 3), jnp.float32) * 0.1,
            b2=jax.random.normal(ks[5], (cout,), jnp.float32) * 0.1,  # cancelled by BN
            g2=1.0 + 0.1 * jax.random.normal(ks[6], (cout,), jnp.float32),
            be2=0.1 * jax.random.normal(ks[7], (cout,), jnp.float32),
        )
        if cin != cout:
            p["wd"] = jax.random.normal(ks[8], (cout, cin, 1, 1), jnp.float32) * 0.1
            p["gd"] = 1.0 + 0.1 * jax.random.normal(ks[9], (cout,), jnp.float32)
            p["bed"] = jnp.zeros((cout,), jnp.float32)
        return p

    N, H, W = 2, 16, 16
    for name, cin, cout in [("downsample", 4, 8), ("identity", 8, 8)]:
        kp, kx, key = jax.random.split(key, 3)
        params = make_params(cin, cout, kp)
        x = jax.random.normal(kx, (N, cin, H, W), jnp.float32)

        out = residual_block_forward(x, params)
        jax.block_until_ready(out)
        ref = residual_block_ref(x, params)

        assert out.shape == (N, cout, H, W), (name, out.shape)
        max_err = float(jnp.max(jnp.abs(out - ref)))
        # Tolerance accounts for bf16 MXU operands (f32 accumulation + f32 BN
        # statistics keep the systematic error well below this).
        assert jnp.allclose(out, ref, atol=5e-2, rtol=5e-2), \
            f"{name}: max abs err {max_err}"

    print("KERNEL_OK")
</pallas_src>

<mosaic_0001>
module attributes {stable_mosaic.version = 11 : i64} {
  func.func @_stage_a_kernel(%arg0: i32, %arg1: memref<2x16x16x4xbf16, #tpu.memory_space<vmem>>, %arg2: memref<36x256xbf16, #tpu.memory_space<vmem>>, %arg3: memref<512x128xbf16, #tpu.memory_space<vmem>>, %arg4: memref<512x128xbf16, #tpu.memory_space<vmem>>, %arg5: memref<1x2x256xf32, #tpu.memory_space<vmem>>, %arg6: memref<2x18x18x4xbf16, #tpu.memory_space<vmem>>, %arg7: memref<512x36xbf16, #tpu.memory_space<vmem>>) attributes {dimension_semantics = [#tpu.dimension_semantics<parallel>], iteration_bounds = array<i64: 1>, scalar_prefetch = 0 : i64, scratch_operands = 2 : i64, tpu.core_type = #tpu.core_type<tc>, window_params = [{transform_indices = @transform_0, window_bounds = array<i64: 2, 16, 16, 4>}, {pipeline_mode = #tpu.pipeline_mode<synchronous>, transform_indices = @transform_1, window_bounds = array<i64: 36, 256>}, {transform_indices = @transform_2, window_bounds = array<i64: 512, 128>}, {transform_indices = @transform_3, window_bounds = array<i64: 512, 128>}, {transform_indices = @transform_4, window_bounds = array<i64: 1, 2, 256>}]} {
    %cst = arith.constant 0.000000e+00 : bf16
    %0 = vector.broadcast %cst : bf16 to vector<2x1x18x4xbf16>
    %c0 = arith.constant 0 : index
    %c0_0 = arith.constant 0 : index
    %c0_1 = arith.constant 0 : index
    %c0_2 = arith.constant 0 : index
    %1 = vector.load %arg6[%c0, %c0_0, %c0_1, %c0_2] : memref<2x18x18x4xbf16, #tpu.memory_space<vmem>>, vector<2x1x18x4xbf16>
    tpu.vector_store %arg6[%c0, %c0_0, %c0_1, %c0_2], %0 {strides = array<i32>} : memref<2x18x18x4xbf16, #tpu.memory_space<vmem>>, vector<2x1x18x4xbf16>,
    %cst_3 = arith.constant 0.000000e+00 : bf16
    %2 = vector.broadcast %cst_3 : bf16 to vector<2x1x18x4xbf16>
    %c0_4 = arith.constant 0 : index
    %c17 = arith.constant 17 : index
    %c0_5 = arith.constant 0 : index
    %c0_6 = arith.constant 0 : index
    %3 = vector.load %arg6[%c0_4, %c17, %c0_5, %c0_6] : memref<2x18x18x4xbf16, #tpu.memory_space<vmem>>, vector<2x1x18x4xbf16>
    tpu.vector_store %arg6[%c0_4, %c17, %c0_5, %c0_6], %2 {strides = array<i32>} : memref<2x18x18x4xbf16, #tpu.memory_space<vmem>>, vector<2x1x18x4xbf16>,
    %cst_7 = arith.constant 0.000000e+00 : bf16
    %4 = vector.broadcast %cst_7 : bf16 to vector<2x18x1x4xbf16>
    %c0_8 = arith.constant 0 : index
    %c0_9 = arith.constant 0 : index
    %c0_10 = arith.constant 0 : index
    %c0_11 = arith.constant 0 : index
    %5 = vector.load %arg6[%c0_8, %c0_9, %c0_10, %c0_11] : memref<2x18x18x4xbf16, #tpu.memory_space<vmem>>, vector<2x18x1x4xbf16>
    tpu.vector_store %arg6[%c0_8, %c0_9, %c0_10, %c0_11], %4 {strides = array<i32>} : memref<2x18x18x4xbf16, #tpu.memory_space<vmem>>, vector<2x18x1x4xbf16>,
    %cst_12 = arith.constant 0.000000e+00 : bf16
    %6 = vector.broadcast %cst_12 : bf16 to vector<2x18x1x4xbf16>
    %c0_13 = arith.constant 0 : index
    %c0_14 = arith.constant 0 : index
    %c17_15 = arith.constant 17 : index
    %c0_16 = arith.constant 0 : index
    %7 = vector.load %arg6[%c0_13, %c0_14, %c17_15, %c0_16] : memref<2x18x18x4xbf16, #tpu.memory_space<vmem>>, vector<2x18x1x4xbf16>
    tpu.vector_store %arg6[%c0_13, %c0_14, %c17_15, %c0_16], %6 {strides = array<i32>} : memref<2x18x18x4xbf16, #tpu.memory_space<vmem>>, vector<2x18x1x4xbf16>,
    %c0_17 = arith.constant 0 : index
    %c0_18 = arith.constant 0 : index
    %c0_19 = arith.constant 0 : index
    %c0_20 = arith.constant 0 : index
    %8 = vector.load %arg1[%c0_17, %c0_18, %c0_19, %c0_20] : memref<2x16x16x4xbf16, #tpu.memory_space<vmem>>, vector<2x16x16x4xbf16>
    %c0_21 = arith.constant 0 : index
    %c1 = arith.constant 1 : index
    %c1_22 = arith.constant 1 : index
    %c0_23 = arith.constant 0 : index
    %9 = vector.load %arg6[%c0_21, %c1, %c1_22, %c0_23] : memref<2x18x18x4xbf16, #tpu.memory_space<vmem>>, vector<2x16x16x4xbf16>
    tpu.vector_store %arg6[%c0_21, %c1, %c1_22, %c0_23], %8 {strides = array<i32>} : memref<2x18x18x4xbf16, #tpu.memory_space<vmem>>, vector<2x16x16x4xbf16>,
    %c0_24 = arith.constant 0 : index
    %c0_25 = arith.constant 0 : index
    %c0_26 = arith.constant 0 : index
    %c0_27 = arith.constant 0 : index
    %10 = vector.load %arg6[%c0_24, %c0_25, %c0_26, %c0_27] : memref<2x18x18x4xbf16, #tpu.memory_space<vmem>>, vector<2x16x16x4xbf16>
    %11 = vector.shape_cast %10 : vector<2x16x16x4xbf16> to vector<512x4xbf16>
    %c0_28 = arith.constant 0 : index
    %c0_29 = arith.constant 0 : index
    %c1_30 = arith.constant 1 : index
    %c0_31 = arith.constant 0 : index
    %12 = vector.load %arg6[%c0_28, %c0_29, %c1_30, %c0_31] : memref<2x18x18x4xbf16, #tpu.memory_space<vmem>>, vector<2x16x16x4xbf16>
    %13 = vector.shape_cast %12 : vector<2x16x16x4xbf16> to vector<512x4xbf16>
    %c0_32 = arith.constant 0 : index
    %c0_33 = arith.constant 0 : index
    %c2 = arith.constant 2 : index
    %c0_34 = arith.constant 0 : index
    %14 = vector.load %arg6[%c0_32, %c0_33, %c2, %c0_34] : memref<2x18x18x4xbf16, #tpu.memory_space<vmem>>, vector<2x16x16x4xbf16>
    %15 = vector.shape_cast %14 : vector<2x16x16x4xbf16> to vector<512x4xbf16>
    %c0_35 = arith.constant 0 : index
    %c1_36 = arith.constant 1 : index
    %c0_37 = arith.constant 0 : index
    %c0_38 = arith.constant 0 : index
    %16 = vector.load %arg6[%c0_35, %c1_36, %c0_37, %c0_38] : memref<2x18x18x4xbf16, #tpu.memory_space<vmem>>, vector<2x16x16x4xbf16>
    %17 = vector.shape_cast %16 : vector<2x16x16x4xbf16> to vector<512x4xbf16>
    %c0_39 = arith.constant 0 : index
    %c1_40 = arith.constant 1 : index
    %c1_41 = arith.constant 1 : index
    %c0_42 = arith.constant 0 : index
    %18 = vector.load %arg6[%c0_39, %c1_40, %c1_41, %c0_42] : memref<2x18x18x4xbf16, #tpu.memory_space<vmem>>, vector<2x16x16x4xbf16>
    %19 = vector.shape_cast %18 : vector<2x16x16x4xbf16> to vector<512x4xbf16>
    %c0_43 = arith.constant 0 : index
    %c1_44 = arith.constant 1 : index
    %c2_45 = arith.constant 2 : index
    %c0_46 = arith.constant 0 : index
    %20 = vector.load %arg6[%c0_43, %c1_44, %c2_45, %c0_46] : memref<2x18x18x4xbf16, #tpu.memory_space<vmem>>, vector<2x16x16x4xbf16>
    %21 = vector.shape_cast %20 : vector<2x16x16x4xbf16> to vector<512x4xbf16>
    %c0_47 = arith.constant 0 : index
    %c2_48 = arith.constant 2 : index
    %c0_49 = arith.constant 0 : index
    %c0_50 = arith.constant 0 : index
    %22 = vector.load %arg6[%c0_47, %c2_48, %c0_49, %c0_50] : memref<2x18x18x4xbf16, #tpu.memory_space<vmem>>, vector<2x16x16x4xbf16>
    %23 = vector.shape_cast %22 : vector<2x16x16x4xbf16> to vector<512x4xbf16>
    %c0_51 = arith.constant 0 : index
    %c2_52 = arith.constant 2 : index
    %c1_53 = arith.constant 1 : index
    %c0_54 = arith.constant 0 : index
    %24 = vector.load %arg6[%c0_51, %c2_52, %c1_53, %c0_54] : memref<2x18x18x4xbf16, #tpu.memory_space<vmem>>, vector<2x16x16x4xbf16>
    %25 = vector.shape_cast %24 : vector<2x16x16x4xbf16> to vector<512x4xbf16>
    %c0_55 = arith.constant 0 : index
    %c2_56 = arith.constant 2 : index
    %c2_57 = arith.constant 2 : index
    %c0_58 = arith.constant 0 : index
    %26 = vector.load %arg6[%c0_55, %c2_56, %c2_57, %c0_58] : memref<2x18x18x4xbf16, #tpu.memory_space<vmem>>, vector<2x16x16x4xbf16>
    %27 = vector.shape_cast %26 : vector<2x16x16x4xbf16> to vector<512x4xbf16>
    %28 = tpu.concatenate %11, %13, %15, %17, %19, %21, %23, %25, %27 in 1 : vector<512x4xbf16>, vector<512x4xbf16>, vector<512x4xbf16>, vector<512x4xbf16>, vector<512x4xbf16>, vector<512x4xbf16>, vector<512x4xbf16>, vector<512x4xbf16>, vector<512x4xbf16> -> vector<512x36xbf16>
    %c0_59 = arith.constant 0 : index
    %c0_60 = arith.constant 0 : index
    %29 = vector.load %arg7[%c0_59, %c0_60] : memref<512x36xbf16, #tpu.memory_space<vmem>>, vector<512x36xbf16>
    tpu.vector_store %arg7[%c0_59, %c0_60], %28 {strides = array<i32>} : memref<512x36xbf16, #tpu.memory_space<vmem>>, vector<512x36xbf16>,
    %c0_61 = arith.constant 0 : index
    %c0_62 = arith.constant 0 : index
    %30 = vector.load %arg7[%c0_61, %c0_62] : memref<512x36xbf16, #tpu.memory_space<vmem>>, vector<512x36xbf16>
    %c0_63 = arith.constant 0 : index
    %c0_64 = arith.constant 0 : index
    %31 = vector.load %arg2[%c0_63, %c0_64] : memref<36x256xbf16, #tpu.memory_space<vmem>>, vector<36x256xbf16>
    %cst_65 = arith.constant dense<0.000000e+00> : vector<512x256xf32>
    %32 = tpu.matmul %30, %31, %cst_65 {dimension_numbers = #tpu.dot_dimension_numbers<[1], [0], [0], [1], [0, 0, 1, 1], [], []>} : vector<512x36xbf16>, vector<36x256xbf16>, vector<512x256xf32> -> vector<512x256xf32>
    %cst_66 = arith.constant dense<0.000000e+00> : vector<256xf32>
    %33 = vector.multi_reduction <add>, %32, %cst_66 [0] : vector<512x256xf32> to vector<256xf32>
    %34 = vector.shape_cast %33 : vector<256xf32> to vector<1x256xf32>
    %35 = arith.mulf %32, %32 : vector<512x256xf32>
    %cst_67 = arith.constant dense<0.000000e+00> : vector<256xf32>
    %36 = vector.multi_reduction <add>, %35, %cst_67 [0] : vector<512x256xf32> to vector<256xf32>
    %37 = vector.shape_cast %36 : vector<256xf32> to vector<1x256xf32>
    %38 = tpu.concatenate %34, %37 in 0 : vector<1x256xf32>, vector<1x256xf32> -> vector<2x256xf32>
    %c0_68 = arith.constant 0 : index
    %c0_69 = arith.constant 0 : index
    %c0_70 = arith.constant 0 : index
    %39 = vector.load %arg5[%c0_68, %c0_69, %c0_70] : memref<1x2x256xf32, #tpu.memory_space<vmem>>, vector<1x2x256xf32>
    %40 = vector.shape_cast %39 : vector<1x2x256xf32> to vector<2x256xf32>
    %41 = vector.shape_cast %38 : vector<2x256xf32> to vector<1x2x256xf32>
    tpu.vector_store %arg5[%c0_68, %c0_69, %c0_70], %41 {strides = array<i32>} : memref<1x2x256xf32, #tpu.memory_space<vmem>>, vector<1x2x256xf32>,
    %42 = vector.extract_strided_slice %32 {offsets = [0, 0], sizes = [512, 128], strides = [1, 1]} : vector<512x256xf32> to vector<512x128xf32>
    %43 = arith.truncf %42 : vector<512x128xf32> to vector<512x128xbf16>
    %c0_71 = arith.constant 0 : index
    %c0_72 = arith.constant 0 : index
    %44 = vector.load %arg3[%c0_71, %c0_72] : memref<512x128xbf16, #tpu.memory_space<vmem>>, vector<512x128xbf16>
    tpu.vector_store %arg3[%c0_71, %c0_72], %43 {strides = array<i32>} : memref<512x128xbf16, #tpu.memory_space<vmem>>, vector<512x128xbf16>,
    %45 = vector.extract_strided_slice %32 {offsets = [0, 128], sizes = [512, 128], strides = [1, 1]} : vector<512x256xf32> to vector<512x128xf32>
    %46 = arith.truncf %45 : vector<512x128xf32> to vector<512x128xbf16>
    %c0_73 = arith.constant 0 : index
    %c0_74 = arith.constant 0 : index
    %47 = vector.load %arg4[%c0_73, %c0_74] : memref<512x128xbf16, #tpu.memory_space<vmem>>, vector<512x128xbf16>
    tpu.vector_store %arg4[%c0_73, %c0_74], %46 {strides = array<i32>} : memref<512x128xbf16, #tpu.memory_space<vmem>>, vector<512x128xbf16>,
    return
  }
  func.func @transform_0(%arg0: i32) -> (i32, i32, i32, i32) {
    %c0_i32 = arith.constant 0 : i32
    %c0_i32_0 = arith.constant 0 : i32
    %c0_i32_1 = arith.constant 0 : i32
    %c0_i32_2 = arith.constant 0 : i32
    return %arg0, %c0_i32, %c0_i32_0, %c0_i32_1 : i32, i32, i32, i32
  }
  func.func @transform_1(%arg0: i32) -> (i32, i32) {
    %c0_i32 = arith.constant 0 : i32
    %c0_i32_0 = arith.constant 0 : i32
    %c0_i32_1 = arith.constant 0 : i32
    return %c0_i32, %c0_i32_0 : i32, i32
  }
  func.func @transform_2(%arg0: i32) -> (i32, i32) {
    %c0_i32 = arith.constant 0 : i32
    %c0_i32_0 = arith.constant 0 : i32
    return %arg0, %c0_i32 : i32, i32
  }
  func.func @transform_3(%arg0: i32) -> (i32, i32) {
    %c0_i32 = arith.constant 0 : i32
    %c0_i32_0 = arith.constant 0 : i32
    return %arg0, %c0_i32 : i32, i32
  }
  func.func @transform_4(%arg0: i32) -> (i32, i32, i32) {
    %c0_i32 = arith.constant 0 : i32
    %c0_i32_0 = arith.constant 0 : i32
    %c0_i32_1 = arith.constant 0 : i32
    return %arg0, %c0_i32, %c0_i32_0 : i32, i32, i32
  }
}

</mosaic_0001>

<llo_original>
// kernel: tpu_custom_call.1
$region0: #{tpu_custom_call.1}
  #allocation0 [shape = 'u32[]', space=smem, size = 0x4, offset = 0x4, fixed_abs, tag = 'smem constant byte address 0x4 - core index']
  #allocation1 [shape = 'u32[72,128]{1,0:T(1,128)}', space=vmem, size = 0x9000, scoped, tag = 'internal scratch']
  #allocation2 [shape = 'bf16[2,18,18,4]{3,2,1,0:T(8,128)(2,1)}', space=vmem, size = 0x36000, scoped, tag = 'scratch operand']
  #allocation3 [shape = 'bf16[512,36]{1,0:T(8,128)(2,1)}', space=vmem, size = 0x20000, scoped, tag = 'scratch operand']
  %s0 = inlined_call_operand.vmem [shape: bf16[2,16,16,4], index: 0, kind: input, shape index: {}]
  %s1 = inlined_call_operand.vmem [shape: bf16[36,256], index: 1, kind: input, shape index: {}]
  %s2 = inlined_call_operand.hbm [shape: bf16[512,128], index: 2, kind: output, shape index: {0}]
  %s3 = inlined_call_operand.hbm [shape: bf16[512,128], index: 3, kind: output, shape index: {1}]
  %s4 = inlined_call_operand.hbm [shape: f32[1,2,256], index: 4, kind: output, shape index: {2}]
  %5 = xla_tuple %s2, %s3, %s4
  %s6 = sld [smem:[#allocation0]]
  $region34: #{tpu_custom_call.1} parent=0
    _
  %s8 = ssub.s32 1, %s6
  %s9 = scalar_select 0, %s8, %s6
  $region1: #{tpu_custom_call.1} parent=0
    #allocation4 [shape = 'u8[131072]{0}', space=vmem, size = 0x20000, scoped, tag = 'output window, operand 0, single buffered']
    #allocation5 [shape = 's32[1]{0}', space=sflag, size = 0x4, scoped, tag = 'scoped memory for tpu_custom_call.1']
    #allocation6 [shape = 'u8[131072]{0}', space=vmem, size = 0x20000, scoped, tag = 'output window, operand 1, single buffered']
    #allocation7 [shape = 's32[1]{0}', space=sflag, size = 0x4, scoped, tag = 'scoped memory for tpu_custom_call.1']
    #allocation8 [shape = 'u8[2048]{0}', space=vmem, size = 0x800, scoped, tag = 'output window, operand 2, single buffered']
    %10 = vsyncpa [#allocation5], 0
    %11 = vsyncpa [#allocation7], 0
    // Predicated region
    $region2: #{tpu_custom_call.1} parent=1 // pred_check
      _
    $region3: #{tpu_custom_call.1} parent=1 // pred_check_branch
      %13 = sbr.rel (0) target = $region5
    $region4: #{tpu_custom_call.1} parent=1 // pred_region
      _
    $region5: #{tpu_custom_call.1} parent=1 // pred_fallthru
      _
    // Predicated region
    $region6: #{tpu_custom_call.1} parent=1 // pred_check
      _
    $region7: #{tpu_custom_call.1} parent=1 // pred_check_branch
      %15 = sbr.rel (0) target = $region9
    $region8: #{tpu_custom_call.1} parent=1 // pred_region
      _
    $region9: #{tpu_custom_call.1} parent=1 // pred_fallthru
      _
    %vm17 = vcmask 27648
    %18 = vst.msk [vmem:[#allocation2] sm:$0xf] %vm17, 0
    %19 = vst.msk [vmem:[#allocation2 + $0x4] sm:$0xf] %vm17, 0
    %vm20 = vcmask 24576
    %21 = vst.msk [vmem:[#allocation2 + $0x8] sm:$0x1] %vm20, 0
    %22 = vst.msk [vmem:[#allocation2 + $0xd8] sm:$0xf] %vm17, 0
    %23 = vst.msk [vmem:[#allocation2 + $0xdc] sm:$0xf] %vm17, 0
    %24 = vst.msk [vmem:[#allocation2 + $0xe0] sm:$0x1] %vm20, 0
    %s25 = scalar_lea.vmem [#allocation2], 204
    %26 = vst.msk [vmem:[%s25] sm:$0xf] %vm17, 0
    %27 = vst.msk [vmem:[%s25 + $0x4] sm:$0xf] %vm17, 0
    %28 = vst.msk [vmem:[%s25 + $0x8] sm:$0x1] %vm20, 0
    %29 = vst.msk [vmem:[%s25 + $0xd8] sm:$0xf] %vm17, 0
    %30 = vst.msk [vmem:[%s25 + $0xdc] sm:$0xf] %vm17, 0
    %31 = vst.msk [vmem:[%s25 + $0xe0] sm:$0x1] %vm20, 0
    %vm32 = vcmask 24576
    %vm33 = vsmask.f32 256
    %vm34 = vmand %vm32, %vm33
    %v35 = vld [vmem:[#allocation2] sm:$0x1]
    %v36 = vsel %vm34, 0, %v35
    %37 = vst [vmem:[#allocation2] sm:$0x1] %v36
    %v38 = vld [vmem:[#allocation2 + $0xc] sm:$0x1]
    %v39 = vsel %vm34, 0, %v38
    %40 = vst [vmem:[#allocation2 + $0xc] sm:$0x1] %v39
    %v41 = vld [vmem:[#allocation2 + $0x18] sm:$0x1]
    %v42 = vsel %vm34, 0, %v41
    %43 = vst [vmem:[#allocation2 + $0x18] sm:$0x1] %v42
    %v44 = vld [vmem:[#allocation2 + $0x24] sm:$0x1]
    %v45 = vsel %vm34, 0, %v44
    %46 = vst [vmem:[#allocation2 + $0x24] sm:$0x1] %v45
    %v47 = vld [vmem:[#allocation2 + $0x30] sm:$0x1]
    %v48 = vsel %vm34, 0, %v47
    %49 = vst [vmem:[#allocation2 + $0x30] sm:$0x1] %v48
    %v50 = vld [vmem:[#allocation2 + $0x3c] sm:$0x1]
    %v51 = vsel %vm34, 0, %v50
    %52 = vst [vmem:[#allocation2 + $0x3c] sm:$0x1] %v51
    %v53 = vld [vmem:[#allocation2 + $0x48] sm:$0x1]
    %v54 = vsel %vm34, 0, %v53
    %55 = vst [vmem:[#allocation2 + $0x48] sm:$0x1] %v54
    %v56 = vld [vmem:[#allocation2 + $0x54] sm:$0x1]
    %v57 = vsel %vm34, 0, %v56
    %58 = vst [vmem:[#allocation2 + $0x54] sm:$0x1] %v57
    %v59 = vld [vmem:[#allocation2 + $0x60] sm:$0x1]
    %v60 = vsel %vm34, 0, %v59
    %61 = vst [vmem:[#allocation2 + $0x60] sm:$0x1] %v60
    %v62 = vld [vmem:[#allocation2 + $0x6c] sm:$0x1]
    %v63 = vsel %vm34, 0, %v62
    %64 = vst [vmem:[#allocation2 + $0x6c] sm:$0x1] %v63
    %v65 = vld [vmem:[#allocation2 + $0x78] sm:$0x1]
    %v66 = vsel %vm34, 0, %v65
    %67 = vst [vmem:[#allocation2 + $0x78] sm:$0x1] %v66
    %v68 = vld [vmem:[#allocation2 + $0x84] sm:$0x1]
    %v69 = vsel %vm34, 0, %v68
    %70 = vst [vmem:[#allocation2 + $0x84] sm:$0x1] %v69
    %v71 = vld [vmem:[#allocation2 + $0x90] sm:$0x1]
    %v72 = vsel %vm34, 0, %v71
    %73 = vst [vmem:[#allocation2 + $0x90] sm:$0x1] %v72
    %v74 = vld [vmem:[#allocation2 + $0x9c] sm:$0x1]
    %v75 = vsel %vm34, 0, %v74
    %76 = vst [vmem:[#allocation2 + $0x9c] sm:$0x1] %v75
    %v77 = vld [vmem:[#allocation2 + $0xa8] sm:$0x1]
    %v78 = vsel %vm34, 0, %v77
    %79 = vst [vmem:[#allocation2 + $0xa8] sm:$0x1] %v78
    %v80 = vld [vmem:[#allocation2 + $0xb4] sm:$0x1]
    %v81 = vsel %vm34, 0, %v80
    %82 = vst [vmem:[#allocation2 + $0xb4] sm:$0x1] %v81
    %v83 = vld [vmem:[#allocation2 + $0xc0] sm:$0x1]
    %v84 = vsel %vm34, 0, %v83
    %85 = vst [vmem:[#allocation2 + $0xc0] sm:$0x1] %v84
    %v86 = vld [vmem:[#allocation2 + $0xcc] sm:$0x1]
    %v87 = vsel %vm34, 0, %v86
    %88 = vst [vmem:[#allocation2 + $0xcc] sm:$0x1] %v87
    %v89 = vld [vmem:[#allocation2 + $0xd8] sm:$0x1]
    %v90 = vsel %vm34, 0, %v89
    %91 = vst [vmem:[#allocation2 + $0xd8] sm:$0x1] %v90
    %v92 = vld [vmem:[#allocation2 + $0xe4] sm:$0x1]
    %v93 = vsel %vm34, 0, %v92
    %94 = vst [vmem:[#allocation2 + $0xe4] sm:$0x1] %v93
    %v95 = vld [vmem:[#allocation2 + $0xf0] sm:$0x1]
    %v96 = vsel %vm34, 0, %v95
    %97 = vst [vmem:[#allocation2 + $0xf0] sm:$0x1] %v96
    %v98 = vld [vmem:[#allocation2 + $0xfc] sm:$0x1]
    %v99 = vsel %vm34, 0, %v98
    %100 = vst [vmem:[#allocation2 + $0xfc] sm:$0x1] %v99
    %v101 = vld [vmem:[#allocation2 + $0x108] sm:$0x1]
    %v102 = vsel %vm34, 0, %v101
    %103 = vst [vmem:[#allocation2 + $0x108] sm:$0x1] %v102
    %v104 = vld [vmem:[#allocation2 + $0x114] sm:$0x1]
    %v105 = vsel %vm34, 0, %v104
    %106 = vst [vmem:[#allocation2 + $0x114] sm:$0x1] %v105
    %v107 = vld [vmem:[#allocation2 + $0x120] sm:$0x1]
    %v108 = vsel %vm34, 0, %v107
    %109 = vst [vmem:[#allocation2 + $0x120] sm:$0x1] %v108
    %v110 = vld [vmem:[#allocation2 + $0x12c] sm:$0x1]
    %v111 = vsel %vm34, 0, %v110
    %112 = vst [vmem:[#allocation2 + $0x12c] sm:$0x1] %v111
    %v113 = vld [vmem:[#allocation2 + $0x138] sm:$0x1]
    %v114 = vsel %vm34, 0, %v113
    %115 = vst [vmem:[#allocation2 + $0x138] sm:$0x1] %v114
    %v116 = vld [vmem:[#allocation2 + $0x144] sm:$0x1]
    %v117 = vsel %vm34, 0, %v116
    %118 = vst [vmem:[#allocation2 + $0x144] sm:$0x1] %v117
    %v119 = vld [vmem:[#allocation2 + $0x150] sm:$0x1]
    %v120 = vsel %vm34, 0, %v119
    %121 = vst [vmem:[#allocation2 + $0x150] sm:$0x1] %v120
    %v122 = vld [vmem:[#allocation2 + $0x15c] sm:$0x1]
    %v123 = vsel %vm34, 0, %v122
    %124 = vst [vmem:[#allocation2 + $0x15c] sm:$0x1] %v123
    %v125 = vld [vmem:[#allocation2 + $0x168] sm:$0x1]
    %v126 = vsel %vm34, 0, %v125
    %127 = vst [vmem:[#allocation2 + $0x168] sm:$0x1] %v126
    %v128 = vld [vmem:[#allocation2 + $0x174] sm:$0x1]
    %v129 = vsel %vm34, 0, %v128
    %130 = vst [vmem:[#allocation2 + $0x174] sm:$0x1] %v129
    %v131 = vld [vmem:[#allocation2 + $0x180] sm:$0x1]
    %v132 = vsel %vm34, 0, %v131
    %133 = vst [vmem:[#allocation2 + $0x180] sm:$0x1] %v132
    %v134 = vld [vmem:[#allocation2 + $0x18c] sm:$0x1]
    %v135 = vsel %vm34, 0, %v134
    %136 = vst [vmem:[#allocation2 + $0x18c] sm:$0x1] %v135
    %v137 = vld [vmem:[#allocation2 + $0x198] sm:$0x1]
    %v138 = vsel %vm34, 0, %v137
    %139 = vst [vmem:[#allocation2 + $0x198] sm:$0x1] %v138
    %v140 = vld [vmem:[#allocation2 + $0x1a4] sm:$0x1]
    %v141 = vsel %vm34, 0, %v140
    %142 = vst [vmem:[#allocation2 + $0x1a4] sm:$0x1] %v141
    %vm143 = vsmask.f32 7938
    %vm144 = vmand %vm32, %vm143
    %v145 = vld [vmem:[#allocation2 + $0x8] sm:$0x1]
    %v146 = vsel %vm144, 0, %v145
    %147 = vst [vmem:[#allocation2 + $0x8] sm:$0x1] %v146
    %v148 = vld [vmem:[#allocation2 + $0x14] sm:$0x1]
    %v149 = vsel %vm144, 0, %v148
    %150 = vst [vmem:[#allocation2 + $0x14] sm:$0x1] %v149
    %v151 = vld [vmem:[#allocation2 + $0x20] sm:$0x1]
    %v152 = vsel %vm144, 0, %v151
    %153 = vst [vmem:[#allocation2 + $0x20] sm:$0x1] %v152
    %v154 = vld [vmem:[#allocation2 + $0x2c] sm:$0x1]
    %v155 = vsel %vm144, 0, %v154
    %156 = vst [vmem:[#allocation2 + $0x2c] sm:$0x1] %v155
    %v157 = vld [vmem:[#allocation2 + $0x38] sm:$0x1]
    %v158 = vsel %vm144, 0, %v157
    %159 = vst [vmem:[#allocation2 + $0x38] sm:$0x1] %v158
    %v160 = vld [vmem:[#allocation2 + $0x44] sm:$0x1]
    %v161 = vsel %vm144, 0, %v160
    %162 = vst [vmem:[#allocation2 + $0x44] sm:$0x1] %v161
    %v163 = vld [vmem:[#allocation2 + $0x50] sm:$0x1]
    %v164 = vsel %vm144, 0, %v163
    %165 = vst [vmem:[#allocation2 + $0x50] sm:$0x1] %v164
    %v166 = vld [vmem:[#allocation2 + $0x5c] sm:$0x1]
    %v167 = vsel %vm144, 0, %v166
    %168 = vst [vmem:[#allocation2 + $0x5c] sm:$0x1] %v167
    %v169 = vld [vmem:[#allocation2 + $0x68] sm:$0x1]
    %v170 = vsel %vm144, 0, %v169
    %171 = vst [vmem:[#allocation2 + $0x68] sm:$0x1] %v170
    %v172 = vld [vmem:[#allocation2 + $0x74] sm:$0x1]
    %v173 = vsel %vm144, 0, %v172
    %174 = vst [vmem:[#allocation2 + $0x74] sm:$0x1] %v173
    %v175 = vld [vmem:[#allocation2 + $0x80] sm:$0x1]
    %v176 = vsel %vm144, 0, %v175
    %177 = vst [vmem:[#allocation2 + $0x80] sm:$0x1] %v176
    %v178 = vld [vmem:[#allocation2 + $0x8c] sm:$0x1]
    %v179 = vsel %vm144, 0, %v178
    %180 = vst [vmem:[#allocation2 + $0x8c] sm:$0x1] %v179
    %v181 = vld [vmem:[#allocation2 + $0x98] sm:$0x1]
    %v182 = vsel %vm144, 0, %v181
    %183 = vst [vmem:[#allocation2 + $0x98] sm:$0x1] %v182
    %v184 = vld [vmem:[#allocation2 + $0xa4] sm:$0x1]
    %v185 = vsel %vm144, 0, %v184
    %186 = vst [vmem:[#allocation2 + $0xa4] sm:$0x1] %v185
    %v187 = vld [vmem:[#allocation2 + $0xb0] sm:$0x1]
    %v188 = vsel %vm144, 0, %v187
    %189 = vst [vmem:[#allocation2 + $0xb0] sm:$0x1] %v188
    %v190 = vld [vmem:[#allocation2 + $0xbc] sm:$0x1]
    %v191 = vsel %vm144, 0, %v190
    %192 = vst [vmem:[#allocation2 + $0xbc] sm:$0x1] %v191
    %v193 = vld [vmem:[#allocation2 + $0xc8] sm:$0x1]
    %v194 = vsel %vm144, 0, %v193
    %195 = vst [vmem:[#allocation2 + $0xc8] sm:$0x1] %v194
    %v196 = vld [vmem:[#allocation2 + $0xd4] sm:$0x1]
    %v197 = vsel %vm144, 0, %v196
    %198 = vst [vmem:[#allocation2 + $0xd4] sm:$0x1] %v197
    %v199 = vld [vmem:[#allocation2 + $0xe0] sm:$0x1]
    %v200 = vsel %vm144, 0, %v199
    %201 = vst [vmem:[#allocation2 + $0xe0] sm:$0x1] %v200
    %v202 = vld [vmem:[#allocation2 + $0xec] sm:$0x1]
    %v203 = vsel %vm144, 0, %v202
    %204 = vst [vmem:[#allocation2 + $0xec] sm:$0x1] %v203
    %v205 = vld [vmem:[#allocation2 + $0xf8] sm:$0x1]
    %v206 = vsel %vm144, 0, %v205
    %207 = vst [vmem:[#allocation2 + $0xf8] sm:$0x1] %v206
    %v208 = vld [vmem:[#allocation2 + $0x104] sm:$0x1]
    %v209 = vsel %vm144, 0, %v208
    %210 = vst [vmem:[#allocation2 + $0x104] sm:$0x1] %v209
    %v211 = vld [vmem:[#allocation2 + $0x110] sm:$0x1]
    %v212 = vsel %vm144, 0, %v211
    %213 = vst [vmem:[#allocation2 + $0x110] sm:$0x1] %v212
    %v214 = vld [vmem:[#allocation2 + $0x11c] sm:$0x1]
    %v215 = vsel %vm144, 0, %v214
    %216 = vst [vmem:[#allocation2 + $0x11c] sm:$0x1] %v215
    %v217 = vld [vmem:[#allocation2 + $0x128] sm:$0x1]
    %v218 = vsel %vm144, 0, %v217
    %219 = vst [vmem:[#allocation2 + $0x128] sm:$0x1] %v218
    %v220 = vld [vmem:[#allocation2 + $0x134] sm:$0x1]
    %v221 = vsel %vm144, 0, %v220
    %222 = vst [vmem:[#allocation2 + $0x134] sm:$0x1] %v221
    %v223 = vld [vmem:[#allocation2 + $0x140] sm:$0x1]
    %v224 = vsel %vm144, 0, %v223
    %225 = vst [vmem:[#allocation2 + $0x140] sm:$0x1] %v224
    %v226 = vld [vmem:[#allocation2 + $0x14c] sm:$0x1]
    %v227 = vsel %vm144, 0, %v226
    %228 = vst [vmem:[#allocation2 + $0x14c] sm:$0x1] %v227
    %v229 = vld [vmem:[#allocation2 + $0x158] sm:$0x1]
    %v230 = vsel %vm144, 0, %v229
    %231 = vst [vmem:[#allocation2 + $0x158] sm:$0x1] %v230
    %v232 = vld [vmem:[#allocation2 + $0x164] sm:$0x1]
    %v233 = vsel %vm144, 0, %v232
    %234 = vst [vmem:[#allocation2 + $0x164] sm:$0x1] %v233
    %v235 = vld [vmem:[#allocation2 + $0x170] sm:$0x1]
    %v236 = vsel %vm144, 0, %v235
    %237 = vst [vmem:[#allocation2 + $0x170] sm:$0x1] %v236
    %v238 = vld [vmem:[#allocation2 + $0x17c] sm:$0x1]
    %v239 = vsel %vm144, 0, %v238
    %240 = vst [vmem:[#allocation2 + $0x17c] sm:$0x1] %v239
    %v241 = vld [vmem:[#allocation2 + $0x188] sm:$0x1]
    %v242 = vsel %vm144, 0, %v241
    %243 = vst [vmem:[#allocation2 + $0x188] sm:$0x1] %v242
    %v244 = vld [vmem:[#allocation2 + $0x194] sm:$0x1]
    %v245 = vsel %vm144, 0, %v244
    %246 = vst [vmem:[#allocation2 + $0x194] sm:$0x1] %v245
    %v247 = vld [vmem:[#allocation2 + $0x1a0] sm:$0x1]
    %v248 = vsel %vm144, 0, %v247
    %249 = vst [vmem:[#allocation2 + $0x1a0] sm:$0x1] %v248
    %v250 = vld [vmem:[#allocation2 + $0x1ac] sm:$0x1]
    %v251 = vsel %vm144, 0, %v250
    %252 = vst [vmem:[#allocation2 + $0x1ac] sm:$0x1] %v251
    %v253 = vld [vmem:[%s0] sm:$0xf]
    %v254 = vld [vmem:[%s0 + $0x4] sm:$0xf]
    %v255 = vld [vmem:[%s0 + $0x8] sm:$0xf]
    %v256 = vld [vmem:[%s0 + $0xc] sm:$0xf]
    %v257 = vld [vmem:[%s0 + $0x10] sm:$0xf]
    %v258 = vld [vmem:[%s0 + $0x14] sm:$0xf]
    %v259 = vld [vmem:[%s0 + $0x18] sm:$0xf]
    %v260 = vld [vmem:[%s0 + $0x1c] sm:$0xf]
    %v261 = vld [vmem:[%s0 + $0x20] sm:$0xf]
    %v262 = vld [vmem:[%s0 + $0x24] sm:$0xf]
    %v263 = vld [vmem:[%s0 + $0x28] sm:$0xf]
    %v264 = vld [vmem:[%s0 + $0x2c] sm:$0xf]
    %v265 = vld [vmem:[%s0 + $0x30] sm:$0xf]
    %v266 = vld [vmem:[%s0 + $0x34] sm:$0xf]
    %v267 = vld [vmem:[%s0 + $0x38] sm:$0xf]
    %v268 = vld [vmem:[%s0 + $0x3c] sm:$0xf]
    %v269 = vld [vmem:[%s0 + $0x40] sm:$0xf]
    %v270 = vld [vmem:[%s0 + $0x44] sm:$0xf]
    %v271 = vld [vmem:[%s0 + $0x48] sm:$0xf]
    %v272 = vld [vmem:[%s0 + $0x4c] sm:$0xf]
    %v273 = vld [vmem:[%s0 + $0x50] sm:$0xf]
    %v274 = vld [vmem:[%s0 + $0x54] sm:$0xf]
    %v275 = vld [vmem:[%s0 + $0x58] sm:$0xf]
    %v276 = vld [vmem:[%s0 + $0x5c] sm:$0xf]
    %v277 = vld [vmem:[%s0 + $0x60] sm:$0xf]
    %v278 = vld [vmem:[%s0 + $0x64] sm:$0xf]
    %v279 = vld [vmem:[%s0 + $0x68] sm:$0xf]
    %v280 = vld [vmem:[%s0 + $0x6c] sm:$0xf]
    %v281 = vld [vmem:[%s0 + $0x70] sm:$0xf]
    %v282 = vld [vmem:[%s0 + $0x74] sm:$0xf]
    %v283 = vld [vmem:[%s0 + $0x78] sm:$0xf]
    %v284 = vld [vmem:[%s0 + $0x7c] sm:$0xf]
    %v285 = vld [vmem:[%s0 + $0x80] sm:$0xf]
    %v286 = vld [vmem:[%s0 + $0x84] sm:$0xf]
    %v287 = vld [vmem:[%s0 + $0x88] sm:$0xf]
    %v288 = vld [vmem:[%s0 + $0x8c] sm:$0xf]
    %v289 = vld [vmem:[%s0 + $0x90] sm:$0xf]
    %v290 = vld [vmem:[%s0 + $0x94] sm:$0xf]
    %v291 = vld [vmem:[%s0 + $0x98] sm:$0xf]
    %v292 = vld [vmem:[%s0 + $0x9c] sm:$0xf]
    %v293 = vld [vmem:[%s0 + $0xa0] sm:$0xf]
    %v294 = vld [vmem:[%s0 + $0xa4] sm:$0xf]
    %v295 = vld [vmem:[%s0 + $0xa8] sm:$0xf]
    %v296 = vld [vmem:[%s0 + $0xac] sm:$0xf]
    %v297 = vld [vmem:[%s0 + $0xb0] sm:$0xf]
    %v298 = vld [vmem:[%s0 + $0xb4] sm:$0xf]
    %v299 = vld [vmem:[%s0 + $0xb8] sm:$0xf]
    %v300 = vld [vmem:[%s0 + $0xbc] sm:$0xf]
    %v301 = vld [vmem:[%s0 + $0xc0] sm:$0xf]
    %v302 = vld [vmem:[%s0 + $0xc4] sm:$0xf]
    %v303 = vld [vmem:[%s0 + $0xc8] sm:$0xf]
    %v304 = vld [vmem:[%s0 + $0xcc] sm:$0xf]
    %v305 = vld [vmem:[%s0 + $0xd0] sm:$0xf]
    %v306 = vld [vmem:[%s0 + $0xd4] sm:$0xf]
    %v307 = vld [vmem:[%s0 + $0xd8] sm:$0xf]
    %v308 = vld [vmem:[%s0 + $0xdc] sm:$0xf]
    %v309 = vld [vmem:[%s0 + $0xe0] sm:$0xf]
    %v310 = vld [vmem:[%s0 + $0xe4] sm:$0xf]
    %v311 = vld [vmem:[%s0 + $0xe8] sm:$0xf]
    %v312 = vld [vmem:[%s0 + $0xec] sm:$0xf]
    %v313 = vld [vmem:[%s0 + $0xf0] sm:$0xf]
    %v314 = vld [vmem:[%s0 + $0xf4] sm:$0xf]
    %v315 = vld [vmem:[%s0 + $0xf8] sm:$0xf]
    %v316 = vld [vmem:[%s0 + $0xfc] sm:$0xf]
    %vm317 = vsmask.f32 4368
    %vm318 = vmor %vm33, %vm317
    %v320 = vshrl.u32 %v253, 16
    %v322 = vrot.slane %v320, 7
    %v323 = vshll.u32 %v253, 16
    %v325 = vor.u32 %v322, %v323
    %v326 = vrot.slane %v322, 4
    %v328 = vshrl.u32 %v254, 16
    %v330 = vrot.slane %v328, 7
    %v331 = vshll.u32 %v254, 16
    %v333 = vor.u32 %v330, %v331
    %v334 = vsel %vm318, %v326, %v333
    %v335 = vrot.slane %v330, 4
    %v337 = vshrl.u32 %v255, 16
    %v339 = vrot.slane %v337, 7
    %v340 = vshll.u32 %v255, 16
    %v342 = vor.u32 %v339, %v340
    %v343 = vrot.slane %v339, 4
    %v345 = vshrl.u32 %v256, 16
    %v347 = vrot.slane %v345, 7
    %v348 = vshll.u32 %v256, 16
    %v350 = vor.u32 %v347, %v348
    %v351 = vsel %vm318, %v343, %v350
    %v352 = vrot.slane %v347, 4
    %v354 = vshrl.u32 %v257, 16
    %v356 = vrot.slane %v354, 7
    %v357 = vshll.u32 %v257, 16
    %v359 = vor.u32 %v356, %v357
    %v360 = vrot.slane %v356, 4
    %v362 = vshrl.u32 %v258, 16
    %v364 = vrot.slane %v362, 7
    %v365 = vshll.u32 %v258, 16
    %v367 = vor.u32 %v364, %v365
    %v368 = vsel %vm318, %v360, %v367
    %v369 = vrot.slane %v364, 4
    %v371 = vshrl.u32 %v259, 16
    %v373 = vrot.slane %v371, 7
    %v374 = vshll.u32 %v259, 16
    %v376 = vor.u32 %v373, %v374
    %v377 = vrot.slane %v373, 4
    %v379 = vshrl.u32 %v260, 16
    %v381 = vrot.slane %v379, 7
    %v382 = vshll.u32 %v260, 16
    %v384 = vor.u32 %v381, %v382
    %v385 = vsel %vm318, %v377, %v384
    %v386 = vrot.slane %v381, 4
    %v388 = vshrl.u32 %v261, 16
    %v390 = vrot.slane %v388, 7
    %v391 = vshll.u32 %v261, 16
    %v393 = vor.u32 %v390, %v391
    %v394 = vrot.slane %v390, 4
    %v396 = vshrl.u32 %v262, 16
    %v398 = vrot.slane %v396, 7
    %v399 = vshll.u32 %v262, 16
    %v401 = vor.u32 %v398, %v399
    %v402 = vsel %vm318, %v394, %v401
    %v403 = vrot.slane %v398, 4
    %v405 = vshrl.u32 %v263, 16
    %v407 = vrot.slane %v405, 7
    %v408 = vshll.u32 %v263, 16
    %v410 = vor.u32 %v407, %v408
    %v411 = vrot.slane %v407, 4
    %v413 = vshrl.u32 %v264, 16
    %v415 = vrot.slane %v413, 7
    %v416 = vshll.u32 %v264, 16
    %v418 = vor.u32 %v415, %v416
    %v419 = vsel %vm318, %v411, %v418
    %v420 = vrot.slane %v415, 4
    %v422 = vshrl.u32 %v265, 16
    %v424 = vrot.slane %v422, 7
    %v425 = vshll.u32 %v265, 16
    %v427 = vor.u32 %v424, %v425
    %v428 = vrot.slane %v424, 4
    %v430 = vshrl.u32 %v266, 16
    %v432 = vrot.slane %v430, 7
    %v433 = vshll.u32 %v266, 16
    %v435 = vor.u32 %v432, %v433
    %v436 = vsel %vm318, %v428, %v435
    %v437 = vrot.slane %v432, 4
    %v439 = vshrl.u32 %v267, 16
    %v441 = vrot.slane %v439, 7
    %v442 = vshll.u32 %v267, 16
    %v444 = vor.u32 %v441, %v442
    %v445 = vrot.slane %v441, 4
    %v447 = vshrl.u32 %v268, 16
    %v449 = vrot.slane %v447, 7
    %v450 = vshll.u32 %v268, 16
    %v452 = vor.u32 %v449, %v450
    %v453 = vsel %vm318, %v445, %v452
    %v454 = vrot.slane %v449, 4
    %v456 = vshrl.u32 %v269, 16
    %v458 = vrot.slane %v456, 7
    %v459 = vshll.u32 %v269, 16
    %v461 = vor.u32 %v458, %v459
    %v462 = vrot.slane %v458, 4
    %v464 = vshrl.u32 %v270, 16
    %v466 = vrot.slane %v464, 7
    %v467 = vshll.u32 %v270, 16
    %v469 = vor.u32 %v466, %v467
    %v470 = vsel %vm318, %v462, %v469
    %v471 = vrot.slane %v466, 4
    %v473 = vshrl.u32 %v271, 16
    %v475 = vrot.slane %v473, 7
    %v476 = vshll.u32 %v271, 16
    %v478 = vor.u32 %v475, %v476
    %v479 = vrot.slane %v475, 4
    %v481 = vshrl.u32 %v272, 16
    %v483 = vrot.slane %v481, 7
    %v484 = vshll.u32 %v272, 16
    %v486 = vor.u32 %v483, %v484
    %v487 = vsel %vm318, %v479, %v486
    %v488 = vrot.slane %v483, 4
    %v490 = vshrl.u32 %v273, 16
    %v492 = vrot.slane %v490, 7
    %v493 = vshll.u32 %v273, 16
    %v495 = vor.u32 %v492, %v493
    %v496 = vrot.slane %v492, 4
    %v498 = vshrl.u32 %v274, 16
    %v500 = vrot.slane %v498, 7
    %v501 = vshll.u32 %v274, 16
    %v503 = vor.u32 %v500, %v501
    %v504 = vsel %vm318, %v496, %v503
    %v505 = vrot.slane %v500, 4
    %v507 = vshrl.u32 %v275, 16
    %v509 = vrot.slane %v507, 7
    %v510 = vshll.u32 %v275, 16
    %v512 = vor.u32 %v509, %v510
    %v513 = vrot.slane %v509, 4
    %v515 = vshrl.u32 %v276, 16
    %v517 = vrot.slane %v515, 7
    %v518 = vshll.u32 %v276, 16
    %v520 = vor.u32 %v517, %v518
    %v521 = vsel %vm318, %v513, %v520
    %v522 = vrot.slane %v517, 4
    %v524 = vshrl.u32 %v277, 16
    %v526 = vrot.slane %v524, 7
    %v527 = vshll.u32 %v277, 16
    %v529 = vor.u32 %v526, %v527
    %v530 = vrot.slane %v526, 4
    %v532 = vshrl.u32 %v278, 16
    %v534 = vrot.slane %v532, 7
    %v535 = vshll.u32 %v278, 16
    %v537 = vor.u32 %v534, %v535
    %v538 = vsel %vm318, %v530, %v537
    %v539 = vrot.slane %v534, 4
    %v541 = vshrl.u32 %v279, 16
    %v543 = vrot.slane %v541, 7
    %v544 = vshll.u32 %v279, 16
    %v546 = vor.u32 %v543, %v544
    %v547 = vrot.slane %v543, 4
    %v549 = vshrl.u32 %v280, 16
    %v551 = vrot.slane %v549, 7
    %v552 = vshll.u32 %v280, 16
    %v554 = vor.u32 %v551, %v552
    %v555 = vsel %vm318, %v547, %v554
    %v556 = vrot.slane %v551, 4
    %v558 = vshrl.u32 %v281, 16
    %v560 = vrot.slane %v558, 7
    %v561 = vshll.u32 %v281, 16
    %v563 = vor.u32 %v560, %v561
    %v564 = vrot.slane %v560, 4
    %v566 = vshrl.u32 %v282, 16
    %v568 = vrot.slane %v566, 7
    %v569 = vshll.u32 %v282, 16
    %v571 = vor.u32 %v568, %v569
    %v572 = vsel %vm318, %v564, %v571
    %v573 = vrot.slane %v568, 4
    %v575 = vshrl.u32 %v283, 16
    %v577 = vrot.slane %v575, 7
    %v578 = vshll.u32 %v283, 16
    %v580 = vor.u32 %v577, %v578
    %v581 = vrot.slane %v577, 4
    %v583 = vshrl.u32 %v284, 16
    %v585 = vrot.slane %v583, 7
    %v586 = vshll.u32 %v284, 16
    %v588 = vor.u32 %v585, %v586
    %v589 = vsel %vm318, %v581, %v588
    %v590 = vrot.slane %v585, 4
    %v592 = vshrl.u32 %v285, 16
    %v594 = vrot.slane %v592, 7
    %v595 = vshll.u32 %v285, 16
    %v597 = vor.u32 %v594, %v595
    %v598 = vrot.slane %v594, 4
    %v600 = vshrl.u32 %v286, 16
    %v602 = vrot.slane %v600, 7
    %v603 = vshll.u32 %v286, 16
    %v605 = vor.u32 %v602, %v603
    %v606 = vsel %vm318, %v598, %v605
    %v607 = vrot.slane %v602, 4
    %v609 = vshrl.u32 %v287, 16
    %v611 = vrot.slane %v609, 7
    %v612 = vshll.u32 %v287, 16
    %v614 = vor.u32 %v611, %v612
    %v615 = vrot.slane %v611, 4
    %v617 = vshrl.u32 %v288, 16
    %v619 = vrot.slane %v617, 7
    %v620 = vshll.u32 %v288, 16
    %v622 = vor.u32 %v619, %v620
    %v623 = vsel %vm318, %v615, %v622
    %v624 = vrot.slane %v619, 4
    %v626 = vshrl.u32 %v289, 16
    %v628 = vrot.slane %v626, 7
    %v629 = vshll.u32 %v289, 16
    %v631 = vor.u32 %v628, %v629
    %v632 = vrot.slane %v628, 4
    %v634 = vshrl.u32 %v290, 16
    %v636 = vrot.slane %v634, 7
    %v637 = vshll.u32 %v290, 16
    %v639 = vor.u32 %v636, %v637
    %v640 = vsel %vm318, %v632, %v639
    %v641 = vrot.slane %v636, 4
    %v643 = vshrl.u32 %v291, 16
    %v645 = vrot.slane %v643, 7
    %v646 = vshll.u32 %v291, 16
    %v648 = vor.u32 %v645, %v646
    %v649 = vrot.slane %v645, 4
    %v651 = vshrl.u32 %v292, 16
    %v653 = vrot.slane %v651, 7
    %v654 = vshll.u32 %v292, 16
    %v656 = vor.u32 %v653, %v654
    %v657 = vsel %vm318, %v649, %v656
    %v658 = vrot.slane %v653, 4
    %v660 = vshrl.u32 %v293, 16
    %v662 = vrot.slane %v660, 7
    %v663 = vshll.u32 %v293, 16
    %v665 = vor.u32 %v662, %v663
    %v666 = vrot.slane %v662, 4
    %v668 = vshrl.u32 %v294, 16
    %v670 = vrot.slane %v668, 7
    %v671 = vshll.u32 %v294, 16
    %v673 = vor.u32 %v670, %v671
    %v674 = vsel %vm318, %v666, %v673
    %v675 = vrot.slane %v670, 4
    %v677 = vshrl.u32 %v295, 16
    %v679 = vrot.slane %v677, 7
    %v680 = vshll.u32 %v295, 16
    %v682 = vor.u32 %v679, %v680
    %v683 = vrot.slane %v679, 4
    %v685 = vshrl.u32 %v296, 16
    %v687 = vrot.slane %v685, 7
    %v688 = vshll.u32 %v296, 16
    %v690 = vor.u32 %v687, %v688
    %v691 = vsel %vm318, %v683, %v690
    %v692 = vrot.slane %v687, 4
    %v694 = vshrl.u32 %v297, 16
    %v696 = vrot.slane %v694, 7
    %v697 = vshll.u32 %v297, 16
    %v699 = vor.u32 %v696, %v697
    %v700 = vrot.slane %v696, 4
    %v702 = vshrl.u32 %v298, 16
    %v704 = vrot.slane %v702, 7
    %v705 = vshll.u32 %v298, 16
    %v707 = vor.u32 %v704, %v705
    %v708 = vsel %vm318, %v700, %v707
    %v709 = vrot.slane %v704, 4
    %v711 = vshrl.u32 %v299, 16
    %v713 = vrot.slane %v711, 7
    %v714 = vshll.u32 %v299, 16
    %v716 = vor.u32 %v713, %v714
    %v717 = vrot.slane %v713, 4
    %v719 = vshrl.u32 %v300, 16
    %v721 = vrot.slane %v719, 7
    %v722 = vshll.u32 %v300, 16
    %v724 = vor.u32 %v721, %v722
    %v725 = vsel %vm318, %v717, %v724
    %v726 = vrot.slane %v721, 4
    %v728 = vshrl.u32 %v301, 16
    %v730 = vrot.slane %v728, 7
    %v731 = vshll.u32 %v301, 16
    %v733 = vor.u32 %v730, %v731
    %v734 = vrot.slane %v730, 4
    %v736 = vshrl.u32 %v302, 16
    %v738 = vrot.slane %v736, 7
    %v739 = vshll.u32 %v302, 16
    %v741 = vor.u32 %v738, %v739
    %v742 = vsel %vm318, %v734, %v741
    %v743 = vrot.slane %v738, 4
    %v745 = vshrl.u32 %v303, 16
    %v747 = vrot.slane %v745, 7
    %v748 = vshll.u32 %v303, 16
    %v750 = vor.u32 %v747, %v748
    %v751 = vrot.slane %v747, 4
    %v753 = vshrl.u32 %v304, 16
    %v755 = vrot.slane %v753, 7
    %v756 = vshll.u32 %v304, 16
    %v758 = vor.u32 %v755, %v756
    %v759 = vsel %vm318, %v751, %v758
    %v760 = vrot.slane %v755, 4
    %v762 = vshrl.u32 %v305, 16
    %v764 = vrot.slane %v762, 7
    %v765 = vshll.u32 %v305, 16
    %v767 = vor.u32 %v764, %v765
    %v768 = vrot.slane %v764, 4
    %v770 = vshrl.u32 %v306, 16
    %v772 = vrot.slane %v770, 7
    %v773 = vshll.u32 %v306, 16
    %v775 = vor.u32 %v772, %v773
    %v776 = vsel %vm318, %v768, %v775
    %v777 = vrot.slane %v772, 4
    %v779 = vshrl.u32 %v307, 16
    %v781 = vrot.slane %v779, 7
    %v782 = vshll.u32 %v307, 16
    %v784 = vor.u32 %v781, %v782
    %v785 = vrot.slane %v781, 4
    %v787 = vshrl.u32 %v308, 16
    %v789 = vrot.slane %v787, 7
    %v790 = vshll.u32 %v308, 16
    %v792 = vor.u32 %v789, %v790
    %v793 = vsel %vm318, %v785, %v792
    %v794 = vrot.slane %v789, 4
    %v796 = vshrl.u32 %v309, 16
    %v798 = vrot.slane %v796, 7
    %v799 = vshll.u32 %v309, 16
    %v801 = vor.u32 %v798, %v799
    %v802 = vrot.slane %v798, 4
    %v804 = vshrl.u32 %v310, 16
    %v806 = vrot.slane %v804, 7
    %v807 = vshll.u32 %v310, 16
    %v809 = vor.u32 %v806, %v807
    %v810 = vsel %vm318, %v802, %v809
    %v811 = vrot.slane %v806, 4
    %v813 = vshrl.u32 %v311, 16
    %v815 = vrot.slane %v813, 7
    %v816 = vshll.u32 %v311, 16
    %v818 = vor.u32 %v815, %v816
    %v819 = vrot.slane %v815, 4
    %v821 = vshrl.u32 %v312, 16
    %v823 = vrot.slane %v821, 7
    %v824 = vshll.u32 %v312, 16
    %v826 = vor.u32 %v823, %v824
    %v827 = vsel %vm318, %v819, %v826
    %v828 = vrot.slane %v823, 4
    %v830 = vshrl.u32 %v313, 16
    %v832 = vrot.slane %v830, 7
    %v833 = vshll.u32 %v313, 16
    %v835 = vor.u32 %v832, %v833
    %v836 = vrot.slane %v832, 4
    %v838 = vshrl.u32 %v314, 16
    %v840 = vrot.slane %v838, 7
    %v841 = vshll.u32 %v314, 16
    %v843 = vor.u32 %v840, %v841
    %v844 = vsel %vm318, %v836, %v843
    %v845 = vrot.slane %v840, 4
    %v847 = vshrl.u32 %v315, 16
    %v849 = vrot.slane %v847, 7
    %v850 = vshll.u32 %v315, 16
    %v852 = vor.u32 %v849, %v850
    %v853 = vrot.slane %v849, 4
    %v855 = vshrl.u32 %v316, 16
    %v857 = vrot.slane %v855, 7
    %v858 = vshll.u32 %v316, 16
    %v860 = vor.u32 %v857, %v858
    %v861 = vsel %vm318, %v853, %v860
    %v862 = vrot.slane %v857, 4
    %s959 = scalar_lea.vmem [#allocation2], 12
    %vm960 = vcmask 27648
    %vm961 = vmand %vm960, %vm143
    %v962 = vld [vmem:[%s959] sm:$0xf]
    %v963 = vsel %vm961, %v325, %v962
    %964 = vst [vmem:[%s959] sm:$0xf] %v963
    %965 = vst.msk [vmem:[%s959 + $0x4] sm:$0xf] %vm17, %v334
    %v966 = vld [vmem:[%s959 + $0x8] sm:$0x1]
    %v967 = vsel %vm34, %v335, %v966
    %968 = vst [vmem:[%s959 + $0x8] sm:$0x1] %v967
    %v969 = vld [vmem:[%s959 + $0xc] sm:$0xf]
    %v970 = vsel %vm961, %v342, %v969
    %971 = vst [vmem:[%s959 + $0xc] sm:$0xf] %v970
    %972 = vst.msk [vmem:[%s959 + $0x10] sm:$0xf] %vm17, %v351
    %v973 = vld [vmem:[%s959 + $0x14] sm:$0x1]
    %v974 = vsel %vm34, %v352, %v973
    %975 = vst [vmem:[%s959 + $0x14] sm:$0x1] %v974
    %v976 = vld [vmem:[%s959 + $0x18] sm:$0xf]
    %v977 = vsel %vm961, %v359, %v976
    %978 = vst [vmem:[%s959 + $0x18] sm:$0xf] %v977
    %979 = vst.msk [vmem:[%s959 + $0x1c] sm:$0xf] %vm17, %v368
    %v980 = vld [vmem:[%s959 + $0x20] sm:$0x1]
    %v981 = vsel %vm34, %v369, %v980
    %982 = vst [vmem:[%s959 + $0x20] sm:$0x1] %v981
    %v983 = vld [vmem:[%s959 + $0x24] sm:$0xf]
    %v984 = vsel %vm961, %v376, %v983
    %985 = vst [vmem:[%s959 + $0x24] sm:$0xf] %v984
    %986 = vst.msk [vmem:[%s959 + $0x28] sm:$0xf] %vm17, %v385
    %v987 = vld [vmem:[%s959 + $0x2c] sm:$0x1]
    %v988 = vsel %vm34, %v386, %v987
    %989 = vst [vmem:[%s959 + $0x2c] sm:$0x1] %v988
    %v990 = vld [vmem:[%s959 + $0x30] sm:$0xf]
    %v991 = vsel %vm961, %v393, %v990
    %992 = vst [vmem:[%s959 + $0x30] sm:$0xf] %v991
    %993 = vst.msk [vmem:[%s959 + $0x34] sm:$0xf] %vm17, %v402
    %v994 = vld [vmem:[%s959 + $0x38] sm:$0x1]
    %v995 = vsel %vm34, %v403, %v994
    %996 = vst [vmem:[%s959 + $0x38] sm:$0x1] %v995
    %v997 = vld [vmem:[%s959 + $0x3c] sm:$0xf]
    %v998 = vsel %vm961, %v410, %v997
    %999 = vst [vmem:[%s959 + $0x3c] sm:$0xf] %v998
    %1000 = vst.msk [vmem:[%s959 + $0x40] sm:$0xf] %vm17, %v419
    %v1001 = vld [vmem:[%s959 + $0x44] sm:$0x1]
    %v1002 = vsel %vm34, %v420, %v1001
    %1003 = vst [vmem:[%s959 + $0x44] sm:$0x1] %v1002
    %v1004 = vld [vmem:[%s959 + $0x48] sm:$0xf]
    %v1005 = vsel %vm961, %v427, %v1004
    %1006 = vst [vmem:[%s959 + $0x48] sm:$0xf] %v1005
    %1007 = vst.msk [vmem:[%s959 + $0x4c] sm:$0xf] %vm17, %v436
    %v1008 = vld [vmem:[%s959 + $0x50] sm:$0x1]
    %v1009 = vsel %vm34, %v437, %v1008
    %1010 = vst [vmem:[%s959 + $0x50] sm:$0x1] %v1009
    %v1011 = vld [vmem:[%s959 + $0x54] sm:$0xf]
    %v1012 = vsel %vm961, %v444, %v1011
    %1013 = vst [vmem:[%s959 + $0x54] sm:$0xf] %v1012
    %1014 = vst.msk [vmem:[%s959 + $0x58] sm:$0xf] %vm17, %v453
    %v1015 = vld [vmem:[%s959 + $0x5c] sm:$0x1]
    %v1016 = vsel %vm34, %v454, %v1015
    %1017 = vst [vmem:[%s959 + $0x5c] sm:$0x1] %v1016
    %v1018 = vld [vmem:[%s959 + $0x60] sm:$0xf]
    %v1019 = vsel %vm961, %v461, %v1018
    %1020 = vst [vmem:[%s959 + $0x60] sm:$0xf] %v1019
    %1021 = vst.msk [vmem:[%s959 + $0x64] sm:$0xf] %vm17, %v470
    %v1022 = vld [vmem:[%s959 + $0x68] sm:$0x1]
    %v1023 = vsel %vm34, %v471, %v1022
    %1024 = vst [vmem:[%s959 + $0x68] sm:$0x1] %v1023
    %v1025 = vld [vmem:[%s959 + $0x6c] sm:$0xf]
    %v1026 = vsel %vm961, %v478, %v1025
    %1027 = vst [vmem:[%s959 + $0x6c] sm:$0xf] %v1026
    %1028 = vst.msk [vmem:[%s959 + $0x70] sm:$0xf] %vm17, %v487
    %v1029 = vld [vmem:[%s959 + $0x74] sm:$0x1]
    %v1030 = vsel %vm34, %v488, %v1029
    %1031 = vst [vmem:[%s959 + $0x74] sm:$0x1] %v1030
    %v1032 = vld [vmem:[%s959 + $0x78] sm:$0xf]
    %v1033 = vsel %vm961, %v495, %v1032
    %1034 = vst [vmem:[%s959 + $0x78] sm:$0xf] %v1033
    %1035 = vst.msk [vmem:[%s959 + $0x7c] sm:$0xf] %vm17, %v504
    %v1036 = vld [vmem:[%s959 + $0x80] sm:$0x1]
    %v1037 = vsel %vm34, %v505, %v1036
    %1038 = vst [vmem:[%s959 + $0x80] sm:$0x1] %v1037
    %v1039 = vld [vmem:[%s959 + $0x84] sm:$0xf]
    %v1040 = vsel %vm961, %v512, %v1039
    %1041 = vst [vmem:[%s959 + $0x84] sm:$0xf] %v1040
    %1042 = vst.msk [vmem:[%s959 + $0x88] sm:$0xf] %vm17, %v521
    %v1043 = vld [vmem:[%s959 + $0x8c] sm:$0x1]
    %v1044 = vsel %vm34, %v522, %v1043
    %1045 = vst [vmem:[%s959 + $0x8c] sm:$0x1] %v1044
    %v1046 = vld [vmem:[%s959 + $0x90] sm:$0xf]
    %v1047 = vsel %vm961, %v529, %v1046
    %1048 = vst [vmem:[%s959 + $0x90] sm:$0xf] %v1047
    %1049 = vst.msk [vmem:[%s959 + $0x94] sm:$0xf] %vm17, %v538
    %v1050 = vld [vmem:[%s959 + $0x98] sm:$0x1]
    %v1051 = vsel %vm34, %v539, %v1050
    %1052 = vst [vmem:[%s959 + $0x98] sm:$0x1] %v1051
    %v1053 = vld [vmem:[%s959 + $0x9c] sm:$0xf]
    %v1054 = vsel %vm961, %v546, %v1053
    %1055 = vst [vmem:[%s959 + $0x9c] sm:$0xf] %v1054
    %1056 = vst.msk [vmem:[%s959 + $0xa0] sm:$0xf] %vm17, %v555
    %v1057 = vld [vmem:[%s959 + $0xa4] sm:$0x1]
    %v1058 = vsel %vm34, %v556, %v1057
    %1059 = vst [vmem:[%s959 + $0xa4] sm:$0x1] %v1058
    %v1060 = vld [vmem:[%s959 + $0xa8] sm:$0xf]
    %v1061 = vsel %vm961, %v563, %v1060
    %1062 = vst [vmem:[%s959 + $0xa8] sm:$0xf] %v1061
    %1063 = vst.msk [vmem:[%s959 + $0xac] sm:$0xf] %vm17, %v572
    %v1064 = vld [vmem:[%s959 + $0xb0] sm:$0x1]
    %v1065 = vsel %vm34, %v573, %v1064
    %1066 = vst [vmem:[%s959 + $0xb0] sm:$0x1] %v1065
    %v1067 = vld [vmem:[%s959 + $0xb4] sm:$0xf]
    %v1068 = vsel %vm961, %v580, %v1067
    %1069 = vst [vmem:[%s959 + $0xb4] sm:$0xf] %v1068
    %1070 = vst.msk [vmem:[%s959 + $0xb8] sm:$0xf] %vm17, %v589
    %v1071 = vld [vmem:[%s959 + $0xbc] sm:$0x1]
    %v1072 = vsel %vm34, %v590, %v1071
    %1073 = vst [vmem:[%s959 + $0xbc] sm:$0x1] %v1072
    %v1074 = vld [vmem:[%s959 + $0xd8] sm:$0xf]
    %v1075 = vsel %vm961, %v597, %v1074
    %1076 = vst [vmem:[%s959 + $0xd8] sm:$0xf] %v1075
    %1077 = vst.msk [vmem:[%s959 + $0xdc] sm:$0xf] %vm17, %v606
    %v1078 = vld [vmem:[%s959 + $0xe0] sm:$0x1]
    %v1079 = vsel %vm34, %v607, %v1078
    %1080 = vst [vmem:[%s959 + $0xe0] sm:$0x1] %v1079
    %v1081 = vld [vmem:[%s959 + $0xe4] sm:$0xf]
    %v1082 = vsel %vm961, %v614, %v1081
    %1083 = vst [vmem:[%s959 + $0xe4] sm:$0xf] %v1082
    %1084 = vst.msk [vmem:[%s959 + $0xe8] sm:$0xf] %vm17, %v623
    %v1085 = vld [vmem:[%s959 + $0xec] sm:$0x1]
    %v1086 = vsel %vm34, %v624, %v1085
    %1087 = vst [vmem:[%s959 + $0xec] sm:$0x1] %v1086
    %v1088 = vld [vmem:[%s959 + $0xf0] sm:$0xf]
    %v1089 = vsel %vm961, %v631, %v1088
    %1090 = vst [vmem:[%s959 + $0xf0] sm:$0xf] %v1089
    %1091 = vst.msk [vmem:[%s959 + $0xf4] sm:$0xf] %vm17, %v640
    %v1092 = vld [vmem:[%s959 + $0xf8] sm:$0x1]
    %v1093 = vsel %vm34, %v641, %v1092
    %1094 = vst [vmem:[%s959 + $0xf8] sm:$0x1] %v1093
    %v1095 = vld [vmem:[%s959 + $0xfc] sm:$0xf]
    %v1096 = vsel %vm961, %v648, %v1095
    %1097 = vst [vmem:[%s959 + $0xfc] sm:$0xf] %v1096
    %1098 = vst.msk [vmem:[%s959 + $0x100] sm:$0xf] %vm17, %v657
    %v1099 = vld [vmem:[%s959 + $0x104] sm:$0x1]
    %v1100 = vsel %vm34, %v658, %v1099
    %1101 = vst [vmem:[%s959 + $0x104] sm:$0x1] %v1100
    %v1102 = vld [vmem:[%s959 + $0x108] sm:$0xf]
    %v1103 = vsel %vm961, %v665, %v1102
    %1104 = vst [vmem:[%s959 + $0x108] sm:$0xf] %v1103
    %1105 = vst.msk [vmem:[%s959 + $0x10c] sm:$0xf] %vm17, %v674
    %v1106 = vld [vmem:[%s959 + $0x110] sm:$0x1]
    %v1107 = vsel %vm34, %v675, %v1106
    %1108 = vst [vmem:[%s959 + $0x110] sm:$0x1] %v1107
    %v1109 = vld [vmem:[%s959 + $0x114] sm:$0xf]
    %v1110 = vsel %vm961, %v682, %v1109
    %1111 = vst [vmem:[%s959 + $0x114] sm:$0xf] %v1110
    %1112 = vst.msk [vmem:[%s959 + $0x118] sm:$0xf] %vm17, %v691
    %v1113 = vld [vmem:[%s959 + $0x11c] sm:$0x1]
    %v1114 = vsel %vm34, %v692, %v1113
    %1115 = vst [vmem:[%s959 + $0x11c] sm:$0x1] %v1114
    %v1116 = vld [vmem:[%s959 + $0x120] sm:$0xf]
    %v1117 = vsel %vm961, %v699, %v1116
    %1118 = vst [vmem:[%s959 + $0x120] sm:$0xf] %v1117
    %1119 = vst.msk [vmem:[%s959 + $0x124] sm:$0xf] %vm17, %v708
    %v1120 = vld [vmem:[%s959 + $0x128] sm:$0x1]
    %v1121 = vsel %vm34, %v709, %v1120
    %1122 = vst [vmem:[%s959 + $0x128] sm:$0x1] %v1121
    %v1123 = vld [vmem:[%s959 + $0x12c] sm:$0xf]
    %v1124 = vsel %vm961, %v716, %v1123
    %1125 = vst [vmem:[%s959 + $0x12c] sm:$0xf] %v1124
    %1126 = vst.msk [vmem:[%s959 + $0x130] sm:$0xf] %vm17, %v725
    %v1127 = vld [vmem:[%s959 + $0x134] sm:$0x1]
    %v1128 = vsel %vm34, %v726, %v1127
    %1129 = vst [vmem:[%s959 + $0x134] sm:$0x1] %v1128
    %v1130 = vld [vmem:[%s959 + $0x138] sm:$0xf]
    %v1131 = vsel %vm961, %v733, %v1130
    %1132 = vst [vmem:[%s959 + $0x138] sm:$0xf] %v1131
    %1133 = vst.msk [vmem:[%s959 + $0x13c] sm:$0xf] %vm17, %v742
    %v1134 = vld [vmem:[%s959 + $0x140] sm:$0x1]
    %v1135 = vsel %vm34, %v743, %v1134
    %1136 = vst [vmem:[%s959 + $0x140] sm:$0x1] %v1135
    %v1137 = vld [vmem:[%s959 + $0x144] sm:$0xf]
    %v1138 = vsel %vm961, %v750, %v1137
    %1139 = vst [vmem:[%s959 + $0x144] sm:$0xf] %v1138
    %1140 = vst.msk [vmem:[%s959 + $0x148] sm:$0xf] %vm17, %v759
    %v1141 = vld [vmem:[%s959 + $0x14c] sm:$0x1]
    %v1142 = vsel %vm34, %v760, %v1141
    %1143 = vst [vmem:[%s959 + $0x14c] sm:$0x1] %v1142
    %v1144 = vld [vmem:[%s959 + $0x150] sm:$0xf]
    %v1145 = vsel %vm961, %v767, %v1144
    %1146 = vst [vmem:[%s959 + $0x150] sm:$0xf] %v1145
    %1147 = vst.msk [vmem:[%s959 + $0x154] sm:$0xf] %vm17, %v776
    %v1148 = vld [vmem:[%s959 + $0x158] sm:$0x1]
    %v1149 = vsel %vm34, %v777, %v1148
    %1150 = vst [vmem:[%s959 + $0x158] sm:$0x1] %v1149
    %v1151 = vld [vmem:[%s959 + $0x15c] sm:$0xf]
    %v1152 = vsel %vm961, %v784, %v1151
    %1153 = vst [vmem:[%s959 + $0x15c] sm:$0xf] %v1152
    %1154 = vst.msk [vmem:[%s959 + $0x160] sm:$0xf] %vm17, %v793
    %v1155 = vld [vmem:[%s959 + $0x164] sm:$0x1]
    %v1156 = vsel %vm34, %v794, %v1155
    %1157 = vst [vmem:[%s959 + $0x164] sm:$0x1] %v1156
    %v1158 = vld [vmem:[%s959 + $0x168] sm:$0xf]
    %v1159 = vsel %vm961, %v801, %v1158
    %1160 = vst [vmem:[%s959 + $0x168] sm:$0xf] %v1159
    %1161 = vst.msk [vmem:[%s959 + $0x16c] sm:$0xf] %vm17, %v810
    %v1162 = vld [vmem:[%s959 + $0x170] sm:$0x1]
    %v1163 = vsel %vm34, %v811, %v1162
    %1164 = vst [vmem:[%s959 + $0x170] sm:$0x1] %v1163
    %v1165 = vld [vmem:[%s959 + $0x174] sm:$0xf]
    %v1166 = vsel %vm961, %v818, %v1165
    %1167 = vst [vmem:[%s959 + $0x174] sm:$0xf] %v1166
    %1168 = vst.msk [vmem:[%s959 + $0x178] sm:$0xf] %vm17, %v827
    %v1169 = vld [vmem:[%s959 + $0x17c] sm:$0x1]
    %v1170 = vsel %vm34, %v828, %v1169
    %1171 = vst [vmem:[%s959 + $0x17c] sm:$0x1] %v1170
    %v1172 = vld [vmem:[%s959 + $0x180] sm:$0xf]
    %v1173 = vsel %vm961, %v835, %v1172
    %1174 = vst [vmem:[%s959 + $0x180] sm:$0xf] %v1173
    %1175 = vst.msk [vmem:[%s959 + $0x184] sm:$0xf] %vm17, %v844
    %v1176 = vld [vmem:[%s959 + $0x188] sm:$0x1]
    %v1177 = vsel %vm34, %v845, %v1176
    %1178 = vst [vmem:[%s959 + $0x188] sm:$0x1] %v1177
    %v1179 = vld [vmem:[%s959 + $0x18c] sm:$0xf]
    %v1180 = vsel %vm961, %v852, %v1179
    %1181 = vst [vmem:[%s959 + $0x18c] sm:$0xf] %v1180
    %1182 = vst.msk [vmem:[%s959 + $0x190] sm:$0xf] %vm17, %v861
    %v1183 = vld [vmem:[%s959 + $0x194] sm:$0x1]
    %v1184 = vsel %vm34, %v862, %v1183
    %1185 = vst [vmem:[%s959 + $0x194] sm:$0x1] %v1184
    %v1186 = vld [vmem:[#allocation2] sm:$0xf]
    %v1187 = vld [vmem:[#allocation2 + $0x4] sm:$0xf]
    %v1188 = vld [vmem:[#allocation2 + $0xc] sm:$0xf]
    %v1189 = vld [vmem:[#allocation2 + $0x10] sm:$0xf]
    %v1190 = vld [vmem:[#allocation2 + $0x18] sm:$0xf]
    %v1191 = vld [vmem:[#allocation2 + $0x1c] sm:$0xf]
    %v1192 = vld [vmem:[#allocation2 + $0x24] sm:$0xf]
    %v1193 = vld [vmem:[#allocation2 + $0x28] sm:$0xf]
    %v1194 = vld [vmem:[#allocation2 + $0x30] sm:$0xf]
    %v1195 = vld [vmem:[#allocation2 + $0x34] sm:$0xf]
    %v1196 = vld [vmem:[#allocation2 + $0x3c] sm:$0xf]
    %v1197 = vld [vmem:[#allocation2 + $0x40] sm:$0xf]
    %v1198 = vld [vmem:[#allocation2 + $0x48] sm:$0xf]
    %v1199 = vld [vmem:[#allocation2 + $0x4c] sm:$0xf]
    %v1200 = vld [vmem:[#allocation2 + $0x54] sm:$0xf]
    %v1201 = vld [vmem:[#allocation2 + $0x58] sm:$0xf]
    %v1202 = vld [vmem:[#allocation2 + $0x60] sm:$0xf]
    %v1203 = vld [vmem:[#allocation2 + $0x64] sm:$0xf]
    %v1204 = vld [vmem:[#allocation2 + $0x6c] sm:$0xf]
    %v1205 = vld [vmem:[#allocation2 + $0x70] sm:$0xf]
    %v1206 = vld [vmem:[#allocation2 + $0x78] sm:$0xf]
    %v1207 = vld [vmem:[#allocation2 + $0x7c] sm:$0xf]
    %v1208 = vld [vmem:[#allocation2 + $0x84] sm:$0xf]
    %v1209 = vld [vmem:[#allocation2 + $0x88] sm:$0xf]
    %v1210 = vld [vmem:[#allocation2 + $0x90] sm:$0xf]
    %v1211 = vld [vmem:[#allocation2 + $0x94] sm:$0xf]
    %v1212 = vld [vmem:[#allocation2 + $0x9c] sm:$0xf]
    %v1213 = vld [vmem:[#allocation2 + $0xa0] sm:$0xf]
    %v1214 = vld [vmem:[#allocation2 + $0xa8] sm:$0xf]
    %v1215 = vld [vmem:[#allocation2 + $0xac] sm:$0xf]
    %v1216 = vld [vmem:[#allocation2 + $0xb4] sm:$0xf]
    %v1217 = vld [vmem:[#allocation2 + $0xb8] sm:$0xf]
    %v1218 = vld [vmem:[#allocation2 + $0xd8] sm:$0xf]
    %v1219 = vld [vmem:[#allocation2 + $0xdc] sm:$0xf]
    %v1220 = vld [vmem:[#allocation2 + $0xe4] sm:$0xf]
    %v1221 = vld [vmem:[#allocation2 + $0xe8] sm:$0xf]
    %v1222 = vld [vmem:[#allocation2 + $0xf0] sm:$0xf]
    %v1223 = vld [vmem:[#allocation2 + $0xf4] sm:$0xf]
    %v1224 = vld [vmem:[#allocation2 + $0xfc] sm:$0xf]
    %v1225 = vld [vmem:[#allocation2 + $0x100] sm:$0xf]
    %v1226 = vld [vmem:[#allocation2 + $0x108] sm:$0xf]
    %v1227 = vld [vmem:[#allocation2 + $0x10c] sm:$0xf]
    %v1228 = vld [vmem:[#allocation2 + $0x114] sm:$0xf]
    %v1229 = vld [vmem:[#allocation2 + $0x118] sm:$0xf]
    %v1230 = vld [vmem:[#allocation2 + $0x120] sm:$0xf]
    %v1231 = vld [vmem:[#allocation2 + $0x124] sm:$0xf]
    %v1232 = vld [vmem:[#allocation2 + $0x12c] sm:$0xf]
    %v1233 = vld [vmem:[#allocation2 + $0x130] sm:$0xf]
    %v1234 = vld [vmem:[#allocation2 + $0x138] sm:$0xf]
    %v1235 = vld [vmem:[#allocation2 + $0x13c] sm:$0xf]
    %v1236 = vld [vmem:[#allocation2 + $0x144] sm:$0xf]
    %v1237 = vld [vmem:[#allocation2 + $0x148] sm:$0xf]
    %v1238 = vld [vmem:[#allocation2 + $0x150] sm:$0xf]
    %v1239 = vld [vmem:[#allocation2 + $0x154] sm:$0xf]
    %v1240 = vld [vmem:[#allocation2 + $0x15c] sm:$0xf]
    %v1241 = vld [vmem:[#allocation2 + $0x160] sm:$0xf]
    %v1242 = vld [vmem:[#allocation2 + $0x168] sm:$0xf]
    %v1243 = vld [vmem:[#allocation2 + $0x16c] sm:$0xf]
    %v1244 = vld [vmem:[#allocation2 + $0x174] sm:$0xf]
    %v1245 = vld [vmem:[#allocation2 + $0x178] sm:$0xf]
    %v1246 = vld [vmem:[#allocation2 + $0x180] sm:$0xf]
    %v1247 = vld [vmem:[#allocation2 + $0x184] sm:$0xf]
    %v1248 = vld [vmem:[#allocation2 + $0x18c] sm:$0xf]
    %v1249 = vld [vmem:[#allocation2 + $0x190] sm:$0xf]
    %v1250 = vld [vmem:[#allocation2 + $0x8] sm:$0x1]
    %v1251 = vld [vmem:[#allocation2 + $0x14] sm:$0x1]
    %v1252 = vld [vmem:[#allocation2 + $0x20] sm:$0x1]
    %v1253 = vld [vmem:[#allocation2 + $0x2c] sm:$0x1]
    %v1254 = vld [vmem:[#allocation2 + $0x38] sm:$0x1]
    %v1255 = vld [vmem:[#allocation2 + $0x44] sm:$0x1]
    %v1256 = vld [vmem:[#allocation2 + $0x50] sm:$0x1]
    %v1257 = vld [vmem:[#allocation2 + $0x5c] sm:$0x1]
    %v1258 = vld [vmem:[#allocation2 + $0x68] sm:$0x1]
    %v1259 = vld [vmem:[#allocation2 + $0x74] sm:$0x1]
    %v1260 = vld [vmem:[#allocation2 + $0x80] sm:$0x1]
    %v1261 = vld [vmem:[#allocation2 + $0x8c] sm:$0x1]
    %v1262 = vld [vmem:[#allocation2 + $0x98] sm:$0x1]
    %v1263 = vld [vmem:[#allocation2 + $0xa4] sm:$0x1]
    %v1264 = vld [vmem:[#allocation2 + $0xb0] sm:$0x1]
    %v1265 = vld [vmem:[#allocation2 + $0xbc] sm:$0x1]
    %v1266 = vld [vmem:[#allocation2 + $0xe0] sm:$0x1]
    %v1267 = vld [vmem:[#allocation2 + $0xec] sm:$0x1]
    %v1268 = vld [vmem:[#allocation2 + $0xf8] sm:$0x1]
    %v1269 = vld [vmem:[#allocation2 + $0x104] sm:$0x1]
    %v1270 = vld [vmem:[#allocation2 + $0x110] sm:$0x1]
    %v1271 = vld [vmem:[#allocation2 + $0x11c] sm:$0x1]
    %v1272 = vld [vmem:[#allocation2 + $0x128] sm:$0x1]
    %v1273 = vld [vmem:[#allocation2 + $0x134] sm:$0x1]
    %v1274 = vld [vmem:[#allocation2 + $0x140] sm:$0x1]
    %v1275 = vld [vmem:[#allocation2 + $0x14c] sm:$0x1]
    %v1276 = vld [vmem:[#allocation2 + $0x158] sm:$0x1]
    %v1277 = vld [vmem:[#allocation2 + $0x164] sm:$0x1]
    %v1278 = vld [vmem:[#allocation2 + $0x170] sm:$0x1]
    %v1279 = vld [vmem:[#allocation2 + $0x17c] sm:$0x1]
    %v1280 = vld [vmem:[#allocation2 + $0x188] sm:$0x1]
    %v1281 = vld [vmem:[#allocation2 + $0x194] sm:$0x1]
    %vm1282 = vsmask.f32 3328
    %vm1283 = vsmask.f32 7440
    %vm1284 = vmor %vm1282, %vm1283
    %v1286 = vshrl.u32 %v1186, 16
    %v1288 = vrot.slane %v1286, 4
    %v1289 = vshll.u32 %v1186, 16
    %v1291 = vrot.slane %v1289, 5
    %v1292 = vor.u32 %v1288, %v1291
    %v1293 = vrot.slane %v1292, 4
    %v1295 = vshll.u32 %v1187, 16
    %v1297 = vrot.slane %v1295, 5
    %v1298 = vsel %vm1284, %v1293, %v1297
    %v1299 = vshrl.u32 %v1187, 16
    %v1301 = vrot.slane %v1299, 4
    %v1302 = vor.u32 %v1301, %v1297
    %v1303 = vrot.slane %v1302, 4
    %v1305 = vshll.u32 %v1250, 16
    %v1307 = vrot.slane %v1305, 5
    %v1308 = vsel %vm1284, %v1303, %v1307
    %v1310 = vshrl.u32 %v1188, 16
    %v1312 = vrot.slane %v1310, 4
    %v1313 = vshll.u32 %v1188, 16
    %v1315 = vrot.slane %v1313, 5
    %v1316 = vor.u32 %v1312, %v1315
    %v1317 = vrot.slane %v1316, 4
    %v1319 = vshll.u32 %v1189, 16
    %v1321 = vrot.slane %v1319, 5
    %v1322 = vsel %vm1284, %v1317, %v1321
    %v1323 = vshrl.u32 %v1189, 16
    %v1325 = vrot.slane %v1323, 4
    %v1326 = vor.u32 %v1325, %v1321
    %v1327 = vrot.slane %v1326, 4
    %v1329 = vshll.u32 %v1251, 16
    %v1331 = vrot.slane %v1329, 5
    %v1332 = vsel %vm1284, %v1327, %v1331
    %v1334 = vshrl.u32 %v1190, 16
    %v1336 = vrot.slane %v1334, 4
    %v1337 = vshll.u32 %v1190, 16
    %v1339 = vrot.slane %v1337, 5
    %v1340 = vor.u32 %v1336, %v1339
    %v1341 = vrot.slane %v1340, 4
    %v1343 = vshll.u32 %v1191, 16
    %v1345 = vrot.slane %v1343, 5
    %v1346 = vsel %vm1284, %v1341, %v1345
    %v1347 = vshrl.u32 %v1191, 16
    %v1349 = vrot.slane %v1347, 4
    %v1350 = vor.u32 %v1349, %v1345
    %v1351 = vrot.slane %v1350, 4
    %v1353 = vshll.u32 %v1252, 16
    %v1355 = vrot.slane %v1353, 5
    %v1356 = vsel %vm1284, %v1351, %v1355
    %v1358 = vshrl.u32 %v1192, 16
    %v1360 = vrot.slane %v1358, 4
    %v1361 = vshll.u32 %v1192, 16
    %v1363 = vrot.slane %v1361, 5
    %v1364 = vor.u32 %v1360, %v1363
    %v1365 = vrot.slane %v1364, 4
    %v1367 = vshll.u32 %v1193, 16
    %v1369 = vrot.slane %v1367, 5
    %v1370 = vsel %vm1284, %v1365, %v1369
    %v1371 = vshrl.u32 %v1193, 16
    %v1373 = vrot.slane %v1371, 4
    %v1374 = vor.u32 %v1373, %v1369
    %v1375 = vrot.slane %v1374, 4
    %v1377 = vshll.u32 %v1253, 16
    %v1379 = vrot.slane %v1377, 5
    %v1380 = vsel %vm1284, %v1375, %v1379
    %v1382 = vshrl.u32 %v1194, 16
    %v1384 = vrot.slane %v1382, 4
    %v1385 = vshll.u32 %v1194, 16
    %v1387 = vrot.slane %v1385, 5
    %v1388 = vor.u32 %v1384, %v1387
    %v1389 = vrot.slane %v1388, 4
    %v1391 = vshll.u32 %v1195, 16
    %v1393 = vrot.slane %v1391, 5
    %v1394 = vsel %vm1284, %v1389, %v1393
    %v1395 = vshrl.u32 %v1195, 16
    %v1397 = vrot.slane %v1395, 4
    %v1398 = vor.u32 %v1397, %v1393
    %v1399 = vrot.slane %v1398, 4
    %v1401 = vshll.u32 %v1254, 16
    %v1403 = vrot.slane %v1401, 5
    %v1404 = vsel %vm1284, %v1399, %v1403
    %v1406 = vshrl.u32 %v1196, 16
    %v1408 = vrot.slane %v1406, 4
    %v1409 = vshll.u32 %v1196, 16
    %v1411 = vrot.slane %v1409, 5
    %v1412 = vor.u32 %v1408, %v1411
    %v1413 = vrot.slane %v1412, 4
    %v1415 = vshll.u32 %v1197, 16
    %v1417 = vrot.slane %v1415, 5
    %v1418 = vsel %vm1284, %v1413, %v1417
    %v1419 = vshrl.u32 %v1197, 16
    %v1421 = vrot.slane %v1419, 4
    %v1422 = vor.u32 %v1421, %v1417
    %v1423 = vrot.slane %v1422, 4
    %v1425 = vshll.u32 %v1255, 16
    %v1427 = vrot.slane %v1425, 5
    %v1428 = vsel %vm1284, %v1423, %v1427
    %v1430 = vshrl.u32 %v1198, 16
    %v1432 = vrot.slane %v1430, 4
    %v1433 = vshll.u32 %v1198, 16
    %v1435 = vrot.slane %v1433, 5
    %v1436 = vor.u32 %v1432, %v1435
    %v1437 = vrot.slane %v1436, 4
    %v1439 = vshll.u32 %v1199, 16
    %v1441 = vrot.slane %v1439, 5
    %v1442 = vsel %vm1284, %v1437, %v1441
    %v1443 = vshrl.u32 %v1199, 16
    %v1445 = vrot.slane %v1443, 4
    %v1446 = vor.u32 %v1445, %v1441
    %v1447 = vrot.slane %v1446, 4
    %v1449 = vshll.u32 %v1256, 16
    %v1451 = vrot.slane %v1449, 5
    %v1452 = vsel %vm1284, %v1447, %v1451
    %v1454 = vshrl.u32 %v1200, 16
    %v1456 = vrot.slane %v1454, 4
    %v1457 = vshll.u32 %v1200, 16
    %v1459 = vrot.slane %v1457, 5
    %v1460 = vor.u32 %v1456, %v1459
    %v1461 = vrot.slane %v1460, 4
    %v1463 = vshll.u32 %v1201, 16
    %v1465 = vrot.slane %v1463, 5
    %v1466 = vsel %vm1284, %v1461, %v1465
    %v1467 = vshrl.u32 %v1201, 16
    %v1469 = vrot.slane %v1467, 4
    %v1470 = vor.u32 %v1469, %v1465
    %v1471 = vrot.slane %v1470, 4
    %v1473 = vshll.u32 %v1257, 16
    %v1475 = vrot.slane %v1473, 5
    %v1476 = vsel %vm1284, %v1471, %v1475
    %v1478 = vshrl.u32 %v1202, 16
    %v1480 = vrot.slane %v1478, 4
    %v1481 = vshll.u32 %v1202, 16
    %v1483 = vrot.slane %v1481, 5
    %v1484 = vor.u32 %v1480, %v1483
    %v1485 = vrot.slane %v1484, 4
    %v1487 = vshll.u32 %v1203, 16
    %v1489 = vrot.slane %v1487, 5
    %v1490 = vsel %vm1284, %v1485, %v1489
    %v1491 = vshrl.u32 %v1203, 16
    %v1493 = vrot.slane %v1491, 4
    %v1494 = vor.u32 %v1493, %v1489
    %v1495 = vrot.slane %v1494, 4
    %v1497 = vshll.u32 %v1258, 16
    %v1499 = vrot.slane %v1497, 5
    %v1500 = vsel %vm1284, %v1495, %v1499
    %v1502 = vshrl.u32 %v1204, 16
    %v1504 = vrot.slane %v1502, 4
    %v1505 = vshll.u32 %v1204, 16
    %v1507 = vrot.slane %v1505, 5
    %v1508 = vor.u32 %v1504, %v1507
    %v1509 = vrot.slane %v1508, 4
    %v1511 = vshll.u32 %v1205, 16
    %v1513 = vrot.slane %v1511, 5
    %v1514 = vsel %vm1284, %v1509, %v1513
    %v1515 = vshrl.u32 %v1205, 16
    %v1517 = vrot.slane %v1515, 4
    %v1518 = vor.u32 %v1517, %v1513
    %v1519 = vrot.slane %v1518, 4
    %v1521 = vshll.u32 %v1259, 16
    %v1523 = vrot.slane %v1521, 5
    %v1524 = vsel %vm1284, %v1519, %v1523
    %v1526 = vshrl.u32 %v1206, 16
    %v1528 = vrot.slane %v1526, 4
    %v1529 = vshll.u32 %v1206, 16
    %v1531 = vrot.slane %v1529, 5
    %v1532 = vor.u32 %v1528, %v1531
    %v1533 = vrot.slane %v1532, 4
    %v1535 = vshll.u32 %v1207, 16
    %v1537 = vrot.slane %v1535, 5
    %v1538 = vsel %vm1284, %v1533, %v1537
    %v1539 = vshrl.u32 %v1207, 16
    %v1541 = vrot.slane %v1539, 4
    %v1542 = vor.u32 %v1541, %v1537
    %v1543 = vrot.slane %v1542, 4
    %v1545 = vshll.u32 %v1260, 16
    %v1547 = vrot.slane %v1545, 5
    %v1548 = vsel %vm1284, %v1543, %v1547
    %v1550 = vshrl.u32 %v1208, 16
    %v1552 = vrot.slane %v1550, 4
    %v1553 = vshll.u32 %v1208, 16
    %v1555 = vrot.slane %v1553, 5
    %v1556 = vor.u32 %v1552, %v1555
    %v1557 = vrot.slane %v1556, 4
    %v1559 = vshll.u32 %v1209, 16
    %v1561 = vrot.slane %v1559, 5
    %v1562 = vsel %vm1284, %v1557, %v1561
    %v1563 = vshrl.u32 %v1209, 16
    %v1565 = vrot.slane %v1563, 4
    %v1566 = vor.u32 %v1565, %v1561
    %v1567 = vrot.slane %v1566, 4
    %v1569 = vshll.u32 %v1261, 16
    %v1571 = vrot.slane %v1569, 5
    %v1572 = vsel %vm1284, %v1567, %v1571
    %v1574 = vshrl.u32 %v1210, 16
    %v1576 = vrot.slane %v1574, 4
    %v1577 = vshll.u32 %v1210, 16
    %v1579 = vrot.slane %v1577, 5
    %v1580 = vor.u32 %v1576, %v1579
    %v1581 = vrot.slane %v1580, 4
    %v1583 = vshll.u32 %v1211, 16
    %v1585 = vrot.slane %v1583, 5
    %v1586 = vsel %vm1284, %v1581, %v1585
    %v1587 = vshrl.u32 %v1211, 16
    %v1589 = vrot.slane %v1587, 4
    %v1590 = vor.u32 %v1589, %v1585
    %v1591 = vrot.slane %v1590, 4
    %v1593 = vshll.u32 %v1262, 16
    %v1595 = vrot.slane %v1593, 5
    %v1596 = vsel %vm1284, %v1591, %v1595
    %v1598 = vshrl.u32 %v1212, 16
    %v1600 = vrot.slane %v1598, 4
    %v1601 = vshll.u32 %v1212, 16
    %v1603 = vrot.slane %v1601, 5
    %v1604 = vor.u32 %v1600, %v1603
    %v1605 = vrot.slane %v1604, 4
    %v1607 = vshll.u32 %v1213, 16
    %v1609 = vrot.slane %v1607, 5
    %v1610 = vsel %vm1284, %v1605, %v1609
    %v1611 = vshrl.u32 %v1213, 16
    %v1613 = vrot.slane %v1611, 4
    %v1614 = vor.u32 %v1613, %v1609
    %v1615 = vrot.slane %v1614, 4
    %v1617 = vshll.u32 %v1263, 16
    %v1619 = vrot.slane %v1617, 5
    %v1620 = vsel %vm1284, %v1615, %v1619
    %v1622 = vshrl.u32 %v1214, 16
    %v1624 = vrot.slane %v1622, 4
    %v1625 = vshll.u32 %v1214, 16
    %v1627 = vrot.slane %v1625, 5
    %v1628 = vor.u32 %v1624, %v1627
    %v1629 = vrot.slane %v1628, 4
    %v1631 = vshll.u32 %v1215, 16
    %v1633 = vrot.slane %v1631, 5
    %v1634 = vsel %vm1284, %v1629, %v1633
    %v1635 = vshrl.u32 %v1215, 16
    %v1637 = vrot.slane %v1635, 4
    %v1638 = vor.u32 %v1637, %v1633
    %v1639 = vrot.slane %v1638, 4
    %v1641 = vshll.u32 %v1264, 16
    %v1643 = vrot.slane %v1641, 5
    %v1644 = vsel %vm1284, %v1639, %v1643
    %v1646 = vshrl.u32 %v1216, 16
    %v1648 = vrot.slane %v1646, 4
    %v1649 = vshll.u32 %v1216, 16
    %v1651 = vrot.slane %v1649, 5
    %v1652 = vor.u32 %v1648, %v1651
    %v1653 = vrot.slane %v1652, 4
    %v1655 = vshll.u32 %v1217, 16
    %v1657 = vrot.slane %v1655, 5
    %v1658 = vsel %vm1284, %v1653, %v1657
    %v1659 = vshrl.u32 %v1217, 16
    %v1661 = vrot.slane %v1659, 4
    %v1662 = vor.u32 %v1661, %v1657
    %v1663 = vrot.slane %v1662, 4
    %v1665 = vshll.u32 %v1265, 16
    %v1667 = vrot.slane %v1665, 5
    %v1668 = vsel %vm1284, %v1663, %v1667
    %v1670 = vshrl.u32 %v1218, 16
    %v1672 = vrot.slane %v1670, 4
    %v1673 = vshll.u32 %v1218, 16
    %v1675 = vrot.slane %v1673, 5
    %v1676 = vor.u32 %v1672, %v1675
    %v1677 = vrot.slane %v1676, 4
    %v1679 = vshll.u32 %v1219, 16
    %v1681 = vrot.slane %v1679, 5
    %v1682 = vsel %vm1284, %v1677, %v1681
    %v1683 = vshrl.u32 %v1219, 16
    %v1685 = vrot.slane %v1683, 4
    %v1686 = vor.u32 %v1685, %v1681
    %v1687 = vrot.slane %v1686, 4
    %v1689 = vshll.u32 %v1266, 16
    %v1691 = vrot.slane %v1689, 5
    %v1692 = vsel %vm1284, %v1687, %v1691
    %v1694 = vshrl.u32 %v1220, 16
    %v1696 = vrot.slane %v1694, 4
    %v1697 = vshll.u32 %v1220, 16
    %v1699 = vrot.slane %v1697, 5
    %v1700 = vor.u32 %v1696, %v1699
    %v1701 = vrot.slane %v1700, 4
    %v1703 = vshll.u32 %v1221, 16
    %v1705 = vrot.slane %v1703, 5
    %v1706 = vsel %vm1284, %v1701, %v1705
    %v1707 = vshrl.u32 %v1221, 16
    %v1709 = vrot.slane %v1707, 4
    %v1710 = vor.u32 %v1709, %v1705
    %v1711 = vrot.slane %v1710, 4
    %v1713 = vshll.u32 %v1267, 16
    %v1715 = vrot.slane %v1713, 5
    %v1716 = vsel %vm1284, %v1711, %v1715
    %v1718 = vshrl.u32 %v1222, 16
    %v1720 = vrot.slane %v1718, 4
    %v1721 = vshll.u32 %v1222, 16
    %v1723 = vrot.slane %v1721, 5
    %v1724 = vor.u32 %v1720, %v1723
    %v1725 = vrot.slane %v1724, 4
    %v1727 = vshll.u32 %v1223, 16
    %v1729 = vrot.slane %v1727, 5
    %v1730 = vsel %vm1284, %v1725, %v1729
    %v1731 = vshrl.u32 %v1223, 16
    %v1733 = vrot.slane %v1731, 4
    %v1734 = vor.u32 %v1733, %v1729
    %v1735 = vrot.slane %v1734, 4
    %v1737 = vshll.u32 %v1268, 16
    %v1739 = vrot.slane %v1737, 5
    %v1740 = vsel %vm1284, %v1735, %v1739
    %v1742 = vshrl.u32 %v1224, 16
    %v1744 = vrot.slane %v1742, 4
    %v1745 = vshll.u32 %v1224, 16
    %v1747 = vrot.slane %v1745, 5
    %v1748 = vor.u32 %v1744, %v1747
    %v1749 = vrot.slane %v1748, 4
    %v1751 = vshll.u32 %v1225, 16
    %v1753 = vrot.slane %v1751, 5
    %v1754 = vsel %vm1284, %v1749, %v1753
    %v1755 = vshrl.u32 %v1225, 16
    %v1757 = vrot.slane %v1755, 4
    %v1758 = vor.u32 %v1757, %v1753
    %v1759 = vrot.slane %v1758, 4
    %v1761 = vshll.u32 %v1269, 16
    %v1763 = vrot.slane %v1761, 5
    %v1764 = vsel %vm1284, %v1759, %v1763
    %v1766 = vshrl.u32 %v1226, 16
    %v1768 = vrot.slane %v1766, 4
    %v1769 = vshll.u32 %v1226, 16
    %v1771 = vrot.slane %v1769, 5
    %v1772 = vor.u32 %v1768, %v1771
    %v1773 = vrot.slane %v1772, 4
    %v1775 = vshll.u32 %v1227, 16
    %v1777 = vrot.slane %v1775, 5
    %v1778 = vsel %vm1284, %v1773, %v1777
    %v1779 = vshrl.u32 %v1227, 16
    %v1781 = vrot.slane %v1779, 4
    %v1782 = vor.u32 %v1781, %v1777
    %v1783 = vrot.slane %v1782, 4
    %v1785 = vshll.u32 %v1270, 16
    %v1787 = vrot.slane %v1785, 5
    %v1788 = vsel %vm1284, %v1783, %v1787
    %v1790 = vshrl.u32 %v1228, 16
    %v1792 = vrot.slane %v1790, 4
    %v1793 = vshll.u32 %v1228, 16
    %v1795 = vrot.slane %v1793, 5
    %v1796 = vor.u32 %v1792, %v1795
    %v1797 = vrot.slane %v1796, 4
    %v1799 = vshll.u32 %v1229, 16
    %v1801 = vrot.slane %v1799, 5
    %v1802 = vsel %vm1284, %v1797, %v1801
    %v1803 = vshrl.u32 %v1229, 16
    %v1805 = vrot.slane %v1803, 4
    %v1806 = vor.u32 %v1805, %v1801
    %v1807 = vrot.slane %v1806, 4
    %v1809 = vshll.u32 %v1271, 16
    %v1811 = vrot.slane %v1809, 5
    %v1812 = vsel %vm1284, %v1807, %v1811
    %v1814 = vshrl.u32 %v1230, 16
    %v1816 = vrot.slane %v1814, 4
    %v1817 = vshll.u32 %v1230, 16
    %v1819 = vrot.slane %v1817, 5
    %v1820 = vor.u32 %v1816, %v1819
    %v1821 = vrot.slane %v1820, 4
    %v1823 = vshll.u32 %v1231, 16
    %v1825 = vrot.slane %v1823, 5
    %v1826 = vsel %vm1284, %v1821, %v1825
    %v1827 = vshrl.u32 %v1231, 16
    %v1829 = vrot.slane %v1827, 4
    %v1830 = vor.u32 %v1829, %v1825
    %v1831 = vrot.slane %v1830, 4
    %v1833 = vshll.u32 %v1272, 16
    %v1835 = vrot.slane %v1833, 5
    %v1836 = vsel %vm1284, %v1831, %v1835
    %v1838 = vshrl.u32 %v1232, 16
    %v1840 = vrot.slane %v1838, 4
    %v1841 = vshll.u32 %v1232, 16
    %v1843 = vrot.slane %v1841, 5
    %v1844 = vor.u32 %v1840, %v1843
    %v1845 = vrot.slane %v1844, 4
    %v1847 = vshll.u32 %v1233, 16
    %v1849 = vrot.slane %v1847, 5
    %v1850 = vsel %vm1284, %v1845, %v1849
    %v1851 = vshrl.u32 %v1233, 16
    %v1853 = vrot.slane %v1851, 4
    %v1854 = vor.u32 %v1853, %v1849
    %v1855 = vrot.slane %v1854, 4
    %v1857 = vshll.u32 %v1273, 16
    %v1859 = vrot.slane %v1857, 5
    %v1860 = vsel %vm1284, %v1855, %v1859
    %v1862 = vshrl.u32 %v1234, 16
    %v1864 = vrot.slane %v1862, 4
    %v1865 = vshll.u32 %v1234, 16
    %v1867 = vrot.slane %v1865, 5
    %v1868 = vor.u32 %v1864, %v1867
    %v1869 = vrot.slane %v1868, 4
    %v1871 = vshll.u32 %v1235, 16
    %v1873 = vrot.slane %v1871, 5
    %v1874 = vsel %vm1284, %v1869, %v1873
    %v1875 = vshrl.u32 %v1235, 16
    %v1877 = vrot.slane %v1875, 4
    %v1878 = vor.u32 %v1877, %v1873
    %v1879 = vrot.slane %v1878, 4
    %v1881 = vshll.u32 %v1274, 16
    %v1883 = vrot.slane %v1881, 5
    %v1884 = vsel %vm1284, %v1879, %v1883
    %v1886 = vshrl.u32 %v1236, 16
    %v1888 = vrot.slane %v1886, 4
    %v1889 = vshll.u32 %v1236, 16
    %v1891 = vrot.slane %v1889, 5
    %v1892 = vor.u32 %v1888, %v1891
    %v1893 = vrot.slane %v1892, 4
    %v1895 = vshll.u32 %v1237, 16
    %v1897 = vrot.slane %v1895, 5
    %v1898 = vsel %vm1284, %v1893, %v1897
    %v1899 = vshrl.u32 %v1237, 16
    %v1901 = vrot.slane %v1899, 4
    %v1902 = vor.u32 %v1901, %v1897
    %v1903 = vrot.slane %v1902, 4
    %v1905 = vshll.u32 %v1275, 16
    %v1907 = vrot.slane %v1905, 5
    %v1908 = vsel %vm1284, %v1903, %v1907
    %v1910 = vshrl.u32 %v1238, 16
    %v1912 = vrot.slane %v1910, 4
    %v1913 = vshll.u32 %v1238, 16
    %v1915 = vrot.slane %v1913, 5
    %v1916 = vor.u32 %v1912, %v1915
    %v1917 = vrot.slane %v1916, 4
    %v1919 = vshll.u32 %v1239, 16
    %v1921 = vrot.slane %v1919, 5
    %v1922 = vsel %vm1284, %v1917, %v1921
    %v1923 = vshrl.u32 %v1239, 16
    %v1925 = vrot.slane %v1923, 4
    %v1926 = vor.u32 %v1925, %v1921
    %v1927 = vrot.slane %v1926, 4
    %v1929 = vshll.u32 %v1276, 16
    %v1931 = vrot.slane %v1929, 5
    %v1932 = vsel %vm1284, %v1927, %v1931
    %v1934 = vshrl.u32 %v1240, 16
    %v1936 = vrot.slane %v1934, 4
    %v1937 = vshll.u32 %v1240, 16
    %v1939 = vrot.slane %v1937, 5
    %v1940 = vor.u32 %v1936, %v1939
    %v1941 = vrot.slane %v1940, 4
    %v1943 = vshll.u32 %v1241, 16
    %v1945 = vrot.slane %v1943, 5
    %v1946 = vsel %vm1284, %v1941, %v1945
    %v1947 = vshrl.u32 %v1241, 16
    %v1949 = vrot.slane %v1947, 4
    %v1950 = vor.u32 %v1949, %v1945
    %v1951 = vrot.slane %v1950, 4
    %v1953 = vshll.u32 %v1277, 16
    %v1955 = vrot.slane %v1953, 5
    %v1956 = vsel %vm1284, %v1951, %v1955
    %v1958 = vshrl.u32 %v1242, 16
    %v1960 = vrot.slane %v1958, 4
    %v1961 = vshll.u32 %v1242, 16
    %v1963 = vrot.slane %v1961, 5
    %v1964 = vor.u32 %v1960, %v1963
    %v1965 = vrot.slane %v1964, 4
    %v1967 = vshll.u32 %v1243, 16
    %v1969 = vrot.slane %v1967, 5
    %v1970 = vsel %vm1284, %v1965, %v1969
    %v1971 = vshrl.u32 %v1243, 16
    %v1973 = vrot.slane %v1971, 4
    %v1974 = vor.u32 %v1973, %v1969
    %v1975 = vrot.slane %v1974, 4
    %v1977 = vshll.u32 %v1278, 16
    %v1979 = vrot.slane %v1977, 5
    %v1980 = vsel %vm1284, %v1975, %v1979
    %v1982 = vshrl.u32 %v1244, 16
    %v1984 = vrot.slane %v1982, 4
    %v1985 = vshll.u32 %v1244, 16
    %v1987 = vrot.slane %v1985, 5
    %v1988 = vor.u32 %v1984, %v1987
    %v1989 = vrot.slane %v1988, 4
    %v1991 = vshll.u32 %v1245, 16
    %v1993 = vrot.slane %v1991, 5
    %v1994 = vsel %vm1284, %v1989, %v1993
    %v1995 = vshrl.u32 %v1245, 16
    %v1997 = vrot.slane %v1995, 4
    %v1998 = vor.u32 %v1997, %v1993
    %v1999 = vrot.slane %v1998, 4
    %v2001 = vshll.u32 %v1279, 16
    %v2003 = vrot.slane %v2001, 5
    %v2004 = vsel %vm1284, %v1999, %v2003
    %v2006 = vshrl.u32 %v1246, 16
    %v2008 = vrot.slane %v2006, 4
    %v2009 = vshll.u32 %v1246, 16
    %v2011 = vrot.slane %v2009, 5
    %v2012 = vor.u32 %v2008, %v2011
    %v2013 = vrot.slane %v2012, 4
    %v2015 = vshll.u32 %v1247, 16
    %v2017 = vrot.slane %v2015, 5
    %v2018 = vsel %vm1284, %v2013, %v2017
    %v2019 = vshrl.u32 %v1247, 16
    %v2021 = vrot.slane %v2019, 4
    %v2022 = vor.u32 %v2021, %v2017
    %v2023 = vrot.slane %v2022, 4
    %v2025 = vshll.u32 %v1280, 16
    %v2027 = vrot.slane %v2025, 5
    %v2028 = vsel %vm1284, %v2023, %v2027
    %v2030 = vshrl.u32 %v1248, 16
    %v2032 = vrot.slane %v2030, 4
    %v2033 = vshll.u32 %v1248, 16
    %v2035 = vrot.slane %v2033, 5
    %v2036 = vor.u32 %v2032, %v2035
    %v2037 = vrot.slane %v2036, 4
    %v2039 = vshll.u32 %v1249, 16
    %v2041 = vrot.slane %v2039, 5
    %v2042 = vsel %vm1284, %v2037, %v2041
    %v2043 = vshrl.u32 %v1249, 16
    %v2045 = vrot.slane %v2043, 4
    %v2046 = vor.u32 %v2045, %v2041
    %v2047 = vrot.slane %v2046, 4
    %v2049 = vshll.u32 %v1281, 16
    %v2051 = vrot.slane %v2049, 5
    %v2052 = vsel %vm1284, %v2047, %v2051
    %v2053 = vld [vmem:[#allocation2] sm:$0xe]
    %v2054 = vld [vmem:[#allocation2 + $0xc] sm:$0xe]
    %v2055 = vld [vmem:[#allocation2 + $0x18] sm:$0xe]
    %v2056 = vld [vmem:[#allocation2 + $0x24] sm:$0xe]
    %v2057 = vld [vmem:[#allocation2 + $0x30] sm:$0xe]
    %v2058 = vld [vmem:[#allocation2 + $0x3c] sm:$0xe]
    %v2059 = vld [vmem:[#allocation2 + $0x48] sm:$0xe]
    %v2060 = vld [vmem:[#allocation2 + $0x54] sm:$0xe]
    %v2061 = vld [vmem:[#allocation2 + $0x60] sm:$0xe]
    %v2062 = vld [vmem:[#allocation2 + $0x6c] sm:$0xe]
    %v2063 = vld [vmem:[#allocation2 + $0x78] sm:$0xe]
    %v2064 = vld [vmem:[#allocation2 + $0x84] sm:$0xe]
    %v2065 = vld [vmem:[#allocation2 + $0x90] sm:$0xe]
    %v2066 = vld [vmem:[#allocation2 + $0x9c] sm:$0xe]
    %v2067 = vld [vmem:[#allocation2 + $0xa8] sm:$0xe]
    %v2068 = vld [vmem:[#allocation2 + $0xb4] sm:$0xe]
    %v2069 = vld [vmem:[#allocation2 + $0xd8] sm:$0xe]
    %v2070 = vld [vmem:[#allocation2 + $0xe4] sm:$0xe]
    %v2071 = vld [vmem:[#allocation2 + $0xf0] sm:$0xe]
    %v2072 = vld [vmem:[#allocation2 + $0xfc] sm:$0xe]
    %v2073 = vld [vmem:[#allocation2 + $0x108] sm:$0xe]
    %v2074 = vld [vmem:[#allocation2 + $0x114] sm:$0xe]
    %v2075 = vld [vmem:[#allocation2 + $0x120] sm:$0xe]
    %v2076 = vld [vmem:[#allocation2 + $0x12c] sm:$0xe]
    %v2077 = vld [vmem:[#allocation2 + $0x138] sm:$0xe]
    %v2078 = vld [vmem:[#allocation2 + $0x144] sm:$0xe]
    %v2079 = vld [vmem:[#allocation2 + $0x150] sm:$0xe]
    %v2080 = vld [vmem:[#allocation2 + $0x15c] sm:$0xe]
    %v2081 = vld [vmem:[#allocation2 + $0x168] sm:$0xe]
    %v2082 = vld [vmem:[#allocation2 + $0x174] sm:$0xe]
    %v2083 = vld [vmem:[#allocation2 + $0x180] sm:$0xe]
    %v2084 = vld [vmem:[#allocation2 + $0x18c] sm:$0xe]
    %vm2181 = vcmask 1042432
    %vm2182 = vcmask 1046532
    %vm2183 = vmor %vm2181, %vm2182
    %v2184 = vrot.slane %v2053, 5
    %v2185 = vrot.slane %v2184, 4
    %v2186 = vrot.slane %v1187, 5
    %v2187 = vsel %vm2183, %v2185, %v2186
    %v2188 = vrot.slane %v2186, 4
    %v2189 = vrot.slane %v1250, 5
    %v2190 = vsel %vm2183, %v2188, %v2189
    %v2191 = vrot.slane %v2054, 5
    %v2192 = vrot.slane %v2191, 4
    %v2193 = vrot.slane %v1189, 5
    %v2194 = vsel %vm2183, %v2192, %v2193
    %v2195 = vrot.slane %v2193, 4
    %v2196 = vrot.slane %v1251, 5
    %v2197 = vsel %vm2183, %v2195, %v2196
    %v2198 = vrot.slane %v2055, 5
    %v2199 = vrot.slane %v2198, 4
    %v2200 = vrot.slane %v1191, 5
    %v2201 = vsel %vm2183, %v2199, %v2200
    %v2202 = vrot.slane %v2200, 4
    %v2203 = vrot.slane %v1252, 5
    %v2204 = vsel %vm2183, %v2202, %v2203
    %v2205 = vrot.slane %v2056, 5
    %v2206 = vrot.slane %v2205, 4
    %v2207 = vrot.slane %v1193, 5
    %v2208 = vsel %vm2183, %v2206, %v2207
    %v2209 = vrot.slane %v2207, 4
    %v2210 = vrot.slane %v1253, 5
    %v2211 = vsel %vm2183, %v2209, %v2210
    %v2212 = vrot.slane %v2057, 5
    %v2213 = vrot.slane %v2212, 4
    %v2214 = vrot.slane %v1195, 5
    %v2215 = vsel %vm2183, %v2213, %v2214
    %v2216 = vrot.slane %v2214, 4
    %v2217 = vrot.slane %v1254, 5
    %v2218 = vsel %vm2183, %v2216, %v2217
    %v2219 = vrot.slane %v2058, 5
    %v2220 = vrot.slane %v2219, 4
    %v2221 = vrot.slane %v1197, 5
    %v2222 = vsel %vm2183, %v2220, %v2221
    %v2223 = vrot.slane %v2221, 4
    %v2224 = vrot.slane %v1255, 5
    %v2225 = vsel %vm2183, %v2223, %v2224
    %v2226 = vrot.slane %v2059, 5
    %v2227 = vrot.slane %v2226, 4
    %v2228 = vrot.slane %v1199, 5
    %v2229 = vsel %vm2183, %v2227, %v2228
    %v2230 = vrot.slane %v2228, 4
    %v2231 = vrot.slane %v1256, 5
    %v2232 = vsel %vm2183, %v2230, %v2231
    %v2233 = vrot.slane %v2060, 5
    %v2234 = vrot.slane %v2233, 4
    %v2235 = vrot.slane %v1201, 5
    %v2236 = vsel %vm2183, %v2234, %v2235
    %v2237 = vrot.slane %v2235, 4
    %v2238 = vrot.slane %v1257, 5
    %v2239 = vsel %vm2183, %v2237, %v2238
    %v2240 = vrot.slane %v2061, 5
    %v2241 = vrot.slane %v2240, 4
    %v2242 = vrot.slane %v1203, 5
    %v2243 = vsel %vm2183, %v2241, %v2242
    %v2244 = vrot.slane %v2242, 4
    %v2245 = vrot.slane %v1258, 5
    %v2246 = vsel %vm2183, %v2244, %v2245
    %v2247 = vrot.slane %v2062, 5
    %v2248 = vrot.slane %v2247, 4
    %v2249 = vrot.slane %v1205, 5
    %v2250 = vsel %vm2183, %v2248, %v2249
    %v2251 = vrot.slane %v2249, 4
    %v2252 = vrot.slane %v1259, 5
    %v2253 = vsel %vm2183, %v2251, %v2252
    %v2254 = vrot.slane %v2063, 5
    %v2255 = vrot.slane %v2254, 4
    %v2256 = vrot.slane %v1207, 5
    %v2257 = vsel %vm2183, %v2255, %v2256
    %v2258 = vrot.slane %v2256, 4
    %v2259 = vrot.slane %v1260, 5
    %v2260 = vsel %vm2183, %v2258, %v2259
    %v2261 = vrot.slane %v2064, 5
    %v2262 = vrot.slane %v2261, 4
    %v2263 = vrot.slane %v1209, 5
    %v2264 = vsel %vm2183, %v2262, %v2263
    %v2265 = vrot.slane %v2263, 4
    %v2266 = vrot.slane %v1261, 5
    %v2267 = vsel %vm2183, %v2265, %v2266
    %v2268 = vrot.slane %v2065, 5
    %v2269 = vrot.slane %v2268, 4
    %v2270 = vrot.slane %v1211, 5
    %v2271 = vsel %vm2183, %v2269, %v2270
    %v2272 = vrot.slane %v2270, 4
    %v2273 = vrot.slane %v1262, 5
    %v2274 = vsel %vm2183, %v2272, %v2273
    %v2275 = vrot.slane %v2066, 5
    %v2276 = vrot.slane %v2275, 4
    %v2277 = vrot.slane %v1213, 5
    %v2278 = vsel %vm2183, %v2276, %v2277
    %v2279 = vrot.slane %v2277, 4
    %v2280 = vrot.slane %v1263, 5
    %v2281 = vsel %vm2183, %v2279, %v2280
    %v2282 = vrot.slane %v2067, 5
    %v2283 = vrot.slane %v2282, 4
    %v2284 = vrot.slane %v1215, 5
    %v2285 = vsel %vm2183, %v2283, %v2284
    %v2286 = vrot.slane %v2284, 4
    %v2287 = vrot.slane %v1264, 5
    %v2288 = vsel %vm2183, %v2286, %v2287
    %v2289 = vrot.slane %v2068, 5
    %v2290 = vrot.slane %v2289, 4
    %v2291 = vrot.slane %v1217, 5
    %v2292 = vsel %vm2183, %v2290, %v2291
    %v2293 = vrot.slane %v2291, 4
    %v2294 = vrot.slane %v1265, 5
    %v2295 = vsel %vm2183, %v2293, %v2294
    %v2296 = vrot.slane %v2069, 5
    %v2297 = vrot.slane %v2296, 4
    %v2298 = vrot.slane %v1219, 5
    %v2299 = vsel %vm2183, %v2297, %v2298
    %v2300 = vrot.slane %v2298, 4
    %v2301 = vrot.slane %v1266, 5
    %v2302 = vsel %vm2183, %v2300, %v2301
    %v2303 = vrot.slane %v2070, 5
    %v2304 = vrot.slane %v2303, 4
    %v2305 = vrot.slane %v1221, 5
    %v2306 = vsel %vm2183, %v2304, %v2305
    %v2307 = vrot.slane %v2305, 4
    %v2308 = vrot.slane %v1267, 5
    %v2309 = vsel %vm2183, %v2307, %v2308
    %v2310 = vrot.slane %v2071, 5
    %v2311 = vrot.slane %v2310, 4
    %v2312 = vrot.slane %v1223, 5
    %v2313 = vsel %vm2183, %v2311, %v2312
    %v2314 = vrot.slane %v2312, 4
    %v2315 = vrot.slane %v1268, 5
    %v2316 = vsel %vm2183, %v2314, %v2315
    %v2317 = vrot.slane %v2072, 5
    %v2318 = vrot.slane %v2317, 4
    %v2319 = vrot.slane %v1225, 5
    %v2320 = vsel %vm2183, %v2318, %v2319
    %v2321 = vrot.slane %v2319, 4
    %v2322 = vrot.slane %v1269, 5
    %v2323 = vsel %vm2183, %v2321, %v2322
    %v2324 = vrot.slane %v2073, 5
    %v2325 = vrot.slane %v2324, 4
    %v2326 = vrot.slane %v1227, 5
    %v2327 = vsel %vm2183, %v2325, %v2326
    %v2328 = vrot.slane %v2326, 4
    %v2329 = vrot.slane %v1270, 5
    %v2330 = vsel %vm2183, %v2328, %v2329
    %v2331 = vrot.slane %v2074, 5
    %v2332 = vrot.slane %v2331, 4
    %v2333 = vrot.slane %v1229, 5
    %v2334 = vsel %vm2183, %v2332, %v2333
    %v2335 = vrot.slane %v2333, 4
    %v2336 = vrot.slane %v1271, 5
    %v2337 = vsel %vm2183, %v2335, %v2336
    %v2338 = vrot.slane %v2075, 5
    %v2339 = vrot.slane %v2338, 4
    %v2340 = vrot.slane %v1231, 5
    %v2341 = vsel %vm2183, %v2339, %v2340
    %v2342 = vrot.slane %v2340, 4
    %v2343 = vrot.slane %v1272, 5
    %v2344 = vsel %vm2183, %v2342, %v2343
    %v2345 = vrot.slane %v2076, 5
    %v2346 = vrot.slane %v2345, 4
    %v2347 = vrot.slane %v1233, 5
    %v2348 = vsel %vm2183, %v2346, %v2347
    %v2349 = vrot.slane %v2347, 4
    %v2350 = vrot.slane %v1273, 5
    %v2351 = vsel %vm2183, %v2349, %v2350
    %v2352 = vrot.slane %v2077, 5
    %v2353 = vrot.slane %v2352, 4
    %v2354 = vrot.slane %v1235, 5
    %v2355 = vsel %vm2183, %v2353, %v2354
    %v2356 = vrot.slane %v2354, 4
    %v2357 = vrot.slane %v1274, 5
    %v2358 = vsel %vm2183, %v2356, %v2357
    %v2359 = vrot.slane %v2078, 5
    %v2360 = vrot.slane %v2359, 4
    %v2361 = vrot.slane %v1237, 5
    %v2362 = vsel %vm2183, %v2360, %v2361
    %v2363 = vrot.slane %v2361, 4
    %v2364 = vrot.slane %v1275, 5
    %v2365 = vsel %vm2183, %v2363, %v2364
    %v2366 = vrot.slane %v2079, 5
    %v2367 = vrot.slane %v2366, 4
    %v2368 = vrot.slane %v1239, 5
    %v2369 = vsel %vm2183, %v2367, %v2368
    %v2370 = vrot.slane %v2368, 4
    %v2371 = vrot.slane %v1276, 5
    %v2372 = vsel %vm2183, %v2370, %v2371
    %v2373 = vrot.slane %v2080, 5
    %v2374 = vrot.slane %v2373, 4
    %v2375 = vrot.slane %v1241, 5
    %v2376 = vsel %vm2183, %v2374, %v2375
    %v2377 = vrot.slane %v2375, 4
    %v2378 = vrot.slane %v1277, 5
    %v2379 = vsel %vm2183, %v2377, %v2378
    %v2380 = vrot.slane %v2081, 5
    %v2381 = vrot.slane %v2380, 4
    %v2382 = vrot.slane %v1243, 5
    %v2383 = vsel %vm2183, %v2381, %v2382
    %v2384 = vrot.slane %v2382, 4
    %v2385 = vrot.slane %v1278, 5
    %v2386 = vsel %vm2183, %v2384, %v2385
    %v2387 = vrot.slane %v2082, 5
    %v2388 = vrot.slane %v2387, 4
    %v2389 = vrot.slane %v1245, 5
    %v2390 = vsel %vm2183, %v2388, %v2389
    %v2391 = vrot.slane %v2389, 4
    %v2392 = vrot.slane %v1279, 5
    %v2393 = vsel %vm2183, %v2391, %v2392
    %v2394 = vrot.slane %v2083, 5
    %v2395 = vrot.slane %v2394, 4
    %v2396 = vrot.slane %v1247, 5
    %v2397 = vsel %vm2183, %v2395, %v2396
    %v2398 = vrot.slane %v2396, 4
    %v2399 = vrot.slane %v1280, 5
    %v2400 = vsel %vm2183, %v2398, %v2399
    %v2401 = vrot.slane %v2084, 5
    %v2402 = vrot.slane %v2401, 4
    %v2403 = vrot.slane %v1249, 5
    %v2404 = vsel %vm2183, %v2402, %v2403
    %v2405 = vrot.slane %v2403, 4
    %v2406 = vrot.slane %v1281, 5
    %v2407 = vsel %vm2183, %v2405, %v2406
    %v2408 = vld [vmem:[%s959] sm:$0xf]
    %v2409 = vld [vmem:[%s959 + $0x4] sm:$0xf]
    %v2410 = vld [vmem:[%s959 + $0xc] sm:$0xf]
    %v2411 = vld [vmem:[%s959 + $0x10] sm:$0xf]
    %v2412 = vld [vmem:[%s959 + $0x18] sm:$0xf]
    %v2413 = vld [vmem:[%s959 + $0x1c] sm:$0xf]
    %v2414 = vld [vmem:[%s959 + $0x24] sm:$0xf]
    %v2415 = vld [vmem:[%s959 + $0x28] sm:$0xf]
    %v2416 = vld [vmem:[%s959 + $0x30] sm:$0xf]
    %v2417 = vld [vmem:[%s959 + $0x34] sm:$0xf]
    %v2418 = vld [vmem:[%s959 + $0x3c] sm:$0xf]
    %v2419 = vld [vmem:[%s959 + $0x40] sm:$0xf]
    %v2420 = vld [vmem:[%s959 + $0x48] sm:$0xf]
    %v2421 = vld [vmem:[%s959 + $0x4c] sm:$0xf]
    %v2422 = vld [vmem:[%s959 + $0x54] sm:$0xf]
    %v2423 = vld [vmem:[%s959 + $0x58] sm:$0xf]
    %v2424 = vld [vmem:[%s959 + $0x60] sm:$0xf]
    %v2425 = vld [vmem:[%s959 + $0x64] sm:$0xf]
    %v2426 = vld [vmem:[%s959 + $0x6c] sm:$0xf]
    %v2427 = vld [vmem:[%s959 + $0x70] sm:$0xf]
    %v2428 = vld [vmem:[%s959 + $0x78] sm:$0xf]
    %v2429 = vld [vmem:[%s959 + $0x7c] sm:$0xf]
    %v2430 = vld [vmem:[%s959 + $0x84] sm:$0xf]
    %v2431 = vld [vmem:[%s959 + $0x88] sm:$0xf]
    %v2432 = vld [vmem:[%s959 + $0x90] sm:$0xf]
    %v2433 = vld [vmem:[%s959 + $0x94] sm:$0xf]
    %v2434 = vld [vmem:[%s959 + $0x9c] sm:$0xf]
    %v2435 = vld [vmem:[%s959 + $0xa0] sm:$0xf]
    %v2436 = vld [vmem:[%s959 + $0xa8] sm:$0xf]
    %v2437 = vld [vmem:[%s959 + $0xac] sm:$0xf]
    %v2438 = vld [vmem:[%s959 + $0xb4] sm:$0xf]
    %v2439 = vld [vmem:[%s959 + $0xb8] sm:$0xf]
    %v2440 = vld [vmem:[%s959 + $0xd8] sm:$0xf]
    %v2441 = vld [vmem:[%s959 + $0xdc] sm:$0xf]
    %v2442 = vld [vmem:[%s959 + $0xe4] sm:$0xf]
    %v2443 = vld [vmem:[%s959 + $0xe8] sm:$0xf]
    %v2444 = vld [vmem:[%s959 + $0xf0] sm:$0xf]
    %v2445 = vld [vmem:[%s959 + $0xf4] sm:$0xf]
    %v2446 = vld [vmem:[%s959 + $0xfc] sm:$0xf]
    %v2447 = vld [vmem:[%s959 + $0x100] sm:$0xf]
    %v2448 = vld [vmem:[%s959 + $0x108] sm:$0xf]
    %v2449 = vld [vmem:[%s959 + $0x10c] sm:$0xf]
    %v2450 = vld [vmem:[%s959 + $0x114] sm:$0xf]
    %v2451 = vld [vmem:[%s959 + $0x118] sm:$0xf]
    %v2452 = vld [vmem:[%s959 + $0x120] sm:$0xf]
    %v2453 = vld [vmem:[%s959 + $0x124] sm:$0xf]
    %v2454 = vld [vmem:[%s959 + $0x12c] sm:$0xf]
    %v2455 = vld [vmem:[%s959 + $0x130] sm:$0xf]
    %v2456 = vld [vmem:[%s959 + $0x138] sm:$0xf]
    %v2457 = vld [vmem:[%s959 + $0x13c] sm:$0xf]
    %v2458 = vld [vmem:[%s959 + $0x144] sm:$0xf]
    %v2459 = vld [vmem:[%s959 + $0x148] sm:$0xf]
    %v2460 = vld [vmem:[%s959 + $0x150] sm:$0xf]
    %v2461 = vld [vmem:[%s959 + $0x154] sm:$0xf]
    %v2462 = vld [vmem:[%s959 + $0x15c] sm:$0xf]
    %v2463 = vld [vmem:[%s959 + $0x160] sm:$0xf]
    %v2464 = vld [vmem:[%s959 + $0x168] sm:$0xf]
    %v2465 = vld [vmem:[%s959 + $0x16c] sm:$0xf]
    %v2466 = vld [vmem:[%s959 + $0x174] sm:$0xf]
    %v2467 = vld [vmem:[%s959 + $0x178] sm:$0xf]
    %v2468 = vld [vmem:[%s959 + $0x180] sm:$0xf]
    %v2469 = vld [vmem:[%s959 + $0x184] sm:$0xf]
    %v2470 = vld [vmem:[%s959 + $0x18c] sm:$0xf]
    %v2471 = vld [vmem:[%s959 + $0x190] sm:$0xf]
    %v2472 = vld [vmem:[%s959 + $0x8] sm:$0x1]
    %v2473 = vld [vmem:[%s959 + $0x14] sm:$0x1]
    %v2474 = vld [vmem:[%s959 + $0x20] sm:$0x1]
    %v2475 = vld [vmem:[%s959 + $0x2c] sm:$0x1]
    %v2476 = vld [vmem:[%s959 + $0x38] sm:$0x1]
    %v2477 = vld [vmem:[%s959 + $0x44] sm:$0x1]
    %v2478 = vld [vmem:[%s959 + $0x50] sm:$0x1]
    %v2479 = vld [vmem:[%s959 + $0x5c] sm:$0x1]
    %v2480 = vld [vmem:[%s959 + $0x68] sm:$0x1]
    %v2481 = vld [vmem:[%s959 + $0x74] sm:$0x1]
    %v2482 = vld [vmem:[%s959 + $0x80] sm:$0x1]
    %v2483 = vld [vmem:[%s959 + $0x8c] sm:$0x1]
    %v2484 = vld [vmem:[%s959 + $0x98] sm:$0x1]
    %v2485 = vld [vmem:[%s959 + $0xa4] sm:$0x1]
    %v2486 = vld [vmem:[%s959 + $0xb0] sm:$0x1]
    %v2487 = vld [vmem:[%s959 + $0xbc] sm:$0x1]
    %v2488 = vld [vmem:[%s959 + $0xe0] sm:$0x1]
    %v2489 = vld [vmem:[%s959 + $0xec] sm:$0x1]
    %v2490 = vld [vmem:[%s959 + $0xf8] sm:$0x1]
    %v2491 = vld [vmem:[%s959 + $0x104] sm:$0x1]
    %v2492 = vld [vmem:[%s959 + $0x110] sm:$0x1]
    %v2493 = vld [vmem:[%s959 + $0x11c] sm:$0x1]
    %v2494 = vld [vmem:[%s959 + $0x128] sm:$0x1]
    %v2495 = vld [vmem:[%s959 + $0x134] sm:$0x1]
    %v2496 = vld [vmem:[%s959 + $0x140] sm:$0x1]
    %v2497 = vld [vmem:[%s959 + $0x14c] sm:$0x1]
    %v2498 = vld [vmem:[%s959 + $0x158] sm:$0x1]
    %v2499 = vld [vmem:[%s959 + $0x164] sm:$0x1]
    %v2500 = vld [vmem:[%s959 + $0x170] sm:$0x1]
    %v2501 = vld [vmem:[%s959 + $0x17c] sm:$0x1]
    %v2502 = vld [vmem:[%s959 + $0x188] sm:$0x1]
    %v2503 = vld [vmem:[%s959 + $0x194] sm:$0x1]
    %v2505 = vshrl.u32 %v2408, 16
    %v2507 = vrot.slane %v2505, 4
    %v2508 = vshll.u32 %v2408, 16
    %v2510 = vrot.slane %v2508, 5
    %v2511 = vor.u32 %v2507, %v2510
    %v2512 = vrot.slane %v2511, 4
    %v2514 = vshll.u32 %v2409, 16
    %v2516 = vrot.slane %v2514, 5
    %v2517 = vsel %vm1284, %v2512, %v2516
    %v2518 = vshrl.u32 %v2409, 16
    %v2520 = vrot.slane %v2518, 4
    %v2521 = vor.u32 %v2520, %v2516
    %v2522 = vrot.slane %v2521, 4
    %v2524 = vshll.u32 %v2472, 16
    %v2526 = vrot.slane %v2524, 5
    %v2527 = vsel %vm1284, %v2522, %v2526
    %v2529 = vshrl.u32 %v2410, 16
    %v2531 = vrot.slane %v2529, 4
    %v2532 = vshll.u32 %v2410, 16
    %v2534 = vrot.slane %v2532, 5
    %v2535 = vor.u32 %v2531, %v2534
    %v2536 = vrot.slane %v2535, 4
    %v2538 = vshll.u32 %v2411, 16
    %v2540 = vrot.slane %v2538, 5
    %v2541 = vsel %vm1284, %v2536, %v2540
    %v2542 = vshrl.u32 %v2411, 16
    %v2544 = vrot.slane %v2542, 4
    %v2545 = vor.u32 %v2544, %v2540
    %v2546 = vrot.slane %v2545, 4
    %v2548 = vshll.u32 %v2473, 16
    %v2550 = vrot.slane %v2548, 5
    %v2551 = vsel %vm1284, %v2546, %v2550
    %v2553 = vshrl.u32 %v2412, 16
    %v2555 = vrot.slane %v2553, 4
    %v2556 = vshll.u32 %v2412, 16
    %v2558 = vrot.slane %v2556, 5
    %v2559 = vor.u32 %v2555, %v2558
    %v2560 = vrot.slane %v2559, 4
    %v2562 = vshll.u32 %v2413, 16
    %v2564 = vrot.slane %v2562, 5
    %v2565 = vsel %vm1284, %v2560, %v2564
    %v2566 = vshrl.u32 %v2413, 16
    %v2568 = vrot.slane %v2566, 4
    %v2569 = vor.u32 %v2568, %v2564
    %v2570 = vrot.slane %v2569, 4
    %v2572 = vshll.u32 %v2474, 16
    %v2574 = vrot.slane %v2572, 5
    %v2575 = vsel %vm1284, %v2570, %v2574
    %v2577 = vshrl.u32 %v2414, 16
    %v2579 = vrot.slane %v2577, 4
    %v2580 = vshll.u32 %v2414, 16
    %v2582 = vrot.slane %v2580, 5
    %v2583 = vor.u32 %v2579, %v2582
    %v2584 = vrot.slane %v2583, 4
    %v2586 = vshll.u32 %v2415, 16
    %v2588 = vrot.slane %v2586, 5
    %v2589 = vsel %vm1284, %v2584, %v2588
    %v2590 = vshrl.u32 %v2415, 16
    %v2592 = vrot.slane %v2590, 4
    %v2593 = vor.u32 %v2592, %v2588
    %v2594 = vrot.slane %v2593, 4
    %v2596 = vshll.u32 %v2475, 16
    %v2598 = vrot.slane %v2596, 5
    %v2599 = vsel %vm1284, %v2594, %v2598
    %v2601 = vshrl.u32 %v2416, 16
    %v2603 = vrot.slane %v2601, 4
    %v2604 = vshll.u32 %v2416, 16
    %v2606 = vrot.slane %v2604, 5
    %v2607 = vor.u32 %v2603, %v2606
    %v2608 = vrot.slane %v2607, 4
    %v2610 = vshll.u32 %v2417, 16
    %v2612 = vrot.slane %v2610, 5
    %v2613 = vsel %vm1284, %v2608, %v2612
    %v2614 = vshrl.u32 %v2417, 16
    %v2616 = vrot.slane %v2614, 4
    %v2617 = vor.u32 %v2616, %v2612
    %v2618 = vrot.slane %v2617, 4
    %v2620 = vshll.u32 %v2476, 16
    %v2622 = vrot.slane %v2620, 5
    %v2623 = vsel %vm1284, %v2618, %v2622
    %v2625 = vshrl.u32 %v2418, 16
    %v2627 = vrot.slane %v2625, 4
    %v2628 = vshll.u32 %v2418, 16
    %v2630 = vrot.slane %v2628, 5
    %v2631 = vor.u32 %v2627, %v2630
    %v2632 = vrot.slane %v2631, 4
    %v2634 = vshll.u32 %v2419, 16
    %v2636 = vrot.slane %v2634, 5
    %v2637 = vsel %vm1284, %v2632, %v2636
    %v2638 = vshrl.u32 %v2419, 16
    %v2640 = vrot.slane %v2638, 4
    %v2641 = vor.u32 %v2640, %v2636
    %v2642 = vrot.slane %v2641, 4
    %v2644 = vshll.u32 %v2477, 16
    %v2646 = vrot.slane %v2644, 5
    %v2647 = vsel %vm1284, %v2642, %v2646
    %v2649 = vshrl.u32 %v2420, 16
    %v2651 = vrot.slane %v2649, 4
    %v2652 = vshll.u32 %v2420, 16
    %v2654 = vrot.slane %v2652, 5
    %v2655 = vor.u32 %v2651, %v2654
    %v2656 = vrot.slane %v2655, 4
    %v2658 = vshll.u32 %v2421, 16
    %v2660 = vrot.slane %v2658, 5
    %v2661 = vsel %vm1284, %v2656, %v2660
    %v2662 = vshrl.u32 %v2421, 16
    %v2664 = vrot.slane %v2662, 4
    %v2665 = vor.u32 %v2664, %v2660
    %v2666 = vrot.slane %v2665, 4
    %v2668 = vshll.u32 %v2478, 16
    %v2670 = vrot.slane %v2668, 5
    %v2671 = vsel %vm1284, %v2666, %v2670
    %v2673 = vshrl.u32 %v2422, 16
    %v2675 = vrot.slane %v2673, 4
    %v2676 = vshll.u32 %v2422, 16
    %v2678 = vrot.slane %v2676, 5
    %v2679 = vor.u32 %v2675, %v2678
    %v2680 = vrot.slane %v2679, 4
    %v2682 = vshll.u32 %v2423, 16
    %v2684 = vrot.slane %v2682, 5
    %v2685 = vsel %vm1284, %v2680, %v2684
    %v2686 = vshrl.u32 %v2423, 16
    %v2688 = vrot.slane %v2686, 4
    %v2689 = vor.u32 %v2688, %v2684
    %v2690 = vrot.slane %v2689, 4
    %v2692 = vshll.u32 %v2479, 16
    %v2694 = vrot.slane %v2692, 5
    %v2695 = vsel %vm1284, %v2690, %v2694
    %v2697 = vshrl.u32 %v2424, 16
    %v2699 = vrot.slane %v2697, 4
    %v2700 = vshll.u32 %v2424, 16
    %v2702 = vrot.slane %v2700, 5
    %v2703 = vor.u32 %v2699, %v2702
    %v2704 = vrot.slane %v2703, 4
    %v2706 = vshll.u32 %v2425, 16
    %v2708 = vrot.slane %v2706, 5
    %v2709 = vsel %vm1284, %v2704, %v2708
    %v2710 = vshrl.u32 %v2425, 16
    %v2712 = vrot.slane %v2710, 4
    %v2713 = vor.u32 %v2712, %v2708
    %v2714 = vrot.slane %v2713, 4
    %v2716 = vshll.u32 %v2480, 16
    %v2718 = vrot.slane %v2716, 5
    %v2719 = vsel %vm1284, %v2714, %v2718
    %v2721 = vshrl.u32 %v2426, 16
    %v2723 = vrot.slane %v2721, 4
    %v2724 = vshll.u32 %v2426, 16
    %v2726 = vrot.slane %v2724, 5
    %v2727 = vor.u32 %v2723, %v2726
    %v2728 = vrot.slane %v2727, 4
    %v2730 = vshll.u32 %v2427, 16
    %v2732 = vrot.slane %v2730, 5
    %v2733 = vsel %vm1284, %v2728, %v2732
    %v2734 = vshrl.u32 %v2427, 16
    %v2736 = vrot.slane %v2734, 4
    %v2737 = vor.u32 %v2736, %v2732
    %v2738 = vrot.slane %v2737, 4
    %v2740 = vshll.u32 %v2481, 16
    %v2742 = vrot.slane %v2740, 5
    %v2743 = vsel %vm1284, %v2738, %v2742
    %v2745 = vshrl.u32 %v2428, 16
    %v2747 = vrot.slane %v2745, 4
    %v2748 = vshll.u32 %v2428, 16
    %v2750 = vrot.slane %v2748, 5
    %v2751 = vor.u32 %v2747, %v2750
    %v2752 = vrot.slane %v2751, 4
    %v2754 = vshll.u32 %v2429, 16
    %v2756 = vrot.slane %v2754, 5
    %v2757 = vsel %vm1284, %v2752, %v2756
    %v2758 = vshrl.u32 %v2429, 16
    %v2760 = vrot.slane %v2758, 4
    %v2761 = vor.u32 %v2760, %v2756
    %v2762 = vrot.slane %v2761, 4
    %v2764 = vshll.u32 %v2482, 16
    %v2766 = vrot.slane %v2764, 5
    %v2767 = vsel %vm1284, %v2762, %v2766
    %v2769 = vshrl.u32 %v2430, 16
    %v2771 = vrot.slane %v2769, 4
    %v2772 = vshll.u32 %v2430, 16
    %v2774 = vrot.slane %v2772, 5
    %v2775 = vor.u32 %v2771, %v2774
    %v2776 = vrot.slane %v2775, 4
    %v2778 = vshll.u32 %v2431, 16
    %v2780 = vrot.slane %v2778, 5
    %v2781 = vsel %vm1284, %v2776, %v2780
    %v2782 = vshrl.u32 %v2431, 16
    %v2784 = vrot.slane %v2782, 4
    %v2785 = vor.u32 %v2784, %v2780
    %v2786 = vrot.slane %v2785, 4
    %v2788 = vshll.u32 %v2483, 16
    %v2790 = vrot.slane %v2788, 5
    %v2791 = vsel %vm1284, %v2786, %v2790
    %v2793 = vshrl.u32 %v2432, 16
    %v2795 = vrot.slane %v2793, 4
    %v2796 = vshll.u32 %v2432, 16
    %v2798 = vrot.slane %v2796, 5
    %v2799 = vor.u32 %v2795, %v2798
    %v2800 = vrot.slane %v2799, 4
    %v2802 = vshll.u32 %v2433, 16
    %v2804 = vrot.slane %v2802, 5
    %v2805 = vsel %vm1284, %v2800, %v2804
    %v2806 = vshrl.u32 %v2433, 16
    %v2808 = vrot.slane %v2806, 4
    %v2809 = vor.u32 %v2808, %v2804
    %v2810 = vrot.slane %v2809, 4
    %v2812 = vshll.u32 %v2484, 16
    %v2814 = vrot.slane %v2812, 5
    %v2815 = vsel %vm1284, %v2810, %v2814
    %v2817 = vshrl.u32 %v2434, 16
    %v2819 = vrot.slane %v2817, 4
    %v2820 = vshll.u32 %v2434, 16
    %v2822 = vrot.slane %v2820, 5
    %v2823 = vor.u32 %v2819, %v2822
    %v2824 = vrot.slane %v2823, 4
    %v2826 = vshll.u32 %v2435, 16
    %v2828 = vrot.slane %v2826, 5
    %v2829 = vsel %vm1284, %v2824, %v2828
    %v2830 = vshrl.u32 %v2435, 16
    %v2832 = vrot.slane %v2830, 4
    %v2833 = vor.u32 %v2832, %v2828
    %v2834 = vrot.slane %v2833, 4
    %v2836 = vshll.u32 %v2485, 16
    %v2838 = vrot.slane %v2836, 5
    %v2839 = vsel %vm1284, %v2834, %v2838
    %v2841 = vshrl.u32 %v2436, 16
    %v2843 = vrot.slane %v2841, 4
    %v2844 = vshll.u32 %v2436, 16
    %v2846 = vrot.slane %v2844, 5
    %v2847 = vor.u32 %v2843, %v2846
    %v2848 = vrot.slane %v2847, 4
    %v2850 = vshll.u32 %v2437, 16
    %v2852 = vrot.slane %v2850, 5
    %v2853 = vsel %vm1284, %v2848, %v2852
    %v2854 = vshrl.u32 %v2437, 16
    %v2856 = vrot.slane %v2854, 4
    %v2857 = vor.u32 %v2856, %v2852
    %v2858 = vrot.slane %v2857, 4
    %v2860 = vshll.u32 %v2486, 16
    %v2862 = vrot.slane %v2860, 5
    %v2863 = vsel %vm1284, %v2858, %v2862
    %v2865 = vshrl.u32 %v2438, 16
    %v2867 = vrot.slane %v2865, 4
    %v2868 = vshll.u32 %v2438, 16
    %v2870 = vrot.slane %v2868, 5
    %v2871 = vor.u32 %v2867, %v2870
    %v2872 = vrot.slane %v2871, 4
    %v2874 = vshll.u32 %v2439, 16
    %v2876 = vrot.slane %v2874, 5
    %v2877 = vsel %vm1284, %v2872, %v2876
    %v2878 = vshrl.u32 %v2439, 16
    %v2880 = vrot.slane %v2878, 4
    %v2881 = vor.u32 %v2880, %v2876
    %v2882 = vrot.slane %v2881, 4
    %v2884 = vshll.u32 %v2487, 16
    %v2886 = vrot.slane %v2884, 5
    %v2887 = vsel %vm1284, %v2882, %v2886
    %v2889 = vshrl.u32 %v2440, 16
    %v2891 = vrot.slane %v2889, 4
    %v2892 = vshll.u32 %v2440, 16
    %v2894 = vrot.slane %v2892, 5
    %v2895 = vor.u32 %v2891, %v2894
    %v2896 = vrot.slane %v2895, 4
    %v2898 = vshll.u32 %v2441, 16
    %v2900 = vrot.slane %v2898, 5
    %v2901 = vsel %vm1284, %v2896, %v2900
    %v2902 = vshrl.u32 %v2441, 16
    %v2904 = vrot.slane %v2902, 4
    %v2905 = vor.u32 %v2904, %v2900
    %v2906 = vrot.slane %v2905, 4
    %v2908 = vshll.u32 %v2488, 16
    %v2910 = vrot.slane %v2908, 5
    %v2911 = vsel %vm1284, %v2906, %v2910
    %v2913 = vshrl.u32 %v2442, 16
    %v2915 = vrot.slane %v2913, 4
    %v2916 = vshll.u32 %v2442, 16
    %v2918 = vrot.slane %v2916, 5
    %v2919 = vor.u32 %v2915, %v2918
    %v2920 = vrot.slane %v2919, 4
    %v2922 = vshll.u32 %v2443, 16
    %v2924 = vrot.slane %v2922, 5
    %v2925 = vsel %vm1284, %v2920, %v2924
    %v2926 = vshrl.u32 %v2443, 16
    %v2928 = vrot.slane %v2926, 4
    %v2929 = vor.u32 %v2928, %v2924
    %v2930 = vrot.slane %v2929, 4
    %v2932 = vshll.u32 %v2489, 16
    %v2934 = vrot.slane %v2932, 5
    %v2935 = vsel %vm1284, %v2930, %v2934
    %v2937 = vshrl.u32 %v2444, 16
    %v2939 = vrot.slane %v2937, 4
    %v2940 = vshll.u32 %v2444, 16
    %v2942 = vrot.slane %v2940, 5
    %v2943 = vor.u32 %v2939, %v2942
    %v2944 = vrot.slane %v2943, 4
    %v2946 = vshll.u32 %v2445, 16
    %v2948 = vrot.slane %v2946, 5
    %v2949 = vsel %vm1284, %v2944, %v2948
    %v2950 = vshrl.u32 %v2445, 16
    %v2952 = vrot.slane %v2950, 4
    %v2953 = vor.u32 %v2952, %v2948
    %v2954 = vrot.slane %v2953, 4
    %v2956 = vshll.u32 %v2490, 16
    %v2958 = vrot.slane %v2956, 5
    %v2959 = vsel %vm1284, %v2954, %v2958
    %v2961 = vshrl.u32 %v2446, 16
    %v2963 = vrot.slane %v2961, 4
    %v2964 = vshll.u32 %v2446, 16
    %v2966 = vrot.slane %v2964, 5
    %v2967 = vor.u32 %v2963, %v2966
    %v2968 = vrot.slane %v2967, 4
    %v2970 = vshll.u32 %v2447, 16
    %v2972 = vrot.slane %v2970, 5
    %v2973 = vsel %vm1284, %v2968, %v2972
    %v2974 = vshrl.u32 %v2447, 16
    %v2976 = vrot.slane %v2974, 4
    %v2977 = vor.u32 %v2976, %v2972
    %v2978 = vrot.slane %v2977, 4
    %v2980 = vshll.u32 %v2491, 16
    %v2982 = vrot.slane %v2980, 5
    %v2983 = vsel %vm1284, %v2978, %v2982
    %v2985 = vshrl.u32 %v2448, 16
    %v2987 = vrot.slane %v2985, 4
    %v2988 = vshll.u32 %v2448, 16
    %v2990 = vrot.slane %v2988, 5
    %v2991 = vor.u32 %v2987, %v2990
    %v2992 = vrot.slane %v2991, 4
    %v2994 = vshll.u32 %v2449, 16
    %v2996 = vrot.slane %v2994, 5
    %v2997 = vsel %vm1284, %v2992, %v2996
    %v2998 = vshrl.u32 %v2449, 16
    %v3000 = vrot.slane %v2998, 4
    %v3001 = vor.u32 %v3000, %v2996
    %v3002 = vrot.slane %v3001, 4
    %v3004 = vshll.u32 %v2492, 16
    %v3006 = vrot.slane %v3004, 5
    %v3007 = vsel %vm1284, %v3002, %v3006
    %v3009 = vshrl.u32 %v2450, 16
    %v3011 = vrot.slane %v3009, 4
    %v3012 = vshll.u32 %v2450, 16
    %v3014 = vrot.slane %v3012, 5
    %v3015 = vor.u32 %v3011, %v3014
    %v3016 = vrot.slane %v3015, 4
    %v3018 = vshll.u32 %v2451, 16
    %v3020 = vrot.slane %v3018, 5
    %v3021 = vsel %vm1284, %v3016, %v3020
    %v3022 = vshrl.u32 %v2451, 16
    %v3024 = vrot.slane %v3022, 4
    %v3025 = vor.u32 %v3024, %v3020
    %v3026 = vrot.slane %v3025, 4
    %v3028 = vshll.u32 %v2493, 16
    %v3030 = vrot.slane %v3028, 5
    %v3031 = vsel %vm1284, %v3026, %v3030
    %v3033 = vshrl.u32 %v2452, 16
    %v3035 = vrot.slane %v3033, 4
    %v3036 = vshll.u32 %v2452, 16
    %v3038 = vrot.slane %v3036, 5
    %v3039 = vor.u32 %v3035, %v3038
    %v3040 = vrot.slane %v3039, 4
    %v3042 = vshll.u32 %v2453, 16
    %v3044 = vrot.slane %v3042, 5
    %v3045 = vsel %vm1284, %v3040, %v3044
    %v3046 = vshrl.u32 %v2453, 16
    %v3048 = vrot.slane %v3046, 4
    %v3049 = vor.u32 %v3048, %v3044
    %v3050 = vrot.slane %v3049, 4
    %v3052 = vshll.u32 %v2494, 16
    %v3054 = vrot.slane %v3052, 5
    %v3055 = vsel %vm1284, %v3050, %v3054
    %v3057 = vshrl.u32 %v2454, 16
    %v3059 = vrot.slane %v3057, 4
    %v3060 = vshll.u32 %v2454, 16
    %v3062 = vrot.slane %v3060, 5
    %v3063 = vor.u32 %v3059, %v3062
    %v3064 = vrot.slane %v3063, 4
    %v3066 = vshll.u32 %v2455, 16
    %v3068 = vrot.slane %v3066, 5
    %v3069 = vsel %vm1284, %v3064, %v3068
    %v3070 = vshrl.u32 %v2455, 16
    %v3072 = vrot.slane %v3070, 4
    %v3073 = vor.u32 %v3072, %v3068
    %v3074 = vrot.slane %v3073, 4
    %v3076 = vshll.u32 %v2495, 16
    %v3078 = vrot.slane %v3076, 5
    %v3079 = vsel %vm1284, %v3074, %v3078
    %v3081 = vshrl.u32 %v2456, 16
    %v3083 = vrot.slane %v3081, 4
    %v3084 = vshll.u32 %v2456, 16
    %v3086 = vrot.slane %v3084, 5
    %v3087 = vor.u32 %v3083, %v3086
    %v3088 = vrot.slane %v3087, 4
    %v3090 = vshll.u32 %v2457, 16
    %v3092 = vrot.slane %v3090, 5
    %v3093 = vsel %vm1284, %v3088, %v3092
    %v3094 = vshrl.u32 %v2457, 16
    %v3096 = vrot.slane %v3094, 4
    %v3097 = vor.u32 %v3096, %v3092
    %v3098 = vrot.slane %v3097, 4
    %v3100 = vshll.u32 %v2496, 16
    %v3102 = vrot.slane %v3100, 5
    %v3103 = vsel %vm1284, %v3098, %v3102
    %v3105 = vshrl.u32 %v2458, 16
    %v3107 = vrot.slane %v3105, 4
    %v3108 = vshll.u32 %v2458, 16
    %v3110 = vrot.slane %v3108, 5
    %v3111 = vor.u32 %v3107, %v3110
    %v3112 = vrot.slane %v3111, 4
    %v3114 = vshll.u32 %v2459, 16
    %v3116 = vrot.slane %v3114, 5
    %v3117 = vsel %vm1284, %v3112, %v3116
    %v3118 = vshrl.u32 %v2459, 16
    %v3120 = vrot.slane %v3118, 4
    %v3121 = vor.u32 %v3120, %v3116
    %v3122 = vrot.slane %v3121, 4
    %v3124 = vshll.u32 %v2497, 16
    %v3126 = vrot.slane %v3124, 5
    %v3127 = vsel %vm1284, %v3122, %v3126
    %v3129 = vshrl.u32 %v2460, 16
    %v3131 = vrot.slane %v3129, 4
    %v3132 = vshll.u32 %v2460, 16
    %v3134 = vrot.slane %v3132, 5
    %v3135 = vor.u32 %v3131, %v3134
    %v3136 = vrot.slane %v3135, 4
    %v3138 = vshll.u32 %v2461, 16
    %v3140 = vrot.slane %v3138, 5
    %v3141 = vsel %vm1284, %v3136, %v3140
    %v3142 = vshrl.u32 %v2461, 16
    %v3144 = vrot.slane %v3142, 4
    %v3145 = vor.u32 %v3144, %v3140
    %v3146 = vrot.slane %v3145, 4
    %v3148 = vshll.u32 %v2498, 16
    %v3150 = vrot.slane %v3148, 5
    %v3151 = vsel %vm1284, %v3146, %v3150
    %v3153 = vshrl.u32 %v2462, 16
    %v3155 = vrot.slane %v3153, 4
    %v3156 = vshll.u32 %v2462, 16
    %v3158 = vrot.slane %v3156, 5
    %v3159 = vor.u32 %v3155, %v3158
    %v3160 = vrot.slane %v3159, 4
    %v3162 = vshll.u32 %v2463, 16
    %v3164 = vrot.slane %v3162, 5
    %v3165 = vsel %vm1284, %v3160, %v3164
    %v3166 = vshrl.u32 %v2463, 16
    %v3168 = vrot.slane %v3166, 4
    %v3169 = vor.u32 %v3168, %v3164
    %v3170 = vrot.slane %v3169, 4
    %v3172 = vshll.u32 %v2499, 16
    %v3174 = vrot.slane %v3172, 5
    %v3175 = vsel %vm1284, %v3170, %v3174
    %v3177 = vshrl.u32 %v2464, 16
    %v3179 = vrot.slane %v3177, 4
    %v3180 = vshll.u32 %v2464, 16
    %v3182 = vrot.slane %v3180, 5
    %v3183 = vor.u32 %v3179, %v3182
    %v3184 = vrot.slane %v3183, 4
    %v3186 = vshll.u32 %v2465, 16
    %v3188 = vrot.slane %v3186, 5
    %v3189 = vsel %vm1284, %v3184, %v3188
    %v3190 = vshrl.u32 %v2465, 16
    %v3192 = vrot.slane %v3190, 4
    %v3193 = vor.u32 %v3192, %v3188
    %v3194 = vrot.slane %v3193, 4
    %v3196 = vshll.u32 %v2500, 16
    %v3198 = vrot.slane %v3196, 5
    %v3199 = vsel %vm1284, %v3194, %v3198
    %v3201 = vshrl.u32 %v2466, 16
    %v3203 = vrot.slane %v3201, 4
    %v3204 = vshll.u32 %v2466, 16
    %v3206 = vrot.slane %v3204, 5
    %v3207 = vor.u32 %v3203, %v3206
    %v3208 = vrot.slane %v3207, 4
    %v3210 = vshll.u32 %v2467, 16
    %v3212 = vrot.slane %v3210, 5
    %v3213 = vsel %vm1284, %v3208, %v3212
    %v3214 = vshrl.u32 %v2467, 16
    %v3216 = vrot.slane %v3214, 4
    %v3217 = vor.u32 %v3216, %v3212
    %v3218 = vrot.slane %v3217, 4
    %v3220 = vshll.u32 %v2501, 16
    %v3222 = vrot.slane %v3220, 5
    %v3223 = vsel %vm1284, %v3218, %v3222
    %v3225 = vshrl.u32 %v2468, 16
    %v3227 = vrot.slane %v3225, 4
    %v3228 = vshll.u32 %v2468, 16
    %v3230 = vrot.slane %v3228, 5
    %v3231 = vor.u32 %v3227, %v3230
    %v3232 = vrot.slane %v3231, 4
    %v3234 = vshll.u32 %v2469, 16
    %v3236 = vrot.slane %v3234, 5
    %v3237 = vsel %vm1284, %v3232, %v3236
    %v3238 = vshrl.u32 %v2469, 16
    %v3240 = vrot.slane %v3238, 4
    %v3241 = vor.u32 %v3240, %v3236
    %v3242 = vrot.slane %v3241, 4
    %v3244 = vshll.u32 %v2502, 16
    %v3246 = vrot.slane %v3244, 5
    %v3247 = vsel %vm1284, %v3242, %v3246
    %v3249 = vshrl.u32 %v2470, 16
    %v3251 = vrot.slane %v3249, 4
    %v3252 = vshll.u32 %v2470, 16
    %v3254 = vrot.slane %v3252, 5
    %v3255 = vor.u32 %v3251, %v3254
    %v3256 = vrot.slane %v3255, 4
    %v3258 = vshll.u32 %v2471, 16
    %v3260 = vrot.slane %v3258, 5
    %v3261 = vsel %vm1284, %v3256, %v3260
    %v3262 = vshrl.u32 %v2471, 16
    %v3264 = vrot.slane %v3262, 4
    %v3265 = vor.u32 %v3264, %v3260
    %v3266 = vrot.slane %v3265, 4
    %v3268 = vshll.u32 %v2503, 16
    %v3270 = vrot.slane %v3268, 5
    %v3271 = vsel %vm1284, %v3266, %v3270
    %v3272 = vld [vmem:[%s959] sm:$0xe]
    %v3273 = vld [vmem:[%s959 + $0xc] sm:$0xe]
    %v3274 = vld [vmem:[%s959 + $0x18] sm:$0xe]
    %v3275 = vld [vmem:[%s959 + $0x24] sm:$0xe]
    %v3276 = vld [vmem:[%s959 + $0x30] sm:$0xe]
    %v3277 = vld [vmem:[%s959 + $0x3c] sm:$0xe]
    %v3278 = vld [vmem:[%s959 + $0x48] sm:$0xe]
    %v3279 = vld [vmem:[%s959 + $0x54] sm:$0xe]
    %v3280 = vld [vmem:[%s959 + $0x60] sm:$0xe]
    %v3281 = vld [vmem:[%s959 + $0x6c] sm:$0xe]
    %v3282 = vld [vmem:[%s959 + $0x78] sm:$0xe]
    %v3283 = vld [vmem:[%s959 + $0x84] sm:$0xe]
    %v3284 = vld [vmem:[%s959 + $0x90] sm:$0xe]
    %v3285 = vld [vmem:[%s959 + $0x9c] sm:$0xe]
    %v3286 = vld [vmem:[%s959 + $0xa8] sm:$0xe]
    %v3287 = vld [vmem:[%s959 + $0xb4] sm:$0xe]
    %v3288 = vld [vmem:[%s959 + $0xd8] sm:$0xe]
    %v3289 = vld [vmem:[%s959 + $0xe4] sm:$0xe]
    %v3290 = vld [vmem:[%s959 + $0xf0] sm:$0xe]
    %v3291 = vld [vmem:[%s959 + $0xfc] sm:$0xe]
    %v3292 = vld [vmem:[%s959 + $0x108] sm:$0xe]
    %v3293 = vld [vmem:[%s959 + $0x114] sm:$0xe]
    %v3294 = vld [vmem:[%s959 + $0x120] sm:$0xe]
    %v3295 = vld [vmem:[%s959 + $0x12c] sm:$0xe]
    %v3296 = vld [vmem:[%s959 + $0x138] sm:$0xe]
    %v3297 = vld [vmem:[%s959 + $0x144] sm:$0xe]
    %v3298 = vld [vmem:[%s959 + $0x150] sm:$0xe]
    %v3299 = vld [vmem:[%s959 + $0x15c] sm:$0xe]
    %v3300 = vld [vmem:[%s959 + $0x168] sm:$0xe]
    %v3301 = vld [vmem:[%s959 + $0x174] sm:$0xe]
    %v3302 = vld [vmem:[%s959 + $0x180] sm:$0xe]
    %v3303 = vld [vmem:[%s959 + $0x18c] sm:$0xe]
    %v3400 = vrot.slane %v3272, 5
    %v3401 = vrot.slane %v3400, 4
    %v3402 = vrot.slane %v2409, 5
    %v3403 = vsel %vm2183, %v3401, %v3402
    %v3404 = vrot.slane %v3402, 4
    %v3405 = vrot.slane %v2472, 5
    %v3406 = vsel %vm2183, %v3404, %v3405
    %v3407 = vrot.slane %v3273, 5
    %v3408 = vrot.slane %v3407, 4
    %v3409 = vrot.slane %v2411, 5
    %v3410 = vsel %vm2183, %v3408, %v3409
    %v3411 = vrot.slane %v3409, 4
    %v3412 = vrot.slane %v2473, 5
    %v3413 = vsel %vm2183, %v3411, %v3412
    %v3414 = vrot.slane %v3274, 5
    %v3415 = vrot.slane %v3414, 4
    %v3416 = vrot.slane %v2413, 5
    %v3417 = vsel %vm2183, %v3415, %v3416
    %v3418 = vrot.slane %v3416, 4
    %v3419 = vrot.slane %v2474, 5
    %v3420 = vsel %vm2183, %v3418, %v3419
    %v3421 = vrot.slane %v3275, 5
    %v3422 = vrot.slane %v3421, 4
    %v3423 = vrot.slane %v2415, 5
    %v3424 = vsel %vm2183, %v3422, %v3423
    %v3425 = vrot.slane %v3423, 4
    %v3426 = vrot.slane %v2475, 5
    %v3427 = vsel %vm2183, %v3425, %v3426
    %v3428 = vrot.slane %v3276, 5
    %v3429 = vrot.slane %v3428, 4
    %v3430 = vrot.slane %v2417, 5
    %v3431 = vsel %vm2183, %v3429, %v3430
    %v3432 = vrot.slane %v3430, 4
    %v3433 = vrot.slane %v2476, 5
    %v3434 = vsel %vm2183, %v3432, %v3433
    %v3435 = vrot.slane %v3277, 5
    %v3436 = vrot.slane %v3435, 4
    %v3437 = vrot.slane %v2419, 5
    %v3438 = vsel %vm2183, %v3436, %v3437
    %v3439 = vrot.slane %v3437, 4
    %v3440 = vrot.slane %v2477, 5
    %v3441 = vsel %vm2183, %v3439, %v3440
    %v3442 = vrot.slane %v3278, 5
    %v3443 = vrot.slane %v3442, 4
    %v3444 = vrot.slane %v2421, 5
    %v3445 = vsel %vm2183, %v3443, %v3444
    %v3446 = vrot.slane %v3444, 4
    %v3447 = vrot.slane %v2478, 5
    %v3448 = vsel %vm2183, %v3446, %v3447
    %v3449 = vrot.slane %v3279, 5
    %v3450 = vrot.slane %v3449, 4
    %v3451 = vrot.slane %v2423, 5
    %v3452 = vsel %vm2183, %v3450, %v3451
    %v3453 = vrot.slane %v3451, 4
    %v3454 = vrot.slane %v2479, 5
    %v3455 = vsel %vm2183, %v3453, %v3454
    %v3456 = vrot.slane %v3280, 5
    %v3457 = vrot.slane %v3456, 4
    %v3458 = vrot.slane %v2425, 5
    %v3459 = vsel %vm2183, %v3457, %v3458
    %v3460 = vrot.slane %v3458, 4
    %v3461 = vrot.slane %v2480, 5
    %v3462 = vsel %vm2183, %v3460, %v3461
    %v3463 = vrot.slane %v3281, 5
    %v3464 = vrot.slane %v3463, 4
    %v3465 = vrot.slane %v2427, 5
    %v3466 = vsel %vm2183, %v3464, %v3465
    %v3467 = vrot.slane %v3465, 4
    %v3468 = vrot.slane %v2481, 5
    %v3469 = vsel %vm2183, %v3467, %v3468
    %v3470 = vrot.slane %v3282, 5
    %v3471 = vrot.slane %v3470, 4
    %v3472 = vrot.slane %v2429, 5
    %v3473 = vsel %vm2183, %v3471, %v3472
    %v3474 = vrot.slane %v3472, 4
    %v3475 = vrot.slane %v2482, 5
    %v3476 = vsel %vm2183, %v3474, %v3475
    %v3477 = vrot.slane %v3283, 5
    %v3478 = vrot.slane %v3477, 4
    %v3479 = vrot.slane %v2431, 5
    %v3480 = vsel %vm2183, %v3478, %v3479
    %v3481 = vrot.slane %v3479, 4
    %v3482 = vrot.slane %v2483, 5
    %v3483 = vsel %vm2183, %v3481, %v3482
    %v3484 = vrot.slane %v3284, 5
    %v3485 = vrot.slane %v3484, 4
    %v3486 = vrot.slane %v2433, 5
    %v3487 = vsel %vm2183, %v3485, %v3486
    %v3488 = vrot.slane %v3486, 4
    %v3489 = vrot.slane %v2484, 5
    %v3490 = vsel %vm2183, %v3488, %v3489
    %v3491 = vrot.slane %v3285, 5
    %v3492 = vrot.slane %v3491, 4
    %v3493 = vrot.slane %v2435, 5
    %v3494 = vsel %vm2183, %v3492, %v3493
    %v3495 = vrot.slane %v3493, 4
    %v3496 = vrot.slane %v2485, 5
    %v3497 = vsel %vm2183, %v3495, %v3496
    %v3498 = vrot.slane %v3286, 5
    %v3499 = vrot.slane %v3498, 4
    %v3500 = vrot.slane %v2437, 5
    %v3501 = vsel %vm2183, %v3499, %v3500
    %v3502 = vrot.slane %v3500, 4
    %v3503 = vrot.slane %v2486, 5
    %v3504 = vsel %vm2183, %v3502, %v3503
    %v3505 = vrot.slane %v3287, 5
    %v3506 = vrot.slane %v3505, 4
    %v3507 = vrot.slane %v2439, 5
    %v3508 = vsel %vm2183, %v3506, %v3507
    %v3509 = vrot.slane %v3507, 4
    %v3510 = vrot.slane %v2487, 5
    %v3511 = vsel %vm2183, %v3509, %v3510
    %v3512 = vrot.slane %v3288, 5
    %v3513 = vrot.slane %v3512, 4
    %v3514 = vrot.slane %v2441, 5
    %v3515 = vsel %vm2183, %v3513, %v3514
    %v3516 = vrot.slane %v3514, 4
    %v3517 = vrot.slane %v2488, 5
    %v3518 = vsel %vm2183, %v3516, %v3517
    %v3519 = vrot.slane %v3289, 5
    %v3520 = vrot.slane %v3519, 4
    %v3521 = vrot.slane %v2443, 5
    %v3522 = vsel %vm2183, %v3520, %v3521
    %v3523 = vrot.slane %v3521, 4
    %v3524 = vrot.slane %v2489, 5
    %v3525 = vsel %vm2183, %v3523, %v3524
    %v3526 = vrot.slane %v3290, 5
    %v3527 = vrot.slane %v3526, 4
    %v3528 = vrot.slane %v2445, 5
    %v3529 = vsel %vm2183, %v3527, %v3528
    %v3530 = vrot.slane %v3528, 4
    %v3531 = vrot.slane %v2490, 5
    %v3532 = vsel %vm2183, %v3530, %v3531
    %v3533 = vrot.slane %v3291, 5
    %v3534 = vrot.slane %v3533, 4
    %v3535 = vrot.slane %v2447, 5
    %v3536 = vsel %vm2183, %v3534, %v3535
    %v3537 = vrot.slane %v3535, 4
    %v3538 = vrot.slane %v2491, 5
    %v3539 = vsel %vm2183, %v3537, %v3538
    %v3540 = vrot.slane %v3292, 5
    %v3541 = vrot.slane %v3540, 4
    %v3542 = vrot.slane %v2449, 5
    %v3543 = vsel %vm2183, %v3541, %v3542
    %v3544 = vrot.slane %v3542, 4
    %v3545 = vrot.slane %v2492, 5
    %v3546 = vsel %vm2183, %v3544, %v3545
    %v3547 = vrot.slane %v3293, 5
    %v3548 = vrot.slane %v3547, 4
    %v3549 = vrot.slane %v2451, 5
    %v3550 = vsel %vm2183, %v3548, %v3549
    %v3551 = vrot.slane %v3549, 4
    %v3552 = vrot.slane %v2493, 5
    %v3553 = vsel %vm2183, %v3551, %v3552
    %v3554 = vrot.slane %v3294, 5
    %v3555 = vrot.slane %v3554, 4
    %v3556 = vrot.slane %v2453, 5
    %v3557 = vsel %vm2183, %v3555, %v3556
    %v3558 = vrot.slane %v3556, 4
    %v3559 = vrot.slane %v2494, 5
    %v3560 = vsel %vm2183, %v3558, %v3559
    %v3561 = vrot.slane %v3295, 5
    %v3562 = vrot.slane %v3561, 4
    %v3563 = vrot.slane %v2455, 5
    %v3564 = vsel %vm2183, %v3562, %v3563
    %v3565 = vrot.slane %v3563, 4
    %v3566 = vrot.slane %v2495, 5
    %v3567 = vsel %vm2183, %v3565, %v3566
    %v3568 = vrot.slane %v3296, 5
    %v3569 = vrot.slane %v3568, 4
    %v3570 = vrot.slane %v2457, 5
    %v3571 = vsel %vm2183, %v3569, %v3570
    %v3572 = vrot.slane %v3570, 4
    %v3573 = vrot.slane %v2496, 5
    %v3574 = vsel %vm2183, %v3572, %v3573
    %v3575 = vrot.slane %v3297, 5
    %v3576 = vrot.slane %v3575, 4
    %v3577 = vrot.slane %v2459, 5
    %v3578 = vsel %vm2183, %v3576, %v3577
    %v3579 = vrot.slane %v3577, 4
    %v3580 = vrot.slane %v2497, 5
    %v3581 = vsel %vm2183, %v3579, %v3580
    %v3582 = vrot.slane %v3298, 5
    %v3583 = vrot.slane %v3582, 4
    %v3584 = vrot.slane %v2461, 5
    %v3585 = vsel %vm2183, %v3583, %v3584
    %v3586 = vrot.slane %v3584, 4
    %v3587 = vrot.slane %v2498, 5
    %v3588 = vsel %vm2183, %v3586, %v3587
    %v3589 = vrot.slane %v3299, 5
    %v3590 = vrot.slane %v3589, 4
    %v3591 = vrot.slane %v2463, 5
    %v3592 = vsel %vm2183, %v3590, %v3591
    %v3593 = vrot.slane %v3591, 4
    %v3594 = vrot.slane %v2499, 5
    %v3595 = vsel %vm2183, %v3593, %v3594
    %v3596 = vrot.slane %v3300, 5
    %v3597 = vrot.slane %v3596, 4
    %v3598 = vrot.slane %v2465, 5
    %v3599 = vsel %vm2183, %v3597, %v3598
    %v3600 = vrot.slane %v3598, 4
    %v3601 = vrot.slane %v2500, 5
    %v3602 = vsel %vm2183, %v3600, %v3601
    %v3603 = vrot.slane %v3301, 5
    %v3604 = vrot.slane %v3603, 4
    %v3605 = vrot.slane %v2467, 5
    %v3606 = vsel %vm2183, %v3604, %v3605
    %v3607 = vrot.slane %v3605, 4
    %v3608 = vrot.slane %v2501, 5
    %v3609 = vsel %vm2183, %v3607, %v3608
    %v3610 = vrot.slane %v3302, 5
    %v3611 = vrot.slane %v3610, 4
    %v3612 = vrot.slane %v2469, 5
    %v3613 = vsel %vm2183, %v3611, %v3612
    %v3614 = vrot.slane %v3612, 4
    %v3615 = vrot.slane %v2502, 5
    %v3616 = vsel %vm2183, %v3614, %v3615
    %v3617 = vrot.slane %v3303, 5
    %v3618 = vrot.slane %v3617, 4
    %v3619 = vrot.slane %v2471, 5
    %v3620 = vsel %vm2183, %v3618, %v3619
    %v3621 = vrot.slane %v3619, 4
    %v3622 = vrot.slane %v2503, 5
    %v3623 = vsel %vm2183, %v3621, %v3622
    %s3624 = scalar_lea.vmem [#allocation2], 24
    %v3625 = vld [vmem:[%s3624] sm:$0xf]
    %v3626 = vld [vmem:[%s3624 + $0x4] sm:$0xf]
    %v3627 = vld [vmem:[%s3624 + $0xc] sm:$0xf]
    %v3628 = vld [vmem:[%s3624 + $0x10] sm:$0xf]
    %v3629 = vld [vmem:[%s3624 + $0x18] sm:$0xf]
    %v3630 = vld [vmem:[%s3624 + $0x1c] sm:$0xf]
    %v3631 = vld [vmem:[%s3624 + $0x24] sm:$0xf]
    %v3632 = vld [vmem:[%s3624 + $0x28] sm:$0xf]
    %v3633 = vld [vmem:[%s3624 + $0x30] sm:$0xf]
    %v3634 = vld [vmem:[%s3624 + $0x34] sm:$0xf]
    %v3635 = vld [vmem:[%s3624 + $0x3c] sm:$0xf]
    %v3636 = vld [vmem:[%s3624 + $0x40] sm:$0xf]
    %v3637 = vld [vmem:[%s3624 + $0x48] sm:$0xf]
    %v3638 = vld [vmem:[%s3624 + $0x4c] sm:$0xf]
    %v3639 = vld [vmem:[%s3624 + $0x54] sm:$0xf]
    %v3640 = vld [vmem:[%s3624 + $0x58] sm:$0xf]
    %v3641 = vld [vmem:[%s3624 + $0x60] sm:$0xf]
    %v3642 = vld [vmem:[%s3624 + $0x64] sm:$0xf]
    %v3643 = vld [vmem:[%s3624 + $0x6c] sm:$0xf]
    %v3644 = vld [vmem:[%s3624 + $0x70] sm:$0xf]
    %v3645 = vld [vmem:[%s3624 + $0x78] sm:$0xf]
    %v3646 = vld [vmem:[%s3624 + $0x7c] sm:$0xf]
    %v3647 = vld [vmem:[%s3624 + $0x84] sm:$0xf]
    %v3648 = vld [vmem:[%s3624 + $0x88] sm:$0xf]
    %v3649 = vld [vmem:[%s3624 + $0x90] sm:$0xf]
    %v3650 = vld [vmem:[%s3624 + $0x94] sm:$0xf]
    %v3651 = vld [vmem:[%s3624 + $0x9c] sm:$0xf]
    %v3652 = vld [vmem:[%s3624 + $0xa0] sm:$0xf]
    %v3653 = vld [vmem:[%s3624 + $0xa8] sm:$0xf]
    %v3654 = vld [vmem:[%s3624 + $0xac] sm:$0xf]
    %v3655 = vld [vmem:[%s3624 + $0xb4] sm:$0xf]
    %v3656 = vld [vmem:[%s3624 + $0xb8] sm:$0xf]
    %v3657 = vld [vmem:[%s3624 + $0xd8] sm:$0xf]
    %v3658 = vld [vmem:[%s3624 + $0xdc] sm:$0xf]
    %v3659 = vld [vmem:[%s3624 + $0xe4] sm:$0xf]
    %v3660 = vld [vmem:[%s3624 + $0xe8] sm:$0xf]
    %v3661 = vld [vmem:[%s3624 + $0xf0] sm:$0xf]
    %v3662 = vld [vmem:[%s3624 + $0xf4] sm:$0xf]
    %v3663 = vld [vmem:[%s3624 + $0xfc] sm:$0xf]
    %v3664 = vld [vmem:[%s3624 + $0x100] sm:$0xf]
    %v3665 = vld [vmem:[%s3624 + $0x108] sm:$0xf]
    %v3666 = vld [vmem:[%s3624 + $0x10c] sm:$0xf]
    %v3667 = vld [vmem:[%s3624 + $0x114] sm:$0xf]
    %v3668 = vld [vmem:[%s3624 + $0x118] sm:$0xf]
    %v3669 = vld [vmem:[%s3624 + $0x120] sm:$0xf]
    %v3670 = vld [vmem:[%s3624 + $0x124] sm:$0xf]
    %v3671 = vld [vmem:[%s3624 + $0x12c] sm:$0xf]
    %v3672 = vld [vmem:[%s3624 + $0x130] sm:$0xf]
    %v3673 = vld [vmem:[%s3624 + $0x138] sm:$0xf]
    %v3674 = vld [vmem:[%s3624 + $0x13c] sm:$0xf]
    %v3675 = vld [vmem:[%s3624 + $0x144] sm:$0xf]
    %v3676 = vld [vmem:[%s3624 + $0x148] sm:$0xf]
    %v3677 = vld [vmem:[%s3624 + $0x150] sm:$0xf]
    %v3678 = vld [vmem:[%s3624 + $0x154] sm:$0xf]
    %v3679 = vld [vmem:[%s3624 + $0x15c] sm:$0xf]
    %v3680 = vld [vmem:[%s3624 + $0x160] sm:$0xf]
    %v3681 = vld [vmem:[%s3624 + $0x168] sm:$0xf]
    %v3682 = vld [vmem:[%s3624 + $0x16c] sm:$0xf]
    %v3683 = vld [vmem:[%s3624 + $0x174] sm:$0xf]
    %v3684 = vld [vmem:[%s3624 + $0x178] sm:$0xf]
    %v3685 = vld [vmem:[%s3624 + $0x180] sm:$0xf]
    %v3686 = vld [vmem:[%s3624 + $0x184] sm:$0xf]
    %v3687 = vld [vmem:[%s3624 + $0x18c] sm:$0xf]
    %v3688 = vld [vmem:[%s3624 + $0x190] sm:$0xf]
    %v3689 = vld [vmem:[%s3624 + $0x8] sm:$0x1]
    %v3690 = vld [vmem:[%s3624 + $0x14] sm:$0x1]
    %v3691 = vld [vmem:[%s3624 + $0x20] sm:$0x1]
    %v3692 = vld [vmem:[%s3624 + $0x2c] sm:$0x1]
    %v3693 = vld [vmem:[%s3624 + $0x38] sm:$0x1]
    %v3694 = vld [vmem:[%s3624 + $0x44] sm:$0x1]
    %v3695 = vld [vmem:[%s3624 + $0x50] sm:$0x1]
    %v3696 = vld [vmem:[%s3624 + $0x5c] sm:$0x1]
    %v3697 = vld [vmem:[%s3624 + $0x68] sm:$0x1]
    %v3698 = vld [vmem:[%s3624 + $0x74] sm:$0x1]
    %v3699 = vld [vmem:[%s3624 + $0x80] sm:$0x1]
    %v3700 = vld [vmem:[%s3624 + $0x8c] sm:$0x1]
    %v3701 = vld [vmem:[%s3624 + $0x98] sm:$0x1]
    %v3702 = vld [vmem:[%s3624 + $0xa4] sm:$0x1]
    %v3703 = vld [vmem:[%s3624 + $0xb0] sm:$0x1]
    %v3704 = vld [vmem:[%s3624 + $0xbc] sm:$0x1]
    %v3705 = vld [vmem:[%s3624 + $0xe0] sm:$0x1]
    %v3706 = vld [vmem:[%s3624 + $0xec] sm:$0x1]
    %v3707 = vld [vmem:[%s3624 + $0xf8] sm:$0x1]
    %v3708 = vld [vmem:[%s3624 + $0x104] sm:$0x1]
    %v3709 = vld [vmem:[%s3624 + $0x110] sm:$0x1]
    %v3710 = vld [vmem:[%s3624 + $0x11c] sm:$0x1]
    %v3711 = vld [vmem:[%s3624 + $0x128] sm:$0x1]
    %v3712 = vld [vmem:[%s3624 + $0x134] sm:$0x1]
    %v3713 = vld [vmem:[%s3624 + $0x140] sm:$0x1]
    %v3714 = vld [vmem:[%s3624 + $0x14c] sm:$0x1]
    %v3715 = vld [vmem:[%s3624 + $0x158] sm:$0x1]
    %v3716 = vld [vmem:[%s3624 + $0x164] sm:$0x1]
    %v3717 = vld [vmem:[%s3624 + $0x170] sm:$0x1]
    %v3718 = vld [vmem:[%s3624 + $0x17c] sm:$0x1]
    %v3719 = vld [vmem:[%s3624 + $0x188] sm:$0x1]
    %v3720 = vld [vmem:[%s3624 + $0x194] sm:$0x1]
    %v3722 = vshrl.u32 %v3625, 16
    %v3724 = vrot.slane %v3722, 4
    %v3725 = vshll.u32 %v3625, 16
    %v3727 = vrot.slane %v3725, 5
    %v3728 = vor.u32 %v3724, %v3727
    %v3729 = vrot.slane %v3728, 4
    %v3731 = vshll.u32 %v3626, 16
    %v3733 = vrot.slane %v3731, 5
    %v3734 = vsel %vm1284, %v3729, %v3733
    %v3735 = vshrl.u32 %v3626, 16
    %v3737 = vrot.slane %v3735, 4
    %v3738 = vor.u32 %v3737, %v3733
    %v3739 = vrot.slane %v3738, 4
    %v3741 = vshll.u32 %v3689, 16
    %v3743 = vrot.slane %v3741, 5
    %v3744 = vsel %vm1284, %v3739, %v3743
    %v3746 = vshrl.u32 %v3627, 16
    %v3748 = vrot.slane %v3746, 4
    %v3749 = vshll.u32 %v3627, 16
    %v3751 = vrot.slane %v3749, 5
    %v3752 = vor.u32 %v3748, %v3751
    %v3753 = vrot.slane %v3752, 4
    %v3755 = vshll.u32 %v3628, 16
    %v3757 = vrot.slane %v3755, 5
    %v3758 = vsel %vm1284, %v3753, %v3757
    %v3759 = vshrl.u32 %v3628, 16
    %v3761 = vrot.slane %v3759, 4
    %v3762 = vor.u32 %v3761, %v3757
    %v3763 = vrot.slane %v3762, 4
    %v3765 = vshll.u32 %v3690, 16
    %v3767 = vrot.slane %v3765, 5
    %v3768 = vsel %vm1284, %v3763, %v3767
    %v3770 = vshrl.u32 %v3629, 16
    %v3772 = vrot.slane %v3770, 4
    %v3773 = vshll.u32 %v3629, 16
    %v3775 = vrot.slane %v3773, 5
    %v3776 = vor.u32 %v3772, %v3775
    %v3777 = vrot.slane %v3776, 4
    %v3779 = vshll.u32 %v3630, 16
    %v3781 = vrot.slane %v3779, 5
    %v3782 = vsel %vm1284, %v3777, %v3781
    %v3783 = vshrl.u32 %v3630, 16
    %v3785 = vrot.slane %v3783, 4
    %v3786 = vor.u32 %v3785, %v3781
    %v3787 = vrot.slane %v3786, 4
    %v3789 = vshll.u32 %v3691, 16
    %v3791 = vrot.slane %v3789, 5
    %v3792 = vsel %vm1284, %v3787, %v3791
    %v3794 = vshrl.u32 %v3631, 16
    %v3796 = vrot.slane %v3794, 4
    %v3797 = vshll.u32 %v3631, 16
    %v3799 = vrot.slane %v3797, 5
    %v3800 = vor.u32 %v3796, %v3799
    %v3801 = vrot.slane %v3800, 4
    %v3803 = vshll.u32 %v3632, 16
    %v3805 = vrot.slane %v3803, 5
    %v3806 = vsel %vm1284, %v3801, %v3805
    %v3807 = vshrl.u32 %v3632, 16
    %v3809 = vrot.slane %v3807, 4
    %v3810 = vor.u32 %v3809, %v3805
    %v3811 = vrot.slane %v3810, 4
    %v3813 = vshll.u32 %v3692, 16
    %v3815 = vrot.slane %v3813, 5
    %v3816 = vsel %vm1284, %v3811, %v3815
    %v3818 = vshrl.u32 %v3633, 16
    %v3820 = vrot.slane %v3818, 4
    %v3821 = vshll.u32 %v3633, 16
    %v3823 = vrot.slane %v3821, 5
    %v3824 = vor.u32 %v3820, %v3823
    %v3825 = vrot.slane %v3824, 4
    %v3827 = vshll.u32 %v3634, 16
    %v3829 = vrot.slane %v3827, 5
    %v3830 = vsel %vm1284, %v3825, %v3829
    %v3831 = vshrl.u32 %v3634, 16
    %v3833 = vrot.slane %v3831, 4
    %v3834 = vor.u32 %v3833, %v3829
    %v3835 = vrot.slane %v3834, 4
    %v3837 = vshll.u32 %v3693, 16
    %v3839 = vrot.slane %v3837, 5
    %v3840 = vsel %vm1284, %v3835, %v3839
    %v3842 = vshrl.u32 %v3635, 16
    %v3844 = vrot.slane %v3842, 4
    %v3845 = vshll.u32 %v3635, 16
    %v3847 = vrot.slane %v3845, 5
    %v3848 = vor.u32 %v3844, %v3847
    %v3849 = vrot.slane %v3848, 4
    %v3851 = vshll.u32 %v3636, 16
    %v3853 = vrot.slane %v3851, 5
    %v3854 = vsel %vm1284, %v3849, %v3853
    %v3855 = vshrl.u32 %v3636, 16
    %v3857 = vrot.slane %v3855, 4
    %v3858 = vor.u32 %v3857, %v3853
    %v3859 = vrot.slane %v3858, 4
    %v3861 = vshll.u32 %v3694, 16
    %v3863 = vrot.slane %v3861, 5
    %v3864 = vsel %vm1284, %v3859, %v3863
    %v3866 = vshrl.u32 %v3637, 16
    %v3868 = vrot.slane %v3866, 4
    %v3869 = vshll.u32 %v3637, 16
    %v3871 = vrot.slane %v3869, 5
    %v3872 = vor.u32 %v3868, %v3871
    %v3873 = vrot.slane %v3872, 4
    %v3875 = vshll.u32 %v3638, 16
    %v3877 = vrot.slane %v3875, 5
    %v3878 = vsel %vm1284, %v3873, %v3877
    %v3879 = vshrl.u32 %v3638, 16
    %v3881 = vrot.slane %v3879, 4
    %v3882 = vor.u32 %v3881, %v3877
    %v3883 = vrot.slane %v3882, 4
    %v3885 = vshll.u32 %v3695, 16
    %v3887 = vrot.slane %v3885, 5
    %v3888 = vsel %vm1284, %v3883, %v3887
    %v3890 = vshrl.u32 %v3639, 16
    %v3892 = vrot.slane %v3890, 4
    %v3893 = vshll.u32 %v3639, 16
    %v3895 = vrot.slane %v3893, 5
    %v3896 = vor.u32 %v3892, %v3895
    %v3897 = vrot.slane %v3896, 4
    %v3899 = vshll.u32 %v3640, 16
    %v3901 = vrot.slane %v3899, 5
    %v3902 = vsel %vm1284, %v3897, %v3901
    %v3903 = vshrl.u32 %v3640, 16
    %v3905 = vrot.slane %v3903, 4
    %v3906 = vor.u32 %v3905, %v3901
    %v3907 = vrot.slane %v3906, 4
    %v3909 = vshll.u32 %v3696, 16
    %v3911 = vrot.slane %v3909, 5
    %v3912 = vsel %vm1284, %v3907, %v3911
    %v3914 = vshrl.u32 %v3641, 16
    %v3916 = vrot.slane %v3914, 4
    %v3917 = vshll.u32 %v3641, 16
    %v3919 = vrot.slane %v3917, 5
    %v3920 = vor.u32 %v3916, %v3919
    %v3921 = vrot.slane %v3920, 4
    %v3923 = vshll.u32 %v3642, 16
    %v3925 = vrot.slane %v3923, 5
    %v3926 = vsel %vm1284, %v3921, %v3925
    %v3927 = vshrl.u32 %v3642, 16
    %v3929 = vrot.slane %v3927, 4
    %v3930 = vor.u32 %v3929, %v3925
    %v3931 = vrot.slane %v3930, 4
    %v3933 = vshll.u32 %v3697, 16
    %v3935 = vrot.slane %v3933, 5
    %v3936 = vsel %vm1284, %v3931, %v3935
    %v3938 = vshrl.u32 %v3643, 16
    %v3940 = vrot.slane %v3938, 4
    %v3941 = vshll.u32 %v3643, 16
    %v3943 = vrot.slane %v3941, 5
    %v3944 = vor.u32 %v3940, %v3943
    %v3945 = vrot.slane %v3944, 4
    %v3947 = vshll.u32 %v3644, 16
    %v3949 = vrot.slane %v3947, 5
    %v3950 = vsel %vm1284, %v3945, %v3949
    %v3951 = vshrl.u32 %v3644, 16
    %v3953 = vrot.slane %v3951, 4
    %v3954 = vor.u32 %v3953, %v3949
    %v3955 = vrot.slane %v3954, 4
    %v3957 = vshll.u32 %v3698, 16
    %v3959 = vrot.slane %v3957, 5
    %v3960 = vsel %vm1284, %v3955, %v3959
    %v3962 = vshrl.u32 %v3645, 16
    %v3964 = vrot.slane %v3962, 4
    %v3965 = vshll.u32 %v3645, 16
    %v3967 = vrot.slane %v3965, 5
    %v3968 = vor.u32 %v3964, %v3967
    %v3969 = vrot.slane %v3968, 4
    %v3971 = vshll.u32 %v3646, 16
    %v3973 = vrot.slane %v3971, 5
    %v3974 = vsel %vm1284, %v3969, %v3973
    %v3975 = vshrl.u32 %v3646, 16
    %v3977 = vrot.slane %v3975, 4
    %v3978 = vor.u32 %v3977, %v3973
    %v3979 = vrot.slane %v3978, 4
    %v3981 = vshll.u32 %v3699, 16
    %v3983 = vrot.slane %v3981, 5
    %v3984 = vsel %vm1284, %v3979, %v3983
    %v3986 = vshrl.u32 %v3647, 16
    %v3988 = vrot.slane %v3986, 4
    %v3989 = vshll.u32 %v3647, 16
    %v3991 = vrot.slane %v3989, 5
    %v3992 = vor.u32 %v3988, %v3991
    %v3993 = vrot.slane %v3992, 4
    %v3995 = vshll.u32 %v3648, 16
    %v3997 = vrot.slane %v3995, 5
    %v3998 = vsel %vm1284, %v3993, %v3997
    %v3999 = vshrl.u32 %v3648, 16
    %v4001 = vrot.slane %v3999, 4
    %v4002 = vor.u32 %v4001, %v3997
    %v4003 = vrot.slane %v4002, 4
    %v4005 = vshll.u32 %v3700, 16
    %v4007 = vrot.slane %v4005, 5
    %v4008 = vsel %vm1284, %v4003, %v4007
    %v4010 = vshrl.u32 %v3649, 16
    %v4012 = vrot.slane %v4010, 4
    %v4013 = vshll.u32 %v3649, 16
    %v4015 = vrot.slane %v4013, 5
    %v4016 = vor.u32 %v4012, %v4015
    %v4017 = vrot.slane %v4016, 4
    %v4019 = vshll.u32 %v3650, 16
    %v4021 = vrot.slane %v4019, 5
    %v4022 = vsel %vm1284, %v4017, %v4021
    %v4023 = vshrl.u32 %v3650, 16
    %v4025 = vrot.slane %v4023, 4
    %v4026 = vor.u32 %v4025, %v4021
    %v4027 = vrot.slane %v4026, 4
    %v4029 = vshll.u32 %v3701, 16
    %v4031 = vrot.slane %v4029, 5
    %v4032 = vsel %vm1284, %v4027, %v4031
    %v4034 = vshrl.u32 %v3651, 16
    %v4036 = vrot.slane %v4034, 4
    %v4037 = vshll.u32 %v3651, 16
    %v4039 = vrot.slane %v4037, 5
    %v4040 = vor.u32 %v4036, %v4039
    %v4041 = vrot.slane %v4040, 4
    %v4043 = vshll.u32 %v3652, 16
    %v4045 = vrot.slane %v4043, 5
    %v4046 = vsel %vm1284, %v4041, %v4045
    %v4047 = vshrl.u32 %v3652, 16
    %v4049 = vrot.slane %v4047, 4
    %v4050 = vor.u32 %v4049, %v4045
    %v4051 = vrot.slane %v4050, 4
    %v4053 = vshll.u32 %v3702, 16
    %v4055 = vrot.slane %v4053, 5
    %v4056 = vsel %vm1284, %v4051, %v4055
    %v4058 = vshrl.u32 %v3653, 16
    %v4060 = vrot.slane %v4058, 4
    %v4061 = vshll.u32 %v3653, 16
    %v4063 = vrot.slane %v4061, 5
    %v4064 = vor.u32 %v4060, %v4063
    %v4065 = vrot.slane %v4064, 4
    %v4067 = vshll.u32 %v3654, 16
    %v4069 = vrot.slane %v4067, 5
    %v4070 = vsel %vm1284, %v4065, %v4069
    %v4071 = vshrl.u32 %v3654, 16
    %v4073 = vrot.slane %v4071, 4
    %v4074 = vor.u32 %v4073, %v4069
    %v4075 = vrot.slane %v4074, 4
    %v4077 = vshll.u32 %v3703, 16
    %v4079 = vrot.slane %v4077, 5
    %v4080 = vsel %vm1284, %v4075, %v4079
    %v4082 = vshrl.u32 %v3655, 16
    %v4084 = vrot.slane %v4082, 4
    %v4085 = vshll.u32 %v3655, 16
    %v4087 = vrot.slane %v4085, 5
    %v4088 = vor.u32 %v4084, %v4087
    %v4089 = vrot.slane %v4088, 4
    %v4091 = vshll.u32 %v3656, 16
    %v4093 = vrot.slane %v4091, 5
    %v4094 = vsel %vm1284, %v4089, %v4093
    %v4095 = vshrl.u32 %v3656, 16
    %v4097 = vrot.slane %v4095, 4
    %v4098 = vor.u32 %v4097, %v4093
    %v4099 = vrot.slane %v4098, 4
    %v4101 = vshll.u32 %v3704, 16
    %v4103 = vrot.slane %v4101, 5
    %v4104 = vsel %vm1284, %v4099, %v4103
    %v4106 = vshrl.u32 %v3657, 16
    %v4108 = vrot.slane %v4106, 4
    %v4109 = vshll.u32 %v3657, 16
    %v4111 = vrot.slane %v4109, 5
    %v4112 = vor.u32 %v4108, %v4111
    %v4113 = vrot.slane %v4112, 4
    %v4115 = vshll.u32 %v3658, 16
    %v4117 = vrot.slane %v4115, 5
    %v4118 = vsel %vm1284, %v4113, %v4117
    %v4119 = vshrl.u32 %v3658, 16
    %v4121 = vrot.slane %v4119, 4
    %v4122 = vor.u32 %v4121, %v4117
    %v4123 = vrot.slane %v4122, 4
    %v4125 = vshll.u32 %v3705, 16
    %v4127 = vrot.slane %v4125, 5
    %v4128 = vsel %vm1284, %v4123, %v4127
    %v4130 = vshrl.u32 %v3659, 16
    %v4132 = vrot.slane %v4130, 4
    %v4133 = vshll.u32 %v3659, 16
    %v4135 = vrot.slane %v4133, 5
    %v4136 = vor.u32 %v4132, %v4135
    %v4137 = vrot.slane %v4136, 4
    %v4139 = vshll.u32 %v3660, 16
    %v4141 = vrot.slane %v4139, 5
    %v4142 = vsel %vm1284, %v4137, %v4141
    %v4143 = vshrl.u32 %v3660, 16
    %v4145 = vrot.slane %v4143, 4
    %v4146 = vor.u32 %v4145, %v4141
    %v4147 = vrot.slane %v4146, 4
    %v4149 = vshll.u32 %v3706, 16
    %v4151 = vrot.slane %v4149, 5
    %v4152 = vsel %vm1284, %v4147, %v4151
    %v4154 = vshrl.u32 %v3661, 16
    %v4156 = vrot.slane %v4154, 4
    %v4157 = vshll.u32 %v3661, 16
    %v4159 = vrot.slane %v4157, 5
    %v4160 = vor.u32 %v4156, %v4159
    %v4161 = vrot.slane %v4160, 4
    %v4163 = vshll.u32 %v3662, 16
    %v4165 = vrot.slane %v4163, 5
    %v4166 = vsel %vm1284, %v4161, %v4165
    %v4167 = vshrl.u32 %v3662, 16
    %v4169 = vrot.slane %v4167, 4
    %v4170 = vor.u32 %v4169, %v4165
    %v4171 = vrot.slane %v4170, 4
    %v4173 = vshll.u32 %v3707, 16
    %v4175 = vrot.slane %v4173, 5
    %v4176 = vsel %vm1284, %v4171, %v4175
    %v4178 = vshrl.u32 %v3663, 16
    %v4180 = vrot.slane %v4178, 4
    %v4181 = vshll.u32 %v3663, 16
    %v4183 = vrot.slane %v4181, 5
    %v4184 = vor.u32 %v4180, %v4183
    %v4185 = vrot.slane %v4184, 4
    %v4187 = vshll.u32 %v3664, 16
    %v4189 = vrot.slane %v4187, 5
    %v4190 = vsel %vm1284, %v4185, %v4189
    %v4191 = vshrl.u32 %v3664, 16
    %v4193 = vrot.slane %v4191, 4
    %v4194 = vor.u32 %v4193, %v4189
    %v4195 = vrot.slane %v4194, 4
    %v4197 = vshll.u32 %v3708, 16
    %v4199 = vrot.slane %v4197, 5
    %v4200 = vsel %vm1284, %v4195, %v4199
    %v4202 = vshrl.u32 %v3665, 16
    %v4204 = vrot.slane %v4202, 4
    %v4205 = vshll.u32 %v3665, 16
    %v4207 = vrot.slane %v4205, 5
    %v4208 = vor.u32 %v4204, %v4207
    %v4209 = vrot.slane %v4208, 4
    %v4211 = vshll.u32 %v3666, 16
    %v4213 = vrot.slane %v4211, 5
    %v4214 = vsel %vm1284, %v4209, %v4213
    %v4215 = vshrl.u32 %v3666, 16
    %v4217 = vrot.slane %v4215, 4
    %v4218 = vor.u32 %v4217, %v4213
    %v4219 = vrot.slane %v4218, 4
    %v4221 = vshll.u32 %v3709, 16
    %v4223 = vrot.slane %v4221, 5
    %v4224 = vsel %vm1284, %v4219, %v4223
    %v4226 = vshrl.u32 %v3667, 16
    %v4228 = vrot.slane %v4226, 4
    %v4229 = vshll.u32 %v3667, 16
    %v4231 = vrot.slane %v4229, 5
    %v4232 = vor.u32 %v4228, %v4231
    %v4233 = vrot.slane %v4232, 4
    %v4235 = vshll.u32 %v3668, 16
    %v4237 = vrot.slane %v4235, 5
    %v4238 = vsel %vm1284, %v4233, %v4237
    %v4239 = vshrl.u32 %v3668, 16
    %v4241 = vrot.slane %v4239, 4
    %v4242 = vor.u32 %v4241, %v4237
    %v4243 = vrot.slane %v4242, 4
    %v4245 = vshll.u32 %v3710, 16
    %v4247 = vrot.slane %v4245, 5
    %v4248 = vsel %vm1284, %v4243, %v4247
    %v4250 = vshrl.u32 %v3669, 16
    %v4252 = vrot.slane %v4250, 4
    %v4253 = vshll.u32 %v3669, 16
    %v4255 = vrot.slane %v4253, 5
    %v4256 = vor.u32 %v4252, %v4255
    %v4257 = vrot.slane %v4256, 4
    %v4259 = vshll.u32 %v3670, 16
    %v4261 = vrot.slane %v4259, 5
    %v4262 = vsel %vm1284, %v4257, %v4261
    %v4263 = vshrl.u32 %v3670, 16
    %v4265 = vrot.slane %v4263, 4
    %v4266 = vor.u32 %v4265, %v4261
    %v4267 = vrot.slane %v4266, 4
    %v4269 = vshll.u32 %v3711, 16
    %v4271 = vrot.slane %v4269, 5
    %v4272 = vsel %vm1284, %v4267, %v4271
    %v4274 = vshrl.u32 %v3671, 16
    %v4276 = vrot.slane %v4274, 4
    %v4277 = vshll.u32 %v3671, 16
    %v4279 = vrot.slane %v4277, 5
    %v4280 = vor.u32 %v4276, %v4279
    %v4281 = vrot.slane %v4280, 4
    %v4283 = vshll.u32 %v3672, 16
    %v4285 = vrot.slane %v4283, 5
    %v4286 = vsel %vm1284, %v4281, %v4285
    %v4287 = vshrl.u32 %v3672, 16
    %v4289 = vrot.slane %v4287, 4
    %v4290 = vor.u32 %v4289, %v4285
    %v4291 = vrot.slane %v4290, 4
    %v4293 = vshll.u32 %v3712, 16
    %v4295 = vrot.slane %v4293, 5
    %v4296 = vsel %vm1284, %v4291, %v4295
    %v4298 = vshrl.u32 %v3673, 16
    %v4300 = vrot.slane %v4298, 4
    %v4301 = vshll.u32 %v3673, 16
    %v4303 = vrot.slane %v4301, 5
    %v4304 = vor.u32 %v4300, %v4303
    %v4305 = vrot.slane %v4304, 4
    %v4307 = vshll.u32 %v3674, 16
    %v4309 = vrot.slane %v4307, 5
    %v4310 = vsel %vm1284, %v4305, %v4309
    %v4311 = vshrl.u32 %v3674, 16
    %v4313 = vrot.slane %v4311, 4
    %v4314 = vor.u32 %v4313, %v4309
    %v4315 = vrot.slane %v4314, 4
    %v4317 = vshll.u32 %v3713, 16
    %v4319 = vrot.slane %v4317, 5
    %v4320 = vsel %vm1284, %v4315, %v4319
    %v4322 = vshrl.u32 %v3675, 16
    %v4324 = vrot.slane %v4322, 4
    %v4325 = vshll.u32 %v3675, 16
    %v4327 = vrot.slane %v4325, 5
    %v4328 = vor.u32 %v4324, %v4327
    %v4329 = vrot.slane %v4328, 4
    %v4331 = vshll.u32 %v3676, 16
    %v4333 = vrot.slane %v4331, 5
    %v4334 = vsel %vm1284, %v4329, %v4333
    %v4335 = vshrl.u32 %v3676, 16
    %v4337 = vrot.slane %v4335, 4
    %v4338 = vor.u32 %v4337, %v4333
    %v4339 = vrot.slane %v4338, 4
    %v4341 = vshll.u32 %v3714, 16
    %v4343 = vrot.slane %v4341, 5
    %v4344 = vsel %vm1284, %v4339, %v4343
    %v4346 = vshrl.u32 %v3677, 16
    %v4348 = vrot.slane %v4346, 4
    %v4349 = vshll.u32 %v3677, 16
    %v4351 = vrot.slane %v4349, 5
    %v4352 = vor.u32 %v4348, %v4351
    %v4353 = vrot.slane %v4352, 4
    %v4355 = vshll.u32 %v3678, 16
    %v4357 = vrot.slane %v4355, 5
    %v4358 = vsel %vm1284, %v4353, %v4357
    %v4359 = vshrl.u32 %v3678, 16
    %v4361 = vrot.slane %v4359, 4
    %v4362 = vor.u32 %v4361, %v4357
    %v4363 = vrot.slane %v4362, 4
    %v4365 = vshll.u32 %v3715, 16
    %v4367 = vrot.slane %v4365, 5
    %v4368 = vsel %vm1284, %v4363, %v4367
    %v4370 = vshrl.u32 %v3679, 16
    %v4372 = vrot.slane %v4370, 4
    %v4373 = vshll.u32 %v3679, 16
    %v4375 = vrot.slane %v4373, 5
    %v4376 = vor.u32 %v4372, %v4375
    %v4377 = vrot.slane %v4376, 4
    %v4379 = vshll.u32 %v3680, 16
    %v4381 = vrot.slane %v4379, 5
    %v4382 = vsel %vm1284, %v4377, %v4381
    %v4383 = vshrl.u32 %v3680, 16
    %v4385 = vrot.slane %v4383, 4
    %v4386 = vor.u32 %v4385, %v4381
    %v4387 = vrot.slane %v4386, 4
    %v4389 = vshll.u32 %v3716, 16
    %v4391 = vrot.slane %v4389, 5
    %v4392 = vsel %vm1284, %v4387, %v4391
    %v4394 = vshrl.u32 %v3681, 16
    %v4396 = vrot.slane %v4394, 4
    %v4397 = vshll.u32 %v3681, 16
    %v4399 = vrot.slane %v4397, 5
    %v4400 = vor.u32 %v4396, %v4399
    %v4401 = vrot.slane %v4400, 4
    %v4403 = vshll.u32 %v3682, 16
    %v4405 = vrot.slane %v4403, 5
    %v4406 = vsel %vm1284, %v4401, %v4405
    %v4407 = vshrl.u32 %v3682, 16
    %v4409 = vrot.slane %v4407, 4
    %v4410 = vor.u32 %v4409, %v4405
    %v4411 = vrot.slane %v4410, 4
    %v4413 = vshll.u32 %v3717, 16
    %v4415 = vrot.slane %v4413, 5
    %v4416 = vsel %vm1284, %v4411, %v4415
    %v4418 = vshrl.u32 %v3683, 16
    %v4420 = vrot.slane %v4418, 4
    %v4421 = vshll.u32 %v3683, 16
    %v4423 = vrot.slane %v4421, 5
    %v4424 = vor.u32 %v4420, %v4423
    %v4425 = vrot.slane %v4424, 4
    %v4427 = vshll.u32 %v3684, 16
    %v4429 = vrot.slane %v4427, 5
    %v4430 = vsel %vm1284, %v4425, %v4429
    %v4431 = vshrl.u32 %v3684, 16
    %v4433 = vrot.slane %v4431, 4
    %v4434 = vor.u32 %v4433, %v4429
    %v4435 = vrot.slane %v4434, 4
    %v4437 = vshll.u32 %v3718, 16
    %v4439 = vrot.slane %v4437, 5
    %v4440 = vsel %vm1284, %v4435, %v4439
    %v4442 = vshrl.u32 %v3685, 16
    %v4444 = vrot.slane %v4442, 4
    %v4445 = vshll.u32 %v3685, 16
    %v4447 = vrot.slane %v4445, 5
    %v4448 = vor.u32 %v4444, %v4447
    %v4449 = vrot.slane %v4448, 4
    %v4451 = vshll.u32 %v3686, 16
    %v4453 = vrot.slane %v4451, 5
    %v4454 = vsel %vm1284, %v4449, %v4453
    %v4455 = vshrl.u32 %v3686, 16
    %v4457 = vrot.slane %v4455, 4
    %v4458 = vor.u32 %v4457, %v4453
    %v4459 = vrot.slane %v4458, 4
    %v4461 = vshll.u32 %v3719, 16
    %v4463 = vrot.slane %v4461, 5
    %v4464 = vsel %vm1284, %v4459, %v4463
    %v4466 = vshrl.u32 %v3687, 16
    %v4468 = vrot.slane %v4466, 4
    %v4469 = vshll.u32 %v3687, 16
    %v4471 = vrot.slane %v4469, 5
    %v4472 = vor.u32 %v4468, %v4471
    %v4473 = vrot.slane %v4472, 4
    %v4475 = vshll.u32 %v3688, 16
    %v4477 = vrot.slane %v4475, 5
    %v4478 = vsel %vm1284, %v4473, %v4477
    %v4479 = vshrl.u32 %v3688, 16
    %v4481 = vrot.slane %v4479, 4
    %v4482 = vor.u32 %v4481, %v4477
    %v4483 = vrot.slane %v4482, 4
    %v4485 = vshll.u32 %v3720, 16
    %v4487 = vrot.slane %v4485, 5
    %v4488 = vsel %vm1284, %v4483, %v4487
    %v4489 = vld [vmem:[%s3624] sm:$0xe]
    %v4490 = vld [vmem:[%s3624 + $0xc] sm:$0xe]
    %v4491 = vld [vmem:[%s3624 + $0x18] sm:$0xe]
    %v4492 = vld [vmem:[%s3624 + $0x24] sm:$0xe]
    %v4493 = vld [vmem:[%s3624 + $0x30] sm:$0xe]
    %v4494 = vld [vmem:[%s3624 + $0x3c] sm:$0xe]
    %v4495 = vld [vmem:[%s3624 + $0x48] sm:$0xe]
    %v4496 = vld [vmem:[%s3624 + $0x54] sm:$0xe]
    %v4497 = vld [vmem:[%s3624 + $0x60] sm:$0xe]
    %v4498 = vld [vmem:[%s3624 + $0x6c] sm:$0xe]
    %v4499 = vld [vmem:[%s3624 + $0x78] sm:$0xe]
    %v4500 = vld [vmem:[%s3624 + $0x84] sm:$0xe]
    %v4501 = vld [vmem:[%s3624 + $0x90] sm:$0xe]
    %v4502 = vld [vmem:[%s3624 + $0x9c] sm:$0xe]
    %v4503 = vld [vmem:[%s3624 + $0xa8] sm:$0xe]
    %v4504 = vld [vmem:[%s3624 + $0xb4] sm:$0xe]
    %v4505 = vld [vmem:[%s3624 + $0xd8] sm:$0xe]
    %v4506 = vld [vmem:[%s3624 + $0xe4] sm:$0xe]
    %v4507 = vld [vmem:[%s3624 + $0xf0] sm:$0xe]
    %v4508 = vld [vmem:[%s3624 + $0xfc] sm:$0xe]
    %v4509 = vld [vmem:[%s3624 + $0x108] sm:$0xe]
    %v4510 = vld [vmem:[%s3624 + $0x114] sm:$0xe]
    %v4511 = vld [vmem:[%s3624 + $0x120] sm:$0xe]
    %v4512 = vld [vmem:[%s3624 + $0x12c] sm:$0xe]
    %v4513 = vld [vmem:[%s3624 + $0x138] sm:$0xe]
    %v4514 = vld [vmem:[%s3624 + $0x144] sm:$0xe]
    %v4515 = vld [vmem:[%s3624 + $0x150] sm:$0xe]
    %v4516 = vld [vmem:[%s3624 + $0x15c] sm:$0xe]
    %v4517 = vld [vmem:[%s3624 + $0x168] sm:$0xe]
    %v4518 = vld [vmem:[%s3624 + $0x174] sm:$0xe]
    %v4519 = vld [vmem:[%s3624 + $0x180] sm:$0xe]
    %v4520 = vld [vmem:[%s3624 + $0x18c] sm:$0xe]
    %v4617 = vrot.slane %v4489, 5
    %v4618 = vrot.slane %v4617, 4
    %v4619 = vrot.slane %v3626, 5
    %v4620 = vsel %vm2183, %v4618, %v4619
    %v4621 = vrot.slane %v4619, 4
    %v4622 = vrot.slane %v3689, 5
    %v4623 = vsel %vm2183, %v4621, %v4622
    %v4624 = vrot.slane %v4490, 5
    %v4625 = vrot.slane %v4624, 4
    %v4626 = vrot.slane %v3628, 5
    %v4627 = vsel %vm2183, %v4625, %v4626
    %v4628 = vrot.slane %v4626, 4
    %v4629 = vrot.slane %v3690, 5
    %v4630 = vsel %vm2183, %v4628, %v4629
    %v4631 = vrot.slane %v4491, 5
    %v4632 = vrot.slane %v4631, 4
    %v4633 = vrot.slane %v3630, 5
    %v4634 = vsel %vm2183, %v4632, %v4633
    %v4635 = vrot.slane %v4633, 4
    %v4636 = vrot.slane %v3691, 5
    %v4637 = vsel %vm2183, %v4635, %v4636
    %v4638 = vrot.slane %v4492, 5
    %v4639 = vrot.slane %v4638, 4
    %v4640 = vrot.slane %v3632, 5
    %v4641 = vsel %vm2183, %v4639, %v4640
    %v4642 = vrot.slane %v4640, 4
    %v4643 = vrot.slane %v3692, 5
    %v4644 = vsel %vm2183, %v4642, %v4643
    %v4645 = vrot.slane %v4493, 5
    %v4646 = vrot.slane %v4645, 4
    %v4647 = vrot.slane %v3634, 5
    %v4648 = vsel %vm2183, %v4646, %v4647
    %v4649 = vrot.slane %v4647, 4
    %v4650 = vrot.slane %v3693, 5
    %v4651 = vsel %vm2183, %v4649, %v4650
    %v4652 = vrot.slane %v4494, 5
    %v4653 = vrot.slane %v4652, 4
    %v4654 = vrot.slane %v3636, 5
    %v4655 = vsel %vm2183, %v4653, %v4654
    %v4656 = vrot.slane %v4654, 4
    %v4657 = vrot.slane %v3694, 5
    %v4658 = vsel %vm2183, %v4656, %v4657
    %v4659 = vrot.slane %v4495, 5
    %v4660 = vrot.slane %v4659, 4
    %v4661 = vrot.slane %v3638, 5
    %v4662 = vsel %vm2183, %v4660, %v4661
    %v4663 = vrot.slane %v4661, 4
    %v4664 = vrot.slane %v3695, 5
    %v4665 = vsel %vm2183, %v4663, %v4664
    %v4666 = vrot.slane %v4496, 5
    %v4667 = vrot.slane %v4666, 4
    %v4668 = vrot.slane %v3640, 5
    %v4669 = vsel %vm2183, %v4667, %v4668
    %v4670 = vrot.slane %v4668, 4
    %v4671 = vrot.slane %v3696, 5
    %v4672 = vsel %vm2183, %v4670, %v4671
    %v4673 = vrot.slane %v4497, 5
    %v4674 = vrot.slane %v4673, 4
    %v4675 = vrot.slane %v3642, 5
    %v4676 = vsel %vm2183, %v4674, %v4675
    %v4677 = vrot.slane %v4675, 4
    %v4678 = vrot.slane %v3697, 5
    %v4679 = vsel %vm2183, %v4677, %v4678
    %v4680 = vrot.slane %v4498, 5
    %v4681 = vrot.slane %v4680, 4
    %v4682 = vrot.slane %v3644, 5
    %v4683 = vsel %vm2183, %v4681, %v4682
    %v4684 = vrot.slane %v4682, 4
    %v4685 = vrot.slane %v3698, 5
    %v4686 = vsel %vm2183, %v4684, %v4685
    %v4687 = vrot.slane %v4499, 5
    %v4688 = vrot.slane %v4687, 4
    %v4689 = vrot.slane %v3646, 5
    %v4690 = vsel %vm2183, %v4688, %v4689
    %v4691 = vrot.slane %v4689, 4
    %v4692 = vrot.slane %v3699, 5
    %v4693 = vsel %vm2183, %v4691, %v4692
    %v4694 = vrot.slane %v4500, 5
    %v4695 = vrot.slane %v4694, 4
    %v4696 = vrot.slane %v3648, 5
    %v4697 = vsel %vm2183, %v4695, %v4696
    %v4698 = vrot.slane %v4696, 4
    %v4699 = vrot.slane %v3700, 5
    %v4700 = vsel %vm2183, %v4698, %v4699
    %v4701 = vrot.slane %v4501, 5
    %v4702 = vrot.slane %v4701, 4
    %v4703 = vrot.slane %v3650, 5
    %v4704 = vsel %vm2183, %v4702, %v4703
    %v4705 = vrot.slane %v4703, 4
    %v4706 = vrot.slane %v3701, 5
    %v4707 = vsel %vm2183, %v4705, %v4706
    %v4708 = vrot.slane %v4502, 5
    %v4709 = vrot.slane %v4708, 4
    %v4710 = vrot.slane %v3652, 5
    %v4711 = vsel %vm2183, %v4709, %v4710
    %v4712 = vrot.slane %v4710, 4
    %v4713 = vrot.slane %v3702, 5
    %v4714 = vsel %vm2183, %v4712, %v4713
    %v4715 = vrot.slane %v4503, 5
    %v4716 = vrot.slane %v4715, 4
    %v4717 = vrot.slane %v3654, 5
    %v4718 = vsel %vm2183, %v4716, %v4717
    %v4719 = vrot.slane %v4717, 4
    %v4720 = vrot.slane %v3703, 5
    %v4721 = vsel %vm2183, %v4719, %v4720
    %v4722 = vrot.slane %v4504, 5
    %v4723 = vrot.slane %v4722, 4
    %v4724 = vrot.slane %v3656, 5
    %v4725 = vsel %vm2183, %v4723, %v4724
    %v4726 = vrot.slane %v4724, 4
    %v4727 = vrot.slane %v3704, 5
    %v4728 = vsel %vm2183, %v4726, %v4727
    %v4729 = vrot.slane %v4505, 5
    %v4730 = vrot.slane %v4729, 4
    %v4731 = vrot.slane %v3658, 5
    %v4732 = vsel %vm2183, %v4730, %v4731
    %v4733 = vrot.slane %v4731, 4
    %v4734 = vrot.slane %v3705, 5
    %v4735 = vsel %vm2183, %v4733, %v4734
    %v4736 = vrot.slane %v4506, 5
    %v4737 = vrot.slane %v4736, 4
    %v4738 = vrot.slane %v3660, 5
    %v4739 = vsel %vm2183, %v4737, %v4738
    %v4740 = vrot.slane %v4738, 4
    %v4741 = vrot.slane %v3706, 5
    %v4742 = vsel %vm2183, %v4740, %v4741
    %v4743 = vrot.slane %v4507, 5
    %v4744 = vrot.slane %v4743, 4
    %v4745 = vrot.slane %v3662, 5
    %v4746 = vsel %vm2183, %v4744, %v4745
    %v4747 = vrot.slane %v4745, 4
    %v4748 = vrot.slane %v3707, 5
    %v4749 = vsel %vm2183, %v4747, %v4748
    %v4750 = vrot.slane %v4508, 5
    %v4751 = vrot.slane %v4750, 4
    %v4752 = vrot.slane %v3664, 5
    %v4753 = vsel %vm2183, %v4751, %v4752
    %v4754 = vrot.slane %v4752, 4
    %v4755 = vrot.slane %v3708, 5
    %v4756 = vsel %vm2183, %v4754, %v4755
    %v4757 = vrot.slane %v4509, 5
    %v4758 = vrot.slane %v4757, 4
    %v4759 = vrot.slane %v3666, 5
    %v4760 = vsel %vm2183, %v4758, %v4759
    %v4761 = vrot.slane %v4759, 4
    %v4762 = vrot.slane %v3709, 5
    %v4763 = vsel %vm2183, %v4761, %v4762
    %v4764 = vrot.slane %v4510, 5
    %v4765 = vrot.slane %v4764, 4
    %v4766 = vrot.slane %v3668, 5
    %v4767 = vsel %vm2183, %v4765, %v4766
    %v4768 = vrot.slane %v4766, 4
    %v4769 = vrot.slane %v3710, 5
    %v4770 = vsel %vm2183, %v4768, %v4769
    %v4771 = vrot.slane %v4511, 5
    %v4772 = vrot.slane %v4771, 4
    %v4773 = vrot.slane %v3670, 5
    %v4774 = vsel %vm2183, %v4772, %v4773
    %v4775 = vrot.slane %v4773, 4
    %v4776 = vrot.slane %v3711, 5
    %v4777 = vsel %vm2183, %v4775, %v4776
    %v4778 = vrot.slane %v4512, 5
    %v4779 = vrot.slane %v4778, 4
    %v4780 = vrot.slane %v3672, 5
    %v4781 = vsel %vm2183, %v4779, %v4780
    %v4782 = vrot.slane %v4780, 4
    %v4783 = vrot.slane %v3712, 5
    %v4784 = vsel %vm2183, %v4782, %v4783
    %v4785 = vrot.slane %v4513, 5
    %v4786 = vrot.slane %v4785, 4
    %v4787 = vrot.slane %v3674, 5
    %v4788 = vsel %vm2183, %v4786, %v4787
    %v4789 = vrot.slane %v4787, 4
    %v4790 = vrot.slane %v3713, 5
    %v4791 = vsel %vm2183, %v4789, %v4790
    %v4792 = vrot.slane %v4514, 5
    %v4793 = vrot.slane %v4792, 4
    %v4794 = vrot.slane %v3676, 5
    %v4795 = vsel %vm2183, %v4793, %v4794
    %v4796 = vrot.slane %v4794, 4
    %v4797 = vrot.slane %v3714, 5
    %v4798 = vsel %vm2183, %v4796, %v4797
    %v4799 = vrot.slane %v4515, 5
    %v4800 = vrot.slane %v4799, 4
    %v4801 = vrot.slane %v3678, 5
    %v4802 = vsel %vm2183, %v4800, %v4801
    %v4803 = vrot.slane %v4801, 4
    %v4804 = vrot.slane %v3715, 5
    %v4805 = vsel %vm2183, %v4803, %v4804
    %v4806 = vrot.slane %v4516, 5
    %v4807 = vrot.slane %v4806, 4
    %v4808 = vrot.slane %v3680, 5
    %v4809 = vsel %vm2183, %v4807, %v4808
    %v4810 = vrot.slane %v4808, 4
    %v4811 = vrot.slane %v3716, 5
    %v4812 = vsel %vm2183, %v4810, %v4811
    %v4813 = vrot.slane %v4517, 5
    %v4814 = vrot.slane %v4813, 4
    %v4815 = vrot.slane %v3682, 5
    %v4816 = vsel %vm2183, %v4814, %v4815
    %v4817 = vrot.slane %v4815, 4
    %v4818 = vrot.slane %v3717, 5
    %v4819 = vsel %vm2183, %v4817, %v4818
    %v4820 = vrot.slane %v4518, 5
    %v4821 = vrot.slane %v4820, 4
    %v4822 = vrot.slane %v3684, 5
    %v4823 = vsel %vm2183, %v4821, %v4822
    %v4824 = vrot.slane %v4822, 4
    %v4825 = vrot.slane %v3718, 5
    %v4826 = vsel %vm2183, %v4824, %v4825
    %v4827 = vrot.slane %v4519, 5
    %v4828 = vrot.slane %v4827, 4
    %v4829 = vrot.slane %v3686, 5
    %v4830 = vsel %vm2183, %v4828, %v4829
    %v4831 = vrot.slane %v4829, 4
    %v4832 = vrot.slane %v3719, 5
    %v4833 = vsel %vm2183, %v4831, %v4832
    %v4834 = vrot.slane %v4520, 5
    %v4835 = vrot.slane %v4834, 4
    %v4836 = vrot.slane %v3688, 5
    %v4837 = vsel %vm2183, %v4835, %v4836
    %v4838 = vrot.slane %v4836, 4
    %v4839 = vrot.slane %v3720, 5
    %v4840 = vsel %vm2183, %v4838, %v4839
    %v4873 = vunpack.c.l.b16 %v1186
    %v4874 = vunpack.c.l.b16 %v1187
    %v4875 = vunpack.c.l.b16 %v1188
    %v4876 = vunpack.c.l.b16 %v1189
    %v4877 = vunpack.c.l.b16 %v1190
    %v4878 = vunpack.c.l.b16 %v1191
    %v4879 = vunpack.c.l.b16 %v1192
    %v4880 = vunpack.c.l.b16 %v1193
    %v4881 = vunpack.c.l.b16 %v1194
    %v4882 = vunpack.c.l.b16 %v1195
    %v4883 = vunpack.c.l.b16 %v1196
    %v4884 = vunpack.c.l.b16 %v1197
    %v4885 = vunpack.c.l.b16 %v1198
    %v4886 = vunpack.c.l.b16 %v1199
    %v4887 = vunpack.c.l.b16 %v1200
    %v4888 = vunpack.c.l.b16 %v1201
    %v4889 = vunpack.c.l.b16 %v1202
    %v4890 = vunpack.c.l.b16 %v1203
    %v4891 = vunpack.c.l.b16 %v1204
    %v4892 = vunpack.c.l.b16 %v1205
    %v4893 = vunpack.c.l.b16 %v1206
    %v4894 = vunpack.c.l.b16 %v1207
    %v4895 = vunpack.c.l.b16 %v1208
    %v4896 = vunpack.c.l.b16 %v1209
    %v4897 = vunpack.c.l.b16 %v1210
    %v4898 = vunpack.c.l.b16 %v1211
    %v4899 = vunpack.c.l.b16 %v1212
    %v4900 = vunpack.c.l.b16 %v1213
    %v4901 = vunpack.c.l.b16 %v1214
    %v4902 = vunpack.c.l.b16 %v1215
    %v4903 = vunpack.c.l.b16 %v1216
    %v4904 = vunpack.c.l.b16 %v1217
    %v4905 = vunpack.c.l.b16 %v1218
    %v4906 = vunpack.c.l.b16 %v1219
    %v4907 = vunpack.c.l.b16 %v1220
    %v4908 = vunpack.c.l.b16 %v1221
    %v4909 = vunpack.c.l.b16 %v1222
    %v4910 = vunpack.c.l.b16 %v1223
    %v4911 = vunpack.c.l.b16 %v1224
    %v4912 = vunpack.c.l.b16 %v1225
    %v4913 = vunpack.c.l.b16 %v1226
    %v4914 = vunpack.c.l.b16 %v1227
    %v4915 = vunpack.c.l.b16 %v1228
    %v4916 = vunpack.c.l.b16 %v1229
    %v4917 = vunpack.c.l.b16 %v1230
    %v4918 = vunpack.c.l.b16 %v1231
    %v4919 = vunpack.c.l.b16 %v1232
    %v4920 = vunpack.c.l.b16 %v1233
    %v4921 = vunpack.c.l.b16 %v1234
    %v4922 = vunpack.c.l.b16 %v1235
    %v4923 = vunpack.c.l.b16 %v1236
    %v4924 = vunpack.c.l.b16 %v1237
    %v4925 = vunpack.c.l.b16 %v1238
    %v4926 = vunpack.c.l.b16 %v1239
    %v4927 = vunpack.c.l.b16 %v1240
    %v4928 = vunpack.c.l.b16 %v1241
    %v4929 = vunpack.c.l.b16 %v1242
    %v4930 = vunpack.c.l.b16 %v1243
    %v4931 = vunpack.c.l.b16 %v1244
    %v4932 = vunpack.c.l.b16 %v1245
    %v4933 = vunpack.c.l.b16 %v1246
    %v4934 = vunpack.c.l.b16 %v1247
    %v4935 = vunpack.c.l.b16 %v1248
    %v4936 = vunpack.c.l.b16 %v1249
    %v4937 = vpack.c.b16 %v4874, %v4873
    %v4938 = vpack.c.b16 %v4876, %v4875
    %v4939 = vpack.c.b16 %v4878, %v4877
    %v4940 = vpack.c.b16 %v4880, %v4879
    %v4941 = vpack.c.b16 %v4882, %v4881
    %v4942 = vpack.c.b16 %v4884, %v4883
    %v4943 = vpack.c.b16 %v4886, %v4885
    %v4944 = vpack.c.b16 %v4888, %v4887
    %v4945 = vpack.c.b16 %v4890, %v4889
    %v4946 = vpack.c.b16 %v4892, %v4891
    %v4947 = vpack.c.b16 %v4894, %v4893
    %v4948 = vpack.c.b16 %v4896, %v4895
    %v4949 = vpack.c.b16 %v4898, %v4897
    %v4950 = vpack.c.b16 %v4900, %v4899
    %v4951 = vpack.c.b16 %v4902, %v4901
    %v4952 = vpack.c.b16 %v4904, %v4903
    %v4953 = vpack.c.b16 %v4906, %v4905
    %v4954 = vpack.c.b16 %v4908, %v4907
    %v4955 = vpack.c.b16 %v4910, %v4909
    %v4956 = vpack.c.b16 %v4912, %v4911
    %v4957 = vpack.c.b16 %v4914, %v4913
    %v4958 = vpack.c.b16 %v4916, %v4915
    %v4959 = vpack.c.b16 %v4918, %v4917
    %v4960 = vpack.c.b16 %v4920, %v4919
    %v4961 = vpack.c.b16 %v4922, %v4921
    %v4962 = vpack.c.b16 %v4924, %v4923
    %v4963 = vpack.c.b16 %v4926, %v4925
    %v4964 = vpack.c.b16 %v4928, %v4927
    %v4965 = vpack.c.b16 %v4930, %v4929
    %v4966 = vpack.c.b16 %v4932, %v4931
    %v4967 = vpack.c.b16 %v4934, %v4933
    %v4968 = vpack.c.b16 %v4936, %v4935
    %v4969 = vunpack.c.l.b16 %v1298
    %v4970 = vunpack.c.l.b16 %v1308
    %v4971 = vunpack.c.l.b16 %v1322
    %v4972 = vunpack.c.l.b16 %v1332
    %v4973 = vunpack.c.l.b16 %v1346
    %v4974 = vunpack.c.l.b16 %v1356
    %v4975 = vunpack.c.l.b16 %v1370
    %v4976 = vunpack.c.l.b16 %v1380
    %v4977 = vunpack.c.l.b16 %v1394
    %v4978 = vunpack.c.l.b16 %v1404
    %v4979 = vunpack.c.l.b16 %v1418
    %v4980 = vunpack.c.l.b16 %v1428
    %v4981 = vunpack.c.l.b16 %v1442
    %v4982 = vunpack.c.l.b16 %v1452
    %v4983 = vunpack.c.l.b16 %v1466
    %v4984 = vunpack.c.l.b16 %v1476
    %v4985 = vunpack.c.l.b16 %v1490
    %v4986 = vunpack.c.l.b16 %v1500
    %v4987 = vunpack.c.l.b16 %v1514
    %v4988 = vunpack.c.l.b16 %v1524
    %v4989 = vunpack.c.l.b16 %v1538
    %v4990 = vunpack.c.l.b16 %v1548
    %v4991 = vunpack.c.l.b16 %v1562
    %v4992 = vunpack.c.l.b16 %v1572
    %v4993 = vunpack.c.l.b16 %v1586
    %v4994 = vunpack.c.l.b16 %v1596
    %v4995 = vunpack.c.l.b16 %v1610
    %v4996 = vunpack.c.l.b16 %v1620
    %v4997 = vunpack.c.l.b16 %v1634
    %v4998 = vunpack.c.l.b16 %v1644
    %v4999 = vunpack.c.l.b16 %v1658
    %v5000 = vunpack.c.l.b16 %v1668
    %v5001 = vunpack.c.l.b16 %v1682
    %v5002 = vunpack.c.l.b16 %v1692
    %v5003 = vunpack.c.l.b16 %v1706
    %v5004 = vunpack.c.l.b16 %v1716
    %v5005 = vunpack.c.l.b16 %v1730
    %v5006 = vunpack.c.l.b16 %v1740
    %v5007 = vunpack.c.l.b16 %v1754
    %v5008 = vunpack.c.l.b16 %v1764
    %v5009 = vunpack.c.l.b16 %v1778
    %v5010 = vunpack.c.l.b16 %v1788
    %v5011 = vunpack.c.l.b16 %v1802
    %v5012 = vunpack.c.l.b16 %v1812
    %v5013 = vunpack.c.l.b16 %v1826
    %v5014 = vunpack.c.l.b16 %v1836
    %v5015 = vunpack.c.l.b16 %v1850
    %v5016 = vunpack.c.l.b16 %v1860
    %v5017 = vunpack.c.l.b16 %v1874
    %v5018 = vunpack.c.l.b16 %v1884
    %v5019 = vunpack.c.l.b16 %v1898
    %v5020 = vunpack.c.l.b16 %v1908
    %v5021 = vunpack.c.l.b16 %v1922
    %v5022 = vunpack.c.l.b16 %v1932
    %v5023 = vunpack.c.l.b16 %v1946
    %v5024 = vunpack.c.l.b16 %v1956
    %v5025 = vunpack.c.l.b16 %v1970
    %v5026 = vunpack.c.l.b16 %v1980
    %v5027 = vunpack.c.l.b16 %v1994
    %v5028 = vunpack.c.l.b16 %v2004
    %v5029 = vunpack.c.l.b16 %v2018
    %v5030 = vunpack.c.l.b16 %v2028
    %v5031 = vunpack.c.l.b16 %v2042
    %v5032 = vunpack.c.l.b16 %v2052
    %v5033 = vpack.c.b16 %v4970, %v4969
    %v5034 = vpack.c.b16 %v4972, %v4971
    %v5035 = vpack.c.b16 %v4974, %v4973
    %v5036 = vpack.c.b16 %v4976, %v4975
    %v5037 = vpack.c.b16 %v4978, %v4977
    %v5038 = vpack.c.b16 %v4980, %v4979
    %v5039 = vpack.c.b16 %v4982, %v4981
    %v5040 = vpack.c.b16 %v4984, %v4983
    %v5041 = vpack.c.b16 %v4986, %v4985
    %v5042 = vpack.c.b16 %v4988, %v4987
    %v5043 = vpack.c.b16 %v4990, %v4989
    %v5044 = vpack.c.b16 %v4992, %v4991
    %v5045 = vpack.c.b16 %v4994, %v4993
    %v5046 = vpack.c.b16 %v4996, %v4995
    %v5047 = vpack.c.b16 %v4998, %v4997
    %v5048 = vpack.c.b16 %v5000, %v4999
    %v5049 = vpack.c.b16 %v5002, %v5001
    %v5050 = vpack.c.b16 %v5004, %v5003
    %v5051 = vpack.c.b16 %v5006, %v5005
    %v5052 = vpack.c.b16 %v5008, %v5007
    %v5053 = vpack.c.b16 %v5010, %v5009
    %v5054 = vpack.c.b16 %v5012, %v5011
    %v5055 = vpack.c.b16 %v5014, %v5013
    %v5056 = vpack.c.b16 %v5016, %v5015
    %v5057 = vpack.c.b16 %v5018, %v5017
    %v5058 = vpack.c.b16 %v5020, %v5019
    %v5059 = vpack.c.b16 %v5022, %v5021
    %v5060 = vpack.c.b16 %v5024, %v5023
    %v5061 = vpack.c.b16 %v5026, %v5025
    %v5062 = vpack.c.b16 %v5028, %v5027
    %v5063 = vpack.c.b16 %v5030, %v5029
    %v5064 = vpack.c.b16 %v5032, %v5031
    %5065 = vrot.lane.b32.xlu0 %v5033, 4
    %v5066 = vpop.permute.xlu0 %5065
    %5067 = vrot.lane.b32.xlu0 %v5034, 4
    %v5068 = vpop.permute.xlu0 %5067
    %5069 = vrot.lane.b32.xlu0 %v5035, 4
    %v5070 = vpop.permute.xlu0 %5069
    %5071 = vrot.lane.b32.xlu0 %v5036, 4
    %v5072 = vpop.permute.xlu0 %5071
    %5073 = vrot.lane.b32.xlu0 %v5037, 4
    %v5074 = vpop.permute.xlu0 %5073
    %5075 = vrot.lane.b32.xlu0 %v5038, 4
    %v5076 = vpop.permute.xlu0 %5075
    %5077 = vrot.lane.b32.xlu0 %v5039, 4
    %v5078 = vpop.permute.xlu0 %5077
    %5079 = vrot.lane.b32.xlu0 %v5040, 4
    %v5080 = vpop.permute.xlu0 %5079
    %5081 = vrot.lane.b32.xlu0 %v5041, 4
    %v5082 = vpop.permute.xlu0 %5081
    %5083 = vrot.lane.b32.xlu0 %v5042, 4
    %v5084 = vpop.permute.xlu0 %5083
    %5085 = vrot.lane.b32.xlu0 %v5043, 4
    %v5086 = vpop.permute.xlu0 %5085
    %5087 = vrot.lane.b32.xlu0 %v5044, 4
    %v5088 = vpop.permute.xlu0 %5087
    %5089 = vrot.lane.b32.xlu0 %v5045, 4
    %v5090 = vpop.permute.xlu0 %5089
    %5091 = vrot.lane.b32.xlu0 %v5046, 4
    %v5092 = vpop.permute.xlu0 %5091
    %5093 = vrot.lane.b32.xlu0 %v5047, 4
    %v5094 = vpop.permute.xlu0 %5093
    %5095 = vrot.lane.b32.xlu0 %v5048, 4
    %v5096 = vpop.permute.xlu0 %5095
    %5097 = vrot.lane.b32.xlu0 %v5049, 4
    %v5098 = vpop.permute.xlu0 %5097
    %5099 = vrot.lane.b32.xlu0 %v5050, 4
    %v5100 = vpop.permute.xlu0 %5099
    %5101 = vrot.lane.b32.xlu0 %v5051, 4
    %v5102 = vpop.permute.xlu0 %5101
    %5103 = vrot.lane.b32.xlu0 %v5052, 4
    %v5104 = vpop.permute.xlu0 %5103
    %5105 = vrot.lane.b32.xlu0 %v5053, 4
    %v5106 = vpop.permute.xlu0 %5105
    %5107 = vrot.lane.b32.xlu0 %v5054, 4
    %v5108 = vpop.permute.xlu0 %5107
    %5109 = vrot.lane.b32.xlu0 %v5055, 4
    %v5110 = vpop.permute.xlu0 %5109
    %5111 = vrot.lane.b32.xlu0 %v5056, 4
    %v5112 = vpop.permute.xlu0 %5111
    %5113 = vrot.lane.b32.xlu0 %v5057, 4
    %v5114 = vpop.permute.xlu0 %5113
    %5115 = vrot.lane.b32.xlu0 %v5058, 4
    %v5116 = vpop.permute.xlu0 %5115
    %5117 = vrot.lane.b32.xlu0 %v5059, 4
    %v5118 = vpop.permute.xlu0 %5117
    %5119 = vrot.lane.b32.xlu0 %v5060, 4
    %v5120 = vpop.permute.xlu0 %5119
    %5121 = vrot.lane.b32.xlu0 %v5061, 4
    %v5122 = vpop.permute.xlu0 %5121
    %5123 = vrot.lane.b32.xlu0 %v5062, 4
    %v5124 = vpop.permute.xlu0 %5123
    %5125 = vrot.lane.b32.xlu0 %v5063, 4
    %v5126 = vpop.permute.xlu0 %5125
    %5127 = vrot.lane.b32.xlu0 %v5064, 4
    %v5128 = vpop.permute.xlu0 %5127
    %v5129 = vunpack.c.l.b16 %v2187
    %v5130 = vunpack.c.l.b16 %v2190
    %v5131 = vunpack.c.l.b16 %v2194
    %v5132 = vunpack.c.l.b16 %v2197
    %v5133 = vunpack.c.l.b16 %v2201
    %v5134 = vunpack.c.l.b16 %v2204
    %v5135 = vunpack.c.l.b16 %v2208
    %v5136 = vunpack.c.l.b16 %v2211
    %v5137 = vunpack.c.l.b16 %v2215
    %v5138 = vunpack.c.l.b16 %v2218
    %v5139 = vunpack.c.l.b16 %v2222
    %v5140 = vunpack.c.l.b16 %v2225
    %v5141 = vunpack.c.l.b16 %v2229
    %v5142 = vunpack.c.l.b16 %v2232
    %v5143 = vunpack.c.l.b16 %v2236
    %v5144 = vunpack.c.l.b16 %v2239
    %v5145 = vunpack.c.l.b16 %v2243
    %v5146 = vunpack.c.l.b16 %v2246
    %v5147 = vunpack.c.l.b16 %v2250
    %v5148 = vunpack.c.l.b16 %v2253
    %v5149 = vunpack.c.l.b16 %v2257
    %v5150 = vunpack.c.l.b16 %v2260
    %v5151 = vunpack.c.l.b16 %v2264
    %v5152 = vunpack.c.l.b16 %v2267
    %v5153 = vunpack.c.l.b16 %v2271
    %v5154 = vunpack.c.l.b16 %v2274
    %v5155 = vunpack.c.l.b16 %v2278
    %v5156 = vunpack.c.l.b16 %v2281
    %v5157 = vunpack.c.l.b16 %v2285
    %v5158 = vunpack.c.l.b16 %v2288
    %v5159 = vunpack.c.l.b16 %v2292
    %v5160 = vunpack.c.l.b16 %v2295
    %v5161 = vunpack.c.l.b16 %v2299
    %v5162 = vunpack.c.l.b16 %v2302
    %v5163 = vunpack.c.l.b16 %v2306
    %v5164 = vunpack.c.l.b16 %v2309
    %v5165 = vunpack.c.l.b16 %v2313
    %v5166 = vunpack.c.l.b16 %v2316
    %v5167 = vunpack.c.l.b16 %v2320
    %v5168 = vunpack.c.l.b16 %v2323
    %v5169 = vunpack.c.l.b16 %v2327
    %v5170 = vunpack.c.l.b16 %v2330
    %v5171 = vunpack.c.l.b16 %v2334
    %v5172 = vunpack.c.l.b16 %v2337
    %v5173 = vunpack.c.l.b16 %v2341
    %v5174 = vunpack.c.l.b16 %v2344
    %v5175 = vunpack.c.l.b16 %v2348
    %v5176 = vunpack.c.l.b16 %v2351
    %v5177 = vunpack.c.l.b16 %v2355
    %v5178 = vunpack.c.l.b16 %v2358
    %v5179 = vunpack.c.l.b16 %v2362
    %v5180 = vunpack.c.l.b16 %v2365
    %v5181 = vunpack.c.l.b16 %v2369
    %v5182 = vunpack.c.l.b16 %v2372
    %v5183 = vunpack.c.l.b16 %v2376
    %v5184 = vunpack.c.l.b16 %v2379
    %v5185 = vunpack.c.l.b16 %v2383
    %v5186 = vunpack.c.l.b16 %v2386
    %v5187 = vunpack.c.l.b16 %v2390
    %v5188 = vunpack.c.l.b16 %v2393
    %v5189 = vunpack.c.l.b16 %v2397
    %v5190 = vunpack.c.l.b16 %v2400
    %v5191 = vunpack.c.l.b16 %v2404
    %v5192 = vunpack.c.l.b16 %v2407
    %v5193 = vpack.c.b16 %v5130, %v5129
    %v5194 = vpack.c.b16 %v5132, %v5131
    %v5195 = vpack.c.b16 %v5134, %v5133
    %v5196 = vpack.c.b16 %v5136, %v5135
    %v5197 = vpack.c.b16 %v5138, %v5137
    %v5198 = vpack.c.b16 %v5140, %v5139
    %v5199 = vpack.c.b16 %v5142, %v5141
    %v5200 = vpack.c.b16 %v5144, %v5143
    %v5201 = vpack.c.b16 %v5146, %v5145
    %v5202 = vpack.c.b16 %v5148, %v5147
    %v5203 = vpack.c.b16 %v5150, %v5149
    %v5204 = vpack.c.b16 %v5152, %v5151
    %v5205 = vpack.c.b16 %v5154, %v5153
    %v5206 = vpack.c.b16 %v5156, %v5155
    %v5207 = vpack.c.b16 %v5158, %v5157
    %v5208 = vpack.c.b16 %v5160, %v5159
    %v5209 = vpack.c.b16 %v5162, %v5161
    %v5210 = vpack.c.b16 %v5164, %v5163
    %v5211 = vpack.c.b16 %v5166, %v5165
    %v5212 = vpack.c.b16 %v5168, %v5167
    %v5213 = vpack.c.b16 %v5170, %v5169
    %v5214 = vpack.c.b16 %v5172, %v5171
    %v5215 = vpack.c.b16 %v5174, %v5173
    %v5216 = vpack.c.b16 %v5176, %v5175
    %v5217 = vpack.c.b16 %v5178, %v5177
    %v5218 = vpack.c.b16 %v5180, %v5179
    %v5219 = vpack.c.b16 %v5182, %v5181
    %v5220 = vpack.c.b16 %v5184, %v5183
    %v5221 = vpack.c.b16 %v5186, %v5185
    %v5222 = vpack.c.b16 %v5188, %v5187
    %v5223 = vpack.c.b16 %v5190, %v5189
    %v5224 = vpack.c.b16 %v5192, %v5191
    %5225 = vrot.lane.b32.xlu0 %v5193, 8
    %v5226 = vpop.permute.xlu0 %5225
    %5227 = vrot.lane.b32.xlu0 %v5194, 8
    %v5228 = vpop.permute.xlu0 %5227
    %5229 = vrot.lane.b32.xlu0 %v5195, 8
    %v5230 = vpop.permute.xlu0 %5229
    %5231 = vrot.lane.b32.xlu0 %v5196, 8
    %v5232 = vpop.permute.xlu0 %5231
    %5233 = vrot.lane.b32.xlu0 %v5197, 8
    %v5234 = vpop.permute.xlu0 %5233
    %5235 = vrot.lane.b32.xlu0 %v5198, 8
    %v5236 = vpop.permute.xlu0 %5235
    %5237 = vrot.lane.b32.xlu0 %v5199, 8
    %v5238 = vpop.permute.xlu0 %5237
    %5239 = vrot.lane.b32.xlu0 %v5200, 8
    %v5240 = vpop.permute.xlu0 %5239
    %5241 = vrot.lane.b32.xlu0 %v5201, 8
    %v5242 = vpop.permute.xlu0 %5241
    %5243 = vrot.lane.b32.xlu0 %v5202, 8
    %v5244 = vpop.permute.xlu0 %5243
    %5245 = vrot.lane.b32.xlu0 %v5203, 8
    %v5246 = vpop.permute.xlu0 %5245
    %5247 = vrot.lane.b32.xlu0 %v5204, 8
    %v5248 = vpop.permute.xlu0 %5247
    %5249 = vrot.lane.b32.xlu0 %v5205, 8
    %v5250 = vpop.permute.xlu0 %5249
    %5251 = vrot.lane.b32.xlu0 %v5206, 8
    %v5252 = vpop.permute.xlu0 %5251
    %5253 = vrot.lane.b32.xlu0 %v5207, 8
    %v5254 = vpop.permute.xlu0 %5253
    %5255 = vrot.lane.b32.xlu0 %v5208, 8
    %v5256 = vpop.permute.xlu0 %5255
    %5257 = vrot.lane.b32.xlu0 %v5209, 8
    %v5258 = vpop.permute.xlu0 %5257
    %5259 = vrot.lane.b32.xlu0 %v5210, 8
    %v5260 = vpop.permute.xlu0 %5259
    %5261 = vrot.lane.b32.xlu0 %v5211, 8
    %v5262 = vpop.permute.xlu0 %5261
    %5263 = vrot.lane.b32.xlu0 %v5212, 8
    %v5264 = vpop.permute.xlu0 %5263
    %5265 = vrot.lane.b32.xlu0 %v5213, 8
    %v5266 = vpop.permute.xlu0 %5265
    %5267 = vrot.lane.b32.xlu0 %v5214, 8
    %v5268 = vpop.permute.xlu0 %5267
    %5269 = vrot.lane.b32.xlu0 %v5215, 8
    %v5270 = vpop.permute.xlu0 %5269
    %5271 = vrot.lane.b32.xlu0 %v5216, 8
    %v5272 = vpop.permute.xlu0 %5271
    %5273 = vrot.lane.b32.xlu0 %v5217, 8
    %v5274 = vpop.permute.xlu0 %5273
    %5275 = vrot.lane.b32.xlu0 %v5218, 8
    %v5276 = vpop.permute.xlu0 %5275
    %5277 = vrot.lane.b32.xlu0 %v5219, 8
    %v5278 = vpop.permute.xlu0 %5277
    %5279 = vrot.lane.b32.xlu0 %v5220, 8
    %v5280 = vpop.permute.xlu0 %5279
    %5281 = vrot.lane.b32.xlu0 %v5221, 8
    %v5282 = vpop.permute.xlu0 %5281
    %5283 = vrot.lane.b32.xlu0 %v5222, 8
    %v5284 = vpop.permute.xlu0 %5283
    %5285 = vrot.lane.b32.xlu0 %v5223, 8
    %v5286 = vpop.permute.xlu0 %5285
    %5287 = vrot.lane.b32.xlu0 %v5224, 8
    %v5288 = vpop.permute.xlu0 %5287
    %v5321 = vunpack.c.l.b16 %v2408
    %v5322 = vunpack.c.l.b16 %v2409
    %v5323 = vunpack.c.l.b16 %v2410
    %v5324 = vunpack.c.l.b16 %v2411
    %v5325 = vunpack.c.l.b16 %v2412
    %v5326 = vunpack.c.l.b16 %v2413
    %v5327 = vunpack.c.l.b16 %v2414
    %v5328 = vunpack.c.l.b16 %v2415
    %v5329 = vunpack.c.l.b16 %v2416
    %v5330 = vunpack.c.l.b16 %v2417
    %v5331 = vunpack.c.l.b16 %v2418
    %v5332 = vunpack.c.l.b16 %v2419
    %v5333 = vunpack.c.l.b16 %v2420
    %v5334 = vunpack.c.l.b16 %v2421
    %v5335 = vunpack.c.l.b16 %v2422
    %v5336 = vunpack.c.l.b16 %v2423
    %v5337 = vunpack.c.l.b16 %v2424
    %v5338 = vunpack.c.l.b16 %v2425
    %v5339 = vunpack.c.l.b16 %v2426
    %v5340 = vunpack.c.l.b16 %v2427
    %v5341 = vunpack.c.l.b16 %v2428
    %v5342 = vunpack.c.l.b16 %v2429
    %v5343 = vunpack.c.l.b16 %v2430
    %v5344 = vunpack.c.l.b16 %v2431
    %v5345 = vunpack.c.l.b16 %v2432
    %v5346 = vunpack.c.l.b16 %v2433
    %v5347 = vunpack.c.l.b16 %v2434
    %v5348 = vunpack.c.l.b16 %v2435
    %v5349 = vunpack.c.l.b16 %v2436
    %v5350 = vunpack.c.l.b16 %v2437
    %v5351 = vunpack.c.l.b16 %v2438
    %v5352 = vunpack.c.l.b16 %v2439
    %v5353 = vunpack.c.l.b16 %v2440
    %v5354 = vunpack.c.l.b16 %v2441
    %v5355 = vunpack.c.l.b16 %v2442
    %v5356 = vunpack.c.l.b16 %v2443
    %v5357 = vunpack.c.l.b16 %v2444
    %v5358 = vunpack.c.l.b16 %v2445
    %v5359 = vunpack.c.l.b16 %v2446
    %v5360 = vunpack.c.l.b16 %v2447
    %v5361 = vunpack.c.l.b16 %v2448
    %v5362 = vunpack.c.l.b16 %v2449
    %v5363 = vunpack.c.l.b16 %v2450
    %v5364 = vunpack.c.l.b16 %v2451
    %v5365 = vunpack.c.l.b16 %v2452
    %v5366 = vunpack.c.l.b16 %v2453
    %v5367 = vunpack.c.l.b16 %v2454
    %v5368 = vunpack.c.l.b16 %v2455
    %v5369 = vunpack.c.l.b16 %v2456
    %v5370 = vunpack.c.l.b16 %v2457
    %v5371 = vunpack.c.l.b16 %v2458
    %v5372 = vunpack.c.l.b16 %v2459
    %v5373 = vunpack.c.l.b16 %v2460
    %v5374 = vunpack.c.l.b16 %v2461
    %v5375 = vunpack.c.l.b16 %v2462
    %v5376 = vunpack.c.l.b16 %v2463
    %v5377 = vunpack.c.l.b16 %v2464
    %v5378 = vunpack.c.l.b16 %v2465
    %v5379 = vunpack.c.l.b16 %v2466
    %v5380 = vunpack.c.l.b16 %v2467
    %v5381 = vunpack.c.l.b16 %v2468
    %v5382 = vunpack.c.l.b16 %v2469
    %v5383 = vunpack.c.l.b16 %v2470
    %v5384 = vunpack.c.l.b16 %v2471
    %v5385 = vpack.c.b16 %v5322, %v5321
    %v5386 = vpack.c.b16 %v5324, %v5323
    %v5387 = vpack.c.b16 %v5326, %v5325
    %v5388 = vpack.c.b16 %v5328, %v5327
    %v5389 = vpack.c.b16 %v5330, %v5329
    %v5390 = vpack.c.b16 %v5332, %v5331
    %v5391 = vpack.c.b16 %v5334, %v5333
    %v5392 = vpack.c.b16 %v5336, %v5335
    %v5393 = vpack.c.b16 %v5338, %v5337
    %v5394 = vpack.c.b16 %v5340, %v5339
    %v5395 = vpack.c.b16 %v5342, %v5341
    %v5396 = vpack.c.b16 %v5344, %v5343
    %v5397 = vpack.c.b16 %v5346, %v5345
    %v5398 = vpack.c.b16 %v5348, %v5347
    %v5399 = vpack.c.b16 %v5350, %v5349
    %v5400 = vpack.c.b16 %v5352, %v5351
    %v5401 = vpack.c.b16 %v5354, %v5353
    %v5402 = vpack.c.b16 %v5356, %v5355
    %v5403 = vpack.c.b16 %v5358, %v5357
    %v5404 = vpack.c.b16 %v5360, %v5359
    %v5405 = vpack.c.b16 %v5362, %v5361
    %v5406 = vpack.c.b16 %v5364, %v5363
    %v5407 = vpack.c.b16 %v5366, %v5365
    %v5408 = vpack.c.b16 %v5368, %v5367
    %v5409 = vpack.c.b16 %v5370, %v5369
    %v5410 = vpack.c.b16 %v5372, %v5371
    %v5411 = vpack.c.b16 %v5374, %v5373
    %v5412 = vpack.c.b16 %v5376, %v5375
    %v5413 = vpack.c.b16 %v5378, %v5377
    %v5414 = vpack.c.b16 %v5380, %v5379
    %v5415 = vpack.c.b16 %v5382, %v5381
    %v5416 = vpack.c.b16 %v5384, %v5383
    %5417 = vrot.lane.b32.xlu0 %v5385, 12
    %v5418 = vpop.permute.xlu0 %5417
    %5419 = vrot.lane.b32.xlu0 %v5386, 12
    %v5420 = vpop.permute.xlu0 %5419
    %5421 = vrot.lane.b32.xlu0 %v5387, 12
    %v5422 = vpop.permute.xlu0 %5421
    %5423 = vrot.lane.b32.xlu0 %v5388, 12
    %v5424 = vpop.permute.xlu0 %5423
    %5425 = vrot.lane.b32.xlu0 %v5389, 12
    %v5426 = vpop.permute.xlu0 %5425
    %5427 = vrot.lane.b32.xlu0 %v5390, 12
    %v5428 = vpop.permute.xlu0 %5427
    %5429 = vrot.lane.b32.xlu0 %v5391, 12
    %v5430 = vpop.permute.xlu0 %5429
    %5431 = vrot.lane.b32.xlu0 %v5392, 12
    %v5432 = vpop.permute.xlu0 %5431
    %5433 = vrot.lane.b32.xlu0 %v5393, 12
    %v5434 = vpop.permute.xlu0 %5433
    %5435 = vrot.lane.b32.xlu0 %v5394, 12
    %v5436 = vpop.permute.xlu0 %5435
    %5437 = vrot.lane.b32.xlu0 %v5395, 12
    %v5438 = vpop.permute.xlu0 %5437
    %5439 = vrot.lane.b32.xlu0 %v5396, 12
    %v5440 = vpop.permute.xlu0 %5439
    %5441 = vrot.lane.b32.xlu0 %v5397, 12
    %v5442 = vpop.permute.xlu0 %5441
    %5443 = vrot.lane.b32.xlu0 %v5398, 12
    %v5444 = vpop.permute.xlu0 %5443
    %5445 = vrot.lane.b32.xlu0 %v5399, 12
    %v5446 = vpop.permute.xlu0 %5445
    %5447 = vrot.lane.b32.xlu0 %v5400, 12
    %v5448 = vpop.permute.xlu0 %5447
    %5449 = vrot.lane.b32.xlu0 %v5401, 12
    %v5450 = vpop.permute.xlu0 %5449
    %5451 = vrot.lane.b32.xlu0 %v5402, 12
    %v5452 = vpop.permute.xlu0 %5451
    %5453 = vrot.lane.b32.xlu0 %v5403, 12
    %v5454 = vpop.permute.xlu0 %5453
    %5455 = vrot.lane.b32.xlu0 %v5404, 12
    %v5456 = vpop.permute.xlu0 %5455
    %5457 = vrot.lane.b32.xlu0 %v5405, 12
    %v5458 = vpop.permute.xlu0 %5457
    %5459 = vrot.lane.b32.xlu0 %v5406, 12
    %v5460 = vpop.permute.xlu0 %5459
    %5461 = vrot.lane.b32.xlu0 %v5407, 12
    %v5462 = vpop.permute.xlu0 %5461
    %5463 = vrot.lane.b32.xlu0 %v5408, 12
    %v5464 = vpop.permute.xlu0 %5463
    %5465 = vrot.lane.b32.xlu0 %v5409, 12
    %v5466 = vpop.permute.xlu0 %5465
    %5467 = vrot.lane.b32.xlu0 %v5410, 12
    %v5468 = vpop.permute.xlu0 %5467
    %5469 = vrot.lane.b32.xlu0 %v5411, 12
    %v5470 = vpop.permute.xlu0 %5469
    %5471 = vrot.lane.b32.xlu0 %v5412, 12
    %v5472 = vpop.permute.xlu0 %5471
    %5473 = vrot.lane.b32.xlu0 %v5413, 12
    %v5474 = vpop.permute.xlu0 %5473
    %5475 = vrot.lane.b32.xlu0 %v5414, 12
    %v5476 = vpop.permute.xlu0 %5475
    %5477 = vrot.lane.b32.xlu0 %v5415, 12
    %v5478 = vpop.permute.xlu0 %5477
    %5479 = vrot.lane.b32.xlu0 %v5416, 12
    %v5480 = vpop.permute.xlu0 %5479
    %v5481 = vunpack.c.l.b16 %v2517
    %v5482 = vunpack.c.l.b16 %v2527
    %v5483 = vunpack.c.l.b16 %v2541
    %v5484 = vunpack.c.l.b16 %v2551
    %v5485 = vunpack.c.l.b16 %v2565
    %v5486 = vunpack.c.l.b16 %v2575
    %v5487 = vunpack.c.l.b16 %v2589
    %v5488 = vunpack.c.l.b16 %v2599
    %v5489 = vunpack.c.l.b16 %v2613
    %v5490 = vunpack.c.l.b16 %v2623
    %v5491 = vunpack.c.l.b16 %v2637
    %v5492 = vunpack.c.l.b16 %v2647
    %v5493 = vunpack.c.l.b16 %v2661
    %v5494 = vunpack.c.l.b16 %v2671
    %v5495 = vunpack.c.l.b16 %v2685
    %v5496 = vunpack.c.l.b16 %v2695
    %v5497 = vunpack.c.l.b16 %v2709
    %v5498 = vunpack.c.l.b16 %v2719
    %v5499 = vunpack.c.l.b16 %v2733
    %v5500 = vunpack.c.l.b16 %v2743
    %v5501 = vunpack.c.l.b16 %v2757
    %v5502 = vunpack.c.l.b16 %v2767
    %v5503 = vunpack.c.l.b16 %v2781
    %v5504 = vunpack.c.l.b16 %v2791
    %v5505 = vunpack.c.l.b16 %v2805
    %v5506 = vunpack.c.l.b16 %v2815
    %v5507 = vunpack.c.l.b16 %v2829
    %v5508 = vunpack.c.l.b16 %v2839
    %v5509 = vunpack.c.l.b16 %v2853
    %v5510 = vunpack.c.l.b16 %v2863
    %v5511 = vunpack.c.l.b16 %v2877
    %v5512 = vunpack.c.l.b16 %v2887
    %v5513 = vunpack.c.l.b16 %v2901
    %v5514 = vunpack.c.l.b16 %v2911
    %v5515 = vunpack.c.l.b16 %v2925
    %v5516 = vunpack.c.l.b16 %v2935
    %v5517 = vunpack.c.l.b16 %v2949
    %v5518 = vunpack.c.l.b16 %v2959
    %v5519 = vunpack.c.l.b16 %v2973
    %v5520 = vunpack.c.l.b16 %v2983
    %v5521 = vunpack.c.l.b16 %v2997
    %v5522 = vunpack.c.l.b16 %v3007
    %v5523 = vunpack.c.l.b16 %v3021
    %v5524 = vunpack.c.l.b16 %v3031
    %v5525 = vunpack.c.l.b16 %v3045
    %v5526 = vunpack.c.l.b16 %v3055
    %v5527 = vunpack.c.l.b16 %v3069
    %v5528 = vunpack.c.l.b16 %v3079
    %v5529 = vunpack.c.l.b16 %v3093
    %v5530 = vunpack.c.l.b16 %v3103
    %v5531 = vunpack.c.l.b16 %v3117
    %v5532 = vunpack.c.l.b16 %v3127
    %v5533 = vunpack.c.l.b16 %v3141
    %v5534 = vunpack.c.l.b16 %v3151
    %v5535 = vunpack.c.l.b16 %v3165
    %v5536 = vunpack.c.l.b16 %v3175
    %v5537 = vunpack.c.l.b16 %v3189
    %v5538 = vunpack.c.l.b16 %v3199
    %v5539 = vunpack.c.l.b16 %v3213
    %v5540 = vunpack.c.l.b16 %v3223
    %v5541 = vunpack.c.l.b16 %v3237
    %v5542 = vunpack.c.l.b16 %v3247
    %v5543 = vunpack.c.l.b16 %v3261
    %v5544 = vunpack.c.l.b16 %v3271
    %v5545 = vpack.c.b16 %v5482, %v5481
    %v5546 = vpack.c.b16 %v5484, %v5483
    %v5547 = vpack.c.b16 %v5486, %v5485
    %v5548 = vpack.c.b16 %v5488, %v5487
    %v5549 = vpack.c.b16 %v5490, %v5489
    %v5550 = vpack.c.b16 %v5492, %v5491
    %v5551 = vpack.c.b16 %v5494, %v5493
    %v5552 = vpack.c.b16 %v5496, %v5495
    %v5553 = vpack.c.b16 %v5498, %v5497
    %v5554 = vpack.c.b16 %v5500, %v5499
    %v5555 = vpack.c.b16 %v5502, %v5501
    %v5556 = vpack.c.b16 %v5504, %v5503
    %v5557 = vpack.c.b16 %v5506, %v5505
    %v5558 = vpack.c.b16 %v5508, %v5507
    %v5559 = vpack.c.b16 %v5510, %v5509
    %v5560 = vpack.c.b16 %v5512, %v5511
    %v5561 = vpack.c.b16 %v5514, %v5513
    %v5562 = vpack.c.b16 %v5516, %v5515
    %v5563 = vpack.c.b16 %v5518, %v5517
    %v5564 = vpack.c.b16 %v5520, %v5519
    %v5565 = vpack.c.b16 %v5522, %v5521
    %v5566 = vpack.c.b16 %v5524, %v5523
    %v5567 = vpack.c.b16 %v5526, %v5525
    %v5568 = vpack.c.b16 %v5528, %v5527
    %v5569 = vpack.c.b16 %v5530, %v5529
    %v5570 = vpack.c.b16 %v5532, %v5531
    %v5571 = vpack.c.b16 %v5534, %v5533
    %v5572 = vpack.c.b16 %v5536, %v5535
    %v5573 = vpack.c.b16 %v5538, %v5537
    %v5574 = vpack.c.b16 %v5540, %v5539
    %v5575 = vpack.c.b16 %v5542, %v5541
    %v5576 = vpack.c.b16 %v5544, %v5543
    %5577 = vrot.lane.b32.xlu0 %v5545, 16
    %v5578 = vpop.permute.xlu0 %5577
    %5579 = vrot.lane.b32.xlu0 %v5546, 16
    %v5580 = vpop.permute.xlu0 %5579
    %5581 = vrot.lane.b32.xlu0 %v5547, 16
    %v5582 = vpop.permute.xlu0 %5581
    %5583 = vrot.lane.b32.xlu0 %v5548, 16
    %v5584 = vpop.permute.xlu0 %5583
    %5585 = vrot.lane.b32.xlu0 %v5549, 16
    %v5586 = vpop.permute.xlu0 %5585
    %5587 = vrot.lane.b32.xlu0 %v5550, 16
    %v5588 = vpop.permute.xlu0 %5587
    %5589 = vrot.lane.b32.xlu0 %v5551, 16
    %v5590 = vpop.permute.xlu0 %5589
    %5591 = vrot.lane.b32.xlu0 %v5552, 16
    %v5592 = vpop.permute.xlu0 %5591
    %5593 = vrot.lane.b32.xlu0 %v5553, 16
    %v5594 = vpop.permute.xlu0 %5593
    %5595 = vrot.lane.b32.xlu0 %v5554, 16
    %v5596 = vpop.permute.xlu0 %5595
    %5597 = vrot.lane.b32.xlu0 %v5555, 16
    %v5598 = vpop.permute.xlu0 %5597
    %5599 = vrot.lane.b32.xlu0 %v5556, 16
    %v5600 = vpop.permute.xlu0 %5599
    %5601 = vrot.lane.b32.xlu0 %v5557, 16
    %v5602 = vpop.permute.xlu0 %5601
    %5603 = vrot.lane.b32.xlu0 %v5558, 16
    %v5604 = vpop.permute.xlu0 %5603
    %5605 = vrot.lane.b32.xlu0 %v5559, 16
    %v5606 = vpop.permute.xlu0 %5605
    %5607 = vrot.lane.b32.xlu0 %v5560, 16
    %v5608 = vpop.permute.xlu0 %5607
    %5609 = vrot.lane.b32.xlu0 %v5561, 16
    %v5610 = vpop.permute.xlu0 %5609
    %5611 = vrot.lane.b32.xlu0 %v5562, 16
    %v5612 = vpop.permute.xlu0 %5611
    %5613 = vrot.lane.b32.xlu0 %v5563, 16
    %v5614 = vpop.permute.xlu0 %5613
    %5615 = vrot.lane.b32.xlu0 %v5564, 16
    %v5616 = vpop.permute.xlu0 %5615
    %5617 = vrot.lane.b32.xlu0 %v5565, 16
    %v5618 = vpop.permute.xlu0 %5617
    %5619 = vrot.lane.b32.xlu0 %v5566, 16
    %v5620 = vpop.permute.xlu0 %5619
    %5621 = vrot.lane.b32.xlu0 %v5567, 16
    %v5622 = vpop.permute.xlu0 %5621
    %5623 = vrot.lane.b32.xlu0 %v5568, 16
    %v5624 = vpop.permute.xlu0 %5623
    %5625 = vrot.lane.b32.xlu0 %v5569, 16
    %v5626 = vpop.permute.xlu0 %5625
    %5627 = vrot.lane.b32.xlu0 %v5570, 16
    %v5628 = vpop.permute.xlu0 %5627
    %5629 = vrot.lane.b32.xlu0 %v5571, 16
    %v5630 = vpop.permute.xlu0 %5629
    %5631 = vrot.lane.b32.xlu0 %v5572, 16
    %v5632 = vpop.permute.xlu0 %5631
    %5633 = vrot.lane.b32.xlu0 %v5573, 16
    %v5634 = vpop.permute.xlu0 %5633
    %5635 = vrot.lane.b32.xlu0 %v5574, 16
    %v5636 = vpop.permute.xlu0 %5635
    %5637 = vrot.lane.b32.xlu0 %v5575, 16
    %v5638 = vpop.permute.xlu0 %5637
    %5639 = vrot.lane.b32.xlu0 %v5576, 16
    %v5640 = vpop.permute.xlu0 %5639
    %v5641 = vunpack.c.l.b16 %v3403
    %v5642 = vunpack.c.l.b16 %v3406
    %v5643 = vunpack.c.l.b16 %v3410
    %v5644 = vunpack.c.l.b16 %v3413
    %v5645 = vunpack.c.l.b16 %v3417
    %v5646 = vunpack.c.l.b16 %v3420
    %v5647 = vunpack.c.l.b16 %v3424
    %v5648 = vunpack.c.l.b16 %v3427
    %v5649 = vunpack.c.l.b16 %v3431
    %v5650 = vunpack.c.l.b16 %v3434
    %v5651 = vunpack.c.l.b16 %v3438
    %v5652 = vunpack.c.l.b16 %v3441
    %v5653 = vunpack.c.l.b16 %v3445
    %v5654 = vunpack.c.l.b16 %v3448
    %v5655 = vunpack.c.l.b16 %v3452
    %v5656 = vunpack.c.l.b16 %v3455
    %v5657 = vunpack.c.l.b16 %v3459
    %v5658 = vunpack.c.l.b16 %v3462
    %v5659 = vunpack.c.l.b16 %v3466
    %v5660 = vunpack.c.l.b16 %v3469
    %v5661 = vunpack.c.l.b16 %v3473
    %v5662 = vunpack.c.l.b16 %v3476
    %v5663 = vunpack.c.l.b16 %v3480
    %v5664 = vunpack.c.l.b16 %v3483
    %v5665 = vunpack.c.l.b16 %v3487
    %v5666 = vunpack.c.l.b16 %v3490
    %v5667 = vunpack.c.l.b16 %v3494
    %v5668 = vunpack.c.l.b16 %v3497
    %v5669 = vunpack.c.l.b16 %v3501
    %v5670 = vunpack.c.l.b16 %v3504
    %v5671 = vunpack.c.l.b16 %v3508
    %v5672 = vunpack.c.l.b16 %v3511
    %v5673 = vunpack.c.l.b16 %v3515
    %v5674 = vunpack.c.l.b16 %v3518
    %v5675 = vunpack.c.l.b16 %v3522
    %v5676 = vunpack.c.l.b16 %v3525
    %v5677 = vunpack.c.l.b16 %v3529
    %v5678 = vunpack.c.l.b16 %v3532
    %v5679 = vunpack.c.l.b16 %v3536
    %v5680 = vunpack.c.l.b16 %v3539
    %v5681 = vunpack.c.l.b16 %v3543
    %v5682 = vunpack.c.l.b16 %v3546
    %v5683 = vunpack.c.l.b16 %v3550
    %v5684 = vunpack.c.l.b16 %v3553
    %v5685 = vunpack.c.l.b16 %v3557
    %v5686 = vunpack.c.l.b16 %v3560
    %v5687 = vunpack.c.l.b16 %v3564
    %v5688 = vunpack.c.l.b16 %v3567
    %v5689 = vunpack.c.l.b16 %v3571
    %v5690 = vunpack.c.l.b16 %v3574
    %v5691 = vunpack.c.l.b16 %v3578
    %v5692 = vunpack.c.l.b16 %v3581
    %v5693 = vunpack.c.l.b16 %v3585
    %v5694 = vunpack.c.l.b16 %v3588
    %v5695 = vunpack.c.l.b16 %v3592
    %v5696 = vunpack.c.l.b16 %v3595
    %v5697 = vunpack.c.l.b16 %v3599
    %v5698 = vunpack.c.l.b16 %v3602
    %v5699 = vunpack.c.l.b16 %v3606
    %v5700 = vunpack.c.l.b16 %v3609
    %v5701 = vunpack.c.l.b16 %v3613
    %v5702 = vunpack.c.l.b16 %v3616
    %v5703 = vunpack.c.l.b16 %v3620
    %v5704 = vunpack.c.l.b16 %v3623
    %v5705 = vpack.c.b16 %v5642, %v5641
    %v5706 = vpack.c.b16 %v5644, %v5643
    %v5707 = vpack.c.b16 %v5646, %v5645
    %v5708 = vpack.c.b16 %v5648, %v5647
    %v5709 = vpack.c.b16 %v5650, %v5649
    %v5710 = vpack.c.b16 %v5652, %v5651
    %v5711 = vpack.c.b16 %v5654, %v5653
    %v5712 = vpack.c.b16 %v5656, %v5655
    %v5713 = vpack.c.b16 %v5658, %v5657
    %v5714 = vpack.c.b16 %v5660, %v5659
    %v5715 = vpack.c.b16 %v5662, %v5661
    %v5716 = vpack.c.b16 %v5664, %v5663
    %v5717 = vpack.c.b16 %v5666, %v5665
    %v5718 = vpack.c.b16 %v5668, %v5667
    %v5719 = vpack.c.b16 %v5670, %v5669
    %v5720 = vpack.c.b16 %v5672, %v5671
    %v5721 = vpack.c.b16 %v5674, %v5673
    %v5722 = vpack.c.b16 %v5676, %v5675
    %v5723 = vpack.c.b16 %v5678, %v5677
    %v5724 = vpack.c.b16 %v5680, %v5679
    %v5725 = vpack.c.b16 %v5682, %v5681
    %v5726 = vpack.c.b16 %v5684, %v5683
    %v5727 = vpack.c.b16 %v5686, %v5685
    %v5728 = vpack.c.b16 %v5688, %v5687
    %v5729 = vpack.c.b16 %v5690, %v5689
    %v5730 = vpack.c.b16 %v5692, %v5691
    %v5731 = vpack.c.b16 %v5694, %v5693
    %v5732 = vpack.c.b16 %v5696, %v5695
    %v5733 = vpack.c.b16 %v5698, %v5697
    %v5734 = vpack.c.b16 %v5700, %v5699
    %v5735 = vpack.c.b16 %v5702, %v5701
    %v5736 = vpack.c.b16 %v5704, %v5703
    %5737 = vrot.lane.b32.xlu0 %v5705, 20
    %v5738 = vpop.permute.xlu0 %5737
    %5739 = vrot.lane.b32.xlu0 %v5706, 20
    %v5740 = vpop.permute.xlu0 %5739
    %5741 = vrot.lane.b32.xlu0 %v5707, 20
    %v5742 = vpop.permute.xlu0 %5741
    %5743 = vrot.lane.b32.xlu0 %v5708, 20
    %v5744 = vpop.permute.xlu0 %5743
    %5745 = vrot.lane.b32.xlu0 %v5709, 20
    %v5746 = vpop.permute.xlu0 %5745
    %5747 = vrot.lane.b32.xlu0 %v5710, 20
    %v5748 = vpop.permute.xlu0 %5747
    %5749 = vrot.lane.b32.xlu0 %v5711, 20
    %v5750 = vpop.permute.xlu0 %5749
    %5751 = vrot.lane.b32.xlu0 %v5712, 20
    %v5752 = vpop.permute.xlu0 %5751
    %5753 = vrot.lane.b32.xlu0 %v5713, 20
    %v5754 = vpop.permute.xlu0 %5753
    %5755 = vrot.lane.b32.xlu0 %v5714, 20
    %v5756 = vpop.permute.xlu0 %5755
    %5757 = vrot.lane.b32.xlu0 %v5715, 20
    %v5758 = vpop.permute.xlu0 %5757
    %5759 = vrot.lane.b32.xlu0 %v5716, 20
    %v5760 = vpop.permute.xlu0 %5759
    %5761 = vrot.lane.b32.xlu0 %v5717, 20
    %v5762 = vpop.permute.xlu0 %5761
    %5763 = vrot.lane.b32.xlu0 %v5718, 20
    %v5764 = vpop.permute.xlu0 %5763
    %5765 = vrot.lane.b32.xlu0 %v5719, 20
    %v5766 = vpop.permute.xlu0 %5765
    %5767 = vrot.lane.b32.xlu0 %v5720, 20
    %v5768 = vpop.permute.xlu0 %5767
    %5769 = vrot.lane.b32.xlu0 %v5721, 20
    %v5770 = vpop.permute.xlu0 %5769
    %5771 = vrot.lane.b32.xlu0 %v5722, 20
    %v5772 = vpop.permute.xlu0 %5771
    %5773 = vrot.lane.b32.xlu0 %v5723, 20
    %v5774 = vpop.permute.xlu0 %5773
    %5775 = vrot.lane.b32.xlu0 %v5724, 20
    %v5776 = vpop.permute.xlu0 %5775
    %5777 = vrot.lane.b32.xlu0 %v5725, 20
    %v5778 = vpop.permute.xlu0 %5777
    %5779 = vrot.lane.b32.xlu0 %v5726, 20
    %v5780 = vpop.permute.xlu0 %5779
    %5781 = vrot.lane.b32.xlu0 %v5727, 20
    %v5782 = vpop.permute.xlu0 %5781
    %5783 = vrot.lane.b32.xlu0 %v5728, 20
    %v5784 = vpop.permute.xlu0 %5783
    %5785 = vrot.lane.b32.xlu0 %v5729, 20
    %v5786 = vpop.permute.xlu0 %5785
    %5787 = vrot.lane.b32.xlu0 %v5730, 20
    %v5788 = vpop.permute.xlu0 %5787
    %5789 = vrot.lane.b32.xlu0 %v5731, 20
    %v5790 = vpop.permute.xlu0 %5789
    %5791 = vrot.lane.b32.xlu0 %v5732, 20
    %v5792 = vpop.permute.xlu0 %5791
    %5793 = vrot.lane.b32.xlu0 %v5733, 20
    %v5794 = vpop.permute.xlu0 %5793
    %5795 = vrot.lane.b32.xlu0 %v5734, 20
    %v5796 = vpop.permute.xlu0 %5795
    %5797 = vrot.lane.b32.xlu0 %v5735, 20
    %v5798 = vpop.permute.xlu0 %5797
    %5799 = vrot.lane.b32.xlu0 %v5736, 20
    %v5800 = vpop.permute.xlu0 %5799
    %v5833 = vunpack.c.l.b16 %v3625
    %v5834 = vunpack.c.l.b16 %v3626
    %v5835 = vunpack.c.l.b16 %v3627
    %v5836 = vunpack.c.l.b16 %v3628
    %v5837 = vunpack.c.l.b16 %v3629
    %v5838 = vunpack.c.l.b16 %v3630
    %v5839 = vunpack.c.l.b16 %v3631
    %v5840 = vunpack.c.l.b16 %v3632
    %v5841 = vunpack.c.l.b16 %v3633
    %v5842 = vunpack.c.l.b16 %v3634
    %v5843 = vunpack.c.l.b16 %v3635
    %v5844 = vunpack.c.l.b16 %v3636
    %v5845 = vunpack.c.l.b16 %v3637
    %v5846 = vunpack.c.l.b16 %v3638
    %v5847 = vunpack.c.l.b16 %v3639
    %v5848 = vunpack.c.l.b16 %v3640
    %v5849 = vunpack.c.l.b16 %v3641
    %v5850 = vunpack.c.l.b16 %v3642
    %v5851 = vunpack.c.l.b16 %v3643
    %v5852 = vunpack.c.l.b16 %v3644
    %v5853 = vunpack.c.l.b16 %v3645
    %v5854 = vunpack.c.l.b16 %v3646
    %v5855 = vunpack.c.l.b16 %v3647
    %v5856 = vunpack.c.l.b16 %v3648
    %v5857 = vunpack.c.l.b16 %v3649
    %v5858 = vunpack.c.l.b16 %v3650
    %v5859 = vunpack.c.l.b16 %v3651
    %v5860 = vunpack.c.l.b16 %v3652
    %v5861 = vunpack.c.l.b16 %v3653
    %v5862 = vunpack.c.l.b16 %v3654
    %v5863 = vunpack.c.l.b16 %v3655
    %v5864 = vunpack.c.l.b16 %v3656
    %v5865 = vunpack.c.l.b16 %v3657
    %v5866 = vunpack.c.l.b16 %v3658
    %v5867 = vunpack.c.l.b16 %v3659
    %v5868 = vunpack.c.l.b16 %v3660
    %v5869 = vunpack.c.l.b16 %v3661
    %v5870 = vunpack.c.l.b16 %v3662
    %v5871 = vunpack.c.l.b16 %v3663
    %v5872 = vunpack.c.l.b16 %v3664
    %v5873 = vunpack.c.l.b16 %v3665
    %v5874 = vunpack.c.l.b16 %v3666
    %v5875 = vunpack.c.l.b16 %v3667
    %v5876 = vunpack.c.l.b16 %v3668
    %v5877 = vunpack.c.l.b16 %v3669
    %v5878 = vunpack.c.l.b16 %v3670
    %v5879 = vunpack.c.l.b16 %v3671
    %v5880 = vunpack.c.l.b16 %v3672
    %v5881 = vunpack.c.l.b16 %v3673
    %v5882 = vunpack.c.l.b16 %v3674
    %v5883 = vunpack.c.l.b16 %v3675
    %v5884 = vunpack.c.l.b16 %v3676
    %v5885 = vunpack.c.l.b16 %v3677
    %v5886 = vunpack.c.l.b16 %v3678
    %v5887 = vunpack.c.l.b16 %v3679
    %v5888 = vunpack.c.l.b16 %v3680
    %v5889 = vunpack.c.l.b16 %v3681
    %v5890 = vunpack.c.l.b16 %v3682
    %v5891 = vunpack.c.l.b16 %v3683
    %v5892 = vunpack.c.l.b16 %v3684
    %v5893 = vunpack.c.l.b16 %v3685
    %v5894 = vunpack.c.l.b16 %v3686
    %v5895 = vunpack.c.l.b16 %v3687
    %v5896 = vunpack.c.l.b16 %v3688
    %v5897 = vpack.c.b16 %v5834, %v5833
    %v5898 = vpack.c.b16 %v5836, %v5835
    %v5899 = vpack.c.b16 %v5838, %v5837
    %v5900 = vpack.c.b16 %v5840, %v5839
    %v5901 = vpack.c.b16 %v5842, %v5841
    %v5902 = vpack.c.b16 %v5844, %v5843
    %v5903 = vpack.c.b16 %v5846, %v5845
    %v5904 = vpack.c.b16 %v5848, %v5847
    %v5905 = vpack.c.b16 %v5850, %v5849
    %v5906 = vpack.c.b16 %v5852, %v5851
    %v5907 = vpack.c.b16 %v5854, %v5853
    %v5908 = vpack.c.b16 %v5856, %v5855
    %v5909 = vpack.c.b16 %v5858, %v5857
    %v5910 = vpack.c.b16 %v5860, %v5859
    %v5911 = vpack.c.b16 %v5862, %v5861
    %v5912 = vpack.c.b16 %v5864, %v5863
    %v5913 = vpack.c.b16 %v5866, %v5865
    %v5914 = vpack.c.b16 %v5868, %v5867
    %v5915 = vpack.c.b16 %v5870, %v5869
    %v5916 = vpack.c.b16 %v5872, %v5871
    %v5917 = vpack.c.b16 %v5874, %v5873
    %v5918 = vpack.c.b16 %v5876, %v5875
    %v5919 = vpack.c.b16 %v5878, %v5877
    %v5920 = vpack.c.b16 %v5880, %v5879
    %v5921 = vpack.c.b16 %v5882, %v5881
    %v5922 = vpack.c.b16 %v5884, %v5883
    %v5923 = vpack.c.b16 %v5886, %v5885
    %v5924 = vpack.c.b16 %v5888, %v5887
    %v5925 = vpack.c.b16 %v5890, %v5889
    %v5926 = vpack.c.b16 %v5892, %v5891
    %v5927 = vpack.c.b16 %v5894, %v5893
    %v5928 = vpack.c.b16 %v5896, %v5895
    %5929 = vrot.lane.b32.xlu0 %v5897, 24
    %v5930 = vpop.permute.xlu0 %5929
    %5931 = vrot.lane.b32.xlu0 %v5898, 24
    %v5932 = vpop.permute.xlu0 %5931
    %5933 = vrot.lane.b32.xlu0 %v5899, 24
    %v5934 = vpop.permute.xlu0 %5933
    %5935 = vrot.lane.b32.xlu0 %v5900, 24
    %v5936 = vpop.permute.xlu0 %5935
    %5937 = vrot.lane.b32.xlu0 %v5901, 24
    %v5938 = vpop.permute.xlu0 %5937
    %5939 = vrot.lane.b32.xlu0 %v5902, 24
    %v5940 = vpop.permute.xlu0 %5939
    %5941 = vrot.lane.b32.xlu0 %v5903, 24
    %v5942 = vpop.permute.xlu0 %5941
    %5943 = vrot.lane.b32.xlu0 %v5904, 24
    %v5944 = vpop.permute.xlu0 %5943
    %5945 = vrot.lane.b32.xlu0 %v5905, 24
    %v5946 = vpop.permute.xlu0 %5945
    %5947 = vrot.lane.b32.xlu0 %v5906, 24
    %v5948 = vpop.permute.xlu0 %5947
    %5949 = vrot.lane.b32.xlu0 %v5907, 24
    %v5950 = vpop.permute.xlu0 %5949
    %5951 = vrot.lane.b32.xlu0 %v5908, 24
    %v5952 = vpop.permute.xlu0 %5951
    %5953 = vrot.lane.b32.xlu0 %v5909, 24
    %v5954 = vpop.permute.xlu0 %5953
    %5955 = vrot.lane.b32.xlu0 %v5910, 24
    %v5956 = vpop.permute.xlu0 %5955
    %5957 = vrot.lane.b32.xlu0 %v5911, 24
    %v5958 = vpop.permute.xlu0 %5957
    %5959 = vrot.lane.b32.xlu0 %v5912, 24
    %v5960 = vpop.permute.xlu0 %5959
    %5961 = vrot.lane.b32.xlu0 %v5913, 24
    %v5962 = vpop.permute.xlu0 %5961
    %5963 = vrot.lane.b32.xlu0 %v5914, 24
    %v5964 = vpop.permute.xlu0 %5963
    %5965 = vrot.lane.b32.xlu0 %v5915, 24
    %v5966 = vpop.permute.xlu0 %5965
    %5967 = vrot.lane.b32.xlu0 %v5916, 24
    %v5968 = vpop.permute.xlu0 %5967
    %5969 = vrot.lane.b32.xlu0 %v5917, 24
    %v5970 = vpop.permute.xlu0 %5969
    %5971 = vrot.lane.b32.xlu0 %v5918, 24
    %v5972 = vpop.permute.xlu0 %5971
    %5973 = vrot.lane.b32.xlu0 %v5919, 24
    %v5974 = vpop.permute.xlu0 %5973
    %5975 = vrot.lane.b32.xlu0 %v5920, 24
    %v5976 = vpop.permute.xlu0 %5975
    %5977 = vrot.lane.b32.xlu0 %v5921, 24
    %v5978 = vpop.permute.xlu0 %5977
    %5979 = vrot.lane.b32.xlu0 %v5922, 24
    %v5980 = vpop.permute.xlu0 %5979
    %5981 = vrot.lane.b32.xlu0 %v5923, 24
    %v5982 = vpop.permute.xlu0 %5981
    %5983 = vrot.lane.b32.xlu0 %v5924, 24
    %v5984 = vpop.permute.xlu0 %5983
    %5985 = vrot.lane.b32.xlu0 %v5925, 24
    %v5986 = vpop.permute.xlu0 %5985
    %5987 = vrot.lane.b32.xlu0 %v5926, 24
    %v5988 = vpop.permute.xlu0 %5987
    %5989 = vrot.lane.b32.xlu0 %v5927, 24
    %v5990 = vpop.permute.xlu0 %5989
    %5991 = vrot.lane.b32.xlu0 %v5928, 24
    %v5992 = vpop.permute.xlu0 %5991
    %v5993 = vunpack.c.l.b16 %v3734
    %v5994 = vunpack.c.l.b16 %v3744
    %v5995 = vunpack.c.l.b16 %v3758
    %v5996 = vunpack.c.l.b16 %v3768
    %v5997 = vunpack.c.l.b16 %v3782
    %v5998 = vunpack.c.l.b16 %v3792
    %v5999 = vunpack.c.l.b16 %v3806
    %v6000 = vunpack.c.l.b16 %v3816
    %v6001 = vunpack.c.l.b16 %v3830
    %v6002 = vunpack.c.l.b16 %v3840
    %v6003 = vunpack.c.l.b16 %v3854
    %v6004 = vunpack.c.l.b16 %v3864
    %v6005 = vunpack.c.l.b16 %v3878
    %v6006 = vunpack.c.l.b16 %v3888
    %v6007 = vunpack.c.l.b16 %v3902
    %v6008 = vunpack.c.l.b16 %v3912
    %v6009 = vunpack.c.l.b16 %v3926
    %v6010 = vunpack.c.l.b16 %v3936
    %v6011 = vunpack.c.l.b16 %v3950
    %v6012 = vunpack.c.l.b16 %v3960
    %v6013 = vunpack.c.l.b16 %v3974
    %v6014 = vunpack.c.l.b16 %v3984
    %v6015 = vunpack.c.l.b16 %v3998
    %v6016 = vunpack.c.l.b16 %v4008
    %v6017 = vunpack.c.l.b16 %v4022
    %v6018 = vunpack.c.l.b16 %v4032
    %v6019 = vunpack.c.l.b16 %v4046
    %v6020 = vunpack.c.l.b16 %v4056
    %v6021 = vunpack.c.l.b16 %v4070
    %v6022 = vunpack.c.l.b16 %v4080
    %v6023 = vunpack.c.l.b16 %v4094
    %v6024 = vunpack.c.l.b16 %v4104
    %v6025 = vunpack.c.l.b16 %v4118
    %v6026 = vunpack.c.l.b16 %v4128
    %v6027 = vunpack.c.l.b16 %v4142
    %v6028 = vunpack.c.l.b16 %v4152
    %v6029 = vunpack.c.l.b16 %v4166
    %v6030 = vunpack.c.l.b16 %v4176
    %v6031 = vunpack.c.l.b16 %v4190
    %v6032 = vunpack.c.l.b16 %v4200
    %v6033 = vunpack.c.l.b16 %v4214
    %v6034 = vunpack.c.l.b16 %v4224
    %v6035 = vunpack.c.l.b16 %v4238
    %v6036 = vunpack.c.l.b16 %v4248
    %v6037 = vunpack.c.l.b16 %v4262
    %v6038 = vunpack.c.l.b16 %v4272
    %v6039 = vunpack.c.l.b16 %v4286
    %v6040 = vunpack.c.l.b16 %v4296
    %v6041 = vunpack.c.l.b16 %v4310
    %v6042 = vunpack.c.l.b16 %v4320
    %v6043 = vunpack.c.l.b16 %v4334
    %v6044 = vunpack.c.l.b16 %v4344
    %v6045 = vunpack.c.l.b16 %v4358
    %v6046 = vunpack.c.l.b16 %v4368
    %v6047 = vunpack.c.l.b16 %v4382
    %v6048 = vunpack.c.l.b16 %v4392
    %v6049 = vunpack.c.l.b16 %v4406
    %v6050 = vunpack.c.l.b16 %v4416
    %v6051 = vunpack.c.l.b16 %v4430
    %v6052 = vunpack.c.l.b16 %v4440
    %v6053 = vunpack.c.l.b16 %v4454
    %v6054 = vunpack.c.l.b16 %v4464
    %v6055 = vunpack.c.l.b16 %v4478
    %v6056 = vunpack.c.l.b16 %v4488
    %v6057 = vpack.c.b16 %v5994, %v5993
    %v6058 = vpack.c.b16 %v5996, %v5995
    %v6059 = vpack.c.b16 %v5998, %v5997
    %v6060 = vpack.c.b16 %v6000, %v5999
    %v6061 = vpack.c.b16 %v6002, %v6001
    %v6062 = vpack.c.b16 %v6004, %v6003
    %v6063 = vpack.c.b16 %v6006, %v6005
    %v6064 = vpack.c.b16 %v6008, %v6007
    %v6065 = vpack.c.b16 %v6010, %v6009
    %v6066 = vpack.c.b16 %v6012, %v6011
    %v6067 = vpack.c.b16 %v6014, %v6013
    %v6068 = vpack.c.b16 %v6016, %v6015
    %v6069 = vpack.c.b16 %v6018, %v6017
    %v6070 = vpack.c.b16 %v6020, %v6019
    %v6071 = vpack.c.b16 %v6022, %v6021
    %v6072 = vpack.c.b16 %v6024, %v6023
    %v6073 = vpack.c.b16 %v6026, %v6025
    %v6074 = vpack.c.b16 %v6028, %v6027
    %v6075 = vpack.c.b16 %v6030, %v6029
    %v6076 = vpack.c.b16 %v6032, %v6031
    %v6077 = vpack.c.b16 %v6034, %v6033
    %v6078 = vpack.c.b16 %v6036, %v6035
    %v6079 = vpack.c.b16 %v6038, %v6037
    %v6080 = vpack.c.b16 %v6040, %v6039
    %v6081 = vpack.c.b16 %v6042, %v6041
    %v6082 = vpack.c.b16 %v6044, %v6043
    %v6083 = vpack.c.b16 %v6046, %v6045
    %v6084 = vpack.c.b16 %v6048, %v6047
    %v6085 = vpack.c.b16 %v6050, %v6049
    %v6086 = vpack.c.b16 %v6052, %v6051
    %v6087 = vpack.c.b16 %v6054, %v6053
    %v6088 = vpack.c.b16 %v6056, %v6055
    %6089 = vrot.lane.b32.xlu0 %v6057, 28
    %v6090 = vpop.permute.xlu0 %6089
    %6091 = vrot.lane.b32.xlu0 %v6058, 28
    %v6092 = vpop.permute.xlu0 %6091
    %6093 = vrot.lane.b32.xlu0 %v6059, 28
    %v6094 = vpop.permute.xlu0 %6093
    %6095 = vrot.lane.b32.xlu0 %v6060, 28
    %v6096 = vpop.permute.xlu0 %6095
    %6097 = vrot.lane.b32.xlu0 %v6061, 28
    %v6098 = vpop.permute.xlu0 %6097
    %6099 = vrot.lane.b32.xlu0 %v6062, 28
    %v6100 = vpop.permute.xlu0 %6099
    %6101 = vrot.lane.b32.xlu0 %v6063, 28
    %v6102 = vpop.permute.xlu0 %6101
    %6103 = vrot.lane.b32.xlu0 %v6064, 28
    %v6104 = vpop.permute.xlu0 %6103
    %6105 = vrot.lane.b32.xlu0 %v6065, 28
    %v6106 = vpop.permute.xlu0 %6105
    %6107 = vrot.lane.b32.xlu0 %v6066, 28
    %v6108 = vpop.permute.xlu0 %6107
    %6109 = vrot.lane.b32.xlu0 %v6067, 28
    %v6110 = vpop.permute.xlu0 %6109
    %6111 = vrot.lane.b32.xlu0 %v6068, 28
    %v6112 = vpop.permute.xlu0 %6111
    %6113 = vrot.lane.b32.xlu0 %v6069, 28
    %v6114 = vpop.permute.xlu0 %6113
    %6115 = vrot.lane.b32.xlu0 %v6070, 28
    %v6116 = vpop.permute.xlu0 %6115
    %6117 = vrot.lane.b32.xlu0 %v6071, 28
    %v6118 = vpop.permute.xlu0 %6117
    %6119 = vrot.lane.b32.xlu0 %v6072, 28
    %v6120 = vpop.permute.xlu0 %6119
    %6121 = vrot.lane.b32.xlu0 %v6073, 28
    %v6122 = vpop.permute.xlu0 %6121
    %6123 = vrot.lane.b32.xlu0 %v6074, 28
    %v6124 = vpop.permute.xlu0 %6123
    %6125 = vrot.lane.b32.xlu0 %v6075, 28
    %v6126 = vpop.permute.xlu0 %6125
    %6127 = vrot.lane.b32.xlu0 %v6076, 28
    %v6128 = vpop.permute.xlu0 %6127
    %6129 = vrot.lane.b32.xlu0 %v6077, 28
    %v6130 = vpop.permute.xlu0 %6129
    %6131 = vrot.lane.b32.xlu0 %v6078, 28
    %v6132 = vpop.permute.xlu0 %6131
    %6133 = vrot.lane.b32.xlu0 %v6079, 28
    %v6134 = vpop.permute.xlu0 %6133
    %6135 = vrot.lane.b32.xlu0 %v6080, 28
    %v6136 = vpop.permute.xlu0 %6135
    %6137 = vrot.lane.b32.xlu0 %v6081, 28
    %v6138 = vpop.permute.xlu0 %6137
    %6139 = vrot.lane.b32.xlu0 %v6082, 28
    %v6140 = vpop.permute.xlu0 %6139
    %6141 = vrot.lane.b32.xlu0 %v6083, 28
    %v6142 = vpop.permute.xlu0 %6141
    %6143 = vrot.lane.b32.xlu0 %v6084, 28
    %v6144 = vpop.permute.xlu0 %6143
    %6145 = vrot.lane.b32.xlu0 %v6085, 28
    %v6146 = vpop.permute.xlu0 %6145
    %6147 = vrot.lane.b32.xlu0 %v6086, 28
    %v6148 = vpop.permute.xlu0 %6147
    %6149 = vrot.lane.b32.xlu0 %v6087, 28
    %v6150 = vpop.permute.xlu0 %6149
    %6151 = vrot.lane.b32.xlu0 %v6088, 28
    %v6152 = vpop.permute.xlu0 %6151
    %v6153 = vunpack.c.l.b16 %v4620
    %v6154 = vunpack.c.l.b16 %v4623
    %v6155 = vunpack.c.l.b16 %v4627
    %v6156 = vunpack.c.l.b16 %v4630
    %v6157 = vunpack.c.l.b16 %v4634
    %v6158 = vunpack.c.l.b16 %v4637
    %v6159 = vunpack.c.l.b16 %v4641
    %v6160 = vunpack.c.l.b16 %v4644
    %v6161 = vunpack.c.l.b16 %v4648
    %v6162 = vunpack.c.l.b16 %v4651
    %v6163 = vunpack.c.l.b16 %v4655
    %v6164 = vunpack.c.l.b16 %v4658
    %v6165 = vunpack.c.l.b16 %v4662
    %v6166 = vunpack.c.l.b16 %v4665
    %v6167 = vunpack.c.l.b16 %v4669
    %v6168 = vunpack.c.l.b16 %v4672
    %v6169 = vunpack.c.l.b16 %v4676
    %v6170 = vunpack.c.l.b16 %v4679
    %v6171 = vunpack.c.l.b16 %v4683
    %v6172 = vunpack.c.l.b16 %v4686
    %v6173 = vunpack.c.l.b16 %v4690
    %v6174 = vunpack.c.l.b16 %v4693
    %v6175 = vunpack.c.l.b16 %v4697
    %v6176 = vunpack.c.l.b16 %v4700
    %v6177 = vunpack.c.l.b16 %v4704
    %v6178 = vunpack.c.l.b16 %v4707
    %v6179 = vunpack.c.l.b16 %v4711
    %v6180 = vunpack.c.l.b16 %v4714
    %v6181 = vunpack.c.l.b16 %v4718
    %v6182 = vunpack.c.l.b16 %v4721
    %v6183 = vunpack.c.l.b16 %v4725
    %v6184 = vunpack.c.l.b16 %v4728
    %v6185 = vunpack.c.l.b16 %v4732
    %v6186 = vunpack.c.l.b16 %v4735
    %v6187 = vunpack.c.l.b16 %v4739
    %v6188 = vunpack.c.l.b16 %v4742
    %v6189 = vunpack.c.l.b16 %v4746
    %v6190 = vunpack.c.l.b16 %v4749
    %v6191 = vunpack.c.l.b16 %v4753
    %v6192 = vunpack.c.l.b16 %v4756
    %v6193 = vunpack.c.l.b16 %v4760
    %v6194 = vunpack.c.l.b16 %v4763
    %v6195 = vunpack.c.l.b16 %v4767
    %v6196 = vunpack.c.l.b16 %v4770
    %v6197 = vunpack.c.l.b16 %v4774
    %v6198 = vunpack.c.l.b16 %v4777
    %v6199 = vunpack.c.l.b16 %v4781
    %v6200 = vunpack.c.l.b16 %v4784
    %v6201 = vunpack.c.l.b16 %v4788
    %v6202 = vunpack.c.l.b16 %v4791
    %v6203 = vunpack.c.l.b16 %v4795
    %v6204 = vunpack.c.l.b16 %v4798
    %v6205 = vunpack.c.l.b16 %v4802
    %v6206 = vunpack.c.l.b16 %v4805
    %v6207 = vunpack.c.l.b16 %v4809
    %v6208 = vunpack.c.l.b16 %v4812
    %v6209 = vunpack.c.l.b16 %v4816
    %v6210 = vunpack.c.l.b16 %v4819
    %v6211 = vunpack.c.l.b16 %v4823
    %v6212 = vunpack.c.l.b16 %v4826
    %v6213 = vunpack.c.l.b16 %v4830
    %v6214 = vunpack.c.l.b16 %v4833
    %v6215 = vunpack.c.l.b16 %v4837
    %v6216 = vunpack.c.l.b16 %v4840
    %v6217 = vpack.c.b16 %v6154, %v6153
    %v6218 = vpack.c.b16 %v6156, %v6155
    %v6219 = vpack.c.b16 %v6158, %v6157
    %v6220 = vpack.c.b16 %v6160, %v6159
    %v6221 = vpack.c.b16 %v6162, %v6161
    %v6222 = vpack.c.b16 %v6164, %v6163
    %v6223 = vpack.c.b16 %v6166, %v6165
    %v6224 = vpack.c.b16 %v6168, %v6167
    %v6225 = vpack.c.b16 %v6170, %v6169
    %v6226 = vpack.c.b16 %v6172, %v6171
    %v6227 = vpack.c.b16 %v6174, %v6173
    %v6228 = vpack.c.b16 %v6176, %v6175
    %v6229 = vpack.c.b16 %v6178, %v6177
    %v6230 = vpack.c.b16 %v6180, %v6179
    %v6231 = vpack.c.b16 %v6182, %v6181
    %v6232 = vpack.c.b16 %v6184, %v6183
    %v6233 = vpack.c.b16 %v6186, %v6185
    %v6234 = vpack.c.b16 %v6188, %v6187
    %v6235 = vpack.c.b16 %v6190, %v6189
    %v6236 = vpack.c.b16 %v6192, %v6191
    %v6237 = vpack.c.b16 %v6194, %v6193
    %v6238 = vpack.c.b16 %v6196, %v6195
    %v6239 = vpack.c.b16 %v6198, %v6197
    %v6240 = vpack.c.b16 %v6200, %v6199
    %v6241 = vpack.c.b16 %v6202, %v6201
    %v6242 = vpack.c.b16 %v6204, %v6203
    %v6243 = vpack.c.b16 %v6206, %v6205
    %v6244 = vpack.c.b16 %v6208, %v6207
    %v6245 = vpack.c.b16 %v6210, %v6209
    %v6246 = vpack.c.b16 %v6212, %v6211
    %v6247 = vpack.c.b16 %v6214, %v6213
    %v6248 = vpack.c.b16 %v6216, %v6215
    %6249 = vrot.lane.b32.xlu0 %v6217, 32
    %v6250 = vpop.permute.xlu0 %6249
    %6251 = vrot.lane.b32.xlu0 %v6218, 32
    %v6252 = vpop.permute.xlu0 %6251
    %6253 = vrot.lane.b32.xlu0 %v6219, 32
    %v6254 = vpop.permute.xlu0 %6253
    %6255 = vrot.lane.b32.xlu0 %v6220, 32
    %v6256 = vpop.permute.xlu0 %6255
    %6257 = vrot.lane.b32.xlu0 %v6221, 32
    %v6258 = vpop.permute.xlu0 %6257
    %6259 = vrot.lane.b32.xlu0 %v6222, 32
    %v6260 = vpop.permute.xlu0 %6259
    %6261 = vrot.lane.b32.xlu0 %v6223, 32
    %v6262 = vpop.permute.xlu0 %6261
    %6263 = vrot.lane.b32.xlu0 %v6224, 32
    %v6264 = vpop.permute.xlu0 %6263
    %6265 = vrot.lane.b32.xlu0 %v6225, 32
    %v6266 = vpop.permute.xlu0 %6265
    %6267 = vrot.lane.b32.xlu0 %v6226, 32
    %v6268 = vpop.permute.xlu0 %6267
    %6269 = vrot.lane.b32.xlu0 %v6227, 32
    %v6270 = vpop.permute.xlu0 %6269
    %6271 = vrot.lane.b32.xlu0 %v6228, 32
    %v6272 = vpop.permute.xlu0 %6271
    %6273 = vrot.lane.b32.xlu0 %v6229, 32
    %v6274 = vpop.permute.xlu0 %6273
    %6275 = vrot.lane.b32.xlu0 %v6230, 32
    %v6276 = vpop.permute.xlu0 %6275
    %6277 = vrot.lane.b32.xlu0 %v6231, 32
    %v6278 = vpop.permute.xlu0 %6277
    %6279 = vrot.lane.b32.xlu0 %v6232, 32
    %v6280 = vpop.permute.xlu0 %6279
    %6281 = vrot.lane.b32.xlu0 %v6233, 32
    %v6282 = vpop.permute.xlu0 %6281
    %6283 = vrot.lane.b32.xlu0 %v6234, 32
    %v6284 = vpop.permute.xlu0 %6283
    %6285 = vrot.lane.b32.xlu0 %v6235, 32
    %v6286 = vpop.permute.xlu0 %6285
    %6287 = vrot.lane.b32.xlu0 %v6236, 32
    %v6288 = vpop.permute.xlu0 %6287
    %6289 = vrot.lane.b32.xlu0 %v6237, 32
    %v6290 = vpop.permute.xlu0 %6289
    %6291 = vrot.lane.b32.xlu0 %v6238, 32
    %v6292 = vpop.permute.xlu0 %6291
    %6293 = vrot.lane.b32.xlu0 %v6239, 32
    %v6294 = vpop.permute.xlu0 %6293
    %6295 = vrot.lane.b32.xlu0 %v6240, 32
    %v6296 = vpop.permute.xlu0 %6295
    %6297 = vrot.lane.b32.xlu0 %v6241, 32
    %v6298 = vpop.permute.xlu0 %6297
    %6299 = vrot.lane.b32.xlu0 %v6242, 32
    %v6300 = vpop.permute.xlu0 %6299
    %6301 = vrot.lane.b32.xlu0 %v6243, 32
    %v6302 = vpop.permute.xlu0 %6301
    %6303 = vrot.lane.b32.xlu0 %v6244, 32
    %v6304 = vpop.permute.xlu0 %6303
    %6305 = vrot.lane.b32.xlu0 %v6245, 32
    %v6306 = vpop.permute.xlu0 %6305
    %6307 = vrot.lane.b32.xlu0 %v6246, 32
    %v6308 = vpop.permute.xlu0 %6307
    %6309 = vrot.lane.b32.xlu0 %v6247, 32
    %v6310 = vpop.permute.xlu0 %6309
    %6311 = vrot.lane.b32.xlu0 %v6248, 32
    %v6312 = vpop.permute.xlu0 %6311
    %vm6313 = vcmask 31744
    %v6316 = vsel %vm6313, %v4937, %v5066
    %v6319 = vsel %vm6313, %v4938, %v5068
    %v6322 = vsel %vm6313, %v4939, %v5070
    %v6325 = vsel %vm6313, %v4940, %v5072
    %v6328 = vsel %vm6313, %v4941, %v5074
    %v6331 = vsel %vm6313, %v4942, %v5076
    %v6334 = vsel %vm6313, %v4943, %v5078
    %v6337 = vsel %vm6313, %v4944, %v5080
    %v6340 = vsel %vm6313, %v4945, %v5082
    %v6343 = vsel %vm6313, %v4946, %v5084
    %v6346 = vsel %vm6313, %v4947, %v5086
    %v6349 = vsel %vm6313, %v4948, %v5088
    %v6352 = vsel %vm6313, %v4949, %v5090
    %v6355 = vsel %vm6313, %v4950, %v5092
    %v6358 = vsel %vm6313, %v4951, %v5094
    %v6361 = vsel %vm6313, %v4952, %v5096
    %v6364 = vsel %vm6313, %v4953, %v5098
    %v6367 = vsel %vm6313, %v4954, %v5100
    %v6370 = vsel %vm6313, %v4955, %v5102
    %v6373 = vsel %vm6313, %v4956, %v5104
    %v6376 = vsel %vm6313, %v4957, %v5106
    %v6379 = vsel %vm6313, %v4958, %v5108
    %v6382 = vsel %vm6313, %v4959, %v5110
    %v6385 = vsel %vm6313, %v4960, %v5112
    %v6388 = vsel %vm6313, %v4961, %v5114
    %v6391 = vsel %vm6313, %v4962, %v5116
    %v6394 = vsel %vm6313, %v4963, %v5118
    %v6397 = vsel %vm6313, %v4964, %v5120
    %v6400 = vsel %vm6313, %v4965, %v5122
    %v6403 = vsel %vm6313, %v4966, %v5124
    %v6406 = vsel %vm6313, %v4967, %v5126
    %v6409 = vsel %vm6313, %v4968, %v5128
    %vm6410 = vcmask 64512
    %v6412 = vsel %vm6410, %v6316, %v5226
    %v6414 = vsel %vm6410, %v6319, %v5228
    %v6416 = vsel %vm6410, %v6322, %v5230
    %v6418 = vsel %vm6410, %v6325, %v5232
    %v6420 = vsel %vm6410, %v6328, %v5234
    %v6422 = vsel %vm6410, %v6331, %v5236
    %v6424 = vsel %vm6410, %v6334, %v5238
    %v6426 = vsel %vm6410, %v6337, %v5240
    %v6428 = vsel %vm6410, %v6340, %v5242
    %v6430 = vsel %vm6410, %v6343, %v5244
    %v6432 = vsel %vm6410, %v6346, %v5246
    %v6434 = vsel %vm6410, %v6349, %v5248
    %v6436 = vsel %vm6410, %v6352, %v5250
    %v6438 = vsel %vm6410, %v6355, %v5252
    %v6440 = vsel %vm6410, %v6358, %v5254
    %v6442 = vsel %vm6410, %v6361, %v5256
    %v6444 = vsel %vm6410, %v6364, %v5258
    %v6446 = vsel %vm6410, %v6367, %v5260
    %v6448 = vsel %vm6410, %v6370, %v5262
    %v6450 = vsel %vm6410, %v6373, %v5264
    %v6452 = vsel %vm6410, %v6376, %v5266
    %v6454 = vsel %vm6410, %v6379, %v5268
    %v6456 = vsel %vm6410, %v6382, %v5270
    %v6458 = vsel %vm6410, %v6385, %v5272
    %v6460 = vsel %vm6410, %v6388, %v5274
    %v6462 = vsel %vm6410, %v6391, %v5276
    %v6464 = vsel %vm6410, %v6394, %v5278
    %v6466 = vsel %vm6410, %v6397, %v5280
    %v6468 = vsel %vm6410, %v6400, %v5282
    %v6470 = vsel %vm6410, %v6403, %v5284
    %v6472 = vsel %vm6410, %v6406, %v5286
    %v6474 = vsel %vm6410, %v6409, %v5288
    %vm6475 = vcmask 97280
    %v6477 = vsel %vm6475, %v6412, %v5418
    %v6479 = vsel %vm6475, %v6414, %v5420
    %v6481 = vsel %vm6475, %v6416, %v5422
    %v6483 = vsel %vm6475, %v6418, %v5424
    %v6485 = vsel %vm6475, %v6420, %v5426
    %v6487 = vsel %vm6475, %v6422, %v5428
    %v6489 = vsel %vm6475, %v6424, %v5430
    %v6491 = vsel %vm6475, %v6426, %v5432
    %v6493 = vsel %vm6475, %v6428, %v5434
    %v6495 = vsel %vm6475, %v6430, %v5436
    %v6497 = vsel %vm6475, %v6432, %v5438
    %v6499 = vsel %vm6475, %v6434, %v5440
    %v6501 = vsel %vm6475, %v6436, %v5442
    %v6503 = vsel %vm6475, %v6438, %v5444
    %v6505 = vsel %vm6475, %v6440, %v5446
    %v6507 = vsel %vm6475, %v6442, %v5448
    %v6509 = vsel %vm6475, %v6444, %v5450
    %v6511 = vsel %vm6475, %v6446, %v5452
    %v6513 = vsel %vm6475, %v6448, %v5454
    %v6515 = vsel %vm6475, %v6450, %v5456
    %v6517 = vsel %vm6475, %v6452, %v5458
    %v6519 = vsel %vm6475, %v6454, %v5460
    %v6521 = vsel %vm6475, %v6456, %v5462
    %v6523 = vsel %vm6475, %v6458, %v5464
    %v6525 = vsel %vm6475, %v6460, %v5466
    %v6527 = vsel %vm6475, %v6462, %v5468
    %v6529 = vsel %vm6475, %v6464, %v5470
    %v6531 = vsel %vm6475, %v6466, %v5472
    %v6533 = vsel %vm6475, %v6468, %v5474
    %v6535 = vsel %vm6475, %v6470, %v5476
    %v6537 = vsel %vm6475, %v6472, %v5478
    %v6539 = vsel %vm6475, %v6474, %v5480
    %vm6540 = vcmask 130048
    %v6542 = vsel %vm6540, %v6477, %v5578
    %v6544 = vsel %vm6540, %v6479, %v5580
    %v6546 = vsel %vm6540, %v6481, %v5582
    %v6548 = vsel %vm6540, %v6483, %v5584
    %v6550 = vsel %vm6540, %v6485, %v5586
    %v6552 = vsel %vm6540, %v6487, %v5588
    %v6554 = vsel %vm6540, %v6489, %v5590
    %v6556 = vsel %vm6540, %v6491, %v5592
    %v6558 = vsel %vm6540, %v6493, %v5594
    %v6560 = vsel %vm6540, %v6495, %v5596
    %v6562 = vsel %vm6540, %v6497, %v5598
    %v6564 = vsel %vm6540, %v6499, %v5600
    %v6566 = vsel %vm6540, %v6501, %v5602
    %v6568 = vsel %vm6540, %v6503, %v5604
    %v6570 = vsel %vm6540, %v6505, %v5606
    %v6572 = vsel %vm6540, %v6507, %v5608
    %v6574 = vsel %vm6540, %v6509, %v5610
    %v6576 = vsel %vm6540, %v6511, %v5612
    %v6578 = vsel %vm6540, %v6513, %v5614
    %v6580 = vsel %vm6540, %v6515, %v5616
    %v6582 = vsel %vm6540, %v6517, %v5618
    %v6584 = vsel %vm6540, %v6519, %v5620
    %v6586 = vsel %vm6540, %v6521, %v5622
    %v6588 = vsel %vm6540, %v6523, %v5624
    %v6590 = vsel %vm6540, %v6525, %v5626
    %v6592 = vsel %vm6540, %v6527, %v5628
    %v6594 = vsel %vm6540, %v6529, %v5630
    %v6596 = vsel %vm6540, %v6531, %v5632
    %v6598 = vsel %vm6540, %v6533, %v5634
    %v6600 = vsel %vm6540, %v6535, %v5636
    %v6602 = vsel %vm6540, %v6537, %v5638
    %v6604 = vsel %vm6540, %v6539, %v5640
    %vm6605 = vcmask 162816
    %v6607 = vsel %vm6605, %v6542, %v5738
    %v6609 = vsel %vm6605, %v6544, %v5740
    %v6611 = vsel %vm6605, %v6546, %v5742
    %v6613 = vsel %vm6605, %v6548, %v5744
    %v6615 = vsel %vm6605, %v6550, %v5746
    %v6617 = vsel %vm6605, %v6552, %v5748
    %v6619 = vsel %vm6605, %v6554, %v5750
    %v6621 = vsel %vm6605, %v6556, %v5752
    %v6623 = vsel %vm6605, %v6558, %v5754
    %v6625 = vsel %vm6605, %v6560, %v5756
    %v6627 = vsel %vm6605, %v6562, %v5758
    %v6629 = vsel %vm6605, %v6564, %v5760
    %v6631 = vsel %vm6605, %v6566, %v5762
    %v6633 = vsel %vm6605, %v6568, %v5764
    %v6635 = vsel %vm6605, %v6570, %v5766
    %v6637 = vsel %vm6605, %v6572, %v5768
    %v6639 = vsel %vm6605, %v6574, %v5770
    %v6641 = vsel %vm6605, %v6576, %v5772
    %v6643 = vsel %vm6605, %v6578, %v5774
    %v6645 = vsel %vm6605, %v6580, %v5776
    %v6647 = vsel %vm6605, %v6582, %v5778
    %v6649 = vsel %vm6605, %v6584, %v5780
    %v6651 = vsel %vm6605, %v6586, %v5782
    %v6653 = vsel %vm6605, %v6588, %v5784
    %v6655 = vsel %vm6605, %v6590, %v5786
    %v6657 = vsel %vm6605, %v6592, %v5788
    %v6659 = vsel %vm6605, %v6594, %v5790
    %v6661 = vsel %vm6605, %v6596, %v5792
    %v6663 = vsel %vm6605, %v6598, %v5794
    %v6665 = vsel %vm6605, %v6600, %v5796
    %v6667 = vsel %vm6605, %v6602, %v5798
    %v6669 = vsel %vm6605, %v6604, %v5800
    %vm6670 = vcmask 195584
    %v6672 = vsel %vm6670, %v6607, %v5930
    %v6674 = vsel %vm6670, %v6609, %v5932
    %v6676 = vsel %vm6670, %v6611, %v5934
    %v6678 = vsel %vm6670, %v6613, %v5936
    %v6680 = vsel %vm6670, %v6615, %v5938
    %v6682 = vsel %vm6670, %v6617, %v5940
    %v6684 = vsel %vm6670, %v6619, %v5942
    %v6686 = vsel %vm6670, %v6621, %v5944
    %v6688 = vsel %vm6670, %v6623, %v5946
    %v6690 = vsel %vm6670, %v6625, %v5948
    %v6692 = vsel %vm6670, %v6627, %v5950
    %v6694 = vsel %vm6670, %v6629, %v5952
    %v6696 = vsel %vm6670, %v6631, %v5954
    %v6698 = vsel %vm6670, %v6633, %v5956
    %v6700 = vsel %vm6670, %v6635, %v5958
    %v6702 = vsel %vm6670, %v6637, %v5960
    %v6704 = vsel %vm6670, %v6639, %v5962
    %v6706 = vsel %vm6670, %v6641, %v5964
    %v6708 = vsel %vm6670, %v6643, %v5966
    %v6710 = vsel %vm6670, %v6645, %v5968
    %v6712 = vsel %vm6670, %v6647, %v5970
    %v6714 = vsel %vm6670, %v6649, %v5972
    %v6716 = vsel %vm6670, %v6651, %v5974
    %v6718 = vsel %vm6670, %v6653, %v5976
    %v6720 = vsel %vm6670, %v6655, %v5978
    %v6722 = vsel %vm6670, %v6657, %v5980
    %v6724 = vsel %vm6670, %v6659, %v5982
    %v6726 = vsel %vm6670, %v6661, %v5984
    %v6728 = vsel %vm6670, %v6663, %v5986
    %v6730 = vsel %vm6670, %v6665, %v5988
    %v6732 = vsel %vm6670, %v6667, %v5990
    %v6734 = vsel %vm6670, %v6669, %v5992
    %vm6735 = vcmask 228352
    %v6737 = vsel %vm6735, %v6672, %v6090
    %v6739 = vsel %vm6735, %v6674, %v6092
    %v6741 = vsel %vm6735, %v6676, %v6094
    %v6743 = vsel %vm6735, %v6678, %v6096
    %v6745 = vsel %vm6735, %v6680, %v6098
    %v6747 = vsel %vm6735, %v6682, %v6100
    %v6749 = vsel %vm6735, %v6684, %v6102
    %v6751 = vsel %vm6735, %v6686, %v6104
    %v6753 = vsel %vm6735, %v6688, %v6106
    %v6755 = vsel %vm6735, %v6690, %v6108
    %v6757 = vsel %vm6735, %v6692, %v6110
    %v6759 = vsel %vm6735, %v6694, %v6112
    %v6761 = vsel %vm6735, %v6696, %v6114
    %v6763 = vsel %vm6735, %v6698, %v6116
    %v6765 = vsel %vm6735, %v6700, %v6118
    %v6767 = vsel %vm6735, %v6702, %v6120
    %v6769 = vsel %vm6735, %v6704, %v6122
    %v6771 = vsel %vm6735, %v6706, %v6124
    %v6773 = vsel %vm6735, %v6708, %v6126
    %v6775 = vsel %vm6735, %v6710, %v6128
    %v6777 = vsel %vm6735, %v6712, %v6130
    %v6779 = vsel %vm6735, %v6714, %v6132
    %v6781 = vsel %vm6735, %v6716, %v6134
    %v6783 = vsel %vm6735, %v6718, %v6136
    %v6785 = vsel %vm6735, %v6720, %v6138
    %v6787 = vsel %vm6735, %v6722, %v6140
    %v6789 = vsel %vm6735, %v6724, %v6142
    %v6791 = vsel %vm6735, %v6726, %v6144
    %v6793 = vsel %vm6735, %v6728, %v6146
    %v6795 = vsel %vm6735, %v6730, %v6148
    %v6797 = vsel %vm6735, %v6732, %v6150
    %v6799 = vsel %vm6735, %v6734, %v6152
    %vm6800 = vcmask 261120
    %v6802 = vsel %vm6800, %v6737, %v6250
    %v6804 = vsel %vm6800, %v6739, %v6252
    %v6806 = vsel %vm6800, %v6741, %v6254
    %v6808 = vsel %vm6800, %v6743, %v6256
    %v6810 = vsel %vm6800, %v6745, %v6258
    %v6812 = vsel %vm6800, %v6747, %v6260
    %v6814 = vsel %vm6800, %v6749, %v6262
    %v6816 = vsel %vm6800, %v6751, %v6264
    %v6818 = vsel %vm6800, %v6753, %v6266
    %v6820 = vsel %vm6800, %v6755, %v6268
    %v6822 = vsel %vm6800, %v6757, %v6270
    %v6824 = vsel %vm6800, %v6759, %v6272
    %v6826 = vsel %vm6800, %v6761, %v6274
    %v6828 = vsel %vm6800, %v6763, %v6276
    %v6830 = vsel %vm6800, %v6765, %v6278
    %v6832 = vsel %vm6800, %v6767, %v6280
    %v6834 = vsel %vm6800, %v6769, %v6282
    %v6836 = vsel %vm6800, %v6771, %v6284
    %v6838 = vsel %vm6800, %v6773, %v6286
    %v6840 = vsel %vm6800, %v6775, %v6288
    %v6842 = vsel %vm6800, %v6777, %v6290
    %v6844 = vsel %vm6800, %v6779, %v6292
    %v6846 = vsel %vm6800, %v6781, %v6294
    %v6848 = vsel %vm6800, %v6783, %v6296
    %v6850 = vsel %vm6800, %v6785, %v6298
    %v6852 = vsel %vm6800, %v6787, %v6300
    %v6854 = vsel %vm6800, %v6789, %v6302
    %v6856 = vsel %vm6800, %v6791, %v6304
    %v6858 = vsel %vm6800, %v6793, %v6306
    %v6860 = vsel %vm6800, %v6795, %v6308
    %v6862 = vsel %vm6800, %v6797, %v6310
    %v6864 = vsel %vm6800, %v6799, %v6312
    %v6897 = vunpack.c.l.b16 %v6802
    %v6898 = vunpack.c.h.b16 %v6802
    %v6899 = vunpack.c.l.b16 %v6804
    %v6900 = vunpack.c.h.b16 %v6804
    %v6901 = vunpack.c.l.b16 %v6806
    %v6902 = vunpack.c.h.b16 %v6806
    %v6903 = vunpack.c.l.b16 %v6808
    %v6904 = vunpack.c.h.b16 %v6808
    %v6905 = vunpack.c.l.b16 %v6810
    %v6906 = vunpack.c.h.b16 %v6810
    %v6907 = vunpack.c.l.b16 %v6812
    %v6908 = vunpack.c.h.b16 %v6812
    %v6909 = vunpack.c.l.b16 %v6814
    %v6910 = vunpack.c.h.b16 %v6814
    %v6911 = vunpack.c.l.b16 %v6816
    %v6912 = vunpack.c.h.b16 %v6816
    %v6913 = vunpack.c.l.b16 %v6818
    %v6914 = vunpack.c.h.b16 %v6818
    %v6915 = vunpack.c.l.b16 %v6820
    %v6916 = vunpack.c.h.b16 %v6820
    %v6917 = vunpack.c.l.b16 %v6822
    %v6918 = vunpack.c.h.b16 %v6822
    %v6919 = vunpack.c.l.b16 %v6824
    %v6920 = vunpack.c.h.b16 %v6824
    %v6921 = vunpack.c.l.b16 %v6826
    %v6922 = vunpack.c.h.b16 %v6826
    %v6923 = vunpack.c.l.b16 %v6828
    %v6924 = vunpack.c.h.b16 %v6828
    %v6925 = vunpack.c.l.b16 %v6830
    %v6926 = vunpack.c.h.b16 %v6830
    %v6927 = vunpack.c.l.b16 %v6832
    %v6928 = vunpack.c.h.b16 %v6832
    %v6929 = vunpack.c.l.b16 %v6834
    %v6930 = vunpack.c.h.b16 %v6834
    %v6931 = vunpack.c.l.b16 %v6836
    %v6932 = vunpack.c.h.b16 %v6836
    %v6933 = vunpack.c.l.b16 %v6838
    %v6934 = vunpack.c.h.b16 %v6838
    %v6935 = vunpack.c.l.b16 %v6840
    %v6936 = vunpack.c.h.b16 %v6840
    %v6937 = vunpack.c.l.b16 %v6842
    %v6938 = vunpack.c.h.b16 %v6842
    %v6939 = vunpack.c.l.b16 %v6844
    %v6940 = vunpack.c.h.b16 %v6844
    %v6941 = vunpack.c.l.b16 %v6846
    %v6942 = vunpack.c.h.b16 %v6846
    %v6943 = vunpack.c.l.b16 %v6848
    %v6944 = vunpack.c.h.b16 %v6848
    %v6945 = vunpack.c.l.b16 %v6850
    %v6946 = vunpack.c.h.b16 %v6850
    %v6947 = vunpack.c.l.b16 %v6852
    %v6948 = vunpack.c.h.b16 %v6852
    %v6949 = vunpack.c.l.b16 %v6854
    %v6950 = vunpack.c.h.b16 %v6854
    %v6951 = vunpack.c.l.b16 %v6856
    %v6952 = vunpack.c.h.b16 %v6856
    %v6953 = vunpack.c.l.b16 %v6858
    %v6954 = vunpack.c.h.b16 %v6858
    %v6955 = vunpack.c.l.b16 %v6860
    %v6956 = vunpack.c.h.b16 %v6860
    %v6957 = vunpack.c.l.b16 %v6862
    %v6958 = vunpack.c.h.b16 %v6862
    %v6959 = vunpack.c.l.b16 %v6864
    %v6960 = vunpack.c.h.b16 %v6864
    %v6961 = vpack.c.b16 %v6897, %v6897
    %v6962 = vpack.c.b16 %v6898, %v6898
    %v6963 = vpack.c.b16 %v6899, %v6899
    %v6964 = vpack.c.b16 %v6900, %v6900
    %v6965 = vpack.c.b16 %v6901, %v6901
    %v6966 = vpack.c.b16 %v6902, %v6902
    %v6967 = vpack.c.b16 %v6903, %v6903
    %v6968 = vpack.c.b16 %v6904, %v6904
    %v6969 = vpack.c.b16 %v6905, %v6905
    %v6970 = vpack.c.b16 %v6906, %v6906
    %v6971 = vpack.c.b16 %v6907, %v6907
    %v6972 = vpack.c.b16 %v6908, %v6908
    %v6973 = vpack.c.b16 %v6909, %v6909
    %v6974 = vpack.c.b16 %v6910, %v6910
    %v6975 = vpack.c.b16 %v6911, %v6911
    %v6976 = vpack.c.b16 %v6912, %v6912
    %v6977 = vpack.c.b16 %v6913, %v6913
    %v6978 = vpack.c.b16 %v6914, %v6914
    %v6979 = vpack.c.b16 %v6915, %v6915
    %v6980 = vpack.c.b16 %v6916, %v6916
    %v6981 = vpack.c.b16 %v6917, %v6917
    %v6982 = vpack.c.b16 %v6918, %v6918
    %v6983 = vpack.c.b16 %v6919, %v6919
    %v6984 = vpack.c.b16 %v6920, %v6920
    %v6985 = vpack.c.b16 %v6921, %v6921
    %v6986 = vpack.c.b16 %v6922, %v6922
    %v6987 = vpack.c.b16 %v6923, %v6923
    %v6988 = vpack.c.b16 %v6924, %v6924
    %v6989 = vpack.c.b16 %v6925, %v6925
    %v6990 = vpack.c.b16 %v6926, %v6926
    %v6991 = vpack.c.b16 %v6927, %v6927
    %v6992 = vpack.c.b16 %v6928, %v6928
    %v6993 = vpack.c.b16 %v6929, %v6929
    %v6994 = vpack.c.b16 %v6930, %v6930
    %v6995 = vpack.c.b16 %v6931, %v6931
    %v6996 = vpack.c.b16 %v6932, %v6932
    %v6997 = vpack.c.b16 %v6933, %v6933
    %v6998 = vpack.c.b16 %v6934, %v6934
    %v6999 = vpack.c.b16 %v6935, %v6935
    %v7000 = vpack.c.b16 %v6936, %v6936
    %v7001 = vpack.c.b16 %v6937, %v6937
    %v7002 = vpack.c.b16 %v6938, %v6938
    %v7003 = vpack.c.b16 %v6939, %v6939
    %v7004 = vpack.c.b16 %v6940, %v6940
    %v7005 = vpack.c.b16 %v6941, %v6941
    %v7006 = vpack.c.b16 %v6942, %v6942
    %v7007 = vpack.c.b16 %v6943, %v6943
    %v7008 = vpack.c.b16 %v6944, %v6944
    %v7009 = vpack.c.b16 %v6945, %v6945
    %v7010 = vpack.c.b16 %v6946, %v6946
    %v7011 = vpack.c.b16 %v6947, %v6947
    %v7012 = vpack.c.b16 %v6948, %v6948
    %v7013 = vpack.c.b16 %v6949, %v6949
    %v7014 = vpack.c.b16 %v6950, %v6950
    %v7015 = vpack.c.b16 %v6951, %v6951
    %v7016 = vpack.c.b16 %v6952, %v6952
    %v7017 = vpack.c.b16 %v6953, %v6953
    %v7018 = vpack.c.b16 %v6954, %v6954
    %v7019 = vpack.c.b16 %v6955, %v6955
    %v7020 = vpack.c.b16 %v6956, %v6956
    %v7021 = vpack.c.b16 %v6957, %v6957
    %v7022 = vpack.c.b16 %v6958, %v6958
    %v7023 = vpack.c.b16 %v6959, %v6959
    %v7024 = vpack.c.b16 %v6960, %v6960
    %vm7089 = vcmask 289792
    %7090 = vst.msk [vmem:[#allocation3] sm:$0xf] %vm7089, %v6961
    %7091 = vst.msk [vmem:[#allocation3 + $0x4] sm:$0xf] %vm7089, %v6962
    %7092 = vst.msk [vmem:[#allocation3 + $0x8] sm:$0xf] %vm7089, %v6963
    %7093 = vst.msk [vmem:[#allocation3 + $0xc] sm:$0xf] %vm7089, %v6964
    %7094 = vst.msk [vmem:[#allocation3 + $0x10] sm:$0xf] %vm7089, %v6965
    %7095 = vst.msk [vmem:[#allocation3 + $0x14] sm:$0xf] %vm7089, %v6966
    %7096 = vst.msk [vmem:[#allocation3 + $0x18] sm:$0xf] %vm7089, %v6967
    %7097 = vst.msk [vmem:[#allocation3 + $0x1c] sm:$0xf] %vm7089, %v6968
    %7098 = vst.msk [vmem:[#allocation3 + $0x20] sm:$0xf] %vm7089, %v6969
    %7099 = vst.msk [vmem:[#allocation3 + $0x24] sm:$0xf] %vm7089, %v6970
    %7100 = vst.msk [vmem:[#allocation3 + $0x28] sm:$0xf] %vm7089, %v6971
    %7101 = vst.msk [vmem:[#allocation3 + $0x2c] sm:$0xf] %vm7089, %v6972
    %7102 = vst.msk [vmem:[#allocation3 + $0x30] sm:$0xf] %vm7089, %v6973
    %7103 = vst.msk [vmem:[#allocation3 + $0x34] sm:$0xf] %vm7089, %v6974
    %7104 = vst.msk [vmem:[#allocation3 + $0x38] sm:$0xf] %vm7089, %v6975
    %7105 = vst.msk [vmem:[#allocation3 + $0x3c] sm:$0xf] %vm7089, %v6976
    %7106 = vst.msk [vmem:[#allocation3 + $0x40] sm:$0xf] %vm7089, %v6977
    %7107 = vst.msk [vmem:[#allocation3 + $0x44] sm:$0xf] %vm7089, %v6978
    %7108 = vst.msk [vmem:[#allocation3 + $0x48] sm:$0xf] %vm7089, %v6979
    %7109 = vst.msk [vmem:[#allocation3 + $0x4c] sm:$0xf] %vm7089, %v6980
    %7110 = vst.msk [vmem:[#allocation3 + $0x50] sm:$0xf] %vm7089, %v6981
    %7111 = vst.msk [vmem:[#allocation3 + $0x54] sm:$0xf] %vm7089, %v6982
    %7112 = vst.msk [vmem:[#allocation3 + $0x58] sm:$0xf] %vm7089, %v6983
    %7113 = vst.msk [vmem:[#allocation3 + $0x5c] sm:$0xf] %vm7089, %v6984
    %7114 = vst.msk [vmem:[#allocation3 + $0x60] sm:$0xf] %vm7089, %v6985
    %7115 = vst.msk [vmem:[#allocation3 + $0x64] sm:$0xf] %vm7089, %v6986
    %7116 = vst.msk [vmem:[#allocation3 + $0x68] sm:$0xf] %vm7089, %v6987
    %7117 = vst.msk [vmem:[#allocation3 + $0x6c] sm:$0xf] %vm7089, %v6988
    %7118 = vst.msk [vmem:[#allocation3 + $0x70] sm:$0xf] %vm7089, %v6989
    %7119 = vst.msk [vmem:[#allocation3 + $0x74] sm:$0xf] %vm7089, %v6990
    %7120 = vst.msk [vmem:[#allocation3 + $0x78] sm:$0xf] %vm7089, %v6991
    %7121 = vst.msk [vmem:[#allocation3 + $0x7c] sm:$0xf] %vm7089, %v6992
    %7122 = vst.msk [vmem:[#allocation3 + $0x80] sm:$0xf] %vm7089, %v6993
    %7123 = vst.msk [vmem:[#allocation3 + $0x84] sm:$0xf] %vm7089, %v6994
    %7124 = vst.msk [vmem:[#allocation3 + $0x88] sm:$0xf] %vm7089, %v6995
    %7125 = vst.msk [vmem:[#allocation3 + $0x8c] sm:$0xf] %vm7089, %v6996
    %7126 = vst.msk [vmem:[#allocation3 + $0x90] sm:$0xf] %vm7089, %v6997
    %7127 = vst.msk [vmem:[#allocation3 + $0x94] sm:$0xf] %vm7089, %v6998
    %7128 = vst.msk [vmem:[#allocation3 + $0x98] sm:$0xf] %vm7089, %v6999
    %7129 = vst.msk [vmem:[#allocation3 + $0x9c] sm:$0xf] %vm7089, %v7000
    %7130 = vst.msk [vmem:[#allocation3 + $0xa0] sm:$0xf] %vm7089, %v7001
    %7131 = vst.msk [vmem:[#allocation3 + $0xa4] sm:$0xf] %vm7089, %v7002
    %7132 = vst.msk [vmem:[#allocation3 + $0xa8] sm:$0xf] %vm7089, %v7003
    %7133 = vst.msk [vmem:[#allocation3 + $0xac] sm:$0xf] %vm7089, %v7004
    %7134 = vst.msk [vmem:[#allocation3 + $0xb0] sm:$0xf] %vm7089, %v7005
    %7135 = vst.msk [vmem:[#allocation3 + $0xb4] sm:$0xf] %vm7089, %v7006
    %7136 = vst.msk [vmem:[#allocation3 + $0xb8] sm:$0xf] %vm7089, %v7007
    %7137 = vst.msk [vmem:[#allocation3 + $0xbc] sm:$0xf] %vm7089, %v7008
    %7138 = vst.msk [vmem:[#allocation3 + $0xc0] sm:$0xf] %vm7089, %v7009
    %7139 = vst.msk [vmem:[#allocation3 + $0xc4] sm:$0xf] %vm7089, %v7010
    %7140 = vst.msk [vmem:[#allocation3 + $0xc8] sm:$0xf] %vm7089, %v7011
    %7141 = vst.msk [vmem:[#allocation3 + $0xcc] sm:$0xf] %vm7089, %v7012
    %7142 = vst.msk [vmem:[#allocation3 + $0xd0] sm:$0xf] %vm7089, %v7013
    %7143 = vst.msk [vmem:[#allocation3 + $0xd4] sm:$0xf] %vm7089, %v7014
    %7144 = vst.msk [vmem:[#allocation3 + $0xd8] sm:$0xf] %vm7089, %v7015
    %7145 = vst.msk [vmem:[#allocation3 + $0xdc] sm:$0xf] %vm7089, %v7016
    %7146 = vst.msk [vmem:[#allocation3 + $0xe0] sm:$0xf] %vm7089, %v7017
    %7147 = vst.msk [vmem:[#allocation3 + $0xe4] sm:$0xf] %vm7089, %v7018
    %7148 = vst.msk [vmem:[#allocation3 + $0xe8] sm:$0xf] %vm7089, %v7019
    %7149 = vst.msk [vmem:[#allocation3 + $0xec] sm:$0xf] %vm7089, %v7020
    %7150 = vst.msk [vmem:[#allocation3 + $0xf0] sm:$0xf] %vm7089, %v7021
    %7151 = vst.msk [vmem:[#allocation3 + $0xf4] sm:$0xf] %vm7089, %v7022
    %7152 = vst.msk [vmem:[#allocation3 + $0xf8] sm:$0xf] %vm7089, %v7023
    %7153 = vst.msk [vmem:[#allocation3 + $0xfc] sm:$0xf] %vm7089, %v7024
    %v7154 = vld [vmem:[#allocation3] sm:$0xf]
    %v7155 = vld [vmem:[#allocation3 + $0x4] sm:$0xf]
    %v7156 = vld [vmem:[#allocation3 + $0x8] sm:$0xf]
    %v7157 = vld [vmem:[#allocation3 + $0xc] sm:$0xf]
    %v7158 = vld [vmem:[#allocation3 + $0x10] sm:$0xf]
    %v7159 = vld [vmem:[#allocation3 + $0x14] sm:$0xf]
    %v7160 = vld [vmem:[#allocation3 + $0x18] sm:$0xf]
    %v7161 = vld [vmem:[#allocation3 + $0x1c] sm:$0xf]
    %v7162 = vld [vmem:[#allocation3 + $0x20] sm:$0xf]
    %v7163 = vld [vmem:[#allocation3 + $0x24] sm:$0xf]
    %v7164 = vld [vmem:[#allocation3 + $0x28] sm:$0xf]
    %v7165 = vld [vmem:[#allocation3 + $0x2c] sm:$0xf]
    %v7166 = vld [vmem:[#allocation3 + $0x30] sm:$0xf]
    %v7167 = vld [vmem:[#allocation3 + $0x34] sm:$0xf]
    %v7168 = vld [vmem:[#allocation3 + $0x38] sm:$0xf]
    %v7169 = vld [vmem:[#allocation3 + $0x3c] sm:$0xf]
    %v7170 = vld [vmem:[#allocation3 + $0x40] sm:$0xf]
    %v7171 = vld [vmem:[#allocation3 + $0x44] sm:$0xf]
    %v7172 = vld [vmem:[#allocation3 + $0x48] sm:$0xf]
    %v7173 = vld [vmem:[#allocation3 + $0x4c] sm:$0xf]
    %v7174 = vld [vmem:[#allocation3 + $0x50] sm:$0xf]
    %v7175 = vld [vmem:[#allocation3 + $0x54] sm:$0xf]
    %v7176 = vld [vmem:[#allocation3 + $0x58] sm:$0xf]
    %v7177 = vld [vmem:[#allocation3 + $0x5c] sm:$0xf]
    %v7178 = vld [vmem:[#allocation3 + $0x60] sm:$0xf]
    %v7179 = vld [vmem:[#allocation3 + $0x64] sm:$0xf]
    %v7180 = vld [vmem:[#allocation3 + $0x68] sm:$0xf]
    %v7181 = vld [vmem:[#allocation3 + $0x6c] sm:$0xf]
    %v7182 = vld [vmem:[#allocation3 + $0x70] sm:$0xf]
    %v7183 = vld [vmem:[#allocation3 + $0x74] sm:$0xf]
    %v7184 = vld [vmem:[#allocation3 + $0x78] sm:$0xf]
    %v7185 = vld [vmem:[#allocation3 + $0x7c] sm:$0xf]
    %v7186 = vld [vmem:[#allocation3 + $0x80] sm:$0xf]
    %v7187 = vld [vmem:[#allocation3 + $0x84] sm:$0xf]
    %v7188 = vld [vmem:[#allocation3 + $0x88] sm:$0xf]
    %v7189 = vld [vmem:[#allocation3 + $0x8c] sm:$0xf]
    %v7190 = vld [vmem:[#allocation3 + $0x90] sm:$0xf]
    %v7191 = vld [vmem:[#allocation3 + $0x94] sm:$0xf]
    %v7192 = vld [vmem:[#allocation3 + $0x98] sm:$0xf]
    %v7193 = vld [vmem:[#allocation3 + $0x9c] sm:$0xf]
    %v7194 = vld [vmem:[#allocation3 + $0xa0] sm:$0xf]
    %v7195 = vld [vmem:[#allocation3 + $0xa4] sm:$0xf]
    %v7196 = vld [vmem:[#allocation3 + $0xa8] sm:$0xf]
    %v7197 = vld [vmem:[#allocation3 + $0xac] sm:$0xf]
    %v7198 = vld [vmem:[#allocation3 + $0xb0] sm:$0xf]
    %v7199 = vld [vmem:[#allocation3 + $0xb4] sm:$0xf]
    %v7200 = vld [vmem:[#allocation3 + $0xb8] sm:$0xf]
    %v7201 = vld [vmem:[#allocation3 + $0xbc] sm:$0xf]
    %v7202 = vld [vmem:[#allocation3 + $0xc0] sm:$0xf]
    %v7203 = vld [vmem:[#allocation3 + $0xc4] sm:$0xf]
    %v7204 = vld [vmem:[#allocation3 + $0xc8] sm:$0xf]
    %v7205 = vld [vmem:[#allocation3 + $0xcc] sm:$0xf]
    %v7206 = vld [vmem:[#allocation3 + $0xd0] sm:$0xf]
    %v7207 = vld [vmem:[#allocation3 + $0xd4] sm:$0xf]
    %v7208 = vld [vmem:[#allocation3 + $0xd8] sm:$0xf]
    %v7209 = vld [vmem:[#allocation3 + $0xdc] sm:$0xf]
    %v7210 = vld [vmem:[#allocation3 + $0xe0] sm:$0xf]
    %v7211 = vld [vmem:[#allocation3 + $0xe4] sm:$0xf]
    %v7212 = vld [vmem:[#allocation3 + $0xe8] sm:$0xf]
    %v7213 = vld [vmem:[#allocation3 + $0xec] sm:$0xf]
    %v7214 = vld [vmem:[#allocation3 + $0xf0] sm:$0xf]
    %v7215 = vld [vmem:[#allocation3 + $0xf4] sm:$0xf]
    %v7216 = vld [vmem:[#allocation3 + $0xf8] sm:$0xf]
    %v7217 = vld [vmem:[#allocation3 + $0xfc] sm:$0xf]
    %v7218 = vld [vmem:[%s1] sm:$0xff]
    %v7219 = vld [vmem:[%s1 + $0x8] sm:$0xff]
    %v7220 = vld [vmem:[%s1 + $0x10] sm:$0xff]
    %v7221 = vld [vmem:[%s1 + $0x18] sm:$0xff]
    %v7222 = vld [vmem:[%s1 + $0x20] sm:$0x33]
    %v7287 = vunpack.c.l.b16 %v7154
    %v7288 = vunpack.c.l.b16 %v7155
    %v7289 = vunpack.c.l.b16 %v7156
    %v7290 = vunpack.c.l.b16 %v7157
    %v7291 = vunpack.c.l.b16 %v7158
    %v7292 = vunpack.c.l.b16 %v7159
    %v7293 = vunpack.c.l.b16 %v7160
    %v7294 = vunpack.c.l.b16 %v7161
    %v7295 = vunpack.c.l.b16 %v7162
    %v7296 = vunpack.c.l.b16 %v7163
    %v7297 = vunpack.c.l.b16 %v7164
    %v7298 = vunpack.c.l.b16 %v7165
    %v7299 = vunpack.c.l.b16 %v7166
    %v7300 = vunpack.c.l.b16 %v7167
    %v7301 = vunpack.c.l.b16 %v7168
    %v7302 = vunpack.c.l.b16 %v7169
    %v7303 = vunpack.c.l.b16 %v7170
    %v7304 = vunpack.c.l.b16 %v7171
    %v7305 = vunpack.c.l.b16 %v7172
    %v7306 = vunpack.c.l.b16 %v7173
    %v7307 = vunpack.c.l.b16 %v7174
    %v7308 = vunpack.c.l.b16 %v7175
    %v7309 = vunpack.c.l.b16 %v7176
    %v7310 = vunpack.c.l.b16 %v7177
    %v7311 = vunpack.c.l.b16 %v7178
    %v7312 = vunpack.c.l.b16 %v7179
    %v7313 = vunpack.c.l.b16 %v7180
    %v7314 = vunpack.c.l.b16 %v7181
    %v7315 = vunpack.c.l.b16 %v7182
    %v7316 = vunpack.c.l.b16 %v7183
    %v7317 = vunpack.c.l.b16 %v7184
    %v7318 = vunpack.c.l.b16 %v7185
    %v7319 = vunpack.c.l.b16 %v7186
    %v7320 = vunpack.c.l.b16 %v7187
    %v7321 = vunpack.c.l.b16 %v7188
    %v7322 = vunpack.c.l.b16 %v7189
    %v7323 = vunpack.c.l.b16 %v7190
    %v7324 = vunpack.c.l.b16 %v7191
    %v7325 = vunpack.c.l.b16 %v7192
    %v7326 = vunpack.c.l.b16 %v7193
    %v7327 = vunpack.c.l.b16 %v7194
    %v7328 = vunpack.c.l.b16 %v7195
    %v7329 = vunpack.c.l.b16 %v7196
    %v7330 = vunpack.c.l.b16 %v7197
    %v7331 = vunpack.c.l.b16 %v7198
    %v7332 = vunpack.c.l.b16 %v7199
    %v7333 = vunpack.c.l.b16 %v7200
    %v7334 = vunpack.c.l.b16 %v7201
    %v7335 = vunpack.c.l.b16 %v7202
    %v7336 = vunpack.c.l.b16 %v7203
    %v7337 = vunpack.c.l.b16 %v7204
    %v7338 = vunpack.c.l.b16 %v7205
    %v7339 = vunpack.c.l.b16 %v7206
    %v7340 = vunpack.c.l.b16 %v7207
    %v7341 = vunpack.c.l.b16 %v7208
    %v7342 = vunpack.c.l.b16 %v7209
    %v7343 = vunpack.c.l.b16 %v7210
    %v7344 = vunpack.c.l.b16 %v7211
    %v7345 = vunpack.c.l.b16 %v7212
    %v7346 = vunpack.c.l.b16 %v7213
    %v7347 = vunpack.c.l.b16 %v7214
    %v7348 = vunpack.c.l.b16 %v7215
    %v7349 = vunpack.c.l.b16 %v7216
    %v7350 = vunpack.c.l.b16 %v7217
    %v7351 = vpack.c.b16 %v7288, %v7287
    %v7352 = vpack.c.b16 %v7290, %v7289
    %v7353 = vpack.c.b16 %v7292, %v7291
    %v7354 = vpack.c.b16 %v7294, %v7293
    %v7355 = vpack.c.b16 %v7296, %v7295
    %v7356 = vpack.c.b16 %v7298, %v7297
    %v7357 = vpack.c.b16 %v7300, %v7299
    %v7358 = vpack.c.b16 %v7302, %v7301
    %v7359 = vpack.c.b16 %v7304, %v7303
    %v7360 = vpack.c.b16 %v7306, %v7305
    %v7361 = vpack.c.b16 %v7308, %v7307
    %v7362 = vpack.c.b16 %v7310, %v7309
    %v7363 = vpack.c.b16 %v7312, %v7311
    %v7364 = vpack.c.b16 %v7314, %v7313
    %v7365 = vpack.c.b16 %v7316, %v7315
    %v7366 = vpack.c.b16 %v7318, %v7317
    %v7367 = vpack.c.b16 %v7320, %v7319
    %v7368 = vpack.c.b16 %v7322, %v7321
    %v7369 = vpack.c.b16 %v7324, %v7323
    %v7370 = vpack.c.b16 %v7326, %v7325
    %v7371 = vpack.c.b16 %v7328, %v7327
    %v7372 = vpack.c.b16 %v7330, %v7329
    %v7373 = vpack.c.b16 %v7332, %v7331
    %v7374 = vpack.c.b16 %v7334, %v7333
    %v7375 = vpack.c.b16 %v7336, %v7335
    %v7376 = vpack.c.b16 %v7338, %v7337
    %v7377 = vpack.c.b16 %v7340, %v7339
    %v7378 = vpack.c.b16 %v7342, %v7341
    %v7379 = vpack.c.b16 %v7344, %v7343
    %v7380 = vpack.c.b16 %v7346, %v7345
    %v7381 = vpack.c.b16 %v7348, %v7347
    %v7382 = vpack.c.b16 %v7350, %v7349
    %v7388 = vunpack.c.l.b16 %v7218
    %v7389 = vunpack.c.h.b16 %v7218
    %v7390 = vunpack.c.l.b16 %v7219
    %v7391 = vunpack.c.h.b16 %v7219
    %v7392 = vunpack.c.l.b16 %v7220
    %v7393 = vunpack.c.h.b16 %v7220
    %v7394 = vunpack.c.l.b16 %v7221
    %v7395 = vunpack.c.h.b16 %v7221
    %v7396 = vunpack.c.l.b16 %v7222
    %v7397 = vunpack.c.h.b16 %v7222
    %v7398 = vpack.c.b16 %v7390, %v7388
    %v7399 = vpack.c.b16 %v7391, %v7389
    %v7400 = vpack.c.b16 %v7394, %v7392
    %v7401 = vpack.c.b16 %v7395, %v7393
    %v7402 = vpack.c.b16 %v7396, %v7396
    %v7403 = vpack.c.b16 %v7397, %v7397
    %vm7408 = vcmask 293888
    %v7410 = vsel %vm7408, %v7351, 0
    %v7413 = vsel %vm7408, %v7352, 0
    %v7416 = vsel %vm7408, %v7353, 0
    %v7419 = vsel %vm7408, %v7354, 0
    %v7422 = vsel %vm7408, %v7355, 0
    %v7425 = vsel %vm7408, %v7356, 0
    %v7428 = vsel %vm7408, %v7357, 0
    %v7431 = vsel %vm7408, %v7358, 0
    %v7434 = vsel %vm7408, %v7359, 0
    %v7437 = vsel %vm7408, %v7360, 0
    %v7440 = vsel %vm7408, %v7361, 0
    %v7443 = vsel %vm7408, %v7362, 0
    %v7446 = vsel %vm7408, %v7363, 0
    %v7449 = vsel %vm7408, %v7364, 0
    %v7452 = vsel %vm7408, %v7365, 0
    %v7455 = vsel %vm7408, %v7366, 0
    %v7458 = vsel %vm7408, %v7367, 0
    %v7461 = vsel %vm7408, %v7368, 0
    %v7464 = vsel %vm7408, %v7369, 0
    %v7467 = vsel %vm7408, %v7370, 0
    %v7470 = vsel %vm7408, %v7371, 0
    %v7473 = vsel %vm7408, %v7372, 0
    %v7476 = vsel %vm7408, %v7373, 0
    %v7479 = vsel %vm7408, %v7374, 0
    %v7482 = vsel %vm7408, %v7375, 0
    %v7485 = vsel %vm7408, %v7376, 0
    %v7488 = vsel %vm7408, %v7377, 0
    %v7491 = vsel %vm7408, %v7378, 0
    %v7494 = vsel %vm7408, %v7379, 0
    %v7497 = vsel %vm7408, %v7380, 0
    %v7500 = vsel %vm7408, %v7381, 0
    %v7503 = vsel %vm7408, %v7382, 0
    %vm7505 = vcmask 1041408
    %v7507 = vsel %vm7505, %v7402, 0
    %v7510 = vsel %vm7505, %v7403, 0
    %7512 = vmatpush.bf16.msra.mxu0 0
    %7513 = vmatpush.bf16.msra.mxu0 0
    %7514 = vmatpush.bf16.msra.mxu0 0
    %7515 = vmatpush.bf16.msra.mxu0 0
    %7516 = vmatpush.bf16.msra.mxu0 0
    %7517 = vmatpush.bf16.msra.mxu0 %v7507
    %7518 = vmatpush.bf16.msra.mxu0 %v7400
    %7519 = vmatpush.bf16.msra.mxu0 %v7398
    %7520 = vmatmul.bf16.gmra.mxu0 %v7410
    %v7521 = vpop.f32.mrf.mxu0
    %v7522 = vadd.f32 0.0, %v7521
    %v7523 = vpop.f32.mrf.mxu0
    %v7524 = vadd.f32 0.0, %v7523
    %7525 = vmatmul.bf16.gmra.mxu0 %v7413
    %v7526 = vpop.f32.mrf.mxu0
    %v7527 = vadd.f32 0.0, %v7526
    %v7528 = vpop.f32.mrf.mxu0
    %v7529 = vadd.f32 0.0, %v7528
    %7530 = vmatmul.bf16.gmra.mxu0 %v7416
    %v7531 = vpop.f32.mrf.mxu0
    %v7532 = vadd.f32 0.0, %v7531
    %v7533 = vpop.f32.mrf.mxu0
    %v7534 = vadd.f32 0.0, %v7533
    %7535 = vmatmul.bf16.gmra.mxu0 %v7419
    %v7536 = vpop.f32.mrf.mxu0
    %v7537 = vadd.f32 0.0, %v7536
    %v7538 = vpop.f32.mrf.mxu0
    %v7539 = vadd.f32 0.0, %v7538
    %7540 = vmatmul.bf16.gmra.mxu0 %v7422
    %v7541 = vpop.f32.mrf.mxu0
    %v7542 = vadd.f32 0.0, %v7541
    %v7543 = vpop.f32.mrf.mxu0
    %v7544 = vadd.f32 0.0, %v7543
    %7545 = vmatmul.bf16.gmra.mxu0 %v7425
    %v7546 = vpop.f32.mrf.mxu0
    %v7547 = vadd.f32 0.0, %v7546
    %v7548 = vpop.f32.mrf.mxu0
    %v7549 = vadd.f32 0.0, %v7548
    %7550 = vmatmul.bf16.gmra.mxu0 %v7428
    %v7551 = vpop.f32.mrf.mxu0
    %v7552 = vadd.f32 0.0, %v7551
    %v7553 = vpop.f32.mrf.mxu0
    %v7554 = vadd.f32 0.0, %v7553
    %7555 = vmatmul.bf16.gmra.mxu0 %v7431
    %v7556 = vpop.f32.mrf.mxu0
    %v7557 = vadd.f32 0.0, %v7556
    %v7558 = vpop.f32.mrf.mxu0
    %v7559 = vadd.f32 0.0, %v7558
    %7560 = vmatmul.bf16.gmra.mxu0 %v7434
    %v7561 = vpop.f32.mrf.mxu0
    %v7562 = vadd.f32 0.0, %v7561
    %v7563 = vpop.f32.mrf.mxu0
    %v7564 = vadd.f32 0.0, %v7563
    %7565 = vmatmul.bf16.gmra.mxu0 %v7437
    %v7566 = vpop.f32.mrf.mxu0
    %v7567 = vadd.f32 0.0, %v7566
    %v7568 = vpop.f32.mrf.mxu0
    %v7569 = vadd.f32 0.0, %v7568
    %7570 = vmatmul.bf16.gmra.mxu0 %v7440
    %v7571 = vpop.f32.mrf.mxu0
    %v7572 = vadd.f32 0.0, %v7571
    %v7573 = vpop.f32.mrf.mxu0
    %v7574 = vadd.f32 0.0, %v7573
    %7575 = vmatmul.bf16.gmra.mxu0 %v7443
    %v7576 = vpop.f32.mrf.mxu0
    %v7577 = vadd.f32 0.0, %v7576
    %v7578 = vpop.f32.mrf.mxu0
    %v7579 = vadd.f32 0.0, %v7578
    %7580 = vmatmul.bf16.gmra.mxu0 %v7446
    %v7581 = vpop.f32.mrf.mxu0
    %v7582 = vadd.f32 0.0, %v7581
    %v7583 = vpop.f32.mrf.mxu0
    %v7584 = vadd.f32 0.0, %v7583
    %7585 = vmatmul.bf16.gmra.mxu0 %v7449
    %v7586 = vpop.f32.mrf.mxu0
    %v7587 = vadd.f32 0.0, %v7586
    %v7588 = vpop.f32.mrf.mxu0
    %v7589 = vadd.f32 0.0, %v7588
    %7590 = vmatmul.bf16.gmra.mxu0 %v7452
    %v7591 = vpop.f32.mrf.mxu0
    %v7592 = vadd.f32 0.0, %v7591
    %v7593 = vpop.f32.mrf.mxu0
    %v7594 = vadd.f32 0.0, %v7593
    %7595 = vmatmul.bf16.gmra.mxu0 %v7455
    %v7596 = vpop.f32.mrf.mxu0
    %v7597 = vadd.f32 0.0, %v7596
    %v7598 = vpop.f32.mrf.mxu0
    %v7599 = vadd.f32 0.0, %v7598
    %7600 = vmatmul.bf16.gmra.mxu0 %v7458
    %v7601 = vpop.f32.mrf.mxu0
    %v7602 = vadd.f32 0.0, %v7601
    %v7603 = vpop.f32.mrf.mxu0
    %v7604 = vadd.f32 0.0, %v7603
    %7605 = vmatmul.bf16.gmra.mxu0 %v7461
    %v7606 = vpop.f32.mrf.mxu0
    %v7607 = vadd.f32 0.0, %v7606
    %v7608 = vpop.f32.mrf.mxu0
    %v7609 = vadd.f32 0.0, %v7608
    %7610 = vmatmul.bf16.gmra.mxu0 %v7464
    %v7611 = vpop.f32.mrf.mxu0
    %v7612 = vadd.f32 0.0, %v7611
    %v7613 = vpop.f32.mrf.mxu0
    %v7614 = vadd.f32 0.0, %v7613
    %7615 = vmatmul.bf16.gmra.mxu0 %v7467
    %v7616 = vpop.f32.mrf.mxu0
    %v7617 = vadd.f32 0.0, %v7616
    %v7618 = vpop.f32.mrf.mxu0
    %v7619 = vadd.f32 0.0, %v7618
    %7620 = vmatmul.bf16.gmra.mxu0 %v7470
    %v7621 = vpop.f32.mrf.mxu0
    %v7622 = vadd.f32 0.0, %v7621
    %v7623 = vpop.f32.mrf.mxu0
    %v7624 = vadd.f32 0.0, %v7623
    %7625 = vmatmul.bf16.gmra.mxu0 %v7473
    %v7626 = vpop.f32.mrf.mxu0
    %v7627 = vadd.f32 0.0, %v7626
    %v7628 = vpop.f32.mrf.mxu0
    %v7629 = vadd.f32 0.0, %v7628
    %7630 = vmatmul.bf16.gmra.mxu0 %v7476
    %v7631 = vpop.f32.mrf.mxu0
    %v7632 = vadd.f32 0.0, %v7631
    %v7633 = vpop.f32.mrf.mxu0
    %v7634 = vadd.f32 0.0, %v7633
    %7635 = vmatmul.bf16.gmra.mxu0 %v7479
    %v7636 = vpop.f32.mrf.mxu0
    %v7637 = vadd.f32 0.0, %v7636
    %v7638 = vpop.f32.mrf.mxu0
    %v7639 = vadd.f32 0.0, %v7638
    %7640 = vmatmul.bf16.gmra.mxu0 %v7482
    %v7641 = vpop.f32.mrf.mxu0
    %v7642 = vadd.f32 0.0, %v7641
    %v7643 = vpop.f32.mrf.mxu0
    %v7644 = vadd.f32 0.0, %v7643
    %7645 = vmatmul.bf16.gmra.mxu0 %v7485
    %v7646 = vpop.f32.mrf.mxu0
    %v7647 = vadd.f32 0.0, %v7646
    %v7648 = vpop.f32.mrf.mxu0
    %v7649 = vadd.f32 0.0, %v7648
    %7650 = vmatmul.bf16.gmra.mxu0 %v7488
    %v7651 = vpop.f32.mrf.mxu0
    %v7652 = vadd.f32 0.0, %v7651
    %v7653 = vpop.f32.mrf.mxu0
    %v7654 = vadd.f32 0.0, %v7653
    %7655 = vmatmul.bf16.gmra.mxu0 %v7491
    %v7656 = vpop.f32.mrf.mxu0
    %v7657 = vadd.f32 0.0, %v7656
    %v7658 = vpop.f32.mrf.mxu0
    %v7659 = vadd.f32 0.0, %v7658
    %7660 = vmatmul.bf16.gmra.mxu0 %v7494
    %v7661 = vpop.f32.mrf.mxu0
    %v7662 = vadd.f32 0.0, %v7661
    %v7663 = vpop.f32.mrf.mxu0
    %v7664 = vadd.f32 0.0, %v7663
    %7665 = vmatmul.bf16.gmra.mxu0 %v7497
    %v7666 = vpop.f32.mrf.mxu0
    %v7667 = vadd.f32 0.0, %v7666
    %v7668 = vpop.f32.mrf.mxu0
    %v7669 = vadd.f32 0.0, %v7668
    %7670 = vmatmul.bf16.gmra.mxu0 %v7500
    %v7671 = vpop.f32.mrf.mxu0
    %v7672 = vadd.f32 0.0, %v7671
    %v7673 = vpop.f32.mrf.mxu0
    %v7674 = vadd.f32 0.0, %v7673
    %7675 = vmatmul.bf16.gmra.mxu0 %v7503
    %v7676 = vpop.f32.mrf.mxu0
    %v7677 = vadd.f32 0.0, %v7676
    %v7678 = vpop.f32.mrf.mxu0
    %v7679 = vadd.f32 0.0, %v7678
    %7680 = vdwg.mxu0
    %7681 = vmatpush.bf16.msra.mxu0 0
    %7682 = vmatpush.bf16.msra.mxu0 0
    %7683 = vmatpush.bf16.msra.mxu0 0
    %7684 = vmatpush.bf16.msra.mxu0 0
    %7685 = vmatpush.bf16.msra.mxu0 0
    %7686 = vmatpush.bf16.msra.mxu0 %v7510
    %7687 = vmatpush.bf16.msra.mxu0 %v7401
    %7688 = vmatpush.bf16.msra.mxu0 %v7399
    %7689 = vmatmul.bf16.gmra.mxu0 %v7410
    %v7690 = vpop.f32.mrf.mxu0
    %v7691 = vadd.f32 0.0, %v7690
    %v7692 = vpop.f32.mrf.mxu0
    %v7693 = vadd.f32 0.0, %v7692
    %7694 = vmatmul.bf16.gmra.mxu0 %v7413
    %v7695 = vpop.f32.mrf.mxu0
    %v7696 = vadd.f32 0.0, %v7695
    %v7697 = vpop.f32.mrf.mxu0
    %v7698 = vadd.f32 0.0, %v7697
    %7699 = vmatmul.bf16.gmra.mxu0 %v7416
    %v7700 = vpop.f32.mrf.mxu0
    %v7701 = vadd.f32 0.0, %v7700
    %v7702 = vpop.f32.mrf.mxu0
    %v7703 = vadd.f32 0.0, %v7702
    %7704 = vmatmul.bf16.gmra.mxu0 %v7419
    %v7705 = vpop.f32.mrf.mxu0
    %v7706 = vadd.f32 0.0, %v7705
    %v7707 = vpop.f32.mrf.mxu0
    %v7708 = vadd.f32 0.0, %v7707
    %7709 = vmatmul.bf16.gmra.mxu0 %v7422
    %v7710 = vpop.f32.mrf.mxu0
    %v7711 = vadd.f32 0.0, %v7710
    %v7712 = vpop.f32.mrf.mxu0
    %v7713 = vadd.f32 0.0, %v7712
    %7714 = vmatmul.bf16.gmra.mxu0 %v7425
    %v7715 = vpop.f32.mrf.mxu0
    %v7716 = vadd.f32 0.0, %v7715
    %v7717 = vpop.f32.mrf.mxu0
    %v7718 = vadd.f32 0.0, %v7717
    %7719 = vmatmul.bf16.gmra.mxu0 %v7428
    %v7720 = vpop.f32.mrf.mxu0
    %v7721 = vadd.f32 0.0, %v7720
    %v7722 = vpop.f32.mrf.mxu0
    %v7723 = vadd.f32 0.0, %v7722
    %7724 = vmatmul.bf16.gmra.mxu0 %v7431
    %v7725 = vpop.f32.mrf.mxu0
    %v7726 = vadd.f32 0.0, %v7725
    %v7727 = vpop.f32.mrf.mxu0
    %v7728 = vadd.f32 0.0, %v7727
    %7729 = vmatmul.bf16.gmra.mxu0 %v7434
    %v7730 = vpop.f32.mrf.mxu0
    %v7731 = vadd.f32 0.0, %v7730
    %v7732 = vpop.f32.mrf.mxu0
    %v7733 = vadd.f32 0.0, %v7732
    %7734 = vmatmul.bf16.gmra.mxu0 %v7437
    %v7735 = vpop.f32.mrf.mxu0
    %v7736 = vadd.f32 0.0, %v7735
    %v7737 = vpop.f32.mrf.mxu0
    %v7738 = vadd.f32 0.0, %v7737
    %7739 = vmatmul.bf16.gmra.mxu0 %v7440
    %v7740 = vpop.f32.mrf.mxu0
    %v7741 = vadd.f32 0.0, %v7740
    %v7742 = vpop.f32.mrf.mxu0
    %v7743 = vadd.f32 0.0, %v7742
    %7744 = vmatmul.bf16.gmra.mxu0 %v7443
    %v7745 = vpop.f32.mrf.mxu0
    %v7746 = vadd.f32 0.0, %v7745
    %v7747 = vpop.f32.mrf.mxu0
    %v7748 = vadd.f32 0.0, %v7747
    %7749 = vmatmul.bf16.gmra.mxu0 %v7446
    %v7750 = vpop.f32.mrf.mxu0
    %v7751 = vadd.f32 0.0, %v7750
    %v7752 = vpop.f32.mrf.mxu0
    %v7753 = vadd.f32 0.0, %v7752
    %7754 = vmatmul.bf16.gmra.mxu0 %v7449
    %v7755 = vpop.f32.mrf.mxu0
    %v7756 = vadd.f32 0.0, %v7755
    %v7757 = vpop.f32.mrf.mxu0
    %v7758 = vadd.f32 0.0, %v7757
    %7759 = vmatmul.bf16.gmra.mxu0 %v7452
    %v7760 = vpop.f32.mrf.mxu0
    %v7761 = vadd.f32 0.0, %v7760
    %v7762 = vpop.f32.mrf.mxu0
    %v7763 = vadd.f32 0.0, %v7762
    %7764 = vmatmul.bf16.gmra.mxu0 %v7455
    %v7765 = vpop.f32.mrf.mxu0
    %v7766 = vadd.f32 0.0, %v7765
    %v7767 = vpop.f32.mrf.mxu0
    %v7768 = vadd.f32 0.0, %v7767
    %7769 = vmatmul.bf16.gmra.mxu0 %v7458
    %v7770 = vpop.f32.mrf.mxu0
    %v7771 = vadd.f32 0.0, %v7770
    %v7772 = vpop.f32.mrf.mxu0
    %v7773 = vadd.f32 0.0, %v7772
    %7774 = vmatmul.bf16.gmra.mxu0 %v7461
    %v7775 = vpop.f32.mrf.mxu0
    %v7776 = vadd.f32 0.0, %v7775
    %v7777 = vpop.f32.mrf.mxu0
    %v7778 = vadd.f32 0.0, %v7777
    %7779 = vmatmul.bf16.gmra.mxu0 %v7464
    %v7780 = vpop.f32.mrf.mxu0
    %v7781 = vadd.f32 0.0, %v7780
    %v7782 = vpop.f32.mrf.mxu0
    %v7783 = vadd.f32 0.0, %v7782
    %7784 = vmatmul.bf16.gmra.mxu0 %v7467
    %v7785 = vpop.f32.mrf.mxu0
    %v7786 = vadd.f32 0.0, %v7785
    %v7787 = vpop.f32.mrf.mxu0
    %v7788 = vadd.f32 0.0, %v7787
    %7789 = vmatmul.bf16.gmra.mxu0 %v7470
    %v7790 = vpop.f32.mrf.mxu0
    %v7791 = vadd.f32 0.0, %v7790
    %v7792 = vpop.f32.mrf.mxu0
    %v7793 = vadd.f32 0.0, %v7792
    %7794 = vmatmul.bf16.gmra.mxu0 %v7473
    %v7795 = vpop.f32.mrf.mxu0
    %v7796 = vadd.f32 0.0, %v7795
    %v7797 = vpop.f32.mrf.mxu0
    %v7798 = vadd.f32 0.0, %v7797
    %7799 = vmatmul.bf16.gmra.mxu0 %v7476
    %v7800 = vpop.f32.mrf.mxu0
    %v7801 = vadd.f32 0.0, %v7800
    %v7802 = vpop.f32.mrf.mxu0
    %v7803 = vadd.f32 0.0, %v7802
    %7804 = vmatmul.bf16.gmra.mxu0 %v7479
    %v7805 = vpop.f32.mrf.mxu0
    %v7806 = vadd.f32 0.0, %v7805
    %v7807 = vpop.f32.mrf.mxu0
    %v7808 = vadd.f32 0.0, %v7807
    %7809 = vmatmul.bf16.gmra.mxu0 %v7482
    %v7810 = vpop.f32.mrf.mxu0
    %v7811 = vadd.f32 0.0, %v7810
    %v7812 = vpop.f32.mrf.mxu0
    %v7813 = vadd.f32 0.0, %v7812
    %7814 = vmatmul.bf16.gmra.mxu0 %v7485
    %v7815 = vpop.f32.mrf.mxu0
    %v7816 = vadd.f32 0.0, %v7815
    %v7817 = vpop.f32.mrf.mxu0
    %v7818 = vadd.f32 0.0, %v7817
    %7819 = vmatmul.bf16.gmra.mxu0 %v7488
    %v7820 = vpop.f32.mrf.mxu0
    %v7821 = vadd.f32 0.0, %v7820
    %v7822 = vpop.f32.mrf.mxu0
    %v7823 = vadd.f32 0.0, %v7822
    %7824 = vmatmul.bf16.gmra.mxu0 %v7491
    %v7825 = vpop.f32.mrf.mxu0
    %v7826 = vadd.f32 0.0, %v7825
    %v7827 = vpop.f32.mrf.mxu0
    %v7828 = vadd.f32 0.0, %v7827
    %7829 = vmatmul.bf16.gmra.mxu0 %v7494
    %v7830 = vpop.f32.mrf.mxu0
    %v7831 = vadd.f32 0.0, %v7830
    %v7832 = vpop.f32.mrf.mxu0
    %v7833 = vadd.f32 0.0, %v7832
    %7834 = vmatmul.bf16.gmra.mxu0 %v7497
    %v7835 = vpop.f32.mrf.mxu0
    %v7836 = vadd.f32 0.0, %v7835
    %v7837 = vpop.f32.mrf.mxu0
    %v7838 = vadd.f32 0.0, %v7837
    %7839 = vmatmul.bf16.gmra.mxu0 %v7500
    %v7840 = vpop.f32.mrf.mxu0
    %v7841 = vadd.f32 0.0, %v7840
    %v7842 = vpop.f32.mrf.mxu0
    %v7843 = vadd.f32 0.0, %v7842
    %7844 = vmatmul.bf16.gmra.mxu0 %v7503
    %v7845 = vpop.f32.mrf.mxu0
    %v7846 = vadd.f32 0.0, %v7845
    %v7847 = vpop.f32.mrf.mxu0
    %v7848 = vadd.f32 0.0, %v7847
    %7849 = vdwg.mxu0
    %v7850 = vadd.f32 %v7522, %v7524
    %v7851 = vadd.f32 %v7850, %v7527
    %v7852 = vadd.f32 %v7851, %v7529
    %v7853 = vadd.f32 %v7852, %v7532
    %v7854 = vadd.f32 %v7853, %v7534
    %v7855 = vadd.f32 %v7854, %v7537
    %v7856 = vadd.f32 %v7855, %v7539
    %v7857 = vadd.f32 %v7856, %v7542
    %v7858 = vadd.f32 %v7857, %v7544
    %v7859 = vadd.f32 %v7858, %v7547
    %v7860 = vadd.f32 %v7859, %v7549
    %v7861 = vadd.f32 %v7860, %v7552
    %v7862 = vadd.f32 %v7861, %v7554
    %v7863 = vadd.f32 %v7862, %v7557
    %v7864 = vadd.f32 %v7863, %v7559
    %v7865 = vadd.f32 %v7864, %v7562
    %v7866 = vadd.f32 %v7865, %v7564
    %v7867 = vadd.f32 %v7866, %v7567
    %v7868 = vadd.f32 %v7867, %v7569
    %v7869 = vadd.f32 %v7868, %v7572
    %v7870 = vadd.f32 %v7869, %v7574
    %v7871 = vadd.f32 %v7870, %v7577
    %v7872 = vadd.f32 %v7871, %v7579
    %v7873 = vadd.f32 %v7872, %v7582
    %v7874 = vadd.f32 %v7873, %v7584
    %v7875 = vadd.f32 %v7874, %v7587
    %v7876 = vadd.f32 %v7875, %v7589
    %v7877 = vadd.f32 %v7876, %v7592
    %v7878 = vadd.f32 %v7877, %v7594
    %v7879 = vadd.f32 %v7878, %v7597
    %v7880 = vadd.f32 %v7879, %v7599
    %v7881 = vadd.f32 %v7880, %v7602
    %v7882 = vadd.f32 %v7881, %v7604
    %v7883 = vadd.f32 %v7882, %v7607
    %v7884 = vadd.f32 %v7883, %v7609
    %v7885 = vadd.f32 %v7884, %v7612
    %v7886 = vadd.f32 %v7885, %v7614
    %v7887 = vadd.f32 %v7886, %v7617
    %v7888 = vadd.f32 %v7887, %v7619
    %v7889 = vadd.f32 %v7888, %v7622
    %v7890 = vadd.f32 %v7889, %v7624
    %v7891 = vadd.f32 %v7890, %v7627
    %v7892 = vadd.f32 %v7891, %v7629
    %v7893 = vadd.f32 %v7892, %v7632
    %v7894 = vadd.f32 %v7893, %v7634
    %v7895 = vadd.f32 %v7894, %v7637
    %v7896 = vadd.f32 %v7895, %v7639
    %v7897 = vadd.f32 %v7896, %v7642
    %v7898 = vadd.f32 %v7897, %v7644
    %v7899 = vadd.f32 %v7898, %v7647
    %v7900 = vadd.f32 %v7899, %v7649
    %v7901 = vadd.f32 %v7900, %v7652
    %v7902 = vadd.f32 %v7901, %v7654
    %v7903 = vadd.f32 %v7902, %v7657
    %v7904 = vadd.f32 %v7903, %v7659
    %v7905 = vadd.f32 %v7904, %v7662
    %v7906 = vadd.f32 %v7905, %v7664
    %v7907 = vadd.f32 %v7906, %v7667
    %v7908 = vadd.f32 %v7907, %v7669
    %v7909 = vadd.f32 %v7908, %v7672
    %v7910 = vadd.f32 %v7909, %v7674
    %v7911 = vadd.f32 %v7910, %v7677
    %v7912 = vadd.f32 %v7911, %v7679
    %v7913 = vrot.slane %v7912, 4
    %v7914 = vadd.f32 %v7912, %v7913
    %v7915 = vrot.slane %v7914, 2
    %v7916 = vadd.f32 %v7914, %v7915
    %v7917 = vrot.slane %v7916, 1
    %v7918 = vadd.f32 %v7916, %v7917
    %v7919 = vadd.f32 %v7691, %v7693
    %v7920 = vadd.f32 %v7919, %v7696
    %v7921 = vadd.f32 %v7920, %v7698
    %v7922 = vadd.f32 %v7921, %v7701
    %v7923 = vadd.f32 %v7922, %v7703
    %v7924 = vadd.f32 %v7923, %v7706
    %v7925 = vadd.f32 %v7924, %v7708
    %v7926 = vadd.f32 %v7925, %v7711
    %v7927 = vadd.f32 %v7926, %v7713
    %v7928 = vadd.f32 %v7927, %v7716
    %v7929 = vadd.f32 %v7928, %v7718
    %v7930 = vadd.f32 %v7929, %v7721
    %v7931 = vadd.f32 %v7930, %v7723
    %v7932 = vadd.f32 %v7931, %v7726
    %v7933 = vadd.f32 %v7932, %v7728
    %v7934 = vadd.f32 %v7933, %v7731
    %v7935 = vadd.f32 %v7934, %v7733
    %v7936 = vadd.f32 %v7935, %v7736
    %v7937 = vadd.f32 %v7936, %v7738
    %v7938 = vadd.f32 %v7937, %v7741
    %v7939 = vadd.f32 %v7938, %v7743
    %v7940 = vadd.f32 %v7939, %v7746
    %v7941 = vadd.f32 %v7940, %v7748
    %v7942 = vadd.f32 %v7941, %v7751
    %v7943 = vadd.f32 %v7942, %v7753
    %v7944 = vadd.f32 %v7943, %v7756
    %v7945 = vadd.f32 %v7944, %v7758
    %v7946 = vadd.f32 %v7945, %v7761
    %v7947 = vadd.f32 %v7946, %v7763
    %v7948 = vadd.f32 %v7947, %v7766
    %v7949 = vadd.f32 %v7948, %v7768
    %v7950 = vadd.f32 %v7949, %v7771
    %v7951 = vadd.f32 %v7950, %v7773
    %v7952 = vadd.f32 %v7951, %v7776
    %v7953 = vadd.f32 %v7952, %v7778
    %v7954 = vadd.f32 %v7953, %v7781
    %v7955 = vadd.f32 %v7954, %v7783
    %v7956 = vadd.f32 %v7955, %v7786
    %v7957 = vadd.f32 %v7956, %v7788
    %v7958 = vadd.f32 %v7957, %v7791
    %v7959 = vadd.f32 %v7958, %v7793
    %v7960 = vadd.f32 %v7959, %v7796
    %v7961 = vadd.f32 %v7960, %v7798
    %v7962 = vadd.f32 %v7961, %v7801
    %v7963 = vadd.f32 %v7962, %v7803
    %v7964 = vadd.f32 %v7963, %v7806
    %v7965 = vadd.f32 %v7964, %v7808
    %v7966 = vadd.f32 %v7965, %v7811
    %v7967 = vadd.f32 %v7966, %v7813
    %v7968 = vadd.f32 %v7967, %v7816
    %v7969 = vadd.f32 %v7968, %v7818
    %v7970 = vadd.f32 %v7969, %v7821
    %v7971 = vadd.f32 %v7970, %v7823
    %v7972 = vadd.f32 %v7971, %v7826
    %v7973 = vadd.f32 %v7972, %v7828
    %v7974 = vadd.f32 %v7973, %v7831
    %v7975 = vadd.f32 %v7974, %v7833
    %v7976 = vadd.f32 %v7975, %v7836
    %v7977 = vadd.f32 %v7976, %v7838
    %v7978 = vadd.f32 %v7977, %v7841
    %v7979 = vadd.f32 %v7978, %v7843
    %v7980 = vadd.f32 %v7979, %v7846
    %v7981 = vadd.f32 %v7980, %v7848
    %v7982 = vrot.slane %v7981, 4
    %v7983 = vadd.f32 %v7981, %v7982
    %v7984 = vrot.slane %v7983, 2
    %v7985 = vadd.f32 %v7983, %v7984
    %v7986 = vrot.slane %v7985, 1
    %v7987 = vadd.f32 %v7985, %v7986
    %v7988 = vmul.f32 %v7522, %v7522
    %v7989 = vmul.f32 %v7691, %v7691
    %v7990 = vmul.f32 %v7524, %v7524
    %v7991 = vmul.f32 %v7693, %v7693
    %v7992 = vmul.f32 %v7527, %v7527
    %v7993 = vmul.f32 %v7696, %v7696
    %v7994 = vmul.f32 %v7529, %v7529
    %v7995 = vmul.f32 %v7698, %v7698
    %v7996 = vmul.f32 %v7532, %v7532
    %v7997 = vmul.f32 %v7701, %v7701
    %v7998 = vmul.f32 %v7534, %v7534
    %v7999 = vmul.f32 %v7703, %v7703
    %v8000 = vmul.f32 %v7537, %v7537
    %v8001 = vmul.f32 %v7706, %v7706
    %v8002 = vmul.f32 %v7539, %v7539
    %v8003 = vmul.f32 %v7708, %v7708
    %v8004 = vmul.f32 %v7542, %v7542
    %v8005 = vmul.f32 %v7711, %v7711
    %v8006 = vmul.f32 %v7544, %v7544
    %v8007 = vmul.f32 %v7713, %v7713
    %v8008 = vmul.f32 %v7547, %v7547
    %v8009 = vmul.f32 %v7716, %v7716
    %v8010 = vmul.f32 %v7549, %v7549
    %v8011 = vmul.f32 %v7718, %v7718
    %v8012 = vmul.f32 %v7552, %v7552
    %v8013 = vmul.f32 %v7721, %v7721
    %v8014 = vmul.f32 %v7554, %v7554
    %v8015 = vmul.f32 %v7723, %v7723
    %v8016 = vmul.f32 %v7557, %v7557
    %v8017 = vmul.f32 %v7726, %v7726
    %v8018 = vmul.f32 %v7559, %v7559
    %v8019 = vmul.f32 %v7728, %v7728
    %v8020 = vmul.f32 %v7562, %v7562
    %v8021 = vmul.f32 %v7731, %v7731
    %v8022 = vmul.f32 %v7564, %v7564
    %v8023 = vmul.f32 %v7733, %v7733
    %v8024 = vmul.f32 %v7567, %v7567
    %v8025 = vmul.f32 %v7736, %v7736
    %v8026 = vmul.f32 %v7569, %v7569
    %v8027 = vmul.f32 %v7738, %v7738
    %v8028 = vmul.f32 %v7572, %v7572
    %v8029 = vmul.f32 %v7741, %v7741
    %v8030 = vmul.f32 %v7574, %v7574
    %v8031 = vmul.f32 %v7743, %v7743
    %v8032 = vmul.f32 %v7577, %v7577
    %v8033 = vmul.f32 %v7746, %v7746
    %v8034 = vmul.f32 %v7579, %v7579
    %v8035 = vmul.f32 %v7748, %v7748
    %v8036 = vmul.f32 %v7582, %v7582
    %v8037 = vmul.f32 %v7751, %v7751
    %v8038 = vmul.f32 %v7584, %v7584
    %v8039 = vmul.f32 %v7753, %v7753
    %v8040 = vmul.f32 %v7587, %v7587
    %v8041 = vmul.f32 %v7756, %v7756
    %v8042 = vmul.f32 %v7589, %v7589
    %v8043 = vmul.f32 %v7758, %v7758
    %v8044 = vmul.f32 %v7592, %v7592
    %v8045 = vmul.f32 %v7761, %v7761
    %v8046 = vmul.f32 %v7594, %v7594
    %v8047 = vmul.f32 %v7763, %v7763
    %v8048 = vmul.f32 %v7597, %v7597
    %v8049 = vmul.f32 %v7766, %v7766
    %v8050 = vmul.f32 %v7599, %v7599
    %v8051 = vmul.f32 %v7768, %v7768
    %v8052 = vmul.f32 %v7602, %v7602
    %v8053 = vmul.f32 %v7771, %v7771
    %v8054 = vmul.f32 %v7604, %v7604
    %v8055 = vmul.f32 %v7773, %v7773
    %v8056 = vmul.f32 %v7607, %v7607
    %v8057 = vmul.f32 %v7776, %v7776
    %v8058 = vmul.f32 %v7609, %v7609
    %v8059 = vmul.f32 %v7778, %v7778
    %v8060 = vmul.f32 %v7612, %v7612
    %v8061 = vmul.f32 %v7781, %v7781
    %v8062 = vmul.f32 %v7614, %v7614
    %v8063 = vmul.f32 %v7783, %v7783
    %v8064 = vmul.f32 %v7617, %v7617
    %v8065 = vmul.f32 %v7786, %v7786
    %v8066 = vmul.f32 %v7619, %v7619
    %v8067 = vmul.f32 %v7788, %v7788
    %v8068 = vmul.f32 %v7622, %v7622
    %v8069 = vmul.f32 %v7791, %v7791
    %v8070 = vmul.f32 %v7624, %v7624
    %v8071 = vmul.f32 %v7793, %v7793
    %v8072 = vmul.f32 %v7627, %v7627
    %v8073 = vmul.f32 %v7796, %v7796
    %v8074 = vmul.f32 %v7629, %v7629
    %v8075 = vmul.f32 %v7798, %v7798
    %v8076 = vmul.f32 %v7632, %v7632
    %v8077 = vmul.f32 %v7801, %v7801
    %v8078 = vmul.f32 %v7634, %v7634
    %v8079 = vmul.f32 %v7803, %v7803
    %v8080 = vmul.f32 %v7637, %v7637
    %v8081 = vmul.f32 %v7806, %v7806
    %v8082 = vmul.f32 %v7639, %v7639
    %v8083 = vmul.f32 %v7808, %v7808
    %v8084 = vmul.f32 %v7642, %v7642
    %v8085 = vmul.f32 %v7811, %v7811
    %v8086 = vmul.f32 %v7644, %v7644
    %v8087 = vmul.f32 %v7813, %v7813
    %v8088 = vmul.f32 %v7647, %v7647
    %v8089 = vmul.f32 %v7816, %v7816
    %v8090 = vmul.f32 %v7649, %v7649
    %v8091 = vmul.f32 %v7818, %v7818
    %v8092 = vmul.f32 %v7652, %v7652
    %v8093 = vmul.f32 %v7821, %v7821
    %v8094 = vmul.f32 %v7654, %v7654
    %v8095 = vmul.f32 %v7823, %v7823
    %v8096 = vmul.f32 %v7657, %v7657
    %v8097 = vmul.f32 %v7826, %v7826
    %v8098 = vmul.f32 %v7659, %v7659
    %v8099 = vmul.f32 %v7828, %v7828
    %v8100 = vmul.f32 %v7662, %v7662
    %v8101 = vmul.f32 %v7831, %v7831
    %v8102 = vmul.f32 %v7664, %v7664
    %v8103 = vmul.f32 %v7833, %v7833
    %v8104 = vmul.f32 %v7667, %v7667
    %v8105 = vmul.f32 %v7836, %v7836
    %v8106 = vmul.f32 %v7669, %v7669
    %v8107 = vmul.f32 %v7838, %v7838
    %v8108 = vmul.f32 %v7672, %v7672
    %v8109 = vmul.f32 %v7841, %v7841
    %v8110 = vmul.f32 %v7674, %v7674
    %v8111 = vmul.f32 %v7843, %v7843
    %v8112 = vmul.f32 %v7677, %v7677
    %v8113 = vmul.f32 %v7846, %v7846
    %v8114 = vmul.f32 %v7679, %v7679
    %v8115 = vmul.f32 %v7848, %v7848
    %v8116 = vadd.f32 %v7988, %v7990
    %v8117 = vadd.f32 %v8116, %v7992
    %v8118 = vadd.f32 %v8117, %v7994
    %v8119 = vadd.f32 %v8118, %v7996
    %v8120 = vadd.f32 %v8119, %v7998
    %v8121 = vadd.f32 %v8120, %v8000
    %v8122 = vadd.f32 %v8121, %v8002
    %v8123 = vadd.f32 %v8122, %v8004
    %v8124 = vadd.f32 %v8123, %v8006
    %v8125 = vadd.f32 %v8124, %v8008
    %v8126 = vadd.f32 %v8125, %v8010
    %v8127 = vadd.f32 %v8126, %v8012
    %v8128 = vadd.f32 %v8127, %v8014
    %v8129 = vadd.f32 %v8128, %v8016
    %v8130 = vadd.f32 %v8129, %v8018
    %v8131 = vadd.f32 %v8130, %v8020
    %v8132 = vadd.f32 %v8131, %v8022
    %v8133 = vadd.f32 %v8132, %v8024
    %v8134 = vadd.f32 %v8133, %v8026
    %v8135 = vadd.f32 %v8134, %v8028
    %v8136 = vadd.f32 %v8135, %v8030
    %v8137 = vadd.f32 %v8136, %v8032
    %v8138 = vadd.f32 %v8137, %v8034
    %v8139 = vadd.f32 %v8138, %v8036
    %v8140 = vadd.f32 %v8139, %v8038
    %v8141 = vadd.f32 %v8140, %v8040
    %v8142 = vadd.f32 %v8141, %v8042
    %v8143 = vadd.f32 %v8142, %v8044
    %v8144 = vadd.f32 %v8143, %v8046
    %v8145 = vadd.f32 %v8144, %v8048
    %v8146 = vadd.f32 %v8145, %v8050
    %v8147 = vadd.f32 %v8146, %v8052
    %v8148 = vadd.f32 %v8147, %v8054
    %v8149 = vadd.f32 %v8148, %v8056
    %v8150 = vadd.f32 %v8149, %v8058
    %v8151 = vadd.f32 %v8150, %v8060
    %v8152 = vadd.f32 %v8151, %v8062
    %v8153 = vadd.f32 %v8152, %v8064
    %v8154 = vadd.f32 %v8153, %v8066
    %v8155 = vadd.f32 %v8154, %v8068
    %v8156 = vadd.f32 %v8155, %v8070
    %v8157 = vadd.f32 %v8156, %v8072
    %v8158 = vadd.f32 %v8157, %v8074
    %v8159 = vadd.f32 %v8158, %v8076
    %v8160 = vadd.f32 %v8159, %v8078
    %v8161 = vadd.f32 %v8160, %v8080
    %v8162 = vadd.f32 %v8161, %v8082
    %v8163 = vadd.f32 %v8162, %v8084
    %v8164 = vadd.f32 %v8163, %v8086
    %v8165 = vadd.f32 %v8164, %v8088
    %v8166 = vadd.f32 %v8165, %v8090
    %v8167 = vadd.f32 %v8166, %v8092
    %v8168 = vadd.f32 %v8167, %v8094
    %v8169 = vadd.f32 %v8168, %v8096
    %v8170 = vadd.f32 %v8169, %v8098
    %v8171 = vadd.f32 %v8170, %v8100
    %v8172 = vadd.f32 %v8171, %v8102
    %v8173 = vadd.f32 %v8172, %v8104
    %v8174 = vadd.f32 %v8173, %v8106
    %v8175 = vadd.f32 %v8174, %v8108
    %v8176 = vadd.f32 %v8175, %v8110
    %v8177 = vadd.f32 %v8176, %v8112
    %v8178 = vadd.f32 %v8177, %v8114
    %v8179 = vrot.slane %v8178, 4
    %v8180 = vadd.f32 %v8178, %v8179
    %v8181 = vrot.slane %v8180, 2
    %v8182 = vadd.f32 %v8180, %v8181
    %v8183 = vrot.slane %v8182, 1
    %v8184 = vadd.f32 %v8182, %v8183
    %v8185 = vadd.f32 %v7989, %v7991
    %v8186 = vadd.f32 %v8185, %v7993
    %v8187 = vadd.f32 %v8186, %v7995
    %v8188 = vadd.f32 %v8187, %v7997
    %v8189 = vadd.f32 %v8188, %v7999
    %v8190 = vadd.f32 %v8189, %v8001
    %v8191 = vadd.f32 %v8190, %v8003
    %v8192 = vadd.f32 %v8191, %v8005
    %v8193 = vadd.f32 %v8192, %v8007
    %v8194 = vadd.f32 %v8193, %v8009
    %v8195 = vadd.f32 %v8194, %v8011
    %v8196 = vadd.f32 %v8195, %v8013
    %v8197 = vadd.f32 %v8196, %v8015
    %v8198 = vadd.f32 %v8197, %v8017
    %v8199 = vadd.f32 %v8198, %v8019
    %v8200 = vadd.f32 %v8199, %v8021
    %v8201 = vadd.f32 %v8200, %v8023
    %v8202 = vadd.f32 %v8201, %v8025
    %v8203 = vadd.f32 %v8202, %v8027
    %v8204 = vadd.f32 %v8203, %v8029
    %v8205 = vadd.f32 %v8204, %v8031
    %v8206 = vadd.f32 %v8205, %v8033
    %v8207 = vadd.f32 %v8206, %v8035
    %v8208 = vadd.f32 %v8207, %v8037
    %v8209 = vadd.f32 %v8208, %v8039
    %v8210 = vadd.f32 %v8209, %v8041
    %v8211 = vadd.f32 %v8210, %v8043
    %v8212 = vadd.f32 %v8211, %v8045
    %v8213 = vadd.f32 %v8212, %v8047
    %v8214 = vadd.f32 %v8213, %v8049
    %v8215 = vadd.f32 %v8214, %v8051
    %v8216 = vadd.f32 %v8215, %v8053
    %v8217 = vadd.f32 %v8216, %v8055
    %v8218 = vadd.f32 %v8217, %v8057
    %v8219 = vadd.f32 %v8218, %v8059
    %v8220 = vadd.f32 %v8219, %v8061
    %v8221 = vadd.f32 %v8220, %v8063
    %v8222 = vadd.f32 %v8221, %v8065
    %v8223 = vadd.f32 %v8222, %v8067
    %v8224 = vadd.f32 %v8223, %v8069
    %v8225 = vadd.f32 %v8224, %v8071
    %v8226 = vadd.f32 %v8225, %v8073
    %v8227 = vadd.f32 %v8226, %v8075
    %v8228 = vadd.f32 %v8227, %v8077
    %v8229 = vadd.f32 %v8228, %v8079
    %v8230 = vadd.f32 %v8229, %v8081
    %v8231 = vadd.f32 %v8230, %v8083
    %v8232 = vadd.f32 %v8231, %v8085
    %v8233 = vadd.f32 %v8232, %v8087
    %v8234 = vadd.f32 %v8233, %v8089
    %v8235 = vadd.f32 %v8234, %v8091
    %v8236 = vadd.f32 %v8235, %v8093
    %v8237 = vadd.f32 %v8236, %v8095
    %v8238 = vadd.f32 %v8237, %v8097
    %v8239 = vadd.f32 %v8238, %v8099
    %v8240 = vadd.f32 %v8239, %v8101
    %v8241 = vadd.f32 %v8240, %v8103
    %v8242 = vadd.f32 %v8241, %v8105
    %v8243 = vadd.f32 %v8242, %v8107
    %v8244 = vadd.f32 %v8243, %v8109
    %v8245 = vadd.f32 %v8244, %v8111
    %v8246 = vadd.f32 %v8245, %v8113
    %v8247 = vadd.f32 %v8246, %v8115
    %v8248 = vrot.slane %v8247, 4
    %v8249 = vadd.f32 %v8247, %v8248
    %v8250 = vrot.slane %v8249, 2
    %v8251 = vadd.f32 %v8249, %v8250
    %v8252 = vrot.slane %v8251, 1
    %v8253 = vadd.f32 %v8251, %v8252
    %vm8254 = vcmask 1040384
    %v8255 = vsel %vm8254, %v7918, %v8184
    %v8256 = vsel %vm8254, %v7987, %v8253
    %v8259 = vrot.slane %v8256, 6
    %v8260 = vsel %vm7505, %v8255, %v8259
    %8262 = vst [vmem:[#allocation8] sm:$0xf] %v8260
    %v8263 = vpack.c.bf16 %v7522, %v7522
    %v8264 = vpack.c.bf16 %v7524, %v7524
    %v8265 = vpack.c.bf16 %v7527, %v7527
    %v8266 = vpack.c.bf16 %v7529, %v7529
    %v8267 = vpack.c.bf16 %v7532, %v7532
    %v8268 = vpack.c.bf16 %v7534, %v7534
    %v8269 = vpack.c.bf16 %v7537, %v7537
    %v8270 = vpack.c.bf16 %v7539, %v7539
    %v8271 = vpack.c.bf16 %v7542, %v7542
    %v8272 = vpack.c.bf16 %v7544, %v7544
    %v8273 = vpack.c.bf16 %v7547, %v7547
    %v8274 = vpack.c.bf16 %v7549, %v7549
    %v8275 = vpack.c.bf16 %v7552, %v7552
    %v8276 = vpack.c.bf16 %v7554, %v7554
    %v8277 = vpack.c.bf16 %v7557, %v7557
    %v8278 = vpack.c.bf16 %v7559, %v7559
    %v8279 = vpack.c.bf16 %v7562, %v7562
    %v8280 = vpack.c.bf16 %v7564, %v7564
    %v8281 = vpack.c.bf16 %v7567, %v7567
    %v8282 = vpack.c.bf16 %v7569, %v7569
    %v8283 = vpack.c.bf16 %v7572, %v7572
    %v8284 = vpack.c.bf16 %v7574, %v7574
    %v8285 = vpack.c.bf16 %v7577, %v7577
    %v8286 = vpack.c.bf16 %v7579, %v7579
    %v8287 = vpack.c.bf16 %v7582, %v7582
    %v8288 = vpack.c.bf16 %v7584, %v7584
    %v8289 = vpack.c.bf16 %v7587, %v7587
    %v8290 = vpack.c.bf16 %v7589, %v7589
    %v8291 = vpack.c.bf16 %v7592, %v7592
    %v8292 = vpack.c.bf16 %v7594, %v7594
    %v8293 = vpack.c.bf16 %v7597, %v7597
    %v8294 = vpack.c.bf16 %v7599, %v7599
    %v8295 = vpack.c.bf16 %v7602, %v7602
    %v8296 = vpack.c.bf16 %v7604, %v7604
    %v8297 = vpack.c.bf16 %v7607, %v7607
    %v8298 = vpack.c.bf16 %v7609, %v7609
    %v8299 = vpack.c.bf16 %v7612, %v7612
    %v8300 = vpack.c.bf16 %v7614, %v7614
    %v8301 = vpack.c.bf16 %v7617, %v7617
    %v8302 = vpack.c.bf16 %v7619, %v7619
    %v8303 = vpack.c.bf16 %v7622, %v7622
    %v8304 = vpack.c.bf16 %v7624, %v7624
    %v8305 = vpack.c.bf16 %v7627, %v7627
    %v8306 = vpack.c.bf16 %v7629, %v7629
    %v8307 = vpack.c.bf16 %v7632, %v7632
    %v8308 = vpack.c.bf16 %v7634, %v7634
    %v8309 = vpack.c.bf16 %v7637, %v7637
    %v8310 = vpack.c.bf16 %v7639, %v7639
    %v8311 = vpack.c.bf16 %v7642, %v7642
    %v8312 = vpack.c.bf16 %v7644, %v7644
    %v8313 = vpack.c.bf16 %v7647, %v7647
    %v8314 = vpack.c.bf16 %v7649, %v7649
    %v8315 = vpack.c.bf16 %v7652, %v7652
    %v8316 = vpack.c.bf16 %v7654, %v7654
    %v8317 = vpack.c.bf16 %v7657, %v7657
    %v8318 = vpack.c.bf16 %v7659, %v7659
    %v8319 = vpack.c.bf16 %v7662, %v7662
    %v8320 = vpack.c.bf16 %v7664, %v7664
    %v8321 = vpack.c.bf16 %v7667, %v7667
    %v8322 = vpack.c.bf16 %v7669, %v7669
    %v8323 = vpack.c.bf16 %v7672, %v7672
    %v8324 = vpack.c.bf16 %v7674, %v7674
    %v8325 = vpack.c.bf16 %v7677, %v7677
    %v8326 = vpack.c.bf16 %v7679, %v7679
    %8327 = vst [vmem:[#allocation4] sm:$0xf] %v8263
    %8328 = vst [vmem:[#allocation4 + $0x4] sm:$0xf] %v8264
    %8329 = vst [vmem:[#allocation4 + $0x8] sm:$0xf] %v8265
    %8330 = vst [vmem:[#allocation4 + $0xc] sm:$0xf] %v8266
    %8331 = vst [vmem:[#allocation4 + $0x10] sm:$0xf] %v8267
    %8332 = vst [vmem:[#allocation4 + $0x14] sm:$0xf] %v8268
    %8333 = vst [vmem:[#allocation4 + $0x18] sm:$0xf] %v8269
    %8334 = vst [vmem:[#allocation4 + $0x1c] sm:$0xf] %v8270
    %8335 = vst [vmem:[#allocation4 + $0x20] sm:$0xf] %v8271
    %8336 = vst [vmem:[#allocation4 + $0x24] sm:$0xf] %v8272
    %8337 = vst [vmem:[#allocation4 + $0x28] sm:$0xf] %v8273
    %8338 = vst [vmem:[#allocation4 + $0x2c] sm:$0xf] %v8274
    %8339 = vst [vmem:[#allocation4 + $0x30] sm:$0xf] %v8275
    %8340 = vst [vmem:[#allocation4 + $0x34] sm:$0xf] %v8276
    %8341 = vst [vmem:[#allocation4 + $0x38] sm:$0xf] %v8277
    %8342 = vst [vmem:[#allocation4 + $0x3c] sm:$0xf] %v8278
    %8343 = vst [vmem:[#allocation4 + $0x40] sm:$0xf] %v8279
    %8344 = vst [vmem:[#allocation4 + $0x44] sm:$0xf] %v8280
    %8345 = vst [vmem:[#allocation4 + $0x48] sm:$0xf] %v8281
    %8346 = vst [vmem:[#allocation4 + $0x4c] sm:$0xf] %v8282
    %8347 = vst [vmem:[#allocation4 + $0x50] sm:$0xf] %v8283
    %8348 = vst [vmem:[#allocation4 + $0x54] sm:$0xf] %v8284
    %8349 = vst [vmem:[#allocation4 + $0x58] sm:$0xf] %v8285
    %8350 = vst [vmem:[#allocation4 + $0x5c] sm:$0xf] %v8286
    %8351 = vst [vmem:[#allocation4 + $0x60] sm:$0xf] %v8287
    %8352 = vst [vmem:[#allocation4 + $0x64] sm:$0xf] %v8288
    %8353 = vst [vmem:[#allocation4 + $0x68] sm:$0xf] %v8289
    %8354 = vst [vmem:[#allocation4 + $0x6c] sm:$0xf] %v8290
    %8355 = vst [vmem:[#allocation4 + $0x70] sm:$0xf] %v8291
    %8356 = vst [vmem:[#allocation4 + $0x74] sm:$0xf] %v8292
    %8357 = vst [vmem:[#allocation4 + $0x78] sm:$0xf] %v8293
    %8358 = vst [vmem:[#allocation4 + $0x7c] sm:$0xf] %v8294
    %8359 = vst [vmem:[#allocation4 + $0x80] sm:$0xf] %v8295
    %8360 = vst [vmem:[#allocation4 + $0x84] sm:$0xf] %v8296
    %8361 = vst [vmem:[#allocation4 + $0x88] sm:$0xf] %v8297
    %8362 = vst [vmem:[#allocation4 + $0x8c] sm:$0xf] %v8298
    %8363 = vst [vmem:[#allocation4 + $0x90] sm:$0xf] %v8299
    %8364 = vst [vmem:[#allocation4 + $0x94] sm:$0xf] %v8300
    %8365 = vst [vmem:[#allocation4 + $0x98] sm:$0xf] %v8301
    %8366 = vst [vmem:[#allocation4 + $0x9c] sm:$0xf] %v8302
    %8367 = vst [vmem:[#allocation4 + $0xa0] sm:$0xf] %v8303
    %8368 = vst [vmem:[#allocation4 + $0xa4] sm:$0xf] %v8304
    %8369 = vst [vmem:[#allocation4 + $0xa8] sm:$0xf] %v8305
    %8370 = vst [vmem:[#allocation4 + $0xac] sm:$0xf] %v8306
    %8371 = vst [vmem:[#allocation4 + $0xb0] sm:$0xf] %v8307
    %8372 = vst [vmem:[#allocation4 + $0xb4] sm:$0xf] %v8308
    %8373 = vst [vmem:[#allocation4 + $0xb8] sm:$0xf] %v8309
    %8374 = vst [vmem:[#allocation4 + $0xbc] sm:$0xf] %v8310
    %8375 = vst [vmem:[#allocation4 + $0xc0] sm:$0xf] %v8311
    %8376 = vst [vmem:[#allocation4 + $0xc4] sm:$0xf] %v8312
    %8377 = vst [vmem:[#allocation4 + $0xc8] sm:$0xf] %v8313
    %8378 = vst [vmem:[#allocation4 + $0xcc] sm:$0xf] %v8314
    %8379 = vst [vmem:[#allocation4 + $0xd0] sm:$0xf] %v8315
    %8380 = vst [vmem:[#allocation4 + $0xd4] sm:$0xf] %v8316
    %8381 = vst [vmem:[#allocation4 + $0xd8] sm:$0xf] %v8317
    %8382 = vst [vmem:[#allocation4 + $0xdc] sm:$0xf] %v8318
    %8383 = vst [vmem:[#allocation4 + $0xe0] sm:$0xf] %v8319
    %8384 = vst [vmem:[#allocation4 + $0xe4] sm:$0xf] %v8320
    %8385 = vst [vmem:[#allocation4 + $0xe8] sm:$0xf] %v8321
    %8386 = vst [vmem:[#allocation4 + $0xec] sm:$0xf] %v8322
    %8387 = vst [vmem:[#allocation4 + $0xf0] sm:$0xf] %v8323
    %8388 = vst [vmem:[#allocation4 + $0xf4] sm:$0xf] %v8324
    %8389 = vst [vmem:[#allocation4 + $0xf8] sm:$0xf] %v8325
    %8390 = vst [vmem:[#allocation4 + $0xfc] sm:$0xf] %v8326
    %v8391 = vpack.c.bf16 %v7691, %v7691
    %v8392 = vpack.c.bf16 %v7693, %v7693
    %v8393 = vpack.c.bf16 %v7696, %v7696
    %v8394 = vpack.c.bf16 %v7698, %v7698
    %v8395 = vpack.c.bf16 %v7701, %v7701
    %v8396 = vpack.c.bf16 %v7703, %v7703
    %v8397 = vpack.c.bf16 %v7706, %v7706
    %v8398 = vpack.c.bf16 %v7708, %v7708
    %v8399 = vpack.c.bf16 %v7711, %v7711
    %v8400 = vpack.c.bf16 %v7713, %v7713
    %v8401 = vpack.c.bf16 %v7716, %v7716
    %v8402 = vpack.c.bf16 %v7718, %v7718
    %v8403 = vpack.c.bf16 %v7721, %v7721
    %v8404 = vpack.c.bf16 %v7723, %v7723
    %v8405 = vpack.c.bf16 %v7726, %v7726
    %v8406 = vpack.c.bf16 %v7728, %v7728
    %v8407 = vpack.c.bf16 %v7731, %v7731
    %v8408 = vpack.c.bf16 %v7733, %v7733
    %v8409 = vpack.c.bf16 %v7736, %v7736
    %v8410 = vpack.c.bf16 %v7738, %v7738
    %v8411 = vpack.c.bf16 %v7741, %v7741
    %v8412 = vpack.c.bf16 %v7743, %v7743
    %v8413 = vpack.c.bf16 %v7746, %v7746
    %v8414 = vpack.c.bf16 %v7748, %v7748
    %v8415 = vpack.c.bf16 %v7751, %v7751
    %v8416 = vpack.c.bf16 %v7753, %v7753
    %v8417 = vpack.c.bf16 %v7756, %v7756
    %v8418 = vpack.c.bf16 %v7758, %v7758
    %v8419 = vpack.c.bf16 %v7761, %v7761
    %v8420 = vpack.c.bf16 %v7763, %v7763
    %v8421 = vpack.c.bf16 %v7766, %v7766
    %v8422 = vpack.c.bf16 %v7768, %v7768
    %v8423 = vpack.c.bf16 %v7771, %v7771
    %v8424 = vpack.c.bf16 %v7773, %v7773
    %v8425 = vpack.c.bf16 %v7776, %v7776
    %v8426 = vpack.c.bf16 %v7778, %v7778
    %v8427 = vpack.c.bf16 %v7781, %v7781
    %v8428 = vpack.c.bf16 %v7783, %v7783
    %v8429 = vpack.c.bf16 %v7786, %v7786
    %v8430 = vpack.c.bf16 %v7788, %v7788
    %v8431 = vpack.c.bf16 %v7791, %v7791
    %v8432 = vpack.c.bf16 %v7793, %v7793
    %v8433 = vpack.c.bf16 %v7796, %v7796
    %v8434 = vpack.c.bf16 %v7798, %v7798
    %v8435 = vpack.c.bf16 %v7801, %v7801
    %v8436 = vpack.c.bf16 %v7803, %v7803
    %v8437 = vpack.c.bf16 %v7806, %v7806
    %v8438 = vpack.c.bf16 %v7808, %v7808
    %v8439 = vpack.c.bf16 %v7811, %v7811
    %v8440 = vpack.c.bf16 %v7813, %v7813
    %v8441 = vpack.c.bf16 %v7816, %v7816
    %v8442 = vpack.c.bf16 %v7818, %v7818
    %v8443 = vpack.c.bf16 %v7821, %v7821
    %v8444 = vpack.c.bf16 %v7823, %v7823
    %v8445 = vpack.c.bf16 %v7826, %v7826
    %v8446 = vpack.c.bf16 %v7828, %v7828
    %v8447 = vpack.c.bf16 %v7831, %v7831
    %v8448 = vpack.c.bf16 %v7833, %v7833
    %v8449 = vpack.c.bf16 %v7836, %v7836
    %v8450 = vpack.c.bf16 %v7838, %v7838
    %v8451 = vpack.c.bf16 %v7841, %v7841
    %v8452 = vpack.c.bf16 %v7843, %v7843
    %v8453 = vpack.c.bf16 %v7846, %v7846
    %v8454 = vpack.c.bf16 %v7848, %v7848
    %8455 = vst [vmem:[#allocation6] sm:$0xf] %v8391
    %8456 = vst [vmem:[#allocation6 + $0x4] sm:$0xf] %v8392
    %8457 = vst [vmem:[#allocation6 + $0x8] sm:$0xf] %v8393
    %8458 = vst [vmem:[#allocation6 + $0xc] sm:$0xf] %v8394
    %8459 = vst [vmem:[#allocation6 + $0x10] sm:$0xf] %v8395
    %8460 = vst [vmem:[#allocation6 + $0x14] sm:$0xf] %v8396
    %8461 = vst [vmem:[#allocation6 + $0x18] sm:$0xf] %v8397
    %8462 = vst [vmem:[#allocation6 + $0x1c] sm:$0xf] %v8398
    %8463 = vst [vmem:[#allocation6 + $0x20] sm:$0xf] %v8399
    %8464 = vst [vmem:[#allocation6 + $0x24] sm:$0xf] %v8400
    %8465 = vst [vmem:[#allocation6 + $0x28] sm:$0xf] %v8401
    %8466 = vst [vmem:[#allocation6 + $0x2c] sm:$0xf] %v8402
    %8467 = vst [vmem:[#allocation6 + $0x30] sm:$0xf] %v8403
    %8468 = vst [vmem:[#allocation6 + $0x34] sm:$0xf] %v8404
    %8469 = vst [vmem:[#allocation6 + $0x38] sm:$0xf] %v8405
    %8470 = vst [vmem:[#allocation6 + $0x3c] sm:$0xf] %v8406
    %8471 = vst [vmem:[#allocation6 + $0x40] sm:$0xf] %v8407
    %8472 = vst [vmem:[#allocation6 + $0x44] sm:$0xf] %v8408
    %8473 = vst [vmem:[#allocation6 + $0x48] sm:$0xf] %v8409
    %8474 = vst [vmem:[#allocation6 + $0x4c] sm:$0xf] %v8410
    %8475 = vst [vmem:[#allocation6 + $0x50] sm:$0xf] %v8411
    %8476 = vst [vmem:[#allocation6 + $0x54] sm:$0xf] %v8412
    %8477 = vst [vmem:[#allocation6 + $0x58] sm:$0xf] %v8413
    %8478 = vst [vmem:[#allocation6 + $0x5c] sm:$0xf] %v8414
    %8479 = vst [vmem:[#allocation6 + $0x60] sm:$0xf] %v8415
    %8480 = vst [vmem:[#allocation6 + $0x64] sm:$0xf] %v8416
    %8481 = vst [vmem:[#allocation6 + $0x68] sm:$0xf] %v8417
    %8482 = vst [vmem:[#allocation6 + $0x6c] sm:$0xf] %v8418
    %8483 = vst [vmem:[#allocation6 + $0x70] sm:$0xf] %v8419
    %8484 = vst [vmem:[#allocation6 + $0x74] sm:$0xf] %v8420
    %8485 = vst [vmem:[#allocation6 + $0x78] sm:$0xf] %v8421
    %8486 = vst [vmem:[#allocation6 + $0x7c] sm:$0xf] %v8422
    %8487 = vst [vmem:[#allocation6 + $0x80] sm:$0xf] %v8423
    %8488 = vst [vmem:[#allocation6 + $0x84] sm:$0xf] %v8424
    %8489 = vst [vmem:[#allocation6 + $0x88] sm:$0xf] %v8425
    %8490 = vst [vmem:[#allocation6 + $0x8c] sm:$0xf] %v8426
    %8491 = vst [vmem:[#allocation6 + $0x90] sm:$0xf] %v8427
    %8492 = vst [vmem:[#allocation6 + $0x94] sm:$0xf] %v8428
    %8493 = vst [vmem:[#allocation6 + $0x98] sm:$0xf] %v8429
    %8494 = vst [vmem:[#allocation6 + $0x9c] sm:$0xf] %v8430
    %8495 = vst [vmem:[#allocation6 + $0xa0] sm:$0xf] %v8431
    %8496 = vst [vmem:[#allocation6 + $0xa4] sm:$0xf] %v8432
    %8497 = vst [vmem:[#allocation6 + $0xa8] sm:$0xf] %v8433
    %8498 = vst [vmem:[#allocation6 + $0xac] sm:$0xf] %v8434
    %8499 = vst [vmem:[#allocation6 + $0xb0] sm:$0xf] %v8435
    %8500 = vst [vmem:[#allocation6 + $0xb4] sm:$0xf] %v8436
    %8501 = vst [vmem:[#allocation6 + $0xb8] sm:$0xf] %v8437
    %8502 = vst [vmem:[#allocation6 + $0xbc] sm:$0xf] %v8438
    %8503 = vst [vmem:[#allocation6 + $0xc0] sm:$0xf] %v8439
    %8504 = vst [vmem:[#allocation6 + $0xc4] sm:$0xf] %v8440
    %8505 = vst [vmem:[#allocation6 + $0xc8] sm:$0xf] %v8441
    %8506 = vst [vmem:[#allocation6 + $0xcc] sm:$0xf] %v8442
    %8507 = vst [vmem:[#allocation6 + $0xd0] sm:$0xf] %v8443
    %8508 = vst [vmem:[#allocation6 + $0xd4] sm:$0xf] %v8444
    %8509 = vst [vmem:[#allocation6 + $0xd8] sm:$0xf] %v8445
    %8510 = vst [vmem:[#allocation6 + $0xdc] sm:$0xf] %v8446
    %8511 = vst [vmem:[#allocation6 + $0xe0] sm:$0xf] %v8447
    %8512 = vst [vmem:[#allocation6 + $0xe4] sm:$0xf] %v8448
    %8513 = vst [vmem:[#allocation6 + $0xe8] sm:$0xf] %v8449
    %8514 = vst [vmem:[#allocation6 + $0xec] sm:$0xf] %v8450
    %8515 = vst [vmem:[#allocation6 + $0xf0] sm:$0xf] %v8451
    %8516 = vst [vmem:[#allocation6 + $0xf4] sm:$0xf] %v8452
    %8517 = vst [vmem:[#allocation6 + $0xf8] sm:$0xf] %v8453
    %8518 = vst [vmem:[#allocation6 + $0xfc] sm:$0xf] %v8454
    // Predicated region
    $region10: #{tpu_custom_call.1} parent=1 // pred_check
      _
    $region11: #{tpu_custom_call.1} parent=1 // pred_check_branch
      %8520 = sbr.rel (0) target = $region13
    $region12: #{tpu_custom_call.1} parent=1 // pred_region
      %8522 = vsyncadd [#allocation5], 0
      %s8523 = sshll.u32 [#allocation4], 4
      %s8524 = int_to_ptr.vmem [resolvable:$true] %s8523
      %s8525 = sshll.u32 %s2, 4
      %s8526 = int_to_ptr.hbm [resolvable:$true] %s8525
      %8531 = dma.vmem_to_hbm [thread:$0]  %s8524, 4096, %s8526, [#allocation5], 64, 64, 4
    $region13: #{tpu_custom_call.1} parent=1 // pred_fallthru
      _
    // Predicated region
    $region14: #{tpu_custom_call.1} parent=1 // pred_check
      _
    $region15: #{tpu_custom_call.1} parent=1 // pred_check_branch
      %8533 = sbr.rel (0) target = $region17
    $region16: #{tpu_custom_call.1} parent=1 // pred_region
      %8535 = vsyncadd [#allocation7], 0
      %s8536 = sshll.u32 [#allocation6], 4
      %s8537 = int_to_ptr.vmem [resolvable:$true] %s8536
      %s8538 = sshll.u32 %s3, 4
      %s8539 = int_to_ptr.hbm [resolvable:$true] %s8538
      %8544 = dma.vmem_to_hbm [thread:$0]  %s8537, 4096, %s8539, [#allocation7], 64, 64, 4
    $region17: #{tpu_custom_call.1} parent=1 // pred_fallthru
      _
    // Predicated region
    $region18: #{tpu_custom_call.1} parent=1 // pred_check
      _
    $region19: #{tpu_custom_call.1} parent=1 // pred_check_branch
      %8546 = sbr.rel (0) target = $region21
    $region20: #{tpu_custom_call.1} parent=1 // pred_region
      %8548 = vsyncadd [#allocation7], 0
      %s8550 = sshll.u32 [#allocation8], 4
      %s8551 = int_to_ptr.vmem [resolvable:$true] %s8550
      %s8552 = sshll.u32 %s4, 4
      %s8553 = int_to_ptr.hbm [resolvable:$true] %s8552
      %8555 = dma.vmem_to_hbm [thread:$0]  %s8551, 64, %s8553, [#allocation7]
    $region21: #{tpu_custom_call.1} parent=1 // pred_fallthru
      _
    // Predicated region
    $region22: #{tpu_custom_call.1} parent=1 // pred_check
      _
    $region23: #{tpu_custom_call.1} parent=1 // pred_check_branch
      %8557 = sbr.rel (0) target = $region25
    $region24: #{tpu_custom_call.1} parent=1 // pred_region
      %8559 = dma.done [#allocation5], 4096
    $region25: #{tpu_custom_call.1} parent=1 // pred_fallthru
      _
    // Predicated region
    $region26: #{tpu_custom_call.1} parent=1 // pred_check
      _
    $region27: #{tpu_custom_call.1} parent=1 // pred_check_branch
      %8561 = sbr.rel (0) target = $region29
    $region28: #{tpu_custom_call.1} parent=1 // pred_region
      %8563 = dma.done [#allocation7], 4096
    $region29: #{tpu_custom_call.1} parent=1 // pred_fallthru
      _
    // Predicated region
    $region30: #{tpu_custom_call.1} parent=1 // pred_check
      _
    $region31: #{tpu_custom_call.1} parent=1 // pred_check_branch
      %8565 = sbr.rel (0) target = $region33
    $region32: #{tpu_custom_call.1} parent=1 // pred_region
      %8567 = dma.done [#allocation7], 64
    $region33: #{tpu_custom_call.1} parent=1 // pred_fallthru
      _
    %8568 = vsyncpa [#allocation5], 1
    %8569 = vsyncpa [#allocation7], 1

</llo_original>
